<compile_context>
chip_gen: v5e
topology: v5e:2x2
jax: 0.10.0
libtpu: 0.0.40
codegen_flags: <defaults>
</compile_context>

<pallas_src>
import numpy as np
import jax
import jax.numpy as jnp
from jax import lax
from jax.experimental import pallas as pl
from jax.experimental.pallas import tpu as pltpu

NMS_RADIUS = 4            # the log-doubling pooling tree below is hard-coded for r=4
BN_EPS = 1e-5
GRID = 8                  # SuperPoint cell size (pixel-shuffle factor, fixed by module)
VMEM_LIMIT = 48 * 1024 * 1024   # explicit budget: fits v7x (64 MiB) / v6e / v5e


def _mosaic(*sems):
    return pltpu.CompilerParams(dimension_semantics=sems,
                                vmem_limit_bytes=VMEM_LIMIT)


def _pick_tile_rows(H, W):
    """Rows of cells per grid step; tile = TH*W matmul rows (multiple of 8)."""
    for th in (16, 12, 10, 8, 6, 5, 4, 3, 2, 1):
        if H % th == 0 and (th * W) % 8 == 0:
            return th
    return H


# --------------------------------------------------------------------------
# Kernel A: 3x3 conv (in-kernel im2col: 9 shifted slices -> 9 MXU dots)
#           + bias + ReLU + per-tile BN_a partial stats (sum, sum-of-squares)
# --------------------------------------------------------------------------
def _conv3x3_relu_kernel(xp_ref, w_ref, b_ref, y_ref, s1_ref, s2_ref):
    # xp_ref: (1, H+2, W+2, Cin) f32, resident per batch element
    # w_ref : (9, Cin, 256) bf16   b_ref: (1, 256) f32
    # y_ref : (1, TH*W, 256) bf16  s1/s2: (1, 1, 1, 256) f32
    th_w = y_ref.shape[1]
    wp2 = xp_ref.shape[2]
    w_cells = wp2 - 2
    th = th_w // w_cells
    row0 = pl.program_id(1) * th

    acc = jnp.zeros((th_w, 256), jnp.float32)
    for ky in range(3):
        rows = xp_ref[0, pl.ds(row0 + ky, th), :, :]            # (TH, W+2, Cin) f32
        for kx in range(3):
            patch = rows[:, kx:kx + w_cells, :]                 # (TH, W, Cin)
            patch = patch.reshape(th_w, rows.shape[2]).astype(jnp.bfloat16)
            acc = acc + jnp.dot(patch, w_ref[ky * 3 + kx],
                                preferred_element_type=jnp.float32)
    acc = jnp.maximum(acc + b_ref[...], 0.0)                    # bias + ReLU (f32)
    y_ref[0] = acc.astype(y_ref.dtype)
    s1_ref[0, 0] = jnp.sum(acc, axis=0, keepdims=True)
    s2_ref[0, 0] = jnp.sum(acc * acc, axis=0, keepdims=True)


def conv3x3_relu(x_pad, w_taps, bias, H, W, TH):
    B, Cin = x_pad.shape[0], x_pad.shape[3]
    T = H // TH
    return pl.pallas_call(
        _conv3x3_relu_kernel,
        out_shape=(jax.ShapeDtypeStruct((B, H * W, 256), jnp.bfloat16),
                   jax.ShapeDtypeStruct((B, T, 1, 256), jnp.float32),
                   jax.ShapeDtypeStruct((B, T, 1, 256), jnp.float32)),
        grid_spec=pltpu.PrefetchScalarGridSpec(
            num_scalar_prefetch=0, grid=(B, T),
            in_specs=[pl.BlockSpec((1, H + 2, W + 2, Cin), lambda b, t: (b, 0, 0, 0)),
                      pl.BlockSpec((9, Cin, 256), lambda b, t: (0, 0, 0)),
                      pl.BlockSpec((1, 256), lambda b, t: (0, 0))],
            out_specs=[pl.BlockSpec((1, TH * W, 256), lambda b, t: (b, t, 0)),
                       pl.BlockSpec((1, 1, 1, 256), lambda b, t: (b, t, 0, 0)),
                       pl.BlockSpec((1, 1, 1, 256), lambda b, t: (b, t, 0, 0))]),
        compiler_params=_mosaic("parallel", "parallel"),
    )(x_pad, w_taps, bias)


# --------------------------------------------------------------------------
# Kernel B: (BN_a-folded) 1x1 conv as a pure matmul, lane-dense padded output
#           + per-tile BN_b partial stats
# --------------------------------------------------------------------------
def _conv1x1_kernel(y_ref, w_ref, b_ref, z_ref, s1_ref, s2_ref):
    z = jnp.dot(y_ref[0], w_ref[...], preferred_element_type=jnp.float32) + b_ref[...]
    z_ref[0] = z                                                # (TH*W, 128) f32
    s1_ref[0, 0] = jnp.sum(z, axis=0, keepdims=True)
    s2_ref[0, 0] = jnp.sum(z * z, axis=0, keepdims=True)


def conv1x1(y1, w2p, b2p, TH_W):
    B, HW, _ = y1.shape
    Cp = w2p.shape[1]
    T = HW // TH_W
    return pl.pallas_call(
        _conv1x1_kernel,
        out_shape=(jax.ShapeDtypeStruct((B, HW, Cp), jnp.float32),
                   jax.ShapeDtypeStruct((B, T, 1, Cp), jnp.float32),
                   jax.ShapeDtypeStruct((B, T, 1, Cp), jnp.float32)),
        grid_spec=pltpu.PrefetchScalarGridSpec(
            num_scalar_prefetch=0, grid=(B, T),
            in_specs=[pl.BlockSpec((1, TH_W, 256), lambda b, t: (b, t, 0)),
                      pl.BlockSpec((256, Cp), lambda b, t: (0, 0)),
                      pl.BlockSpec((1, Cp), lambda b, t: (0, 0))],
            out_specs=[pl.BlockSpec((1, TH_W, Cp), lambda b, t: (b, t, 0)),
                       pl.BlockSpec((1, 1, 1, Cp), lambda b, t: (b, t, 0, 0)),
                       pl.BlockSpec((1, 1, 1, Cp), lambda b, t: (b, t, 0, 0))]),
        compiler_params=_mosaic("parallel", "parallel"),
    )(y1, w2p, b2p)


# --------------------------------------------------------------------------
# Kernel C: BN_b affine + channel softmax (pad lanes masked to -inf) + drop dustbin
# --------------------------------------------------------------------------
def bn_softmax(z, sbp, tbp, TH_W, n_real, n_keep):
    B, HW, Cp = z.shape
    T = HW // TH_W

    def kern(z_ref, sb_ref, tb_ref, o_ref):
        zz = z_ref[0] * sb_ref[...] + tb_ref[...]               # (R, 128)
        col = lax.broadcasted_iota(jnp.int32, zz.shape, 1)
        zz = jnp.where(col < n_real, zz, -jnp.inf)              # mask pad lanes
        m = jnp.max(zz, axis=-1, keepdims=True)
        e = jnp.exp(zz - m)
        s = jnp.sum(e, axis=-1, keepdims=True)
        p = e * pl.reciprocal(s, approx=False)
        o_ref[0] = p[:, :n_keep]                                # drop dustbin + pad

    return pl.pallas_call(
        kern,
        out_shape=jax.ShapeDtypeStruct((B, HW, n_keep), jnp.float32),
        grid_spec=pltpu.PrefetchScalarGridSpec(
            num_scalar_prefetch=0, grid=(B, T),
            in_specs=[pl.BlockSpec((1, TH_W, Cp), lambda b, t: (b, t, 0)),
                      pl.BlockSpec((1, Cp), lambda b, t: (0, 0)),
                      pl.BlockSpec((1, Cp), lambda b, t: (0, 0))],
            out_specs=pl.BlockSpec((1, TH_W, n_keep), lambda b, t: (b, t, 0))),
        compiler_params=_mosaic("parallel", "parallel"),
    )(z, sbp, tbp)


# --------------------------------------------------------------------------
# Kernel D: simple_nms (radius-4 NMS, 2 refinement passes)
#   log-doubling max pool (shifts 1,2,4 per direction) + hoisted edge masks
# --------------------------------------------------------------------------
def _pool_axis(x, axis, masks, n):
    neg = jnp.float32(-jnp.inf)

    def sh(v, s):  # v[i + s] with out-of-range -> -inf (masks precomputed)
        return jnp.where(masks[s], pltpu.roll(v, shift=(-s) % n, axis=axis), neg)

    r1 = jnp.maximum(x, sh(x, 1))          # [i, i+1]
    r2 = jnp.maximum(r1, sh(r1, 2))        # [i, i+3]
    rp = jnp.maximum(r2, sh(x, 4))         # [i, i+4]
    l1 = jnp.maximum(x, sh(x, -1))         # [i-1, i]
    l2 = jnp.maximum(l1, sh(l1, -2))       # [i-3, i]
    lp = jnp.maximum(l2, sh(x, -4))        # [i-4, i]
    return jnp.maximum(rp, lp)             # [i-4, i+4]


def _simple_nms_kernel(s_ref, o_ref):
    x = s_ref[0]                                                # (H*8, W*8)
    n0, n1 = x.shape
    idx0 = lax.broadcasted_iota(jnp.int32, x.shape, 0)
    idx1 = lax.broadcasted_iota(jnp.int32, x.shape, 1)
    shifts = (1, 2, 4, -1, -2, -4)
    masks0 = {s: (idx0 + s >= 0) & (idx0 + s < n0) for s in shifts}
    masks1 = {s: (idx1 + s >= 0) & (idx1 + s < n1) for s in shifts}

    def pool(v):
        return _pool_axis(_pool_axis(v, 1, masks1, n1), 0, masks0, n0)

    zeros = jnp.zeros_like(x)
    max_mask = x == pool(x)
    for _ in range(2):
        supp_mask = pool(max_mask.astype(jnp.float32)) > 0
        supp_scores = jnp.where(supp_mask, zeros, x)
        new_max_mask = supp_scores == pool(supp_scores)
        max_mask = max_mask | (new_max_mask & jnp.logical_not(supp_mask))
    o_ref[0] = jnp.where(max_mask, x, zeros)


def simple_nms_pallas(scores):
    # TODO(synk): for very large images on v7x, row-tile this kernel with a 12-row
    # halo so it shards across both TensorCores; single whole-image block here.
    B, Hp, Wp = scores.shape
    return pl.pallas_call(
        _simple_nms_kernel,
        out_shape=jax.ShapeDtypeStruct((B, Hp, Wp), jnp.float32),
        grid_spec=pltpu.PrefetchScalarGridSpec(
            num_scalar_prefetch=0, grid=(B,),
            in_specs=[pl.BlockSpec((1, Hp, Wp), lambda b: (b, 0, 0))],
            out_specs=pl.BlockSpec((1, Hp, Wp), lambda b: (b, 0, 0))),
        compiler_params=_mosaic("parallel"),
    )(scores)


# --------------------------------------------------------------------------
# Parameters (deterministic synthetic init; torch layouts kept for the reference)
# --------------------------------------------------------------------------
def init_params(key, cin, grid_size=GRID):
    c_out = grid_size * grid_size + 1                           # 65
    ks = jax.random.split(key, 8)
    wa = jax.random.normal(ks[0], (256, cin, 3, 3), jnp.float32) / np.sqrt(cin * 9)
    ba = jax.random.normal(ks[1], (256,), jnp.float32) * 0.05
    wb = jax.random.normal(ks[2], (c_out, 256, 1, 1), jnp.float32) / np.sqrt(256.0)
    bb = jax.random.normal(ks[3], (c_out,), jnp.float32) * 0.05
    gamma_a = 1.0 + 0.1 * jax.random.normal(ks[4], (256,), jnp.float32)
    beta_a = 0.1 * jax.random.normal(ks[5], (256,), jnp.float32)
    gamma_b = 1.0 + 0.1 * jax.random.normal(ks[6], (c_out,), jnp.float32)
    beta_b = 0.1 * jax.random.normal(ks[7], (c_out,), jnp.float32)
    # OIHW -> (ky, kx, Cin, 256) -> (9, Cin, 256); tap index = ky*3 + kx
    wa_taps = jnp.transpose(wa, (2, 3, 1, 0)).reshape(9, cin, 256).astype(jnp.bfloat16)
    wb_mat = wb[:, :, 0, 0].T                                   # (256, 65) f32
    return dict(wa_oihw=wa, wb_oihw=wb, wa_taps=wa_taps,
                ba=ba.reshape(1, 256), bb=bb, wb_mat=wb_mat,
                gamma_a=gamma_a, beta_a=beta_a, gamma_b=gamma_b, beta_b=beta_b)


# --------------------------------------------------------------------------
# Forward pass (dense part -> Pallas kernels)
# --------------------------------------------------------------------------
@jax.jit
def detector_head_forward(params, x_nchw):
    B, Cin, H, W = x_nchw.shape
    assert W % 8 == 0, "kernel tiling assumes the cell-grid width is a multiple of 8"
    TH = _pick_tile_rows(H, W)
    n_real = GRID * GRID + 1                                    # 65 (incl. dustbin)
    n_keep = GRID * GRID                                        # 64
    Cp = 128                                                    # lane-dense pad width

    # glue: NCHW -> padded NHWC (f32; matmul operands are cast to bf16 in-kernel)
    x = jnp.transpose(x_nchw, (0, 2, 3, 1)).astype(jnp.float32)
    x_pad = jnp.pad(x, ((0, 0), (1, 1), (1, 1), (0, 0)))

    # kernel A: 3x3 conv + bias + ReLU + BN_a partial stats
    y1, a_sum, a_ssq = conv3x3_relu(x_pad, params['wa_taps'], params['ba'], H, W, TH)

    # BN_a (training-mode batch stats, biased var) folded into the 1x1 weights
    n_el = B * H * W
    mean_a = jnp.sum(a_sum, axis=(0, 1, 2)) / n_el
    var_a = jnp.sum(a_ssq, axis=(0, 1, 2)) / n_el - mean_a * mean_a
    sa = params['gamma_a'] / jnp.sqrt(var_a + BN_EPS)
    ta = params['beta_a'] - mean_a * sa
    w2 = sa[:, None] * params['wb_mat']                         # (256, 65)
    b2 = ta @ params['wb_mat'] + params['bb']                   # (65,)
    w2p = jnp.pad(w2, ((0, 0), (0, Cp - n_real))).astype(jnp.bfloat16)
    b2p = jnp.pad(b2, (0, Cp - n_real)).reshape(1, Cp)

    # kernel B: folded 1x1 conv (pure matmul) + BN_b partial stats
    z, b_sum, b_ssq = conv1x1(y1, w2p, b2p, TH * W)

    mean_b = jnp.sum(b_sum[..., :n_real], axis=(0, 1, 2)) / n_el
    var_b = jnp.sum(b_ssq[..., :n_real], axis=(0, 1, 2)) / n_el - mean_b * mean_b
    sb = params['gamma_b'] / jnp.sqrt(var_b + BN_EPS)
    tb = params['beta_b'] - mean_b * sb
    sbp = jnp.pad(sb, (0, Cp - n_real)).reshape(1, Cp)
    tbp = jnp.pad(tb, (0, Cp - n_real)).reshape(1, Cp)

    # kernel C: BN_b affine + softmax + drop dustbin
    p = bn_softmax(z, sbp, tbp, TH * W, n_real, n_keep)         # (B, HW, 64)

    # cell -> pixel rearrangement (XLA glue, matches the torch permute/reshape chain)
    # TODO(synk): could be fused into kernel C's out_spec for a lane-dense (W*8)-wide
    # store; kept in XLA to avoid a fragile in-kernel (TH,W,8,8)->(TH*8,W*8) relayout.
    sc = p.reshape(B, H, W, GRID, GRID)
    sc = sc.transpose(0, 1, 3, 2, 4).reshape(B, H * GRID, W * GRID)

    nms = simple_nms_pallas(sc)
    return nms, sc


# --------------------------------------------------------------------------
# Keypoint extraction (host): nonzero / remove_borders / top_k / flip.
# TODO(synk): dynamically-shaped per-image keypoint lists have no static-shape
# Pallas/JAX equivalent; extraction is done on host with numpy.
# --------------------------------------------------------------------------
def extract_keypoints(nms_np, border, h, w, curr_max_kp, curr_key_thresh):
    keypoints, scores = [], []
    for s in nms_np:
        kp = np.argwhere(s > curr_key_thresh)                   # (N, 2) as (y, x)
        sc = s[kp[:, 0], kp[:, 1]]
        mask = ((kp[:, 0] >= border) & (kp[:, 0] < h * 8 - border) &
                (kp[:, 1] >= border) & (kp[:, 1] < w * 8 - border))
        kp, sc = kp[mask], sc[mask]
        if 0 <= curr_max_kp < len(kp):
            idx = np.argsort(-sc)[:curr_max_kp]
            kp, sc = kp[idx], sc[idx]
        keypoints.append(kp[:, ::-1].astype(np.float32))        # flip -> (x, y)
        scores.append(sc)
    return keypoints, scores


# --------------------------------------------------------------------------
# Pure-JAX references for verification
# --------------------------------------------------------------------------
def ref_pixel_scores(params, x_nchw):
    c65 = params['bb'].shape[0]
    out = lax.conv_general_dilated(x_nchw, params['wa_oihw'], (1, 1), 'SAME',
                                   dimension_numbers=('NCHW', 'OIHW', 'NCHW'),
                                   precision=lax.Precision.HIGHEST)
    out = jnp.maximum(out + params['ba'].reshape(1, 256, 1, 1), 0.0)
    mean = out.mean(axis=(0, 2, 3), keepdims=True)
    var = out.var(axis=(0, 2, 3), keepdims=True)
    out = ((out - mean) / jnp.sqrt(var + BN_EPS) * params['gamma_a'].reshape(1, -1, 1, 1)
           + params['beta_a'].reshape(1, -1, 1, 1))
    out = lax.conv_general_dilated(out, params['wb_oihw'], (1, 1), 'VALID',
                                   dimension_numbers=('NCHW', 'OIHW', 'NCHW'),
                                   precision=lax.Precision.HIGHEST)
    out = out + params['bb'].reshape(1, c65, 1, 1)
    mean = out.mean(axis=(0, 2, 3), keepdims=True)
    var = out.var(axis=(0, 2, 3), keepdims=True)
    out = ((out - mean) / jnp.sqrt(var + BN_EPS) * params['gamma_b'].reshape(1, -1, 1, 1)
           + params['beta_b'].reshape(1, -1, 1, 1))
    sc = jax.nn.softmax(out, axis=1)[:, :-1]
    b, _, h, w = sc.shape
    sc = sc.transpose(0, 2, 3, 1).reshape(b, h, w, 8, 8)
    sc = sc.transpose(0, 1, 3, 2, 4).reshape(b, h * 8, w * 8)
    return sc


def ref_simple_nms(scores, radius):
    def mp(x):
        return lax.reduce_window(x, -jnp.inf, lax.max,
                                 (1, 2 * radius + 1, 2 * radius + 1), (1, 1, 1),
                                 [(0, 0), (radius, radius), (radius, radius)])
    zeros = jnp.zeros_like(scores)
    max_mask = scores == mp(scores)
    for _ in range(2):
        supp_mask = mp(max_mask.astype(jnp.float32)) > 0
        supp_scores = jnp.where(supp_mask, zeros, scores)
        new_max_mask = supp_scores == mp(supp_scores)
        max_mask = max_mask | (new_max_mask & ~supp_mask)
    return jnp.where(max_mask, scores, zeros)


# --------------------------------------------------------------------------
if __name__ == "__main__":
    key = jax.random.PRNGKey(0)
    k_x, k_p = jax.random.split(key)

    B, Cin, H, W = 2, 8, 8, 8              # coarse feature map; pixel map = 64x64
    config = {'remove_borders': 4}
    curr_max_kp = 50
    curr_key_thresh = 0.01

    x = jax.random.normal(k_x, (B, Cin, H, W), jnp.float32)
    params = init_params(k_p, Cin, GRID)

    nms_scores, pixel_scores = detector_head_forward(params, x)
    nms_scores = jax.block_until_ready(nms_scores)

    # correctness checks against pure-JAX references
    ref_sc = ref_pixel_scores(params, x)
    np.testing.assert_allclose(np.asarray(pixel_scores), np.asarray(ref_sc), atol=2e-2)
    ref_nms = ref_simple_nms(pixel_scores, NMS_RADIUS)
    np.testing.assert_allclose(np.asarray(nms_scores), np.asarray(ref_nms), atol=1e-6)

    keypoints, kp_scores = extract_keypoints(np.asarray(nms_scores),
                                             config['remove_borders'],
                                             H, W, curr_max_kp, curr_key_thresh)
    assert len(keypoints) == B and all(k.shape[1] == 2 for k in keypoints if len(k))

    print("KERNEL_OK")
</pallas_src>

<mosaic_0001>
module attributes {stable_mosaic.version = 11 : i64} {
  func.func @_conv3x3_relu_kernel(%arg0: i32, %arg1: i32, %arg2: memref<1x10x10x8xf32, #tpu.memory_space<vmem>>, %arg3: memref<9x8x256xbf16, #tpu.memory_space<vmem>>, %arg4: memref<1x256xf32, #tpu.memory_space<vmem>>, %arg5: memref<1x64x256xbf16, #tpu.memory_space<vmem>>, %arg6: memref<1x1x1x256xf32, #tpu.memory_space<vmem>>, %arg7: memref<1x1x1x256xf32, #tpu.memory_space<vmem>>) attributes {dimension_semantics = [#tpu.dimension_semantics<parallel>, #tpu.dimension_semantics<parallel>], iteration_bounds = array<i64: 2, 1>, scalar_prefetch = 0 : i64, scratch_operands = 0 : i64, tpu.core_type = #tpu.core_type<tc>, window_params = [{transform_indices = @transform_0, window_bounds = array<i64: 1, 10, 10, 8>}, {pipeline_mode = #tpu.pipeline_mode<synchronous>, transform_indices = @transform_1, window_bounds = array<i64: 9, 8, 256>}, {pipeline_mode = #tpu.pipeline_mode<synchronous>, transform_indices = @transform_2, window_bounds = array<i64: 1, 256>}, {transform_indices = @transform_3, window_bounds = array<i64: 1, 64, 256>}, {transform_indices = @transform_4, window_bounds = array<i64: 1, 1, 1, 256>}, {transform_indices = @transform_5, window_bounds = array<i64: 1, 1, 1, 256>}]} {
    %c8_i32 = arith.constant 8 : i32
    %0 = arith.muli %arg1, %c8_i32 : i32
    %cst = arith.constant 0.000000e+00 : f32
    %1 = vector.broadcast %cst : f32 to vector<64x256xf32>
    %c0_i32 = arith.constant 0 : i32
    %2 = arith.addi %0, %c0_i32 : i32
    %c0 = arith.constant 0 : index
    %3 = arith.index_cast %2 : i32 to index
    %c0_0 = arith.constant 0 : index
    %c0_1 = arith.constant 0 : index
    %4 = vector.load %arg2[%c0, %3, %c0_0, %c0_1] : memref<1x10x10x8xf32, #tpu.memory_space<vmem>>, vector<1x8x10x8xf32>
    %5 = vector.shape_cast %4 : vector<1x8x10x8xf32> to vector<8x10x8xf32>
    %6 = vector.extract_strided_slice %5 {offsets = [0, 0, 0], sizes = [8, 8, 8], strides = [1, 1, 1]} : vector<8x10x8xf32> to vector<8x8x8xf32>
    %7 = vector.shape_cast %6 : vector<8x8x8xf32> to vector<64x8xf32>
    %8 = arith.truncf %7 : vector<64x8xf32> to vector<64x8xbf16>
    %c0_2 = arith.constant 0 : index
    %c0_3 = arith.constant 0 : index
    %c0_4 = arith.constant 0 : index
    %9 = vector.load %arg3[%c0_2, %c0_3, %c0_4] : memref<9x8x256xbf16, #tpu.memory_space<vmem>>, vector<1x8x256xbf16>
    %10 = vector.shape_cast %9 : vector<1x8x256xbf16> to vector<8x256xbf16>
    %cst_5 = arith.constant dense<0.000000e+00> : vector<64x256xf32>
    %11 = tpu.matmul %8, %10, %cst_5 {dimension_numbers = #tpu.dot_dimension_numbers<[1], [0], [0], [1], [0, 0, 1, 1], [], []>} : vector<64x8xbf16>, vector<8x256xbf16>, vector<64x256xf32> -> vector<64x256xf32>
    %12 = arith.addf %1, %11 : vector<64x256xf32>
    %13 = vector.extract_strided_slice %5 {offsets = [0, 1, 0], sizes = [8, 8, 8], strides = [1, 1, 1]} : vector<8x10x8xf32> to vector<8x8x8xf32>
    %14 = vector.shape_cast %13 : vector<8x8x8xf32> to vector<64x8xf32>
    %15 = arith.truncf %14 : vector<64x8xf32> to vector<64x8xbf16>
    %c1 = arith.constant 1 : index
    %c0_6 = arith.constant 0 : index
    %c0_7 = arith.constant 0 : index
    %16 = vector.load %arg3[%c1, %c0_6, %c0_7] : memref<9x8x256xbf16, #tpu.memory_space<vmem>>, vector<1x8x256xbf16>
    %17 = vector.shape_cast %16 : vector<1x8x256xbf16> to vector<8x256xbf16>
    %cst_8 = arith.constant dense<0.000000e+00> : vector<64x256xf32>
    %18 = tpu.matmul %15, %17, %cst_8 {dimension_numbers = #tpu.dot_dimension_numbers<[1], [0], [0], [1], [0, 0, 1, 1], [], []>} : vector<64x8xbf16>, vector<8x256xbf16>, vector<64x256xf32> -> vector<64x256xf32>
    %19 = arith.addf %12, %18 : vector<64x256xf32>
    %20 = vector.extract_strided_slice %5 {offsets = [0, 2, 0], sizes = [8, 8, 8], strides = [1, 1, 1]} : vector<8x10x8xf32> to vector<8x8x8xf32>
    %21 = vector.shape_cast %20 : vector<8x8x8xf32> to vector<64x8xf32>
    %22 = arith.truncf %21 : vector<64x8xf32> to vector<64x8xbf16>
    %c2 = arith.constant 2 : index
    %c0_9 = arith.constant 0 : index
    %c0_10 = arith.constant 0 : index
    %23 = vector.load %arg3[%c2, %c0_9, %c0_10] : memref<9x8x256xbf16, #tpu.memory_space<vmem>>, vector<1x8x256xbf16>
    %24 = vector.shape_cast %23 : vector<1x8x256xbf16> to vector<8x256xbf16>
    %cst_11 = arith.constant dense<0.000000e+00> : vector<64x256xf32>
    %25 = tpu.matmul %22, %24, %cst_11 {dimension_numbers = #tpu.dot_dimension_numbers<[1], [0], [0], [1], [0, 0, 1, 1], [], []>} : vector<64x8xbf16>, vector<8x256xbf16>, vector<64x256xf32> -> vector<64x256xf32>
    %26 = arith.addf %19, %25 : vector<64x256xf32>
    %c1_i32 = arith.constant 1 : i32
    %27 = arith.addi %0, %c1_i32 : i32
    %c0_12 = arith.constant 0 : index
    %28 = arith.index_cast %27 : i32 to index
    %c0_13 = arith.constant 0 : index
    %c0_14 = arith.constant 0 : index
    %29 = vector.load %arg2[%c0_12, %28, %c0_13, %c0_14] : memref<1x10x10x8xf32, #tpu.memory_space<vmem>>, vector<1x8x10x8xf32>
    %30 = vector.shape_cast %29 : vector<1x8x10x8xf32> to vector<8x10x8xf32>
    %31 = vector.extract_strided_slice %30 {offsets = [0, 0, 0], sizes = [8, 8, 8], strides = [1, 1, 1]} : vector<8x10x8xf32> to vector<8x8x8xf32>
    %32 = vector.shape_cast %31 : vector<8x8x8xf32> to vector<64x8xf32>
    %33 = arith.truncf %32 : vector<64x8xf32> to vector<64x8xbf16>
    %c3 = arith.constant 3 : index
    %c0_15 = arith.constant 0 : index
    %c0_16 = arith.constant 0 : index
    %34 = vector.load %arg3[%c3, %c0_15, %c0_16] : memref<9x8x256xbf16, #tpu.memory_space<vmem>>, vector<1x8x256xbf16>
    %35 = vector.shape_cast %34 : vector<1x8x256xbf16> to vector<8x256xbf16>
    %cst_17 = arith.constant dense<0.000000e+00> : vector<64x256xf32>
    %36 = tpu.matmul %33, %35, %cst_17 {dimension_numbers = #tpu.dot_dimension_numbers<[1], [0], [0], [1], [0, 0, 1, 1], [], []>} : vector<64x8xbf16>, vector<8x256xbf16>, vector<64x256xf32> -> vector<64x256xf32>
    %37 = arith.addf %26, %36 : vector<64x256xf32>
    %38 = vector.extract_strided_slice %30 {offsets = [0, 1, 0], sizes = [8, 8, 8], strides = [1, 1, 1]} : vector<8x10x8xf32> to vector<8x8x8xf32>
    %39 = vector.shape_cast %38 : vector<8x8x8xf32> to vector<64x8xf32>
    %40 = arith.truncf %39 : vector<64x8xf32> to vector<64x8xbf16>
    %c4 = arith.constant 4 : index
    %c0_18 = arith.constant 0 : index
    %c0_19 = arith.constant 0 : index
    %41 = vector.load %arg3[%c4, %c0_18, %c0_19] : memref<9x8x256xbf16, #tpu.memory_space<vmem>>, vector<1x8x256xbf16>
    %42 = vector.shape_cast %41 : vector<1x8x256xbf16> to vector<8x256xbf16>
    %cst_20 = arith.constant dense<0.000000e+00> : vector<64x256xf32>
    %43 = tpu.matmul %40, %42, %cst_20 {dimension_numbers = #tpu.dot_dimension_numbers<[1], [0], [0], [1], [0, 0, 1, 1], [], []>} : vector<64x8xbf16>, vector<8x256xbf16>, vector<64x256xf32> -> vector<64x256xf32>
    %44 = arith.addf %37, %43 : vector<64x256xf32>
    %45 = vector.extract_strided_slice %30 {offsets = [0, 2, 0], sizes = [8, 8, 8], strides = [1, 1, 1]} : vector<8x10x8xf32> to vector<8x8x8xf32>
    %46 = vector.shape_cast %45 : vector<8x8x8xf32> to vector<64x8xf32>
    %47 = arith.truncf %46 : vector<64x8xf32> to vector<64x8xbf16>
    %c5 = arith.constant 5 : index
    %c0_21 = arith.constant 0 : index
    %c0_22 = arith.constant 0 : index
    %48 = vector.load %arg3[%c5, %c0_21, %c0_22] : memref<9x8x256xbf16, #tpu.memory_space<vmem>>, vector<1x8x256xbf16>
    %49 = vector.shape_cast %48 : vector<1x8x256xbf16> to vector<8x256xbf16>
    %cst_23 = arith.constant dense<0.000000e+00> : vector<64x256xf32>
    %50 = tpu.matmul %47, %49, %cst_23 {dimension_numbers = #tpu.dot_dimension_numbers<[1], [0], [0], [1], [0, 0, 1, 1], [], []>} : vector<64x8xbf16>, vector<8x256xbf16>, vector<64x256xf32> -> vector<64x256xf32>
    %51 = arith.addf %44, %50 : vector<64x256xf32>
    %c2_i32 = arith.constant 2 : i32
    %52 = arith.addi %0, %c2_i32 : i32
    %c0_24 = arith.constant 0 : index
    %53 = arith.index_cast %52 : i32 to index
    %c0_25 = arith.constant 0 : index
    %c0_26 = arith.constant 0 : index
    %54 = vector.load %arg2[%c0_24, %53, %c0_25, %c0_26] : memref<1x10x10x8xf32, #tpu.memory_space<vmem>>, vector<1x8x10x8xf32>
    %55 = vector.shape_cast %54 : vector<1x8x10x8xf32> to vector<8x10x8xf32>
    %56 = vector.extract_strided_slice %55 {offsets = [0, 0, 0], sizes = [8, 8, 8], strides = [1, 1, 1]} : vector<8x10x8xf32> to vector<8x8x8xf32>
    %57 = vector.shape_cast %56 : vector<8x8x8xf32> to vector<64x8xf32>
    %58 = arith.truncf %57 : vector<64x8xf32> to vector<64x8xbf16>
    %c6 = arith.constant 6 : index
    %c0_27 = arith.constant 0 : index
    %c0_28 = arith.constant 0 : index
    %59 = vector.load %arg3[%c6, %c0_27, %c0_28] : memref<9x8x256xbf16, #tpu.memory_space<vmem>>, vector<1x8x256xbf16>
    %60 = vector.shape_cast %59 : vector<1x8x256xbf16> to vector<8x256xbf16>
    %cst_29 = arith.constant dense<0.000000e+00> : vector<64x256xf32>
    %61 = tpu.matmul %58, %60, %cst_29 {dimension_numbers = #tpu.dot_dimension_numbers<[1], [0], [0], [1], [0, 0, 1, 1], [], []>} : vector<64x8xbf16>, vector<8x256xbf16>, vector<64x256xf32> -> vector<64x256xf32>
    %62 = arith.addf %51, %61 : vector<64x256xf32>
    %63 = vector.extract_strided_slice %55 {offsets = [0, 1, 0], sizes = [8, 8, 8], strides = [1, 1, 1]} : vector<8x10x8xf32> to vector<8x8x8xf32>
    %64 = vector.shape_cast %63 : vector<8x8x8xf32> to vector<64x8xf32>
    %65 = arith.truncf %64 : vector<64x8xf32> to vector<64x8xbf16>
    %c7 = arith.constant 7 : index
    %c0_30 = arith.constant 0 : index
    %c0_31 = arith.constant 0 : index
    %66 = vector.load %arg3[%c7, %c0_30, %c0_31] : memref<9x8x256xbf16, #tpu.memory_space<vmem>>, vector<1x8x256xbf16>
    %67 = vector.shape_cast %66 : vector<1x8x256xbf16> to vector<8x256xbf16>
    %cst_32 = arith.constant dense<0.000000e+00> : vector<64x256xf32>
    %68 = tpu.matmul %65, %67, %cst_32 {dimension_numbers = #tpu.dot_dimension_numbers<[1], [0], [0], [1], [0, 0, 1, 1], [], []>} : vector<64x8xbf16>, vector<8x256xbf16>, vector<64x256xf32> -> vector<64x256xf32>
    %69 = arith.addf %62, %68 : vector<64x256xf32>
    %70 = vector.extract_strided_slice %55 {offsets = [0, 2, 0], sizes = [8, 8, 8], strides = [1, 1, 1]} : vector<8x10x8xf32> to vector<8x8x8xf32>
    %71 = vector.shape_cast %70 : vector<8x8x8xf32> to vector<64x8xf32>
    %72 = arith.truncf %71 : vector<64x8xf32> to vector<64x8xbf16>
    %c8 = arith.constant 8 : index
    %c0_33 = arith.constant 0 : index
    %c0_34 = arith.constant 0 : index
    %73 = vector.load %arg3[%c8, %c0_33, %c0_34] : memref<9x8x256xbf16, #tpu.memory_space<vmem>>, vector<1x8x256xbf16>
    %74 = vector.shape_cast %73 : vector<1x8x256xbf16> to vector<8x256xbf16>
    %cst_35 = arith.constant dense<0.000000e+00> : vector<64x256xf32>
    %75 = tpu.matmul %72, %74, %cst_35 {dimension_numbers = #tpu.dot_dimension_numbers<[1], [0], [0], [1], [0, 0, 1, 1], [], []>} : vector<64x8xbf16>, vector<8x256xbf16>, vector<64x256xf32> -> vector<64x256xf32>
    %76 = arith.addf %69, %75 : vector<64x256xf32>
    %c0_36 = arith.constant 0 : index
    %c0_37 = arith.constant 0 : index
    %77 = vector.load %arg4[%c0_36, %c0_37] : memref<1x256xf32, #tpu.memory_space<vmem>>, vector<1x256xf32>
    %78 = vector.broadcast %77 : vector<1x256xf32> to vector<64x256xf32>
    %79 = arith.addf %76, %78 : vector<64x256xf32>
    %cst_38 = arith.constant 0.000000e+00 : f32
    %80 = vector.broadcast %cst_38 : f32 to vector<64x256xf32>
    %81 = arith.maximumf %79, %80 : vector<64x256xf32>
    %82 = arith.truncf %81 : vector<64x256xf32> to vector<64x256xbf16>
    %c0_39 = arith.constant 0 : index
    %c0_40 = arith.constant 0 : index
    %c0_41 = arith.constant 0 : index
    %83 = vector.load %arg5[%c0_39, %c0_40, %c0_41] : memref<1x64x256xbf16, #tpu.memory_space<vmem>>, vector<1x64x256xbf16>
    %84 = vector.shape_cast %83 : vector<1x64x256xbf16> to vector<64x256xbf16>
    %85 = vector.shape_cast %82 : vector<64x256xbf16> to vector<1x64x256xbf16>
    tpu.vector_store %arg5[%c0_39, %c0_40, %c0_41], %85 {strides = array<i32>} : memref<1x64x256xbf16, #tpu.memory_space<vmem>>, vector<1x64x256xbf16>,
    %cst_42 = arith.constant dense<0.000000e+00> : vector<256xf32>
    %86 = vector.multi_reduction <add>, %81, %cst_42 [0] : vector<64x256xf32> to vector<256xf32>
    %87 = vector.shape_cast %86 : vector<256xf32> to vector<1x256xf32>
    %c0_43 = arith.constant 0 : index
    %c0_44 = arith.constant 0 : index
    %c0_45 = arith.constant 0 : index
    %c0_46 = arith.constant 0 : index
    %88 = vector.load %arg6[%c0_43, %c0_44, %c0_45, %c0_46] : memref<1x1x1x256xf32, #tpu.memory_space<vmem>>, vector<1x1x1x256xf32>
    %89 = vector.shape_cast %88 : vector<1x1x1x256xf32> to vector<1x256xf32>
    %90 = vector.shape_cast %87 : vector<1x256xf32> to vector<1x1x1x256xf32>
    tpu.vector_store %arg6[%c0_43, %c0_44, %c0_45, %c0_46], %90 {strides = array<i32>} : memref<1x1x1x256xf32, #tpu.memory_space<vmem>>, vector<1x1x1x256xf32>,
    %91 = arith.mulf %81, %81 : vector<64x256xf32>
    %cst_47 = arith.constant dense<0.000000e+00> : vector<256xf32>
    %92 = vector.multi_reduction <add>, %91, %cst_47 [0] : vector<64x256xf32> to vector<256xf32>
    %93 = vector.shape_cast %92 : vector<256xf32> to vector<1x256xf32>
    %c0_48 = arith.constant 0 : index
    %c0_49 = arith.constant 0 : index
    %c0_50 = arith.constant 0 : index
    %c0_51 = arith.constant 0 : index
    %94 = vector.load %arg7[%c0_48, %c0_49, %c0_50, %c0_51] : memref<1x1x1x256xf32, #tpu.memory_space<vmem>>, vector<1x1x1x256xf32>
    %95 = vector.shape_cast %94 : vector<1x1x1x256xf32> to vector<1x256xf32>
    %96 = vector.shape_cast %93 : vector<1x256xf32> to vector<1x1x1x256xf32>
    tpu.vector_store %arg7[%c0_48, %c0_49, %c0_50, %c0_51], %96 {strides = array<i32>} : memref<1x1x1x256xf32, #tpu.memory_space<vmem>>, vector<1x1x1x256xf32>,
    return
  }
  func.func @transform_0(%arg0: i32, %arg1: i32) -> (i32, i32, i32, i32) {
    %c0_i32 = arith.constant 0 : i32
    %c0_i32_0 = arith.constant 0 : i32
    %c0_i32_1 = arith.constant 0 : i32
    %c0_i32_2 = arith.constant 0 : i32
    return %arg0, %c0_i32, %c0_i32_0, %c0_i32_1 : i32, i32, i32, i32
  }
  func.func @transform_1(%arg0: i32, %arg1: i32) -> (i32, i32, i32) {
    %c0_i32 = arith.constant 0 : i32
    %c0_i32_0 = arith.constant 0 : i32
    %c0_i32_1 = arith.constant 0 : i32
    %c0_i32_2 = arith.constant 0 : i32
    return %c0_i32, %c0_i32_0, %c0_i32_1 : i32, i32, i32
  }
  func.func @transform_2(%arg0: i32, %arg1: i32) -> (i32, i32) {
    %c0_i32 = arith.constant 0 : i32
    %c0_i32_0 = arith.constant 0 : i32
    %c0_i32_1 = arith.constant 0 : i32
    return %c0_i32, %c0_i32_0 : i32, i32
  }
  func.func @transform_3(%arg0: i32, %arg1: i32) -> (i32, i32, i32) {
    %c0_i32 = arith.constant 0 : i32
    %c0_i32_0 = arith.constant 0 : i32
    return %arg0, %arg1, %c0_i32 : i32, i32, i32
  }
  func.func @transform_4(%arg0: i32, %arg1: i32) -> (i32, i32, i32, i32) {
    %c0_i32 = arith.constant 0 : i32
    %c0_i32_0 = arith.constant 0 : i32
    %c0_i32_1 = arith.constant 0 : i32
    return %arg0, %arg1, %c0_i32, %c0_i32_0 : i32, i32, i32, i32
  }
  func.func @transform_5(%arg0: i32, %arg1: i32) -> (i32, i32, i32, i32) {
    %c0_i32 = arith.constant 0 : i32
    %c0_i32_0 = arith.constant 0 : i32
    %c0_i32_1 = arith.constant 0 : i32
    return %arg0, %arg1, %c0_i32, %c0_i32_0 : i32, i32, i32, i32
  }
}

module attributes {stable_mosaic.version = 11 : i64} {
  func.func @_conv1x1_kernel(%arg0: i32, %arg1: i32, %arg2: memref<1x64x256xbf16, #tpu.memory_space<vmem>>, %arg3: memref<256x128xbf16, #tpu.memory_space<vmem>>, %arg4: memref<1x128xf32, #tpu.memory_space<vmem>>, %arg5: memref<1x64x128xf32, #tpu.memory_space<vmem>>, %arg6: memref<1x1x1x128xf32, #tpu.memory_space<vmem>>, %arg7: memref<1x1x1x128xf32, #tpu.memory_space<vmem>>) attributes {dimension_semantics = [#tpu.dimension_semantics<parallel>, #tpu.dimension_semantics<parallel>], iteration_bounds = array<i64: 2, 1>, scalar_prefetch = 0 : i64, scratch_operands = 0 : i64, tpu.core_type = #tpu.core_type<tc>, window_params = [{transform_indices = @transform_0, window_bounds = array<i64: 1, 64, 256>}, {pipeline_mode = #tpu.pipeline_mode<synchronous>, transform_indices = @transform_1, window_bounds = array<i64: 256, 128>}, {pipeline_mode = #tpu.pipeline_mode<synchronous>, transform_indices = @transform_2, window_bounds = array<i64: 1, 128>}, {transform_indices = @transform_3, window_bounds = array<i64: 1, 64, 128>}, {transform_indices = @transform_4, window_bounds = array<i64: 1, 1, 1, 128>}, {transform_indices = @transform_5, window_bounds = array<i64: 1, 1, 1, 128>}]} {
    %c0 = arith.constant 0 : index
    %c0_0 = arith.constant 0 : index
    %c0_1 = arith.constant 0 : index
    %0 = vector.load %arg2[%c0, %c0_0, %c0_1] : memref<1x64x256xbf16, #tpu.memory_space<vmem>>, vector<1x64x256xbf16>
    %1 = vector.shape_cast %0 : vector<1x64x256xbf16> to vector<64x256xbf16>
    %c0_2 = arith.constant 0 : index
    %c0_3 = arith.constant 0 : index
    %2 = vector.load %arg3[%c0_2, %c0_3] : memref<256x128xbf16, #tpu.memory_space<vmem>>, vector<256x128xbf16>
    %cst = arith.constant dense<0.000000e+00> : vector<64x128xf32>
    %3 = tpu.matmul %1, %2, %cst {dimension_numbers = #tpu.dot_dimension_numbers<[1], [0], [0], [1], [0, 0, 1, 1], [], []>} : vector<64x256xbf16>, vector<256x128xbf16>, vector<64x128xf32> -> vector<64x128xf32>
    %c0_4 = arith.constant 0 : index
    %c0_5 = arith.constant 0 : index
    %4 = vector.load %arg4[%c0_4, %c0_5] : memref<1x128xf32, #tpu.memory_space<vmem>>, vector<1x128xf32>
    %5 = vector.broadcast %4 : vector<1x128xf32> to vector<64x128xf32>
    %6 = arith.addf %3, %5 : vector<64x128xf32>
    %c0_6 = arith.constant 0 : index
    %c0_7 = arith.constant 0 : index
    %c0_8 = arith.constant 0 : index
    %7 = vector.load %arg5[%c0_6, %c0_7, %c0_8] : memref<1x64x128xf32, #tpu.memory_space<vmem>>, vector<1x64x128xf32>
    %8 = vector.shape_cast %7 : vector<1x64x128xf32> to vector<64x128xf32>
    %9 = vector.shape_cast %6 : vector<64x128xf32> to vector<1x64x128xf32>
    tpu.vector_store %arg5[%c0_6, %c0_7, %c0_8], %9 {strides = array<i32>} : memref<1x64x128xf32, #tpu.memory_space<vmem>>, vector<1x64x128xf32>,
    %cst_9 = arith.constant dense<0.000000e+00> : vector<128xf32>
    %10 = vector.multi_reduction <add>, %6, %cst_9 [0] : vector<64x128xf32> to vector<128xf32>
    %11 = vector.shape_cast %10 : vector<128xf32> to vector<1x128xf32>
    %c0_10 = arith.constant 0 : index
    %c0_11 = arith.constant 0 : index
    %c0_12 = arith.constant 0 : index
    %c0_13 = arith.constant 0 : index
    %12 = vector.load %arg6[%c0_10, %c0_11, %c0_12, %c0_13] : memref<1x1x1x128xf32, #tpu.memory_space<vmem>>, vector<1x1x1x128xf32>
    %13 = vector.shape_cast %12 : vector<1x1x1x128xf32> to vector<1x128xf32>
    %14 = vector.shape_cast %11 : vector<1x128xf32> to vector<1x1x1x128xf32>
    tpu.vector_store %arg6[%c0_10, %c0_11, %c0_12, %c0_13], %14 {strides = array<i32>} : memref<1x1x1x128xf32, #tpu.memory_space<vmem>>, vector<1x1x1x128xf32>,
    %15 = arith.mulf %6, %6 : vector<64x128xf32>
    %cst_14 = arith.constant dense<0.000000e+00> : vector<128xf32>
    %16 = vector.multi_reduction <add>, %15, %cst_14 [0] : vector<64x128xf32> to vector<128xf32>
    %17 = vector.shape_cast %16 : vector<128xf32> to vector<1x128xf32>
    %c0_15 = arith.constant 0 : index
    %c0_16 = arith.constant 0 : index
    %c0_17 = arith.constant 0 : index
    %c0_18 = arith.constant 0 : index
    %18 = vector.load %arg7[%c0_15, %c0_16, %c0_17, %c0_18] : memref<1x1x1x128xf32, #tpu.memory_space<vmem>>, vector<1x1x1x128xf32>
    %19 = vector.shape_cast %18 : vector<1x1x1x128xf32> to vector<1x128xf32>
    %20 = vector.shape_cast %17 : vector<1x128xf32> to vector<1x1x1x128xf32>
    tpu.vector_store %arg7[%c0_15, %c0_16, %c0_17, %c0_18], %20 {strides = array<i32>} : memref<1x1x1x128xf32, #tpu.memory_space<vmem>>, vector<1x1x1x128xf32>,
    return
  }
  func.func @transform_0(%arg0: i32, %arg1: i32) -> (i32, i32, i32) {
    %c0_i32 = arith.constant 0 : i32
    %c0_i32_0 = arith.constant 0 : i32
    return %arg0, %arg1, %c0_i32 : i32, i32, i32
  }
  func.func @transform_1(%arg0: i32, %arg1: i32) -> (i32, i32) {
    %c0_i32 = arith.constant 0 : i32
    %c0_i32_0 = arith.constant 0 : i32
    %c0_i32_1 = arith.constant 0 : i32
    return %c0_i32, %c0_i32_0 : i32, i32
  }
  func.func @transform_2(%arg0: i32, %arg1: i32) -> (i32, i32) {
    %c0_i32 = arith.constant 0 : i32
    %c0_i32_0 = arith.constant 0 : i32
    %c0_i32_1 = arith.constant 0 : i32
    return %c0_i32, %c0_i32_0 : i32, i32
  }
  func.func @transform_3(%arg0: i32, %arg1: i32) -> (i32, i32, i32) {
    %c0_i32 = arith.constant 0 : i32
    %c0_i32_0 = arith.constant 0 : i32
    return %arg0, %arg1, %c0_i32 : i32, i32, i32
  }
  func.func @transform_4(%arg0: i32, %arg1: i32) -> (i32, i32, i32, i32) {
    %c0_i32 = arith.constant 0 : i32
    %c0_i32_0 = arith.constant 0 : i32
    %c0_i32_1 = arith.constant 0 : i32
    return %arg0, %arg1, %c0_i32, %c0_i32_0 : i32, i32, i32, i32
  }
  func.func @transform_5(%arg0: i32, %arg1: i32) -> (i32, i32, i32, i32) {
    %c0_i32 = arith.constant 0 : i32
    %c0_i32_0 = arith.constant 0 : i32
    %c0_i32_1 = arith.constant 0 : i32
    return %arg0, %arg1, %c0_i32, %c0_i32_0 : i32, i32, i32, i32
  }
}

module attributes {stable_mosaic.version = 11 : i64} {
  func.func @kern(%arg0: i32, %arg1: i32, %arg2: memref<1x64x128xf32, #tpu.memory_space<vmem>>, %arg3: memref<1x128xf32, #tpu.memory_space<vmem>>, %arg4: memref<1x128xf32, #tpu.memory_space<vmem>>, %arg5: memref<1x64x64xf32, #tpu.memory_space<vmem>>) attributes {dimension_semantics = [#tpu.dimension_semantics<parallel>, #tpu.dimension_semantics<parallel>], iteration_bounds = array<i64: 2, 1>, scalar_prefetch = 0 : i64, scratch_operands = 0 : i64, tpu.core_type = #tpu.core_type<tc>, window_params = [{transform_indices = @transform_0, window_bounds = array<i64: 1, 64, 128>}, {pipeline_mode = #tpu.pipeline_mode<synchronous>, transform_indices = @transform_1, window_bounds = array<i64: 1, 128>}, {pipeline_mode = #tpu.pipeline_mode<synchronous>, transform_indices = @transform_2, window_bounds = array<i64: 1, 128>}, {transform_indices = @transform_3, window_bounds = array<i64: 1, 64, 64>}]} {
    %c0 = arith.constant 0 : index
    %c0_0 = arith.constant 0 : index
    %c0_1 = arith.constant 0 : index
    %0 = vector.load %arg2[%c0, %c0_0, %c0_1] : memref<1x64x128xf32, #tpu.memory_space<vmem>>, vector<1x64x128xf32>
    %1 = vector.shape_cast %0 : vector<1x64x128xf32> to vector<64x128xf32>
    %c0_2 = arith.constant 0 : index
    %c0_3 = arith.constant 0 : index
    %2 = vector.load %arg3[%c0_2, %c0_3] : memref<1x128xf32, #tpu.memory_space<vmem>>, vector<1x128xf32>
    %3 = vector.broadcast %2 : vector<1x128xf32> to vector<64x128xf32>
    %4 = arith.mulf %1, %3 : vector<64x128xf32>
    %c0_4 = arith.constant 0 : index
    %c0_5 = arith.constant 0 : index
    %5 = vector.load %arg4[%c0_4, %c0_5] : memref<1x128xf32, #tpu.memory_space<vmem>>, vector<1x128xf32>
    %6 = vector.broadcast %5 : vector<1x128xf32> to vector<64x128xf32>
    %7 = arith.addf %4, %6 : vector<64x128xf32>
    %8 = tpu.iota {dimensions = array<i32: 1>} : vector<64x128xi32>
    %c65_i32 = arith.constant 65 : i32
    %9 = vector.broadcast %c65_i32 : i32 to vector<64x128xi32>
    %10 = arith.cmpi slt, %8, %9 : vector<64x128xi32>
    %cst = arith.constant 0xFF800000 : f32
    %11 = vector.broadcast %cst : f32 to vector<64x128xf32>
    %12 = arith.select %10, %7, %11 : vector<64x128xi1>, vector<64x128xf32>
    %cst_6 = arith.constant dense<0xFF800000> : vector<64xf32>
    %13 = vector.multi_reduction <maximumf>, %12, %cst_6 [1] : vector<64x128xf32> to vector<64xf32>
    %14 = vector.shape_cast %13 : vector<64xf32> to vector<64x1xf32>
    %15 = vector.broadcast %14 : vector<64x1xf32> to vector<64x128xf32>
    %16 = arith.subf %12, %15 : vector<64x128xf32>
    %17 = math.exp %16 : vector<64x128xf32>
    %cst_7 = arith.constant dense<0.000000e+00> : vector<64xf32>
    %18 = vector.multi_reduction <add>, %17, %cst_7 [1] : vector<64x128xf32> to vector<64xf32>
    %19 = vector.shape_cast %18 : vector<64xf32> to vector<64x1xf32>
    %20 = tpu.reciprocal %19 : vector<64x1xf32> -> vector<64x1xf32>
    %21 = vector.broadcast %20 : vector<64x1xf32> to vector<64x128xf32>
    %22 = arith.mulf %17, %21 : vector<64x128xf32>
    %23 = vector.extract_strided_slice %22 {offsets = [0, 0], sizes = [64, 64], strides = [1, 1]} : vector<64x128xf32> to vector<64x64xf32>
    %c0_8 = arith.constant 0 : index
    %c0_9 = arith.constant 0 : index
    %c0_10 = arith.constant 0 : index
    %24 = vector.load %arg5[%c0_8, %c0_9, %c0_10] : memref<1x64x64xf32, #tpu.memory_space<vmem>>, vector<1x64x64xf32>
    %25 = vector.shape_cast %24 : vector<1x64x64xf32> to vector<64x64xf32>
    %26 = vector.shape_cast %23 : vector<64x64xf32> to vector<1x64x64xf32>
    tpu.vector_store %arg5[%c0_8, %c0_9, %c0_10], %26 {strides = array<i32>} : memref<1x64x64xf32, #tpu.memory_space<vmem>>, vector<1x64x64xf32>,
    return
  }
  func.func @transform_0(%arg0: i32, %arg1: i32) -> (i32, i32, i32) {
    %c0_i32 = arith.constant 0 : i32
    %c0_i32_0 = arith.constant 0 : i32
    return %arg0, %arg1, %c0_i32 : i32, i32, i32
  }
  func.func @transform_1(%arg0: i32, %arg1: i32) -> (i32, i32) {
    %c0_i32 = arith.constant 0 : i32
    %c0_i32_0 = arith.constant 0 : i32
    %c0_i32_1 = arith.constant 0 : i32
    return %c0_i32, %c0_i32_0 : i32, i32
  }
  func.func @transform_2(%arg0: i32, %arg1: i32) -> (i32, i32) {
    %c0_i32 = arith.constant 0 : i32
    %c0_i32_0 = arith.constant 0 : i32
    %c0_i32_1 = arith.constant 0 : i32
    return %c0_i32, %c0_i32_0 : i32, i32
  }
  func.func @transform_3(%arg0: i32, %arg1: i32) -> (i32, i32, i32) {
    %c0_i32 = arith.constant 0 : i32
    %c0_i32_0 = arith.constant 0 : i32
    return %arg0, %arg1, %c0_i32 : i32, i32, i32
  }
}

module attributes {stable_mosaic.version = 11 : i64} {
  func.func @_simple_nms_kernel(%arg0: i32, %arg1: memref<1x64x64xf32, #tpu.memory_space<vmem>>, %arg2: memref<1x64x64xf32, #tpu.memory_space<vmem>>) attributes {dimension_semantics = [#tpu.dimension_semantics<parallel>], iteration_bounds = array<i64: 2>, scalar_prefetch = 0 : i64, scratch_operands = 0 : i64, tpu.core_type = #tpu.core_type<tc>, window_params = [{transform_indices = @transform_0, window_bounds = array<i64: 1, 64, 64>}, {transform_indices = @transform_1, window_bounds = array<i64: 1, 64, 64>}]} {
    %c0 = arith.constant 0 : index
    %c0_0 = arith.constant 0 : index
    %c0_1 = arith.constant 0 : index
    %0 = vector.load %arg1[%c0, %c0_0, %c0_1] : memref<1x64x64xf32, #tpu.memory_space<vmem>>, vector<1x64x64xf32>
    %1 = vector.shape_cast %0 : vector<1x64x64xf32> to vector<64x64xf32>
    %2 = tpu.iota {dimensions = array<i32: 0>} : vector<64x64xi32>
    %3 = tpu.iota {dimensions = array<i32: 1>} : vector<64x64xi32>
    %c1_i32 = arith.constant 1 : i32
    %4 = vector.broadcast %c1_i32 : i32 to vector<64x64xi32>
    %5 = arith.addi %2, %4 : vector<64x64xi32>
    %c0_i32 = arith.constant 0 : i32
    %6 = vector.broadcast %c0_i32 : i32 to vector<64x64xi32>
    %7 = arith.cmpi sge, %5, %6 : vector<64x64xi32>
    %c1_i32_2 = arith.constant 1 : i32
    %8 = vector.broadcast %c1_i32_2 : i32 to vector<64x64xi32>
    %9 = arith.addi %2, %8 : vector<64x64xi32>
    %c64_i32 = arith.constant 64 : i32
    %10 = vector.broadcast %c64_i32 : i32 to vector<64x64xi32>
    %11 = arith.cmpi slt, %9, %10 : vector<64x64xi32>
    %12 = arith.andi %7, %11 : vector<64x64xi1>
    %c2_i32 = arith.constant 2 : i32
    %13 = vector.broadcast %c2_i32 : i32 to vector<64x64xi32>
    %14 = arith.addi %2, %13 : vector<64x64xi32>
    %c0_i32_3 = arith.constant 0 : i32
    %15 = vector.broadcast %c0_i32_3 : i32 to vector<64x64xi32>
    %16 = arith.cmpi sge, %14, %15 : vector<64x64xi32>
    %c2_i32_4 = arith.constant 2 : i32
    %17 = vector.broadcast %c2_i32_4 : i32 to vector<64x64xi32>
    %18 = arith.addi %2, %17 : vector<64x64xi32>
    %c64_i32_5 = arith.constant 64 : i32
    %19 = vector.broadcast %c64_i32_5 : i32 to vector<64x64xi32>
    %20 = arith.cmpi slt, %18, %19 : vector<64x64xi32>
    %21 = arith.andi %16, %20 : vector<64x64xi1>
    %c4_i32 = arith.constant 4 : i32
    %22 = vector.broadcast %c4_i32 : i32 to vector<64x64xi32>
    %23 = arith.addi %2, %22 : vector<64x64xi32>
    %c0_i32_6 = arith.constant 0 : i32
    %24 = vector.broadcast %c0_i32_6 : i32 to vector<64x64xi32>
    %25 = arith.cmpi sge, %23, %24 : vector<64x64xi32>
    %c4_i32_7 = arith.constant 4 : i32
    %26 = vector.broadcast %c4_i32_7 : i32 to vector<64x64xi32>
    %27 = arith.addi %2, %26 : vector<64x64xi32>
    %c64_i32_8 = arith.constant 64 : i32
    %28 = vector.broadcast %c64_i32_8 : i32 to vector<64x64xi32>
    %29 = arith.cmpi slt, %27, %28 : vector<64x64xi32>
    %30 = arith.andi %25, %29 : vector<64x64xi1>
    %c-1_i32 = arith.constant -1 : i32
    %31 = vector.broadcast %c-1_i32 : i32 to vector<64x64xi32>
    %32 = arith.addi %2, %31 : vector<64x64xi32>
    %c0_i32_9 = arith.constant 0 : i32
    %33 = vector.broadcast %c0_i32_9 : i32 to vector<64x64xi32>
    %34 = arith.cmpi sge, %32, %33 : vector<64x64xi32>
    %c-1_i32_10 = arith.constant -1 : i32
    %35 = vector.broadcast %c-1_i32_10 : i32 to vector<64x64xi32>
    %36 = arith.addi %2, %35 : vector<64x64xi32>
    %c64_i32_11 = arith.constant 64 : i32
    %37 = vector.broadcast %c64_i32_11 : i32 to vector<64x64xi32>
    %38 = arith.cmpi slt, %36, %37 : vector<64x64xi32>
    %39 = arith.andi %34, %38 : vector<64x64xi1>
    %c-2_i32 = arith.constant -2 : i32
    %40 = vector.broadcast %c-2_i32 : i32 to vector<64x64xi32>
    %41 = arith.addi %2, %40 : vector<64x64xi32>
    %c0_i32_12 = arith.constant 0 : i32
    %42 = vector.broadcast %c0_i32_12 : i32 to vector<64x64xi32>
    %43 = arith.cmpi sge, %41, %42 : vector<64x64xi32>
    %c-2_i32_13 = arith.constant -2 : i32
    %44 = vector.broadcast %c-2_i32_13 : i32 to vector<64x64xi32>
    %45 = arith.addi %2, %44 : vector<64x64xi32>
    %c64_i32_14 = arith.constant 64 : i32
    %46 = vector.broadcast %c64_i32_14 : i32 to vector<64x64xi32>
    %47 = arith.cmpi slt, %45, %46 : vector<64x64xi32>
    %48 = arith.andi %43, %47 : vector<64x64xi1>
    %c-4_i32 = arith.constant -4 : i32
    %49 = vector.broadcast %c-4_i32 : i32 to vector<64x64xi32>
    %50 = arith.addi %2, %49 : vector<64x64xi32>
    %c0_i32_15 = arith.constant 0 : i32
    %51 = vector.broadcast %c0_i32_15 : i32 to vector<64x64xi32>
    %52 = arith.cmpi sge, %50, %51 : vector<64x64xi32>
    %c-4_i32_16 = arith.constant -4 : i32
    %53 = vector.broadcast %c-4_i32_16 : i32 to vector<64x64xi32>
    %54 = arith.addi %2, %53 : vector<64x64xi32>
    %c64_i32_17 = arith.constant 64 : i32
    %55 = vector.broadcast %c64_i32_17 : i32 to vector<64x64xi32>
    %56 = arith.cmpi slt, %54, %55 : vector<64x64xi32>
    %57 = arith.andi %52, %56 : vector<64x64xi1>
    %c1_i32_18 = arith.constant 1 : i32
    %58 = vector.broadcast %c1_i32_18 : i32 to vector<64x64xi32>
    %59 = arith.addi %3, %58 : vector<64x64xi32>
    %c0_i32_19 = arith.constant 0 : i32
    %60 = vector.broadcast %c0_i32_19 : i32 to vector<64x64xi32>
    %61 = arith.cmpi sge, %59, %60 : vector<64x64xi32>
    %c1_i32_20 = arith.constant 1 : i32
    %62 = vector.broadcast %c1_i32_20 : i32 to vector<64x64xi32>
    %63 = arith.addi %3, %62 : vector<64x64xi32>
    %c64_i32_21 = arith.constant 64 : i32
    %64 = vector.broadcast %c64_i32_21 : i32 to vector<64x64xi32>
    %65 = arith.cmpi slt, %63, %64 : vector<64x64xi32>
    %66 = arith.andi %61, %65 : vector<64x64xi1>
    %c2_i32_22 = arith.constant 2 : i32
    %67 = vector.broadcast %c2_i32_22 : i32 to vector<64x64xi32>
    %68 = arith.addi %3, %67 : vector<64x64xi32>
    %c0_i32_23 = arith.constant 0 : i32
    %69 = vector.broadcast %c0_i32_23 : i32 to vector<64x64xi32>
    %70 = arith.cmpi sge, %68, %69 : vector<64x64xi32>
    %c2_i32_24 = arith.constant 2 : i32
    %71 = vector.broadcast %c2_i32_24 : i32 to vector<64x64xi32>
    %72 = arith.addi %3, %71 : vector<64x64xi32>
    %c64_i32_25 = arith.constant 64 : i32
    %73 = vector.broadcast %c64_i32_25 : i32 to vector<64x64xi32>
    %74 = arith.cmpi slt, %72, %73 : vector<64x64xi32>
    %75 = arith.andi %70, %74 : vector<64x64xi1>
    %c4_i32_26 = arith.constant 4 : i32
    %76 = vector.broadcast %c4_i32_26 : i32 to vector<64x64xi32>
    %77 = arith.addi %3, %76 : vector<64x64xi32>
    %c0_i32_27 = arith.constant 0 : i32
    %78 = vector.broadcast %c0_i32_27 : i32 to vector<64x64xi32>
    %79 = arith.cmpi sge, %77, %78 : vector<64x64xi32>
    %c4_i32_28 = arith.constant 4 : i32
    %80 = vector.broadcast %c4_i32_28 : i32 to vector<64x64xi32>
    %81 = arith.addi %3, %80 : vector<64x64xi32>
    %c64_i32_29 = arith.constant 64 : i32
    %82 = vector.broadcast %c64_i32_29 : i32 to vector<64x64xi32>
    %83 = arith.cmpi slt, %81, %82 : vector<64x64xi32>
    %84 = arith.andi %79, %83 : vector<64x64xi1>
    %c-1_i32_30 = arith.constant -1 : i32
    %85 = vector.broadcast %c-1_i32_30 : i32 to vector<64x64xi32>
    %86 = arith.addi %3, %85 : vector<64x64xi32>
    %c0_i32_31 = arith.constant 0 : i32
    %87 = vector.broadcast %c0_i32_31 : i32 to vector<64x64xi32>
    %88 = arith.cmpi sge, %86, %87 : vector<64x64xi32>
    %c-1_i32_32 = arith.constant -1 : i32
    %89 = vector.broadcast %c-1_i32_32 : i32 to vector<64x64xi32>
    %90 = arith.addi %3, %89 : vector<64x64xi32>
    %c64_i32_33 = arith.constant 64 : i32
    %91 = vector.broadcast %c64_i32_33 : i32 to vector<64x64xi32>
    %92 = arith.cmpi slt, %90, %91 : vector<64x64xi32>
    %93 = arith.andi %88, %92 : vector<64x64xi1>
    %c-2_i32_34 = arith.constant -2 : i32
    %94 = vector.broadcast %c-2_i32_34 : i32 to vector<64x64xi32>
    %95 = arith.addi %3, %94 : vector<64x64xi32>
    %c0_i32_35 = arith.constant 0 : i32
    %96 = vector.broadcast %c0_i32_35 : i32 to vector<64x64xi32>
    %97 = arith.cmpi sge, %95, %96 : vector<64x64xi32>
    %c-2_i32_36 = arith.constant -2 : i32
    %98 = vector.broadcast %c-2_i32_36 : i32 to vector<64x64xi32>
    %99 = arith.addi %3, %98 : vector<64x64xi32>
    %c64_i32_37 = arith.constant 64 : i32
    %100 = vector.broadcast %c64_i32_37 : i32 to vector<64x64xi32>
    %101 = arith.cmpi slt, %99, %100 : vector<64x64xi32>
    %102 = arith.andi %97, %101 : vector<64x64xi1>
    %c-4_i32_38 = arith.constant -4 : i32
    %103 = vector.broadcast %c-4_i32_38 : i32 to vector<64x64xi32>
    %104 = arith.addi %3, %103 : vector<64x64xi32>
    %c0_i32_39 = arith.constant 0 : i32
    %105 = vector.broadcast %c0_i32_39 : i32 to vector<64x64xi32>
    %106 = arith.cmpi sge, %104, %105 : vector<64x64xi32>
    %c-4_i32_40 = arith.constant -4 : i32
    %107 = vector.broadcast %c-4_i32_40 : i32 to vector<64x64xi32>
    %108 = arith.addi %3, %107 : vector<64x64xi32>
    %c64_i32_41 = arith.constant 64 : i32
    %109 = vector.broadcast %c64_i32_41 : i32 to vector<64x64xi32>
    %110 = arith.cmpi slt, %108, %109 : vector<64x64xi32>
    %111 = arith.andi %106, %110 : vector<64x64xi1>
    %cst = arith.constant 0.000000e+00 : f32
    %112 = vector.broadcast %cst : f32 to vector<64x64xf32>
    %c63_i32 = arith.constant 63 : i32
    %113 = tpu.dynamic_rotate %1 by %c63_i32 dim 1 : vector<64x64xf32>, i32 -> vector<64x64xf32>
    %cst_42 = arith.constant 0xFF800000 : f32
    %114 = vector.broadcast %cst_42 : f32 to vector<64x64xf32>
    %115 = arith.select %66, %113, %114 : vector<64x64xi1>, vector<64x64xf32>
    %116 = arith.maximumf %1, %115 : vector<64x64xf32>
    %c62_i32 = arith.constant 62 : i32
    %117 = tpu.dynamic_rotate %116 by %c62_i32 dim 1 : vector<64x64xf32>, i32 -> vector<64x64xf32>
    %cst_43 = arith.constant 0xFF800000 : f32
    %118 = vector.broadcast %cst_43 : f32 to vector<64x64xf32>
    %119 = arith.select %75, %117, %118 : vector<64x64xi1>, vector<64x64xf32>
    %120 = arith.maximumf %116, %119 : vector<64x64xf32>
    %c60_i32 = arith.constant 60 : i32
    %121 = tpu.dynamic_rotate %1 by %c60_i32 dim 1 : vector<64x64xf32>, i32 -> vector<64x64xf32>
    %cst_44 = arith.constant 0xFF800000 : f32
    %122 = vector.broadcast %cst_44 : f32 to vector<64x64xf32>
    %123 = arith.select %84, %121, %122 : vector<64x64xi1>, vector<64x64xf32>
    %124 = arith.maximumf %120, %123 : vector<64x64xf32>
    %c1_i32_45 = arith.constant 1 : i32
    %125 = tpu.dynamic_rotate %1 by %c1_i32_45 dim 1 : vector<64x64xf32>, i32 -> vector<64x64xf32>
    %cst_46 = arith.constant 0xFF800000 : f32
    %126 = vector.broadcast %cst_46 : f32 to vector<64x64xf32>
    %127 = arith.select %93, %125, %126 : vector<64x64xi1>, vector<64x64xf32>
    %128 = arith.maximumf %1, %127 : vector<64x64xf32>
    %c2_i32_47 = arith.constant 2 : i32
    %129 = tpu.dynamic_rotate %128 by %c2_i32_47 dim 1 : vector<64x64xf32>, i32 -> vector<64x64xf32>
    %cst_48 = arith.constant 0xFF800000 : f32
    %130 = vector.broadcast %cst_48 : f32 to vector<64x64xf32>
    %131 = arith.select %102, %129, %130 : vector<64x64xi1>, vector<64x64xf32>
    %132 = arith.maximumf %128, %131 : vector<64x64xf32>
    %c4_i32_49 = arith.constant 4 : i32
    %133 = tpu.dynamic_rotate %1 by %c4_i32_49 dim 1 : vector<64x64xf32>, i32 -> vector<64x64xf32>
    %cst_50 = arith.constant 0xFF800000 : f32
    %134 = vector.broadcast %cst_50 : f32 to vector<64x64xf32>
    %135 = arith.select %111, %133, %134 : vector<64x64xi1>, vector<64x64xf32>
    %136 = arith.maximumf %132, %135 : vector<64x64xf32>
    %137 = arith.maximumf %124, %136 : vector<64x64xf32>
    %c63_i32_51 = arith.constant 63 : i32
    %138 = tpu.dynamic_rotate %137 by %c63_i32_51 dim 0 : vector<64x64xf32>, i32 -> vector<64x64xf32>
    %cst_52 = arith.constant 0xFF800000 : f32
    %139 = vector.broadcast %cst_52 : f32 to vector<64x64xf32>
    %140 = arith.select %12, %138, %139 : vector<64x64xi1>, vector<64x64xf32>
    %141 = arith.maximumf %137, %140 : vector<64x64xf32>
    %c62_i32_53 = arith.constant 62 : i32
    %142 = tpu.dynamic_rotate %141 by %c62_i32_53 dim 0 : vector<64x64xf32>, i32 -> vector<64x64xf32>
    %cst_54 = arith.constant 0xFF800000 : f32
    %143 = vector.broadcast %cst_54 : f32 to vector<64x64xf32>
    %144 = arith.select %21, %142, %143 : vector<64x64xi1>, vector<64x64xf32>
    %145 = arith.maximumf %141, %144 : vector<64x64xf32>
    %c60_i32_55 = arith.constant 60 : i32
    %146 = tpu.dynamic_rotate %137 by %c60_i32_55 dim 0 : vector<64x64xf32>, i32 -> vector<64x64xf32>
    %cst_56 = arith.constant 0xFF800000 : f32
    %147 = vector.broadcast %cst_56 : f32 to vector<64x64xf32>
    %148 = arith.select %30, %146, %147 : vector<64x64xi1>, vector<64x64xf32>
    %149 = arith.maximumf %145, %148 : vector<64x64xf32>
    %c1_i32_57 = arith.constant 1 : i32
    %150 = tpu.dynamic_rotate %137 by %c1_i32_57 dim 0 : vector<64x64xf32>, i32 -> vector<64x64xf32>
    %cst_58 = arith.constant 0xFF800000 : f32
    %151 = vector.broadcast %cst_58 : f32 to vector<64x64xf32>
    %152 = arith.select %39, %150, %151 : vector<64x64xi1>, vector<64x64xf32>
    %153 = arith.maximumf %137, %152 : vector<64x64xf32>
    %c2_i32_59 = arith.constant 2 : i32
    %154 = tpu.dynamic_rotate %153 by %c2_i32_59 dim 0 : vector<64x64xf32>, i32 -> vector<64x64xf32>
    %cst_60 = arith.constant 0xFF800000 : f32
    %155 = vector.broadcast %cst_60 : f32 to vector<64x64xf32>
    %156 = arith.select %48, %154, %155 : vector<64x64xi1>, vector<64x64xf32>
    %157 = arith.maximumf %153, %156 : vector<64x64xf32>
    %c4_i32_61 = arith.constant 4 : i32
    %158 = tpu.dynamic_rotate %137 by %c4_i32_61 dim 0 : vector<64x64xf32>, i32 -> vector<64x64xf32>
    %cst_62 = arith.constant 0xFF800000 : f32
    %159 = vector.broadcast %cst_62 : f32 to vector<64x64xf32>
    %160 = arith.select %57, %158, %159 : vector<64x64xi1>, vector<64x64xf32>
    %161 = arith.maximumf %157, %160 : vector<64x64xf32>
    %162 = arith.maximumf %149, %161 : vector<64x64xf32>
    %163 = arith.cmpf oeq, %1, %162 : vector<64x64xf32>
    %164 = arith.extui %163 : vector<64x64xi1> to vector<64x64xi32>
    %165 = arith.sitofp %164 : vector<64x64xi32> to vector<64x64xf32>
    %c63_i32_63 = arith.constant 63 : i32
    %166 = tpu.dynamic_rotate %165 by %c63_i32_63 dim 1 : vector<64x64xf32>, i32 -> vector<64x64xf32>
    %cst_64 = arith.constant 0xFF800000 : f32
    %167 = vector.broadcast %cst_64 : f32 to vector<64x64xf32>
    %168 = arith.select %66, %166, %167 : vector<64x64xi1>, vector<64x64xf32>
    %169 = arith.maximumf %165, %168 : vector<64x64xf32>
    %c62_i32_65 = arith.constant 62 : i32
    %170 = tpu.dynamic_rotate %169 by %c62_i32_65 dim 1 : vector<64x64xf32>, i32 -> vector<64x64xf32>
    %cst_66 = arith.constant 0xFF800000 : f32
    %171 = vector.broadcast %cst_66 : f32 to vector<64x64xf32>
    %172 = arith.select %75, %170, %171 : vector<64x64xi1>, vector<64x64xf32>
    %173 = arith.maximumf %169, %172 : vector<64x64xf32>
    %c60_i32_67 = arith.constant 60 : i32
    %174 = tpu.dynamic_rotate %165 by %c60_i32_67 dim 1 : vector<64x64xf32>, i32 -> vector<64x64xf32>
    %cst_68 = arith.constant 0xFF800000 : f32
    %175 = vector.broadcast %cst_68 : f32 to vector<64x64xf32>
    %176 = arith.select %84, %174, %175 : vector<64x64xi1>, vector<64x64xf32>
    %177 = arith.maximumf %173, %176 : vector<64x64xf32>
    %c1_i32_69 = arith.constant 1 : i32
    %178 = tpu.dynamic_rotate %165 by %c1_i32_69 dim 1 : vector<64x64xf32>, i32 -> vector<64x64xf32>
    %cst_70 = arith.constant 0xFF800000 : f32
    %179 = vector.broadcast %cst_70 : f32 to vector<64x64xf32>
    %180 = arith.select %93, %178, %179 : vector<64x64xi1>, vector<64x64xf32>
    %181 = arith.maximumf %165, %180 : vector<64x64xf32>
    %c2_i32_71 = arith.constant 2 : i32
    %182 = tpu.dynamic_rotate %181 by %c2_i32_71 dim 1 : vector<64x64xf32>, i32 -> vector<64x64xf32>
    %cst_72 = arith.constant 0xFF800000 : f32
    %183 = vector.broadcast %cst_72 : f32 to vector<64x64xf32>
    %184 = arith.select %102, %182, %183 : vector<64x64xi1>, vector<64x64xf32>
    %185 = arith.maximumf %181, %184 : vector<64x64xf32>
    %c4_i32_73 = arith.constant 4 : i32
    %186 = tpu.dynamic_rotate %165 by %c4_i32_73 dim 1 : vector<64x64xf32>, i32 -> vector<64x64xf32>
    %cst_74 = arith.constant 0xFF800000 : f32
    %187 = vector.broadcast %cst_74 : f32 to vector<64x64xf32>
    %188 = arith.select %111, %186, %187 : vector<64x64xi1>, vector<64x64xf32>
    %189 = arith.maximumf %185, %188 : vector<64x64xf32>
    %190 = arith.maximumf %177, %189 : vector<64x64xf32>
    %c63_i32_75 = arith.constant 63 : i32
    %191 = tpu.dynamic_rotate %190 by %c63_i32_75 dim 0 : vector<64x64xf32>, i32 -> vector<64x64xf32>
    %cst_76 = arith.constant 0xFF800000 : f32
    %192 = vector.broadcast %cst_76 : f32 to vector<64x64xf32>
    %193 = arith.select %12, %191, %192 : vector<64x64xi1>, vector<64x64xf32>
    %194 = arith.maximumf %190, %193 : vector<64x64xf32>
    %c62_i32_77 = arith.constant 62 : i32
    %195 = tpu.dynamic_rotate %194 by %c62_i32_77 dim 0 : vector<64x64xf32>, i32 -> vector<64x64xf32>
    %cst_78 = arith.constant 0xFF800000 : f32
    %196 = vector.broadcast %cst_78 : f32 to vector<64x64xf32>
    %197 = arith.select %21, %195, %196 : vector<64x64xi1>, vector<64x64xf32>
    %198 = arith.maximumf %194, %197 : vector<64x64xf32>
    %c60_i32_79 = arith.constant 60 : i32
    %199 = tpu.dynamic_rotate %190 by %c60_i32_79 dim 0 : vector<64x64xf32>, i32 -> vector<64x64xf32>
    %cst_80 = arith.constant 0xFF800000 : f32
    %200 = vector.broadcast %cst_80 : f32 to vector<64x64xf32>
    %201 = arith.select %30, %199, %200 : vector<64x64xi1>, vector<64x64xf32>
    %202 = arith.maximumf %198, %201 : vector<64x64xf32>
    %c1_i32_81 = arith.constant 1 : i32
    %203 = tpu.dynamic_rotate %190 by %c1_i32_81 dim 0 : vector<64x64xf32>, i32 -> vector<64x64xf32>
    %cst_82 = arith.constant 0xFF800000 : f32
    %204 = vector.broadcast %cst_82 : f32 to vector<64x64xf32>
    %205 = arith.select %39, %203, %204 : vector<64x64xi1>, vector<64x64xf32>
    %206 = arith.maximumf %190, %205 : vector<64x64xf32>
    %c2_i32_83 = arith.constant 2 : i32
    %207 = tpu.dynamic_rotate %206 by %c2_i32_83 dim 0 : vector<64x64xf32>, i32 -> vector<64x64xf32>
    %cst_84 = arith.constant 0xFF800000 : f32
    %208 = vector.broadcast %cst_84 : f32 to vector<64x64xf32>
    %209 = arith.select %48, %207, %208 : vector<64x64xi1>, vector<64x64xf32>
    %210 = arith.maximumf %206, %209 : vector<64x64xf32>
    %c4_i32_85 = arith.constant 4 : i32
    %211 = tpu.dynamic_rotate %190 by %c4_i32_85 dim 0 : vector<64x64xf32>, i32 -> vector<64x64xf32>
    %cst_86 = arith.constant 0xFF800000 : f32
    %212 = vector.broadcast %cst_86 : f32 to vector<64x64xf32>
    %213 = arith.select %57, %211, %212 : vector<64x64xi1>, vector<64x64xf32>
    %214 = arith.maximumf %210, %213 : vector<64x64xf32>
    %215 = arith.maximumf %202, %214 : vector<64x64xf32>
    %cst_87 = arith.constant 0.000000e+00 : f32
    %216 = vector.broadcast %cst_87 : f32 to vector<64x64xf32>
    %217 = arith.cmpf ogt, %215, %216 : vector<64x64xf32>
    %218 = arith.select %217, %112, %1 : vector<64x64xi1>, vector<64x64xf32>
    %c63_i32_88 = arith.constant 63 : i32
    %219 = tpu.dynamic_rotate %218 by %c63_i32_88 dim 1 : vector<64x64xf32>, i32 -> vector<64x64xf32>
    %cst_89 = arith.constant 0xFF800000 : f32
    %220 = vector.broadcast %cst_89 : f32 to vector<64x64xf32>
    %221 = arith.select %66, %219, %220 : vector<64x64xi1>, vector<64x64xf32>
    %222 = arith.maximumf %218, %221 : vector<64x64xf32>
    %c62_i32_90 = arith.constant 62 : i32
    %223 = tpu.dynamic_rotate %222 by %c62_i32_90 dim 1 : vector<64x64xf32>, i32 -> vector<64x64xf32>
    %cst_91 = arith.constant 0xFF800000 : f32
    %224 = vector.broadcast %cst_91 : f32 to vector<64x64xf32>
    %225 = arith.select %75, %223, %224 : vector<64x64xi1>, vector<64x64xf32>
    %226 = arith.maximumf %222, %225 : vector<64x64xf32>
    %c60_i32_92 = arith.constant 60 : i32
    %227 = tpu.dynamic_rotate %218 by %c60_i32_92 dim 1 : vector<64x64xf32>, i32 -> vector<64x64xf32>
    %cst_93 = arith.constant 0xFF800000 : f32
    %228 = vector.broadcast %cst_93 : f32 to vector<64x64xf32>
    %229 = arith.select %84, %227, %228 : vector<64x64xi1>, vector<64x64xf32>
    %230 = arith.maximumf %226, %229 : vector<64x64xf32>
    %c1_i32_94 = arith.constant 1 : i32
    %231 = tpu.dynamic_rotate %218 by %c1_i32_94 dim 1 : vector<64x64xf32>, i32 -> vector<64x64xf32>
    %cst_95 = arith.constant 0xFF800000 : f32
    %232 = vector.broadcast %cst_95 : f32 to vector<64x64xf32>
    %233 = arith.select %93, %231, %232 : vector<64x64xi1>, vector<64x64xf32>
    %234 = arith.maximumf %218, %233 : vector<64x64xf32>
    %c2_i32_96 = arith.constant 2 : i32
    %235 = tpu.dynamic_rotate %234 by %c2_i32_96 dim 1 : vector<64x64xf32>, i32 -> vector<64x64xf32>
    %cst_97 = arith.constant 0xFF800000 : f32
    %236 = vector.broadcast %cst_97 : f32 to vector<64x64xf32>
    %237 = arith.select %102, %235, %236 : vector<64x64xi1>, vector<64x64xf32>
    %238 = arith.maximumf %234, %237 : vector<64x64xf32>
    %c4_i32_98 = arith.constant 4 : i32
    %239 = tpu.dynamic_rotate %218 by %c4_i32_98 dim 1 : vector<64x64xf32>, i32 -> vector<64x64xf32>
    %cst_99 = arith.constant 0xFF800000 : f32
    %240 = vector.broadcast %cst_99 : f32 to vector<64x64xf32>
    %241 = arith.select %111, %239, %240 : vector<64x64xi1>, vector<64x64xf32>
    %242 = arith.maximumf %238, %241 : vector<64x64xf32>
    %243 = arith.maximumf %230, %242 : vector<64x64xf32>
    %c63_i32_100 = arith.constant 63 : i32
    %244 = tpu.dynamic_rotate %243 by %c63_i32_100 dim 0 : vector<64x64xf32>, i32 -> vector<64x64xf32>
    %cst_101 = arith.constant 0xFF800000 : f32
    %245 = vector.broadcast %cst_101 : f32 to vector<64x64xf32>
    %246 = arith.select %12, %244, %245 : vector<64x64xi1>, vector<64x64xf32>
    %247 = arith.maximumf %243, %246 : vector<64x64xf32>
    %c62_i32_102 = arith.constant 62 : i32
    %248 = tpu.dynamic_rotate %247 by %c62_i32_102 dim 0 : vector<64x64xf32>, i32 -> vector<64x64xf32>
    %cst_103 = arith.constant 0xFF800000 : f32
    %249 = vector.broadcast %cst_103 : f32 to vector<64x64xf32>
    %250 = arith.select %21, %248, %249 : vector<64x64xi1>, vector<64x64xf32>
    %251 = arith.maximumf %247, %250 : vector<64x64xf32>
    %c60_i32_104 = arith.constant 60 : i32
    %252 = tpu.dynamic_rotate %243 by %c60_i32_104 dim 0 : vector<64x64xf32>, i32 -> vector<64x64xf32>
    %cst_105 = arith.constant 0xFF800000 : f32
    %253 = vector.broadcast %cst_105 : f32 to vector<64x64xf32>
    %254 = arith.select %30, %252, %253 : vector<64x64xi1>, vector<64x64xf32>
    %255 = arith.maximumf %251, %254 : vector<64x64xf32>
    %c1_i32_106 = arith.constant 1 : i32
    %256 = tpu.dynamic_rotate %243 by %c1_i32_106 dim 0 : vector<64x64xf32>, i32 -> vector<64x64xf32>
    %cst_107 = arith.constant 0xFF800000 : f32
    %257 = vector.broadcast %cst_107 : f32 to vector<64x64xf32>
    %258 = arith.select %39, %256, %257 : vector<64x64xi1>, vector<64x64xf32>
    %259 = arith.maximumf %243, %258 : vector<64x64xf32>
    %c2_i32_108 = arith.constant 2 : i32
    %260 = tpu.dynamic_rotate %259 by %c2_i32_108 dim 0 : vector<64x64xf32>, i32 -> vector<64x64xf32>
    %cst_109 = arith.constant 0xFF800000 : f32
    %261 = vector.broadcast %cst_109 : f32 to vector<64x64xf32>
    %262 = arith.select %48, %260, %261 : vector<64x64xi1>, vector<64x64xf32>
    %263 = arith.maximumf %259, %262 : vector<64x64xf32>
    %c4_i32_110 = arith.constant 4 : i32
    %264 = tpu.dynamic_rotate %243 by %c4_i32_110 dim 0 : vector<64x64xf32>, i32 -> vector<64x64xf32>
    %cst_111 = arith.constant 0xFF800000 : f32
    %265 = vector.broadcast %cst_111 : f32 to vector<64x64xf32>
    %266 = arith.select %57, %264, %265 : vector<64x64xi1>, vector<64x64xf32>
    %267 = arith.maximumf %263, %266 : vector<64x64xf32>
    %268 = arith.maximumf %255, %267 : vector<64x64xf32>
    %269 = arith.cmpf oeq, %218, %268 : vector<64x64xf32>
    %cst_112 = arith.constant dense<true> : vector<64x64xi1>
    %270 = arith.xori %217, %cst_112 : vector<64x64xi1>
    %271 = arith.andi %269, %270 : vector<64x64xi1>
    %272 = arith.ori %163, %271 : vector<64x64xi1>
    %273 = arith.extui %272 : vector<64x64xi1> to vector<64x64xi32>
    %274 = arith.sitofp %273 : vector<64x64xi32> to vector<64x64xf32>
    %c63_i32_113 = arith.constant 63 : i32
    %275 = tpu.dynamic_rotate %274 by %c63_i32_113 dim 1 : vector<64x64xf32>, i32 -> vector<64x64xf32>
    %cst_114 = arith.constant 0xFF800000 : f32
    %276 = vector.broadcast %cst_114 : f32 to vector<64x64xf32>
    %277 = arith.select %66, %275, %276 : vector<64x64xi1>, vector<64x64xf32>
    %278 = arith.maximumf %274, %277 : vector<64x64xf32>
    %c62_i32_115 = arith.constant 62 : i32
    %279 = tpu.dynamic_rotate %278 by %c62_i32_115 dim 1 : vector<64x64xf32>, i32 -> vector<64x64xf32>
    %cst_116 = arith.constant 0xFF800000 : f32
    %280 = vector.broadcast %cst_116 : f32 to vector<64x64xf32>
    %281 = arith.select %75, %279, %280 : vector<64x64xi1>, vector<64x64xf32>
    %282 = arith.maximumf %278, %281 : vector<64x64xf32>
    %c60_i32_117 = arith.constant 60 : i32
    %283 = tpu.dynamic_rotate %274 by %c60_i32_117 dim 1 : vector<64x64xf32>, i32 -> vector<64x64xf32>
    %cst_118 = arith.constant 0xFF800000 : f32
    %284 = vector.broadcast %cst_118 : f32 to vector<64x64xf32>
    %285 = arith.select %84, %283, %284 : vector<64x64xi1>, vector<64x64xf32>
    %286 = arith.maximumf %282, %285 : vector<64x64xf32>
    %c1_i32_119 = arith.constant 1 : i32
    %287 = tpu.dynamic_rotate %274 by %c1_i32_119 dim 1 : vector<64x64xf32>, i32 -> vector<64x64xf32>
    %cst_120 = arith.constant 0xFF800000 : f32
    %288 = vector.broadcast %cst_120 : f32 to vector<64x64xf32>
    %289 = arith.select %93, %287, %288 : vector<64x64xi1>, vector<64x64xf32>
    %290 = arith.maximumf %274, %289 : vector<64x64xf32>
    %c2_i32_121 = arith.constant 2 : i32
    %291 = tpu.dynamic_rotate %290 by %c2_i32_121 dim 1 : vector<64x64xf32>, i32 -> vector<64x64xf32>
    %cst_122 = arith.constant 0xFF800000 : f32
    %292 = vector.broadcast %cst_122 : f32 to vector<64x64xf32>
    %293 = arith.select %102, %291, %292 : vector<64x64xi1>, vector<64x64xf32>
    %294 = arith.maximumf %290, %293 : vector<64x64xf32>
    %c4_i32_123 = arith.constant 4 : i32
    %295 = tpu.dynamic_rotate %274 by %c4_i32_123 dim 1 : vector<64x64xf32>, i32 -> vector<64x64xf32>
    %cst_124 = arith.constant 0xFF800000 : f32
    %296 = vector.broadcast %cst_124 : f32 to vector<64x64xf32>
    %297 = arith.select %111, %295, %296 : vector<64x64xi1>, vector<64x64xf32>
    %298 = arith.maximumf %294, %297 : vector<64x64xf32>
    %299 = arith.maximumf %286, %298 : vector<64x64xf32>
    %c63_i32_125 = arith.constant 63 : i32
    %300 = tpu.dynamic_rotate %299 by %c63_i32_125 dim 0 : vector<64x64xf32>, i32 -> vector<64x64xf32>
    %cst_126 = arith.constant 0xFF800000 : f32
    %301 = vector.broadcast %cst_126 : f32 to vector<64x64xf32>
    %302 = arith.select %12, %300, %301 : vector<64x64xi1>, vector<64x64xf32>
    %303 = arith.maximumf %299, %302 : vector<64x64xf32>
    %c62_i32_127 = arith.constant 62 : i32
    %304 = tpu.dynamic_rotate %303 by %c62_i32_127 dim 0 : vector<64x64xf32>, i32 -> vector<64x64xf32>
    %cst_128 = arith.constant 0xFF800000 : f32
    %305 = vector.broadcast %cst_128 : f32 to vector<64x64xf32>
    %306 = arith.select %21, %304, %305 : vector<64x64xi1>, vector<64x64xf32>
    %307 = arith.maximumf %303, %306 : vector<64x64xf32>
    %c60_i32_129 = arith.constant 60 : i32
    %308 = tpu.dynamic_rotate %299 by %c60_i32_129 dim 0 : vector<64x64xf32>, i32 -> vector<64x64xf32>
    %cst_130 = arith.constant 0xFF800000 : f32
    %309 = vector.broadcast %cst_130 : f32 to vector<64x64xf32>
    %310 = arith.select %30, %308, %309 : vector<64x64xi1>, vector<64x64xf32>
    %311 = arith.maximumf %307, %310 : vector<64x64xf32>
    %c1_i32_131 = arith.constant 1 : i32
    %312 = tpu.dynamic_rotate %299 by %c1_i32_131 dim 0 : vector<64x64xf32>, i32 -> vector<64x64xf32>
    %cst_132 = arith.constant 0xFF800000 : f32
    %313 = vector.broadcast %cst_132 : f32 to vector<64x64xf32>
    %314 = arith.select %39, %312, %313 : vector<64x64xi1>, vector<64x64xf32>
    %315 = arith.maximumf %299, %314 : vector<64x64xf32>
    %c2_i32_133 = arith.constant 2 : i32
    %316 = tpu.dynamic_rotate %315 by %c2_i32_133 dim 0 : vector<64x64xf32>, i32 -> vector<64x64xf32>
    %cst_134 = arith.constant 0xFF800000 : f32
    %317 = vector.broadcast %cst_134 : f32 to vector<64x64xf32>
    %318 = arith.select %48, %316, %317 : vector<64x64xi1>, vector<64x64xf32>
    %319 = arith.maximumf %315, %318 : vector<64x64xf32>
    %c4_i32_135 = arith.constant 4 : i32
    %320 = tpu.dynamic_rotate %299 by %c4_i32_135 dim 0 : vector<64x64xf32>, i32 -> vector<64x64xf32>
    %cst_136 = arith.constant 0xFF800000 : f32
    %321 = vector.broadcast %cst_136 : f32 to vector<64x64xf32>
    %322 = arith.select %57, %320, %321 : vector<64x64xi1>, vector<64x64xf32>
    %323 = arith.maximumf %319, %322 : vector<64x64xf32>
    %324 = arith.maximumf %311, %323 : vector<64x64xf32>
    %cst_137 = arith.constant 0.000000e+00 : f32
    %325 = vector.broadcast %cst_137 : f32 to vector<64x64xf32>
    %326 = arith.cmpf ogt, %324, %325 : vector<64x64xf32>
    %327 = arith.select %326, %112, %1 : vector<64x64xi1>, vector<64x64xf32>
    %c63_i32_138 = arith.constant 63 : i32
    %328 = tpu.dynamic_rotate %327 by %c63_i32_138 dim 1 : vector<64x64xf32>, i32 -> vector<64x64xf32>
    %cst_139 = arith.constant 0xFF800000 : f32
    %329 = vector.broadcast %cst_139 : f32 to vector<64x64xf32>
    %330 = arith.select %66, %328, %329 : vector<64x64xi1>, vector<64x64xf32>
    %331 = arith.maximumf %327, %330 : vector<64x64xf32>
    %c62_i32_140 = arith.constant 62 : i32
    %332 = tpu.dynamic_rotate %331 by %c62_i32_140 dim 1 : vector<64x64xf32>, i32 -> vector<64x64xf32>
    %cst_141 = arith.constant 0xFF800000 : f32
    %333 = vector.broadcast %cst_141 : f32 to vector<64x64xf32>
    %334 = arith.select %75, %332, %333 : vector<64x64xi1>, vector<64x64xf32>
    %335 = arith.maximumf %331, %334 : vector<64x64xf32>
    %c60_i32_142 = arith.constant 60 : i32
    %336 = tpu.dynamic_rotate %327 by %c60_i32_142 dim 1 : vector<64x64xf32>, i32 -> vector<64x64xf32>
    %cst_143 = arith.constant 0xFF800000 : f32
    %337 = vector.broadcast %cst_143 : f32 to vector<64x64xf32>
    %338 = arith.select %84, %336, %337 : vector<64x64xi1>, vector<64x64xf32>
    %339 = arith.maximumf %335, %338 : vector<64x64xf32>
    %c1_i32_144 = arith.constant 1 : i32
    %340 = tpu.dynamic_rotate %327 by %c1_i32_144 dim 1 : vector<64x64xf32>, i32 -> vector<64x64xf32>
    %cst_145 = arith.constant 0xFF800000 : f32
    %341 = vector.broadcast %cst_145 : f32 to vector<64x64xf32>
    %342 = arith.select %93, %340, %341 : vector<64x64xi1>, vector<64x64xf32>
    %343 = arith.maximumf %327, %342 : vector<64x64xf32>
    %c2_i32_146 = arith.constant 2 : i32
    %344 = tpu.dynamic_rotate %343 by %c2_i32_146 dim 1 : vector<64x64xf32>, i32 -> vector<64x64xf32>
    %cst_147 = arith.constant 0xFF800000 : f32
    %345 = vector.broadcast %cst_147 : f32 to vector<64x64xf32>
    %346 = arith.select %102, %344, %345 : vector<64x64xi1>, vector<64x64xf32>
    %347 = arith.maximumf %343, %346 : vector<64x64xf32>
    %c4_i32_148 = arith.constant 4 : i32
    %348 = tpu.dynamic_rotate %327 by %c4_i32_148 dim 1 : vector<64x64xf32>, i32 -> vector<64x64xf32>
    %cst_149 = arith.constant 0xFF800000 : f32
    %349 = vector.broadcast %cst_149 : f32 to vector<64x64xf32>
    %350 = arith.select %111, %348, %349 : vector<64x64xi1>, vector<64x64xf32>
    %351 = arith.maximumf %347, %350 : vector<64x64xf32>
    %352 = arith.maximumf %339, %351 : vector<64x64xf32>
    %c63_i32_150 = arith.constant 63 : i32
    %353 = tpu.dynamic_rotate %352 by %c63_i32_150 dim 0 : vector<64x64xf32>, i32 -> vector<64x64xf32>
    %cst_151 = arith.constant 0xFF800000 : f32
    %354 = vector.broadcast %cst_151 : f32 to vector<64x64xf32>
    %355 = arith.select %12, %353, %354 : vector<64x64xi1>, vector<64x64xf32>
    %356 = arith.maximumf %352, %355 : vector<64x64xf32>
    %c62_i32_152 = arith.constant 62 : i32
    %357 = tpu.dynamic_rotate %356 by %c62_i32_152 dim 0 : vector<64x64xf32>, i32 -> vector<64x64xf32>
    %cst_153 = arith.constant 0xFF800000 : f32
    %358 = vector.broadcast %cst_153 : f32 to vector<64x64xf32>
    %359 = arith.select %21, %357, %358 : vector<64x64xi1>, vector<64x64xf32>
    %360 = arith.maximumf %356, %359 : vector<64x64xf32>
    %c60_i32_154 = arith.constant 60 : i32
    %361 = tpu.dynamic_rotate %352 by %c60_i32_154 dim 0 : vector<64x64xf32>, i32 -> vector<64x64xf32>
    %cst_155 = arith.constant 0xFF800000 : f32
    %362 = vector.broadcast %cst_155 : f32 to vector<64x64xf32>
    %363 = arith.select %30, %361, %362 : vector<64x64xi1>, vector<64x64xf32>
    %364 = arith.maximumf %360, %363 : vector<64x64xf32>
    %c1_i32_156 = arith.constant 1 : i32
    %365 = tpu.dynamic_rotate %352 by %c1_i32_156 dim 0 : vector<64x64xf32>, i32 -> vector<64x64xf32>
    %cst_157 = arith.constant 0xFF800000 : f32
    %366 = vector.broadcast %cst_157 : f32 to vector<64x64xf32>
    %367 = arith.select %39, %365, %366 : vector<64x64xi1>, vector<64x64xf32>
    %368 = arith.maximumf %352, %367 : vector<64x64xf32>
    %c2_i32_158 = arith.constant 2 : i32
    %369 = tpu.dynamic_rotate %368 by %c2_i32_158 dim 0 : vector<64x64xf32>, i32 -> vector<64x64xf32>
    %cst_159 = arith.constant 0xFF800000 : f32
    %370 = vector.broadcast %cst_159 : f32 to vector<64x64xf32>
    %371 = arith.select %48, %369, %370 : vector<64x64xi1>, vector<64x64xf32>
    %372 = arith.maximumf %368, %371 : vector<64x64xf32>
    %c4_i32_160 = arith.constant 4 : i32
    %373 = tpu.dynamic_rotate %352 by %c4_i32_160 dim 0 : vector<64x64xf32>, i32 -> vector<64x64xf32>
    %cst_161 = arith.constant 0xFF800000 : f32
    %374 = vector.broadcast %cst_161 : f32 to vector<64x64xf32>
    %375 = arith.select %57, %373, %374 : vector<64x64xi1>, vector<64x64xf32>
    %376 = arith.maximumf %372, %375 : vector<64x64xf32>
    %377 = arith.maximumf %364, %376 : vector<64x64xf32>
    %378 = arith.cmpf oeq, %327, %377 : vector<64x64xf32>
    %cst_162 = arith.constant dense<true> : vector<64x64xi1>
    %379 = arith.xori %326, %cst_162 : vector<64x64xi1>
    %380 = arith.andi %378, %379 : vector<64x64xi1>
    %381 = arith.ori %272, %380 : vector<64x64xi1>
    %382 = arith.select %381, %1, %112 : vector<64x64xi1>, vector<64x64xf32>
    %c0_163 = arith.constant 0 : index
    %c0_164 = arith.constant 0 : index
    %c0_165 = arith.constant 0 : index
    %383 = vector.load %arg2[%c0_163, %c0_164, %c0_165] : memref<1x64x64xf32, #tpu.memory_space<vmem>>, vector<1x64x64xf32>
    %384 = vector.shape_cast %383 : vector<1x64x64xf32> to vector<64x64xf32>
    %385 = vector.shape_cast %382 : vector<64x64xf32> to vector<1x64x64xf32>
    tpu.vector_store %arg2[%c0_163, %c0_164, %c0_165], %385 {strides = array<i32>} : memref<1x64x64xf32, #tpu.memory_space<vmem>>, vector<1x64x64xf32>,
    return
  }
  func.func @transform_0(%arg0: i32) -> (i32, i32, i32) {
    %c0_i32 = arith.constant 0 : i32
    %c0_i32_0 = arith.constant 0 : i32
    %c0_i32_1 = arith.constant 0 : i32
    return %arg0, %c0_i32, %c0_i32_0 : i32, i32, i32
  }
  func.func @transform_1(%arg0: i32) -> (i32, i32, i32) {
    %c0_i32 = arith.constant 0 : i32
    %c0_i32_0 = arith.constant 0 : i32
    %c0_i32_1 = arith.constant 0 : i32
    return %arg0, %c0_i32, %c0_i32_0 : i32, i32, i32
  }
}

</mosaic_0001>

<llo_original>
// kernel: detector_head_forward.5
$region0: #{detector_head_forward.5}
  #allocation0 [shape = 'u32[]', space=smem, size = 0x4, offset = 0x4, fixed_abs, tag = 'smem constant byte address 0x4 - core index']
  #allocation1 [shape = 'u32[72,128]{1,0:T(1,128)}', space=vmem, size = 0x9000, scoped, tag = 'internal scratch']
  %s0 = inlined_call_operand.vmem [shape: bf16[2,64,256], index: 0, kind: input, shape index: {}]
  %s1 = inlined_call_operand.vmem [shape: bf16[256,128], index: 1, kind: input, shape index: {}]
  %s2 = inlined_call_operand.vmem [shape: f32[1,128], index: 2, kind: input, shape index: {}]
  %s3 = inlined_call_operand.vmem [shape: f32[2,64,128], index: 3, kind: output, shape index: {0}]
  %s4 = inlined_call_operand.vmem [shape: f32[2,1,1,128], index: 4, kind: output, shape index: {1}]
  %s5 = inlined_call_operand.vmem [shape: f32[2,1,1,128], index: 5, kind: output, shape index: {2}]
  %6 = xla_tuple %s3, %s4, %s5
  %s7 = sld [smem:[#allocation0]]
  $region61: #{detector_head_forward.5} parent=0
    _
  %s9 = ssub.s32 1, %s7
  %s10 = scalar_select 0, %s9, %s7
  loop: start=0, step=1, limit=4
  $region2: #{detector_head_forward.5} parent=0 // loop_pre_header
    _
  $region3: #{detector_head_forward.5} parent=0 // loop_header
    %s12 = sphi 0, %s16
    %p13 = scmp.ge.s32.totalorder %s12, 4
    %s19 = sphi 0, %s31
    %s20 = sphi 0, %s27
    %s21 = sphi 0, %s19
    %s22 = sphi 0, %s20
    %s23 = sphi 0, %s21
    %s24 = sphi 0, %s22
    %s36 = sphi 0, %s38
    %s39 = sphi 0, %s36
    %s40 = sphi 0, %s39
    %s56 = sphi 0, %s40
    %s60 = sphi 0, %s60
    %s62 = sphi 0, %s60
    %s63 = sphi 0, %s62
    %s77 = sphi 0, %s63
    %s81 = sphi 0, %s81
    %s83 = sphi 0, %s81
    %s84 = sphi 0, %s83
    %s98 = sphi 0, %s84
    %s106 = sphi 0, %s108
    %s109 = sphi 0, %s106
    %s110 = sphi 0, %s109
    %s126 = sphi 0, %s110
    %s134 = sphi 0, %s136
    %s137 = sphi 0, %s134
    %s138 = sphi 0, %s137
    %s154 = sphi 0, %s138
    %s162 = sphi 0, %s164
    %s165 = sphi 0, %s162
    %s166 = sphi 0, %s165
    %s182 = sphi 0, %s166
  $region4: #{detector_head_forward.5} parent=0 // loop_header_branch
    %15 = sbr.rel (%p13) target = $region8
  $region5: #{detector_head_forward.5} parent=0 // loop_body
    %s17 = ssub.s32 %s12, 1
    %s18 = ssub.s32 %s12, 2
    %s25 = sadd.s32 1, %s20
    %p26 = scmp.ge.s32.totalorder %s25, 1
    %s27 = scalar_select %p26, 0, %s25
    %s28 = sadd.s32 1, %s19
    %s29 = scalar_select %p26, %s28, %s19
    %p30 = scmp.ge.s32.totalorder %s29, 2
    %s31 = scalar_select %p30, 0, %s29
    %s32 = ssub.s32 %s19, %s31
    %s33 = ssub.s32 %s20, %s27
    %s34 = sor.u32 %s32, %s33
    %p35 = scmp.eq.s32.totalorder %s34, 0
    %s37 = sadd.s32 %s36, 1
    %s38 = scalar_select %p35, %s36, %s37
    %p41 = pneg %p35
    %p42 = scmp.eq.s32.totalorder %s12, 1
    %p43 = por %p41, %p42
    %p44 = scmp.ne.s32.totalorder %s36, %s39
    %p45 = scmp.eq.s32.totalorder %s12, 0
    %p46 = por %p44, %p45
    %p47 = scmp.ne.s32.totalorder %s36, %s39
    %p48 = scmp.eq.s32.totalorder %s17, 1
    %p49 = por %p47, %p48
    %p50 = scmp.ne.s32.totalorder %s39, %s40
    %p51 = scmp.eq.s32.totalorder %s17, 0
    %p52 = por %p50, %p51
    %p53 = scmp.ne.s32.totalorder %s39, %s40
    %p54 = scmp.eq.s32.totalorder %s18, 1
    %p55 = por %p53, %p54
    %p57 = scmp.ne.s32.totalorder %s40, %s56
    %p58 = scmp.eq.s32.totalorder %s18, 0
    %p59 = por %p57, %p58
    %s61 = sadd.s32 %s60, 1
    %p64 = scmp.eq.s32.totalorder %s12, 1
    %p65 = scmp.ne.s32.totalorder %s60, %s62
    %p66 = scmp.eq.s32.totalorder %s12, 0
    %p67 = por %p65, %p66
    %p68 = scmp.ne.s32.totalorder %s60, %s62
    %p69 = scmp.eq.s32.totalorder %s17, 1
    %p70 = por %p68, %p69
    %p71 = scmp.ne.s32.totalorder %s62, %s63
    %p72 = scmp.eq.s32.totalorder %s17, 0
    %p73 = por %p71, %p72
    %p74 = scmp.ne.s32.totalorder %s62, %s63
    %p75 = scmp.eq.s32.totalorder %s18, 1
    %p76 = por %p74, %p75
    %p78 = scmp.ne.s32.totalorder %s63, %s77
    %p79 = scmp.eq.s32.totalorder %s18, 0
    %p80 = por %p78, %p79
    %s82 = sadd.s32 %s81, 1
    %p85 = scmp.eq.s32.totalorder %s12, 1
    %p86 = scmp.ne.s32.totalorder %s81, %s83
    %p87 = scmp.eq.s32.totalorder %s12, 0
    %p88 = por %p86, %p87
    %p89 = scmp.ne.s32.totalorder %s81, %s83
    %p90 = scmp.eq.s32.totalorder %s17, 1
    %p91 = por %p89, %p90
    %p92 = scmp.ne.s32.totalorder %s83, %s84
    %p93 = scmp.eq.s32.totalorder %s17, 0
    %p94 = por %p92, %p93
    %p95 = scmp.ne.s32.totalorder %s83, %s84
    %p96 = scmp.eq.s32.totalorder %s18, 1
    %p97 = por %p95, %p96
    %p99 = scmp.ne.s32.totalorder %s84, %s98
    %p100 = scmp.eq.s32.totalorder %s18, 0
    %p101 = por %p99, %p100
    %s102 = ssub.s32 %s19, %s31
    %s103 = ssub.s32 %s20, %s27
    %s104 = sor.u32 %s102, %s103
    %p105 = scmp.eq.s32.totalorder %s104, 0
    %s107 = sadd.s32 %s106, 1
    %s108 = scalar_select %p105, %s106, %s107
    %p111 = pneg %p105
    %p112 = scmp.eq.s32.totalorder %s12, 1
    %p113 = por %p111, %p112
    %p114 = scmp.ne.s32.totalorder %s106, %s109
    %p115 = scmp.eq.s32.totalorder %s12, 0
    %p116 = por %p114, %p115
    %p117 = scmp.ne.s32.totalorder %s106, %s109
    %p118 = scmp.eq.s32.totalorder %s17, 1
    %p119 = por %p117, %p118
    %p120 = scmp.ne.s32.totalorder %s109, %s110
    %p121 = scmp.eq.s32.totalorder %s17, 0
    %p122 = por %p120, %p121
    %p123 = scmp.ne.s32.totalorder %s109, %s110
    %p124 = scmp.eq.s32.totalorder %s18, 1
    %p125 = por %p123, %p124
    %p127 = scmp.ne.s32.totalorder %s110, %s126
    %p128 = scmp.eq.s32.totalorder %s18, 0
    %p129 = por %p127, %p128
    %s130 = ssub.s32 %s19, %s31
    %s131 = ssub.s32 %s20, %s27
    %s132 = sor.u32 %s130, %s131
    %p133 = scmp.eq.s32.totalorder %s132, 0
    %s135 = sadd.s32 %s134, 1
    %s136 = scalar_select %p133, %s134, %s135
    %p139 = pneg %p133
    %p140 = scmp.eq.s32.totalorder %s12, 1
    %p141 = por %p139, %p140
    %p142 = scmp.ne.s32.totalorder %s134, %s137
    %p143 = scmp.eq.s32.totalorder %s12, 0
    %p144 = por %p142, %p143
    %p145 = scmp.ne.s32.totalorder %s134, %s137
    %p146 = scmp.eq.s32.totalorder %s17, 1
    %p147 = por %p145, %p146
    %p148 = scmp.ne.s32.totalorder %s137, %s138
    %p149 = scmp.eq.s32.totalorder %s17, 0
    %p150 = por %p148, %p149
    %p151 = scmp.ne.s32.totalorder %s137, %s138
    %p152 = scmp.eq.s32.totalorder %s18, 1
    %p153 = por %p151, %p152
    %p155 = scmp.ne.s32.totalorder %s138, %s154
    %p156 = scmp.eq.s32.totalorder %s18, 0
    %p157 = por %p155, %p156
    %s158 = ssub.s32 %s19, %s31
    %s159 = ssub.s32 %s20, %s27
    %s160 = sor.u32 %s158, %s159
    %p161 = scmp.eq.s32.totalorder %s160, 0
    %s163 = sadd.s32 %s162, 1
    %s164 = scalar_select %p161, %s162, %s163
    %p167 = pneg %p161
    %p168 = scmp.eq.s32.totalorder %s12, 1
    %p169 = por %p167, %p168
    %p170 = scmp.ne.s32.totalorder %s162, %s165
    %p171 = scmp.eq.s32.totalorder %s12, 0
    %p172 = por %p170, %p171
    %p173 = scmp.ne.s32.totalorder %s162, %s165
    %p174 = scmp.eq.s32.totalorder %s17, 1
    %p175 = por %p173, %p174
    %p176 = scmp.ne.s32.totalorder %s165, %s166
    %p177 = scmp.eq.s32.totalorder %s17, 0
    %p178 = por %p176, %p177
    %p179 = scmp.ne.s32.totalorder %s165, %s166
    %p180 = scmp.eq.s32.totalorder %s18, 1
    %p181 = por %p179, %p180
    %p183 = scmp.ne.s32.totalorder %s166, %s182
    %p184 = scmp.eq.s32.totalorder %s18, 0
    %p185 = por %p183, %p184
    %p186 = scmp.le.s32.totalorder 1, %s12
    %p187 = scmp.lt.s32.totalorder %s12, 3
    %p188 = pnand %p186, %p187
    %p189 = pneg %p188
    // Predicated region
    $region9: #{detector_head_forward.5} parent=5 // pred_check
      _
    $region10: #{detector_head_forward.5} parent=5 // pred_check_branch
      %191 = sbr.rel (%p188) target = $region12
    $region11: #{detector_head_forward.5} parent=5 // pred_region
      %s192 = ssub.s32 %s12, 1
      // Predicated region
      $region13: #{detector_head_forward.5} parent=11 // pred_check
        %p193 = pneg %p73
      $region14: #{detector_head_forward.5} parent=11 // pred_check_branch
        %195 = sbr.rel (%p193) target = $region16
      $region15: #{detector_head_forward.5} parent=11 // pred_region
        _
      $region16: #{detector_head_forward.5} parent=11 // pred_fallthru
        _
      // Predicated region
      $region17: #{detector_head_forward.5} parent=11 // pred_check
        %p196 = pneg %p94
      $region18: #{detector_head_forward.5} parent=11 // pred_check_branch
        %198 = sbr.rel (%p196) target = $region20
      $region19: #{detector_head_forward.5} parent=11 // pred_region
        _
      $region20: #{detector_head_forward.5} parent=11 // pred_fallthru
        _
    $region12: #{detector_head_forward.5} parent=5 // pred_fallthru
      _
    %p199 = scmp.lt.s32.totalorder %s12, 2
    // Predicated region
    $region21: #{detector_head_forward.5} parent=5 // pred_check
      %p200 = pneg %p199
    $region22: #{detector_head_forward.5} parent=5 // pred_check_branch
      %202 = sbr.rel (%p200) target = $region24
    $region23: #{detector_head_forward.5} parent=5 // pred_region
      // Predicated region
      $region25: #{detector_head_forward.5} parent=23 // pred_check
        %p203 = pneg %p46
      $region26: #{detector_head_forward.5} parent=23 // pred_check_branch
        %205 = sbr.rel (%p203) target = $region28
      $region27: #{detector_head_forward.5} parent=23 // pred_region
        %s206 = smul.u32 8, %s20
        %p207 = scmp.lt.s32.totalorder %s19, 1
        %s208 = scalar_select %p207, %s19, 1
        %p209 = scmp.lt.s32.totalorder %s206, 7
        %s210 = scalar_select %p209, %s206, 7
        %s211 = smul.addr %s210, 2
        %s212 = smul.addr %s208, 16
        %s213 = sadd.s32 %s211, %s212
        %s214 = smul.addr %s213, 4
        %s215 = scalar_lea.vmem %s0, %s214
        %s216 = smul.u32 8, %s20
      $region28: #{detector_head_forward.5} parent=23 // pred_fallthru
        _
    $region24: #{detector_head_forward.5} parent=5 // pred_fallthru
      _
    %p217 = scmp.le.s32.totalorder 1, %s12
    %p218 = scmp.lt.s32.totalorder %s12, 3
    %p219 = pnand %p217, %p218
    %p220 = pneg %p219
    // Predicated region
    $region29: #{detector_head_forward.5} parent=5 // pred_check
      _
    $region30: #{detector_head_forward.5} parent=5 // pred_check_branch
      %222 = sbr.rel (%p219) target = $region32
    $region31: #{detector_head_forward.5} parent=5 // pred_region
      %s223 = ssub.s32 %s12, 1
      %s224 = smul.u32 8, %s22
      %p225 = scmp.lt.s32.totalorder %s21, 1
      %s226 = scalar_select %p225, %s21, 1
      %p227 = scmp.lt.s32.totalorder %s224, 7
      %s228 = scalar_select %p227, %s224, 7
      %s229 = smul.addr %s228, 2
      %s230 = smul.addr %s226, 16
      %s231 = sadd.s32 %s229, %s230
      %s232 = smul.addr %s231, 4
      %s233 = scalar_lea.vmem %s0, %s232
      %p234 = pneg %p52
      %p235 = pneg %p49
      %p236 = pneg %p73
      %p237 = pneg %p70
      %p238 = pneg %p94
      %p239 = pneg %p91
      %p240 = pneg %p122
      %p241 = pneg %p119
      %s242 = smul.u32 8, %s22
      %p243 = scmp.lt.s32.totalorder %s21, 1
      %s244 = scalar_select %p243, %s21, 1
      %p245 = scmp.lt.s32.totalorder %s242, 7
      %s246 = scalar_select %p245, %s242, 7
      %s247 = smul.addr %s244, 8
      %s248 = sadd.s32 %s246, %s247
      %s249 = smul.addr %s248, 8
      %s250 = scalar_lea.vmem %s3, %s249
      %p251 = pneg %p150
      %p252 = pneg %p147
      %p253 = scmp.lt.s32.totalorder %s21, 1
      %s254 = scalar_select %p253, %s21, 1
      %p255 = scmp.lt.s32.totalorder %s22, 0
      %s256 = scalar_select %p255, %s22, 0
      %s257 = sadd.s32 %s256, %s254
      %s258 = scalar_lea.vmem %s4, %s257
      %p259 = pneg %p178
      %p260 = pneg %p175
      %p261 = scmp.lt.s32.totalorder %s21, 1
      %s262 = scalar_select %p261, %s21, 1
      %p263 = scmp.lt.s32.totalorder %s22, 0
      %s264 = scalar_select %p263, %s22, 0
      %s265 = sadd.s32 %s264, %s262
      %s266 = scalar_lea.vmem %s5, %s265
      %s267 = smul.u32 8, %s22
      %p268 = scmp.lt.s32.totalorder %s21, 1
      %s269 = scalar_select %p268, %s21, 1
      %p270 = scmp.lt.s32.totalorder %s267, 7
      %s271 = scalar_select %p270, %s267, 7
      %s272 = smul.addr %s271, 2
      %s273 = smul.addr %s269, 16
      %s274 = sadd.s32 %s272, %s273
      %s275 = smul.addr %s274, 4
      %s276 = scalar_lea.vmem %s0, %s275
      %s277 = smul.u32 8, %s22
      %s278 = smul.u32 8, %s22
      %p279 = scmp.lt.s32.totalorder %s21, 1
      %s280 = scalar_select %p279, %s21, 1
      %p281 = scmp.lt.s32.totalorder %s278, 7
      %s282 = scalar_select %p281, %s278, 7
      %s283 = smul.addr %s280, 8
      %s284 = sadd.s32 %s282, %s283
      %s285 = smul.addr %s284, 8
      %s286 = scalar_lea.vmem %s3, %s285
      %s287 = smul.u32 8, %s22
      %p288 = scmp.lt.s32.totalorder %s21, 1
      %s289 = scalar_select %p288, %s21, 1
      %p290 = scmp.lt.s32.totalorder %s22, 0
      %s291 = scalar_select %p290, %s22, 0
      %s292 = sadd.s32 %s291, %s289
      %s293 = scalar_lea.vmem %s4, %s292
      %p294 = scmp.lt.s32.totalorder %s21, 1
      %s295 = scalar_select %p294, %s21, 1
      %p296 = scmp.lt.s32.totalorder %s22, 0
      %s297 = scalar_select %p296, %s22, 0
      %s298 = sadd.s32 %s297, %s295
      %s299 = scalar_lea.vmem %s5, %s298
      %v300 = vld [vmem:[%s276] sm:$0xff]
      %v301 = vld [vmem:[%s276 + $0x8] sm:$0xff]
      %v302 = vld [vmem:[%s276 + $0x10] sm:$0xff]
      %v303 = vld [vmem:[%s276 + $0x18] sm:$0xff]
      %v304 = vld [vmem:[%s276 + $0x20] sm:$0xff]
      %v305 = vld [vmem:[%s276 + $0x28] sm:$0xff]
      %v306 = vld [vmem:[%s276 + $0x30] sm:$0xff]
      %v307 = vld [vmem:[%s276 + $0x38] sm:$0xff]
      %v308 = vld [vmem:[%s1] sm:$0xf]
      %v309 = vld [vmem:[%s1 + $0x4] sm:$0xf]
      %v310 = vld [vmem:[%s1 + $0x8] sm:$0xf]
      %v311 = vld [vmem:[%s1 + $0xc] sm:$0xf]
      %v312 = vld [vmem:[%s1 + $0x10] sm:$0xf]
      %v313 = vld [vmem:[%s1 + $0x14] sm:$0xf]
      %v314 = vld [vmem:[%s1 + $0x18] sm:$0xf]
      %v315 = vld [vmem:[%s1 + $0x1c] sm:$0xf]
      %v316 = vld [vmem:[%s1 + $0x20] sm:$0xf]
      %v317 = vld [vmem:[%s1 + $0x24] sm:$0xf]
      %v318 = vld [vmem:[%s1 + $0x28] sm:$0xf]
      %v319 = vld [vmem:[%s1 + $0x2c] sm:$0xf]
      %v320 = vld [vmem:[%s1 + $0x30] sm:$0xf]
      %v321 = vld [vmem:[%s1 + $0x34] sm:$0xf]
      %v322 = vld [vmem:[%s1 + $0x38] sm:$0xf]
      %v323 = vld [vmem:[%s1 + $0x3c] sm:$0xf]
      %v324 = vld [vmem:[%s1 + $0x40] sm:$0xf]
      %v325 = vld [vmem:[%s1 + $0x44] sm:$0xf]
      %v326 = vld [vmem:[%s1 + $0x48] sm:$0xf]
      %v327 = vld [vmem:[%s1 + $0x4c] sm:$0xf]
      %v328 = vld [vmem:[%s1 + $0x50] sm:$0xf]
      %v329 = vld [vmem:[%s1 + $0x54] sm:$0xf]
      %v330 = vld [vmem:[%s1 + $0x58] sm:$0xf]
      %v331 = vld [vmem:[%s1 + $0x5c] sm:$0xf]
      %v332 = vld [vmem:[%s1 + $0x60] sm:$0xf]
      %v333 = vld [vmem:[%s1 + $0x64] sm:$0xf]
      %v334 = vld [vmem:[%s1 + $0x68] sm:$0xf]
      %v335 = vld [vmem:[%s1 + $0x6c] sm:$0xf]
      %v336 = vld [vmem:[%s1 + $0x70] sm:$0xf]
      %v337 = vld [vmem:[%s1 + $0x74] sm:$0xf]
      %v338 = vld [vmem:[%s1 + $0x78] sm:$0xf]
      %v339 = vld [vmem:[%s1 + $0x7c] sm:$0xf]
      %v340 = vld [vmem:[%s2] sm:$0x1]
      %v342 = vperm.slane %v340, 0
      %v352 = vunpack.c.l.b16 %v300
      %v353 = vunpack.c.h.b16 %v300
      %v354 = vunpack.c.l.b16 %v301
      %v355 = vunpack.c.h.b16 %v301
      %v356 = vunpack.c.l.b16 %v302
      %v357 = vunpack.c.h.b16 %v302
      %v358 = vunpack.c.l.b16 %v303
      %v359 = vunpack.c.h.b16 %v303
      %v360 = vunpack.c.l.b16 %v304
      %v361 = vunpack.c.h.b16 %v304
      %v362 = vunpack.c.l.b16 %v305
      %v363 = vunpack.c.h.b16 %v305
      %v364 = vunpack.c.l.b16 %v306
      %v365 = vunpack.c.h.b16 %v306
      %v366 = vunpack.c.l.b16 %v307
      %v367 = vunpack.c.h.b16 %v307
      %v368 = vpack.c.b16 %v354, %v352
      %v369 = vpack.c.b16 %v355, %v353
      %v370 = vpack.c.b16 %v358, %v356
      %v371 = vpack.c.b16 %v359, %v357
      %v372 = vpack.c.b16 %v362, %v360
      %v373 = vpack.c.b16 %v363, %v361
      %v374 = vpack.c.b16 %v366, %v364
      %v375 = vpack.c.b16 %v367, %v365
      %v416 = vunpack.c.l.b16 %v308
      %v417 = vunpack.c.l.b16 %v309
      %v418 = vunpack.c.l.b16 %v310
      %v419 = vunpack.c.l.b16 %v311
      %v420 = vunpack.c.l.b16 %v312
      %v421 = vunpack.c.l.b16 %v313
      %v422 = vunpack.c.l.b16 %v314
      %v423 = vunpack.c.l.b16 %v315
      %v424 = vunpack.c.l.b16 %v316
      %v425 = vunpack.c.l.b16 %v317
      %v426 = vunpack.c.l.b16 %v318
      %v427 = vunpack.c.l.b16 %v319
      %v428 = vunpack.c.l.b16 %v320
      %v429 = vunpack.c.l.b16 %v321
      %v430 = vunpack.c.l.b16 %v322
      %v431 = vunpack.c.l.b16 %v323
      %v432 = vunpack.c.l.b16 %v324
      %v433 = vunpack.c.l.b16 %v325
      %v434 = vunpack.c.l.b16 %v326
      %v435 = vunpack.c.l.b16 %v327
      %v436 = vunpack.c.l.b16 %v328
      %v437 = vunpack.c.l.b16 %v329
      %v438 = vunpack.c.l.b16 %v330
      %v439 = vunpack.c.l.b16 %v331
      %v440 = vunpack.c.l.b16 %v332
      %v441 = vunpack.c.l.b16 %v333
      %v442 = vunpack.c.l.b16 %v334
      %v443 = vunpack.c.l.b16 %v335
      %v444 = vunpack.c.l.b16 %v336
      %v445 = vunpack.c.l.b16 %v337
      %v446 = vunpack.c.l.b16 %v338
      %v447 = vunpack.c.l.b16 %v339
      %v448 = vpack.c.b16 %v417, %v416
      %v449 = vpack.c.b16 %v419, %v418
      %v450 = vpack.c.b16 %v421, %v420
      %v451 = vpack.c.b16 %v423, %v422
      %v452 = vpack.c.b16 %v425, %v424
      %v453 = vpack.c.b16 %v427, %v426
      %v454 = vpack.c.b16 %v429, %v428
      %v455 = vpack.c.b16 %v431, %v430
      %v456 = vpack.c.b16 %v433, %v432
      %v457 = vpack.c.b16 %v435, %v434
      %v458 = vpack.c.b16 %v437, %v436
      %v459 = vpack.c.b16 %v439, %v438
      %v460 = vpack.c.b16 %v441, %v440
      %v461 = vpack.c.b16 %v443, %v442
      %v462 = vpack.c.b16 %v445, %v444
      %v463 = vpack.c.b16 %v447, %v446
      %480 = vmatpush.bf16.msra.mxu0 %v455
      %481 = vmatpush.bf16.msra.mxu0 %v454
      %482 = vmatpush.bf16.msra.mxu0 %v453
      %483 = vmatpush.bf16.msra.mxu0 %v452
      %484 = vmatpush.bf16.msra.mxu0 %v451
      %485 = vmatpush.bf16.msra.mxu0 %v450
      %486 = vmatpush.bf16.msra.mxu0 %v449
      %487 = vmatpush.bf16.msra.mxu0 %v448
      %488 = vmatmul.bf16.gmra.mxu0 %v368
      %v489 = vpop.f32.mrf.mxu0
      %v490 = vadd.f32 %v342, %v489
      %v491 = vpop.f32.mrf.mxu0
      %v492 = vadd.f32 %v342, %v491
      %493 = vmatmul.bf16.gmra.mxu0 %v370
      %v494 = vpop.f32.mrf.mxu0
      %v495 = vadd.f32 %v342, %v494
      %v496 = vpop.f32.mrf.mxu0
      %v497 = vadd.f32 %v342, %v496
      %498 = vmatmul.bf16.gmra.mxu0 %v372
      %v499 = vpop.f32.mrf.mxu0
      %v500 = vadd.f32 %v342, %v499
      %v501 = vpop.f32.mrf.mxu0
      %v502 = vadd.f32 %v342, %v501
      %503 = vmatmul.bf16.gmra.mxu0 %v374
      %v504 = vpop.f32.mrf.mxu0
      %v505 = vadd.f32 %v342, %v504
      %v506 = vpop.f32.mrf.mxu0
      %v507 = vadd.f32 %v342, %v506
      %508 = vdwg.mxu0
      %509 = vmatpush.bf16.msra.mxu0 %v463
      %510 = vmatpush.bf16.msra.mxu0 %v462
      %511 = vmatpush.bf16.msra.mxu0 %v461
      %512 = vmatpush.bf16.msra.mxu0 %v460
      %513 = vmatpush.bf16.msra.mxu0 %v459
      %514 = vmatpush.bf16.msra.mxu0 %v458
      %515 = vmatpush.bf16.msra.mxu0 %v457
      %516 = vmatpush.bf16.msra.mxu0 %v456
      %517 = vmatmul.bf16.gmra.mxu0 %v369
      %v518 = vpop.f32.mrf.mxu0
      %v519 = vadd.f32 %v490, %v518
      %v520 = vpop.f32.mrf.mxu0
      %v521 = vadd.f32 %v492, %v520
      %522 = vmatmul.bf16.gmra.mxu0 %v371
      %v523 = vpop.f32.mrf.mxu0
      %v524 = vadd.f32 %v495, %v523
      %v525 = vpop.f32.mrf.mxu0
      %v526 = vadd.f32 %v497, %v525
      %527 = vmatmul.bf16.gmra.mxu0 %v373
      %v528 = vpop.f32.mrf.mxu0
      %v529 = vadd.f32 %v500, %v528
      %v530 = vpop.f32.mrf.mxu0
      %v531 = vadd.f32 %v502, %v530
      %532 = vmatmul.bf16.gmra.mxu0 %v375
      %v533 = vpop.f32.mrf.mxu0
      %v534 = vadd.f32 %v505, %v533
      %v535 = vpop.f32.mrf.mxu0
      %v536 = vadd.f32 %v507, %v535
      %537 = vdwg.mxu0
      %538 = vst [vmem:[%s286] sm:$0xff] %v519
      %539 = vst [vmem:[%s286 + $0x8] sm:$0xff] %v521
      %540 = vst [vmem:[%s286 + $0x10] sm:$0xff] %v524
      %541 = vst [vmem:[%s286 + $0x18] sm:$0xff] %v526
      %542 = vst [vmem:[%s286 + $0x20] sm:$0xff] %v529
      %543 = vst [vmem:[%s286 + $0x28] sm:$0xff] %v531
      %544 = vst [vmem:[%s286 + $0x30] sm:$0xff] %v534
      %545 = vst [vmem:[%s286 + $0x38] sm:$0xff] %v536
      %v546 = vadd.f32 %v519, %v521
      %v547 = vadd.f32 %v546, %v524
      %v548 = vadd.f32 %v547, %v526
      %v549 = vadd.f32 %v548, %v529
      %v550 = vadd.f32 %v549, %v531
      %v551 = vadd.f32 %v550, %v534
      %v552 = vadd.f32 %v551, %v536
      %v553 = vrot.slane %v552, 4
      %v554 = vadd.f32 %v552, %v553
      %v555 = vrot.slane %v554, 2
      %v556 = vadd.f32 %v554, %v555
      %v557 = vrot.slane %v556, 1
      %v558 = vadd.f32 %v556, %v557
      %559 = vst [vmem:[%s293] sm:$0x1] %v558
      %v560 = vmul.f32 %v519, %v519
      %v561 = vmul.f32 %v521, %v521
      %v562 = vmul.f32 %v524, %v524
      %v563 = vmul.f32 %v526, %v526
      %v564 = vmul.f32 %v529, %v529
      %v565 = vmul.f32 %v531, %v531
      %v566 = vmul.f32 %v534, %v534
      %v567 = vmul.f32 %v536, %v536
      %v568 = vadd.f32 %v560, %v561
      %v569 = vadd.f32 %v568, %v562
      %v570 = vadd.f32 %v569, %v563
      %v571 = vadd.f32 %v570, %v564
      %v572 = vadd.f32 %v571, %v565
      %v573 = vadd.f32 %v572, %v566
      %v574 = vadd.f32 %v573, %v567
      %v575 = vrot.slane %v574, 4
      %v576 = vadd.f32 %v574, %v575
      %v577 = vrot.slane %v576, 2
      %v578 = vadd.f32 %v576, %v577
      %v579 = vrot.slane %v578, 1
      %v580 = vadd.f32 %v578, %v579
      %581 = vst [vmem:[%s299] sm:$0x1] %v580
      %s582 = smul.u32 8, %s22
      %p583 = scmp.lt.s32.totalorder %s21, 1
      %s584 = scalar_select %p583, %s21, 1
      %p585 = scmp.lt.s32.totalorder %s582, 7
      %s586 = scalar_select %p585, %s582, 7
      %s587 = smul.addr %s584, 8
      %s588 = sadd.s32 %s586, %s587
      %s589 = smul.addr %s588, 8
      %s590 = scalar_lea.vmem %s3, %s589
      %p591 = scmp.lt.s32.totalorder %s21, 1
      %s592 = scalar_select %p591, %s21, 1
      %p593 = scmp.lt.s32.totalorder %s22, 0
      %s594 = scalar_select %p593, %s22, 0
      %s595 = sadd.s32 %s594, %s592
      %s596 = scalar_lea.vmem %s4, %s595
      %p597 = scmp.lt.s32.totalorder %s21, 1
      %s598 = scalar_select %p597, %s21, 1
      %p599 = scmp.lt.s32.totalorder %s22, 0
      %s600 = scalar_select %p599, %s22, 0
      %s601 = sadd.s32 %s600, %s598
      %s602 = scalar_lea.vmem %s5, %s601
      // Predicated region
      $region33: #{detector_head_forward.5} parent=31 // pred_check
        %p603 = pneg %p119
      $region34: #{detector_head_forward.5} parent=31 // pred_check_branch
        %605 = sbr.rel (%p603) target = $region36
      $region35: #{detector_head_forward.5} parent=31 // pred_region
        %s606 = smul.u32 8, %s22
      $region36: #{detector_head_forward.5} parent=31 // pred_fallthru
        _
      // Predicated region
      $region37: #{detector_head_forward.5} parent=31 // pred_check
        %p607 = pneg %p147
      $region38: #{detector_head_forward.5} parent=31 // pred_check_branch
        %609 = sbr.rel (%p607) target = $region40
      $region39: #{detector_head_forward.5} parent=31 // pred_region
        _
      $region40: #{detector_head_forward.5} parent=31 // pred_fallthru
        _
      // Predicated region
      $region41: #{detector_head_forward.5} parent=31 // pred_check
        %p610 = pneg %p175
      $region42: #{detector_head_forward.5} parent=31 // pred_check_branch
        %612 = sbr.rel (%p610) target = $region44
      $region43: #{detector_head_forward.5} parent=31 // pred_region
        _
      $region44: #{detector_head_forward.5} parent=31 // pred_fallthru
        _
    $region32: #{detector_head_forward.5} parent=5 // pred_fallthru
      _
    %p613 = scmp.le.s32.totalorder 2, %s12
    // Predicated region
    $region45: #{detector_head_forward.5} parent=5 // pred_check
      %p614 = pneg %p613
    $region46: #{detector_head_forward.5} parent=5 // pred_check_branch
      %616 = sbr.rel (%p614) target = $region48
    $region47: #{detector_head_forward.5} parent=5 // pred_region
      %s617 = ssub.s32 %s12, 2
      // Predicated region
      $region49: #{detector_head_forward.5} parent=47 // pred_check
        %p618 = pneg %p125
      $region50: #{detector_head_forward.5} parent=47 // pred_check_branch
        %620 = sbr.rel (%p618) target = $region52
      $region51: #{detector_head_forward.5} parent=47 // pred_region
        %s621 = smul.u32 8, %s24
        %p622 = scmp.lt.s32.totalorder %s23, 1
        %s623 = scalar_select %p622, %s23, 1
        %p624 = scmp.lt.s32.totalorder %s621, 7
        %s625 = scalar_select %p624, %s621, 7
        %s626 = smul.addr %s623, 8
        %s627 = sadd.s32 %s625, %s626
        %s628 = smul.addr %s627, 8
        %s629 = scalar_lea.vmem %s3, %s628
      $region52: #{detector_head_forward.5} parent=47 // pred_fallthru
        _
      // Predicated region
      $region53: #{detector_head_forward.5} parent=47 // pred_check
        %p630 = pneg %p153
      $region54: #{detector_head_forward.5} parent=47 // pred_check_branch
        %632 = sbr.rel (%p630) target = $region56
      $region55: #{detector_head_forward.5} parent=47 // pred_region
        %p633 = scmp.lt.s32.totalorder %s23, 1
        %s634 = scalar_select %p633, %s23, 1
        %p635 = scmp.lt.s32.totalorder %s24, 0
        %s636 = scalar_select %p635, %s24, 0
        %s637 = sadd.s32 %s636, %s634
        %s638 = scalar_lea.vmem %s4, %s637
      $region56: #{detector_head_forward.5} parent=47 // pred_fallthru
        _
      // Predicated region
      $region57: #{detector_head_forward.5} parent=47 // pred_check
        %p639 = pneg %p181
      $region58: #{detector_head_forward.5} parent=47 // pred_check_branch
        %641 = sbr.rel (%p639) target = $region60
      $region59: #{detector_head_forward.5} parent=47 // pred_region
        %p642 = scmp.lt.s32.totalorder %s23, 1
        %s643 = scalar_select %p642, %s23, 1
        %p644 = scmp.lt.s32.totalorder %s24, 0
        %s645 = scalar_select %p644, %s24, 0
        %s646 = sadd.s32 %s645, %s643
        %s647 = scalar_lea.vmem %s5, %s646
      $region60: #{detector_head_forward.5} parent=47 // pred_fallthru
        _
    $region48: #{detector_head_forward.5} parent=5 // pred_fallthru
      _
  $region6: #{detector_head_forward.5} parent=0 // loop_footer
    %s16 = sadd.s32 1, %s12
  $region7: #{detector_head_forward.5} parent=0 // loop_footer_branch
    %11 = sbr.rel target = $region3
  $region8: #{detector_head_forward.5} parent=0 // loop_exit
    _

// kernel: detector_head_forward.6
$region0: #{detector_head_forward.6}
  #allocation0 [shape = 'u32[]', space=smem, size = 0x4, offset = 0x4, fixed_abs, tag = 'smem constant byte address 0x4 - core index']
  #allocation1 [shape = 'u32[72,128]{1,0:T(1,128)}', space=vmem, size = 0x9000, scoped, tag = 'internal scratch']
  %s0 = inlined_call_operand.vmem [shape: f32[2,64,128], index: 0, kind: input, shape index: {}]
  %s1 = inlined_call_operand.vmem [shape: f32[1,128], index: 1, kind: input, shape index: {}]
  %s2 = inlined_call_operand.vmem [shape: f32[1,128], index: 2, kind: input, shape index: {}]
  %s3 = inlined_call_operand.vmem [shape: f32[2,64,64], index: 3, kind: output, shape index: {}]
  %s4 = sld [smem:[#allocation0]]
  $region45: #{detector_head_forward.6} parent=0
    _
  %s6 = ssub.s32 1, %s4
  %s7 = scalar_select 0, %s6, %s4
  loop: start=0, step=1, limit=4
  $region2: #{detector_head_forward.6} parent=0 // loop_pre_header
    _
  $region3: #{detector_head_forward.6} parent=0 // loop_header
    %s9 = sphi 0, %s13
    %p10 = scmp.ge.s32.totalorder %s9, 4
    %s16 = sphi 0, %s28
    %s17 = sphi 0, %s24
    %s18 = sphi 0, %s16
    %s19 = sphi 0, %s17
    %s20 = sphi 0, %s18
    %s21 = sphi 0, %s19
    %s33 = sphi 0, %s35
    %s36 = sphi 0, %s33
    %s37 = sphi 0, %s36
    %s53 = sphi 0, %s37
    %s57 = sphi 0, %s57
    %s59 = sphi 0, %s57
    %s60 = sphi 0, %s59
    %s74 = sphi 0, %s60
    %s78 = sphi 0, %s78
    %s80 = sphi 0, %s78
    %s81 = sphi 0, %s80
    %s95 = sphi 0, %s81
    %s103 = sphi 0, %s105
    %s106 = sphi 0, %s103
    %s107 = sphi 0, %s106
    %s123 = sphi 0, %s107
  $region4: #{detector_head_forward.6} parent=0 // loop_header_branch
    %12 = sbr.rel (%p10) target = $region8
  $region5: #{detector_head_forward.6} parent=0 // loop_body
    %s14 = ssub.s32 %s9, 1
    %s15 = ssub.s32 %s9, 2
    %s22 = sadd.s32 1, %s17
    %p23 = scmp.ge.s32.totalorder %s22, 1
    %s24 = scalar_select %p23, 0, %s22
    %s25 = sadd.s32 1, %s16
    %s26 = scalar_select %p23, %s25, %s16
    %p27 = scmp.ge.s32.totalorder %s26, 2
    %s28 = scalar_select %p27, 0, %s26
    %s29 = ssub.s32 %s16, %s28
    %s30 = ssub.s32 %s17, %s24
    %s31 = sor.u32 %s29, %s30
    %p32 = scmp.eq.s32.totalorder %s31, 0
    %s34 = sadd.s32 %s33, 1
    %s35 = scalar_select %p32, %s33, %s34
    %p38 = pneg %p32
    %p39 = scmp.eq.s32.totalorder %s9, 1
    %p40 = por %p38, %p39
    %p41 = scmp.ne.s32.totalorder %s33, %s36
    %p42 = scmp.eq.s32.totalorder %s9, 0
    %p43 = por %p41, %p42
    %p44 = scmp.ne.s32.totalorder %s33, %s36
    %p45 = scmp.eq.s32.totalorder %s14, 1
    %p46 = por %p44, %p45
    %p47 = scmp.ne.s32.totalorder %s36, %s37
    %p48 = scmp.eq.s32.totalorder %s14, 0
    %p49 = por %p47, %p48
    %p50 = scmp.ne.s32.totalorder %s36, %s37
    %p51 = scmp.eq.s32.totalorder %s15, 1
    %p52 = por %p50, %p51
    %p54 = scmp.ne.s32.totalorder %s37, %s53
    %p55 = scmp.eq.s32.totalorder %s15, 0
    %p56 = por %p54, %p55
    %s58 = sadd.s32 %s57, 1
    %p61 = scmp.eq.s32.totalorder %s9, 1
    %p62 = scmp.ne.s32.totalorder %s57, %s59
    %p63 = scmp.eq.s32.totalorder %s9, 0
    %p64 = por %p62, %p63
    %p65 = scmp.ne.s32.totalorder %s57, %s59
    %p66 = scmp.eq.s32.totalorder %s14, 1
    %p67 = por %p65, %p66
    %p68 = scmp.ne.s32.totalorder %s59, %s60
    %p69 = scmp.eq.s32.totalorder %s14, 0
    %p70 = por %p68, %p69
    %p71 = scmp.ne.s32.totalorder %s59, %s60
    %p72 = scmp.eq.s32.totalorder %s15, 1
    %p73 = por %p71, %p72
    %p75 = scmp.ne.s32.totalorder %s60, %s74
    %p76 = scmp.eq.s32.totalorder %s15, 0
    %p77 = por %p75, %p76
    %s79 = sadd.s32 %s78, 1
    %p82 = scmp.eq.s32.totalorder %s9, 1
    %p83 = scmp.ne.s32.totalorder %s78, %s80
    %p84 = scmp.eq.s32.totalorder %s9, 0
    %p85 = por %p83, %p84
    %p86 = scmp.ne.s32.totalorder %s78, %s80
    %p87 = scmp.eq.s32.totalorder %s14, 1
    %p88 = por %p86, %p87
    %p89 = scmp.ne.s32.totalorder %s80, %s81
    %p90 = scmp.eq.s32.totalorder %s14, 0
    %p91 = por %p89, %p90
    %p92 = scmp.ne.s32.totalorder %s80, %s81
    %p93 = scmp.eq.s32.totalorder %s15, 1
    %p94 = por %p92, %p93
    %p96 = scmp.ne.s32.totalorder %s81, %s95
    %p97 = scmp.eq.s32.totalorder %s15, 0
    %p98 = por %p96, %p97
    %s99 = ssub.s32 %s16, %s28
    %s100 = ssub.s32 %s17, %s24
    %s101 = sor.u32 %s99, %s100
    %p102 = scmp.eq.s32.totalorder %s101, 0
    %s104 = sadd.s32 %s103, 1
    %s105 = scalar_select %p102, %s103, %s104
    %p108 = pneg %p102
    %p109 = scmp.eq.s32.totalorder %s9, 1
    %p110 = por %p108, %p109
    %p111 = scmp.ne.s32.totalorder %s103, %s106
    %p112 = scmp.eq.s32.totalorder %s9, 0
    %p113 = por %p111, %p112
    %p114 = scmp.ne.s32.totalorder %s103, %s106
    %p115 = scmp.eq.s32.totalorder %s14, 1
    %p116 = por %p114, %p115
    %p117 = scmp.ne.s32.totalorder %s106, %s107
    %p118 = scmp.eq.s32.totalorder %s14, 0
    %p119 = por %p117, %p118
    %p120 = scmp.ne.s32.totalorder %s106, %s107
    %p121 = scmp.eq.s32.totalorder %s15, 1
    %p122 = por %p120, %p121
    %p124 = scmp.ne.s32.totalorder %s107, %s123
    %p125 = scmp.eq.s32.totalorder %s15, 0
    %p126 = por %p124, %p125
    %p127 = scmp.le.s32.totalorder 1, %s9
    %p128 = scmp.lt.s32.totalorder %s9, 3
    %p129 = pnand %p127, %p128
    %p130 = pneg %p129
    // Predicated region
    $region9: #{detector_head_forward.6} parent=5 // pred_check
      _
    $region10: #{detector_head_forward.6} parent=5 // pred_check_branch
      %132 = sbr.rel (%p129) target = $region12
    $region11: #{detector_head_forward.6} parent=5 // pred_region
      %s133 = ssub.s32 %s9, 1
      // Predicated region
      $region13: #{detector_head_forward.6} parent=11 // pred_check
        %p134 = pneg %p70
      $region14: #{detector_head_forward.6} parent=11 // pred_check_branch
        %136 = sbr.rel (%p134) target = $region16
      $region15: #{detector_head_forward.6} parent=11 // pred_region
        _
      $region16: #{detector_head_forward.6} parent=11 // pred_fallthru
        _
      // Predicated region
      $region17: #{detector_head_forward.6} parent=11 // pred_check
        %p137 = pneg %p91
      $region18: #{detector_head_forward.6} parent=11 // pred_check_branch
        %139 = sbr.rel (%p137) target = $region20
      $region19: #{detector_head_forward.6} parent=11 // pred_region
        _
      $region20: #{detector_head_forward.6} parent=11 // pred_fallthru
        _
    $region12: #{detector_head_forward.6} parent=5 // pred_fallthru
      _
    %p140 = scmp.lt.s32.totalorder %s9, 2
    // Predicated region
    $region21: #{detector_head_forward.6} parent=5 // pred_check
      %p141 = pneg %p140
    $region22: #{detector_head_forward.6} parent=5 // pred_check_branch
      %143 = sbr.rel (%p141) target = $region24
    $region23: #{detector_head_forward.6} parent=5 // pred_region
      // Predicated region
      $region25: #{detector_head_forward.6} parent=23 // pred_check
        %p144 = pneg %p43
      $region26: #{detector_head_forward.6} parent=23 // pred_check_branch
        %146 = sbr.rel (%p144) target = $region28
      $region27: #{detector_head_forward.6} parent=23 // pred_region
        %s147 = smul.u32 8, %s17
        %p148 = scmp.lt.s32.totalorder %s16, 1
        %s149 = scalar_select %p148, %s16, 1
        %p150 = scmp.lt.s32.totalorder %s147, 7
        %s151 = scalar_select %p150, %s147, 7
        %s152 = smul.addr %s149, 8
        %s153 = sadd.s32 %s151, %s152
        %s154 = smul.addr %s153, 8
        %s155 = scalar_lea.vmem %s0, %s154
        %s156 = smul.u32 8, %s17
      $region28: #{detector_head_forward.6} parent=23 // pred_fallthru
        _
    $region24: #{detector_head_forward.6} parent=5 // pred_fallthru
      _
    %p157 = scmp.le.s32.totalorder 1, %s9
    %p158 = scmp.lt.s32.totalorder %s9, 3
    %p159 = pnand %p157, %p158
    %p160 = pneg %p159
    // Predicated region
    $region29: #{detector_head_forward.6} parent=5 // pred_check
      _
    $region30: #{detector_head_forward.6} parent=5 // pred_check_branch
      %162 = sbr.rel (%p159) target = $region32
    $region31: #{detector_head_forward.6} parent=5 // pred_region
      %s163 = ssub.s32 %s9, 1
      %s164 = smul.u32 8, %s19
      %p165 = scmp.lt.s32.totalorder %s18, 1
      %s166 = scalar_select %p165, %s18, 1
      %p167 = scmp.lt.s32.totalorder %s164, 7
      %s168 = scalar_select %p167, %s164, 7
      %s169 = smul.addr %s166, 8
      %s170 = sadd.s32 %s168, %s169
      %s171 = smul.addr %s170, 8
      %s172 = scalar_lea.vmem %s0, %s171
      %p173 = pneg %p49
      %p174 = pneg %p46
      %p175 = pneg %p70
      %p176 = pneg %p67
      %p177 = pneg %p91
      %p178 = pneg %p88
      %p179 = pneg %p119
      %p180 = pneg %p116
      %s181 = smul.u32 8, %s19
      %p182 = scmp.lt.s32.totalorder %s18, 1
      %s183 = scalar_select %p182, %s18, 1
      %p184 = scmp.lt.s32.totalorder %s181, 7
      %s185 = scalar_select %p184, %s181, 7
      %s186 = smul.addr %s183, 8
      %s187 = sadd.s32 %s185, %s186
      %s188 = smul.addr %s187, 8
      %s189 = scalar_lea.vmem %s3, %s188
      %s190 = smul.u32 8, %s19
      %p191 = scmp.lt.s32.totalorder %s18, 1
      %s192 = scalar_select %p191, %s18, 1
      %p193 = scmp.lt.s32.totalorder %s190, 7
      %s194 = scalar_select %p193, %s190, 7
      %s195 = smul.addr %s192, 8
      %s196 = sadd.s32 %s194, %s195
      %s197 = smul.addr %s196, 8
      %s198 = scalar_lea.vmem %s0, %s197
      %s199 = smul.u32 8, %s19
      %s200 = smul.u32 8, %s19
      %p201 = scmp.lt.s32.totalorder %s18, 1
      %s202 = scalar_select %p201, %s18, 1
      %p203 = scmp.lt.s32.totalorder %s200, 7
      %s204 = scalar_select %p203, %s200, 7
      %s205 = smul.addr %s202, 8
      %s206 = sadd.s32 %s204, %s205
      %s207 = smul.addr %s206, 8
      %s208 = scalar_lea.vmem %s3, %s207
      %s209 = smul.u32 8, %s19
      %v210 = vld [vmem:[%s198] sm:$0xff]
      %v211 = vld [vmem:[%s198 + $0x8] sm:$0xff]
      %v212 = vld [vmem:[%s198 + $0x10] sm:$0xff]
      %v213 = vld [vmem:[%s198 + $0x18] sm:$0xff]
      %v214 = vld [vmem:[%s198 + $0x20] sm:$0xff]
      %v215 = vld [vmem:[%s198 + $0x28] sm:$0xff]
      %v216 = vld [vmem:[%s198 + $0x30] sm:$0xff]
      %v217 = vld [vmem:[%s198 + $0x38] sm:$0xff]
      %v218 = vld [vmem:[%s1] sm:$0x1]
      %v220 = vperm.slane %v218, 0
      %v222 = vmul.f32 %v210, %v220
      %v223 = vmul.f32 %v211, %v220
      %v224 = vmul.f32 %v212, %v220
      %v225 = vmul.f32 %v213, %v220
      %v226 = vmul.f32 %v214, %v220
      %v227 = vmul.f32 %v215, %v220
      %v228 = vmul.f32 %v216, %v220
      %v229 = vmul.f32 %v217, %v220
      %v230 = vld [vmem:[%s2] sm:$0x1]
      %v232 = vperm.slane %v230, 0
      %v234 = vadd.f32 %v222, %v232
      %v235 = vadd.f32 %v223, %v232
      %v236 = vadd.f32 %v224, %v232
      %v237 = vadd.f32 %v225, %v232
      %v238 = vadd.f32 %v226, %v232
      %v239 = vadd.f32 %v227, %v232
      %v240 = vadd.f32 %v228, %v232
      %v241 = vadd.f32 %v229, %v232
      %v242 = vlaneseq
      %v243 = vand.u32 %v242, 127
      %vm244 = vcmp.lt.s32.totalorder %v243, 65
      %v245 = vsel %vm244, %v234, -inf
      %v246 = vsel %vm244, %v235, -inf
      %v247 = vsel %vm244, %v236, -inf
      %v248 = vsel %vm244, %v237, -inf
      %v249 = vsel %vm244, %v238, -inf
      %v250 = vsel %vm244, %v239, -inf
      %v251 = vsel %vm244, %v240, -inf
      %v252 = vsel %vm244, %v241, -inf
      %253 = vmax.xlane.f32.xlu0 %v245
      %v254 = vpop.xlane.xlu0 %253
      %255 = vmax.xlane.f32.xlu0 %v246
      %v256 = vpop.xlane.xlu0 %255
      %257 = vmax.xlane.f32.xlu0 %v247
      %v258 = vpop.xlane.xlu0 %257
      %259 = vmax.xlane.f32.xlu0 %v248
      %v260 = vpop.xlane.xlu0 %259
      %261 = vmax.xlane.f32.xlu0 %v249
      %v262 = vpop.xlane.xlu0 %261
      %263 = vmax.xlane.f32.xlu0 %v250
      %v264 = vpop.xlane.xlu0 %263
      %265 = vmax.xlane.f32.xlu0 %v251
      %v266 = vpop.xlane.xlu0 %265
      %267 = vmax.xlane.f32.xlu0 %v252
      %v268 = vpop.xlane.xlu0 %267
      %v269 = vsub.f32 %v245, %v254
      %v270 = vsub.f32 %v246, %v256
      %v271 = vsub.f32 %v247, %v258
      %v272 = vsub.f32 %v248, %v260
      %v273 = vsub.f32 %v249, %v262
      %v274 = vsub.f32 %v250, %v264
      %v275 = vsub.f32 %v251, %v266
      %v276 = vsub.f32 %v252, %v268
      %v277 = vmul.f32 %v269, 1.442695
      %v278 = vpow.pop %v277
      %v279 = vmul.f32 %v270, 1.442695
      %v280 = vpow.pop %v279
      %v281 = vmul.f32 %v271, 1.442695
      %v282 = vpow.pop %v281
      %v283 = vmul.f32 %v272, 1.442695
      %v284 = vpow.pop %v283
      %v285 = vmul.f32 %v273, 1.442695
      %v286 = vpow.pop %v285
      %v287 = vmul.f32 %v274, 1.442695
      %v288 = vpow.pop %v287
      %v289 = vmul.f32 %v275, 1.442695
      %v290 = vpow.pop %v289
      %v291 = vmul.f32 %v276, 1.442695
      %v292 = vpow.pop %v291
      %293 = vadd.xlane.f32.xlu0 %v278
      %v294 = vpop.xlane.xlu0 %293
      %295 = vadd.xlane.f32.xlu0 %v280
      %v296 = vpop.xlane.xlu0 %295
      %297 = vadd.xlane.f32.xlu0 %v282
      %v298 = vpop.xlane.xlu0 %297
      %299 = vadd.xlane.f32.xlu0 %v284
      %v300 = vpop.xlane.xlu0 %299
      %301 = vadd.xlane.f32.xlu0 %v286
      %v302 = vpop.xlane.xlu0 %301
      %303 = vadd.xlane.f32.xlu0 %v288
      %v304 = vpop.xlane.xlu0 %303
      %305 = vadd.xlane.f32.xlu0 %v290
      %v306 = vpop.xlane.xlu0 %305
      %307 = vadd.xlane.f32.xlu0 %v292
      %v308 = vpop.xlane.xlu0 %307
      %v309 = vrcp.pop %v294
      %v310 = vmul.f32 %v294, %v309
      %v311 = vsub.f32 1.0, %v310
      %v312 = vmul.f32 %v309, %v311
      %v313 = vadd.f32 %v309, %v312
      %vm314 = vweird.f32 %v294
      %vm315 = vweird.f32 %v309
      %vm316 = vmor %vm314, %vm315
      %v317 = vsel %vm316, %v309, %v313
      %v318 = vand.u32 2147483647, %v294
      %vm319 = vcmp.eq.f32.partialorder %v318, 8.507059e+37
      %v320 = vand.u32 %v294, 2147483648
      %v321 = vor.u32 1.1754944e-38, %v320
      %v322 = vsel %vm319, %v321, %v317
      %v323 = vrcp.pop %v296
      %v324 = vmul.f32 %v296, %v323
      %v325 = vsub.f32 1.0, %v324
      %v326 = vmul.f32 %v323, %v325
      %v327 = vadd.f32 %v323, %v326
      %vm328 = vweird.f32 %v296
      %vm329 = vweird.f32 %v323
      %vm330 = vmor %vm328, %vm329
      %v331 = vsel %vm330, %v323, %v327
      %v332 = vand.u32 2147483647, %v296
      %vm333 = vcmp.eq.f32.partialorder %v332, 8.507059e+37
      %v334 = vand.u32 %v296, 2147483648
      %v335 = vor.u32 1.1754944e-38, %v334
      %v336 = vsel %vm333, %v335, %v331
      %v337 = vrcp.pop %v298
      %v338 = vmul.f32 %v298, %v337
      %v339 = vsub.f32 1.0, %v338
      %v340 = vmul.f32 %v337, %v339
      %v341 = vadd.f32 %v337, %v340
      %vm342 = vweird.f32 %v298
      %vm343 = vweird.f32 %v337
      %vm344 = vmor %vm342, %vm343
      %v345 = vsel %vm344, %v337, %v341
      %v346 = vand.u32 2147483647, %v298
      %vm347 = vcmp.eq.f32.partialorder %v346, 8.507059e+37
      %v348 = vand.u32 %v298, 2147483648
      %v349 = vor.u32 1.1754944e-38, %v348
      %v350 = vsel %vm347, %v349, %v345
      %v351 = vrcp.pop %v300
      %v352 = vmul.f32 %v300, %v351
      %v353 = vsub.f32 1.0, %v352
      %v354 = vmul.f32 %v351, %v353
      %v355 = vadd.f32 %v351, %v354
      %vm356 = vweird.f32 %v300
      %vm357 = vweird.f32 %v351
      %vm358 = vmor %vm356, %vm357
      %v359 = vsel %vm358, %v351, %v355
      %v360 = vand.u32 2147483647, %v300
      %vm361 = vcmp.eq.f32.partialorder %v360, 8.507059e+37
      %v362 = vand.u32 %v300, 2147483648
      %v363 = vor.u32 1.1754944e-38, %v362
      %v364 = vsel %vm361, %v363, %v359
      %v365 = vrcp.pop %v302
      %v366 = vmul.f32 %v302, %v365
      %v367 = vsub.f32 1.0, %v366
      %v368 = vmul.f32 %v365, %v367
      %v369 = vadd.f32 %v365, %v368
      %vm370 = vweird.f32 %v302
      %vm371 = vweird.f32 %v365
      %vm372 = vmor %vm370, %vm371
      %v373 = vsel %vm372, %v365, %v369
      %v374 = vand.u32 2147483647, %v302
      %vm375 = vcmp.eq.f32.partialorder %v374, 8.507059e+37
      %v376 = vand.u32 %v302, 2147483648
      %v377 = vor.u32 1.1754944e-38, %v376
      %v378 = vsel %vm375, %v377, %v373
      %v379 = vrcp.pop %v304
      %v380 = vmul.f32 %v304, %v379
      %v381 = vsub.f32 1.0, %v380
      %v382 = vmul.f32 %v379, %v381
      %v383 = vadd.f32 %v379, %v382
      %vm384 = vweird.f32 %v304
      %vm385 = vweird.f32 %v379
      %vm386 = vmor %vm384, %vm385
      %v387 = vsel %vm386, %v379, %v383
      %v388 = vand.u32 2147483647, %v304
      %vm389 = vcmp.eq.f32.partialorder %v388, 8.507059e+37
      %v390 = vand.u32 %v304, 2147483648
      %v391 = vor.u32 1.1754944e-38, %v390
      %v392 = vsel %vm389, %v391, %v387
      %v393 = vrcp.pop %v306
      %v394 = vmul.f32 %v306, %v393
      %v395 = vsub.f32 1.0, %v394
      %v396 = vmul.f32 %v393, %v395
      %v397 = vadd.f32 %v393, %v396
      %vm398 = vweird.f32 %v306
      %vm399 = vweird.f32 %v393
      %vm400 = vmor %vm398, %vm399
      %v401 = vsel %vm400, %v393, %v397
      %v402 = vand.u32 2147483647, %v306
      %vm403 = vcmp.eq.f32.partialorder %v402, 8.507059e+37
      %v404 = vand.u32 %v306, 2147483648
      %v405 = vor.u32 1.1754944e-38, %v404
      %v406 = vsel %vm403, %v405, %v401
      %v407 = vrcp.pop %v308
      %v408 = vmul.f32 %v308, %v407
      %v409 = vsub.f32 1.0, %v408
      %v410 = vmul.f32 %v407, %v409
      %v411 = vadd.f32 %v407, %v410
      %vm412 = vweird.f32 %v308
      %vm413 = vweird.f32 %v407
      %vm414 = vmor %vm412, %vm413
      %v415 = vsel %vm414, %v407, %v411
      %v416 = vand.u32 2147483647, %v308
      %vm417 = vcmp.eq.f32.partialorder %v416, 8.507059e+37
      %v418 = vand.u32 %v308, 2147483648
      %v419 = vor.u32 1.1754944e-38, %v418
      %v420 = vsel %vm417, %v419, %v415
      %v421 = vmul.f32 %v278, %v322
      %v422 = vmul.f32 %v280, %v336
      %v423 = vmul.f32 %v282, %v350
      %v424 = vmul.f32 %v284, %v364
      %v425 = vmul.f32 %v286, %v378
      %v426 = vmul.f32 %v288, %v392
      %v427 = vmul.f32 %v290, %v406
      %v428 = vmul.f32 %v292, %v420
      %vm429 = vcmask 523264
      %430 = vst.msk [vmem:[%s208] sm:$0xff] %vm429, %v421
      %431 = vst.msk [vmem:[%s208 + $0x8] sm:$0xff] %vm429, %v422
      %432 = vst.msk [vmem:[%s208 + $0x10] sm:$0xff] %vm429, %v423
      %433 = vst.msk [vmem:[%s208 + $0x18] sm:$0xff] %vm429, %v424
      %434 = vst.msk [vmem:[%s208 + $0x20] sm:$0xff] %vm429, %v425
      %435 = vst.msk [vmem:[%s208 + $0x28] sm:$0xff] %vm429, %v426
      %436 = vst.msk [vmem:[%s208 + $0x30] sm:$0xff] %vm429, %v427
      %437 = vst.msk [vmem:[%s208 + $0x38] sm:$0xff] %vm429, %v428
      %s438 = smul.u32 8, %s19
      %p439 = scmp.lt.s32.totalorder %s18, 1
      %s440 = scalar_select %p439, %s18, 1
      %p441 = scmp.lt.s32.totalorder %s438, 7
      %s442 = scalar_select %p441, %s438, 7
      %s443 = smul.addr %s440, 8
      %s444 = sadd.s32 %s442, %s443
      %s445 = smul.addr %s444, 8
      %s446 = scalar_lea.vmem %s3, %s445
      // Predicated region
      $region33: #{detector_head_forward.6} parent=31 // pred_check
        %p447 = pneg %p116
      $region34: #{detector_head_forward.6} parent=31 // pred_check_branch
        %449 = sbr.rel (%p447) target = $region36
      $region35: #{detector_head_forward.6} parent=31 // pred_region
        %s450 = smul.u32 8, %s19
      $region36: #{detector_head_forward.6} parent=31 // pred_fallthru
        _
    $region32: #{detector_head_forward.6} parent=5 // pred_fallthru
      _
    %p451 = scmp.le.s32.totalorder 2, %s9
    // Predicated region
    $region37: #{detector_head_forward.6} parent=5 // pred_check
      %p452 = pneg %p451
    $region38: #{detector_head_forward.6} parent=5 // pred_check_branch
      %454 = sbr.rel (%p452) target = $region40
    $region39: #{detector_head_forward.6} parent=5 // pred_region
      %s455 = ssub.s32 %s9, 2
      // Predicated region
      $region41: #{detector_head_forward.6} parent=39 // pred_check
        %p456 = pneg %p122
      $region42: #{detector_head_forward.6} parent=39 // pred_check_branch
        %458 = sbr.rel (%p456) target = $region44
      $region43: #{detector_head_forward.6} parent=39 // pred_region
        %s459 = smul.u32 8, %s21
        %p460 = scmp.lt.s32.totalorder %s20, 1
        %s461 = scalar_select %p460, %s20, 1
        %p462 = scmp.lt.s32.totalorder %s459, 7
        %s463 = scalar_select %p462, %s459, 7
        %s464 = smul.addr %s461, 8
        %s465 = sadd.s32 %s463, %s464
        %s466 = smul.addr %s465, 8
        %s467 = scalar_lea.vmem %s3, %s466
      $region44: #{detector_head_forward.6} parent=39 // pred_fallthru
        _
    $region40: #{detector_head_forward.6} parent=5 // pred_fallthru
      _
  $region6: #{detector_head_forward.6} parent=0 // loop_footer
    %s13 = sadd.s32 1, %s9
  $region7: #{detector_head_forward.6} parent=0 // loop_footer_branch
    %8 = sbr.rel target = $region3
  $region8: #{detector_head_forward.6} parent=0 // loop_exit
    _

// kernel: detector_head_forward.4
$region0: #{detector_head_forward.4}
  #allocation0 [shape = 'u32[]', space=smem, size = 0x4, offset = 0x4, fixed_abs, tag = 'smem constant byte address 0x4 - core index']
  #allocation1 [shape = 'u32[72,128]{1,0:T(1,128)}', space=vmem, size = 0x9000, scoped, tag = 'internal scratch']
  %s0 = inlined_call_operand.vmem [shape: f32[2,10,10,8], index: 0, kind: input, shape index: {}]
  %s1 = inlined_call_operand.vmem [shape: bf16[9,8,256], index: 1, kind: input, shape index: {}]
  %s2 = inlined_call_operand.vmem [shape: f32[1,256], index: 2, kind: input, shape index: {}]
  %s3 = inlined_call_operand.vmem [shape: bf16[2,64,256], index: 3, kind: output, shape index: {0}]
  %s4 = inlined_call_operand.vmem [shape: f32[2,1,1,256], index: 4, kind: output, shape index: {1}]
  %s5 = inlined_call_operand.vmem [shape: f32[2,1,1,256], index: 5, kind: output, shape index: {2}]
  %6 = xla_tuple %s3, %s4, %s5
  %s7 = sld [smem:[#allocation0]]
  $region61: #{detector_head_forward.4} parent=0
    _
  %s9 = ssub.s32 1, %s7
  %s10 = scalar_select 0, %s9, %s7
  loop: start=0, step=1, limit=4
  $region2: #{detector_head_forward.4} parent=0 // loop_pre_header
    _
  $region3: #{detector_head_forward.4} parent=0 // loop_header
    %s12 = sphi 0, %s16
    %p13 = scmp.ge.s32.totalorder %s12, 4
    %s19 = sphi 0, %s31
    %s20 = sphi 0, %s27
    %s21 = sphi 0, %s19
    %s22 = sphi 0, %s20
    %s23 = sphi 0, %s21
    %s24 = sphi 0, %s22
    %s34 = sphi 0, %s36
    %s37 = sphi 0, %s34
    %s38 = sphi 0, %s37
    %s54 = sphi 0, %s38
    %s58 = sphi 0, %s58
    %s60 = sphi 0, %s58
    %s61 = sphi 0, %s60
    %s75 = sphi 0, %s61
    %s79 = sphi 0, %s79
    %s81 = sphi 0, %s79
    %s82 = sphi 0, %s81
    %s96 = sphi 0, %s82
    %s104 = sphi 0, %s106
    %s107 = sphi 0, %s104
    %s108 = sphi 0, %s107
    %s124 = sphi 0, %s108
    %s132 = sphi 0, %s134
    %s135 = sphi 0, %s132
    %s136 = sphi 0, %s135
    %s152 = sphi 0, %s136
    %s160 = sphi 0, %s162
    %s163 = sphi 0, %s160
    %s164 = sphi 0, %s163
    %s180 = sphi 0, %s164
  $region4: #{detector_head_forward.4} parent=0 // loop_header_branch
    %15 = sbr.rel (%p13) target = $region8
  $region5: #{detector_head_forward.4} parent=0 // loop_body
    %s17 = ssub.s32 %s12, 1
    %s18 = ssub.s32 %s12, 2
    %s25 = sadd.s32 1, %s20
    %p26 = scmp.ge.s32.totalorder %s25, 1
    %s27 = scalar_select %p26, 0, %s25
    %s28 = sadd.s32 1, %s19
    %s29 = scalar_select %p26, %s28, %s19
    %p30 = scmp.ge.s32.totalorder %s29, 2
    %s31 = scalar_select %p30, 0, %s29
    %s32 = ssub.s32 %s19, %s31
    %p33 = scmp.eq.s32.totalorder %s32, 0
    %s35 = sadd.s32 %s34, 1
    %s36 = scalar_select %p33, %s34, %s35
    %p39 = pneg %p33
    %p40 = scmp.eq.s32.totalorder %s12, 1
    %p41 = por %p39, %p40
    %p42 = scmp.ne.s32.totalorder %s34, %s37
    %p43 = scmp.eq.s32.totalorder %s12, 0
    %p44 = por %p42, %p43
    %p45 = scmp.ne.s32.totalorder %s34, %s37
    %p46 = scmp.eq.s32.totalorder %s17, 1
    %p47 = por %p45, %p46
    %p48 = scmp.ne.s32.totalorder %s37, %s38
    %p49 = scmp.eq.s32.totalorder %s17, 0
    %p50 = por %p48, %p49
    %p51 = scmp.ne.s32.totalorder %s37, %s38
    %p52 = scmp.eq.s32.totalorder %s18, 1
    %p53 = por %p51, %p52
    %p55 = scmp.ne.s32.totalorder %s38, %s54
    %p56 = scmp.eq.s32.totalorder %s18, 0
    %p57 = por %p55, %p56
    %s59 = sadd.s32 %s58, 1
    %p62 = scmp.eq.s32.totalorder %s12, 1
    %p63 = scmp.ne.s32.totalorder %s58, %s60
    %p64 = scmp.eq.s32.totalorder %s12, 0
    %p65 = por %p63, %p64
    %p66 = scmp.ne.s32.totalorder %s58, %s60
    %p67 = scmp.eq.s32.totalorder %s17, 1
    %p68 = por %p66, %p67
    %p69 = scmp.ne.s32.totalorder %s60, %s61
    %p70 = scmp.eq.s32.totalorder %s17, 0
    %p71 = por %p69, %p70
    %p72 = scmp.ne.s32.totalorder %s60, %s61
    %p73 = scmp.eq.s32.totalorder %s18, 1
    %p74 = por %p72, %p73
    %p76 = scmp.ne.s32.totalorder %s61, %s75
    %p77 = scmp.eq.s32.totalorder %s18, 0
    %p78 = por %p76, %p77
    %s80 = sadd.s32 %s79, 1
    %p83 = scmp.eq.s32.totalorder %s12, 1
    %p84 = scmp.ne.s32.totalorder %s79, %s81
    %p85 = scmp.eq.s32.totalorder %s12, 0
    %p86 = por %p84, %p85
    %p87 = scmp.ne.s32.totalorder %s79, %s81
    %p88 = scmp.eq.s32.totalorder %s17, 1
    %p89 = por %p87, %p88
    %p90 = scmp.ne.s32.totalorder %s81, %s82
    %p91 = scmp.eq.s32.totalorder %s17, 0
    %p92 = por %p90, %p91
    %p93 = scmp.ne.s32.totalorder %s81, %s82
    %p94 = scmp.eq.s32.totalorder %s18, 1
    %p95 = por %p93, %p94
    %p97 = scmp.ne.s32.totalorder %s82, %s96
    %p98 = scmp.eq.s32.totalorder %s18, 0
    %p99 = por %p97, %p98
    %s100 = ssub.s32 %s19, %s31
    %s101 = ssub.s32 %s20, %s27
    %s102 = sor.u32 %s100, %s101
    %p103 = scmp.eq.s32.totalorder %s102, 0
    %s105 = sadd.s32 %s104, 1
    %s106 = scalar_select %p103, %s104, %s105
    %p109 = pneg %p103
    %p110 = scmp.eq.s32.totalorder %s12, 1
    %p111 = por %p109, %p110
    %p112 = scmp.ne.s32.totalorder %s104, %s107
    %p113 = scmp.eq.s32.totalorder %s12, 0
    %p114 = por %p112, %p113
    %p115 = scmp.ne.s32.totalorder %s104, %s107
    %p116 = scmp.eq.s32.totalorder %s17, 1
    %p117 = por %p115, %p116
    %p118 = scmp.ne.s32.totalorder %s107, %s108
    %p119 = scmp.eq.s32.totalorder %s17, 0
    %p120 = por %p118, %p119
    %p121 = scmp.ne.s32.totalorder %s107, %s108
    %p122 = scmp.eq.s32.totalorder %s18, 1
    %p123 = por %p121, %p122
    %p125 = scmp.ne.s32.totalorder %s108, %s124
    %p126 = scmp.eq.s32.totalorder %s18, 0
    %p127 = por %p125, %p126
    %s128 = ssub.s32 %s19, %s31
    %s129 = ssub.s32 %s20, %s27
    %s130 = sor.u32 %s128, %s129
    %p131 = scmp.eq.s32.totalorder %s130, 0
    %s133 = sadd.s32 %s132, 1
    %s134 = scalar_select %p131, %s132, %s133
    %p137 = pneg %p131
    %p138 = scmp.eq.s32.totalorder %s12, 1
    %p139 = por %p137, %p138
    %p140 = scmp.ne.s32.totalorder %s132, %s135
    %p141 = scmp.eq.s32.totalorder %s12, 0
    %p142 = por %p140, %p141
    %p143 = scmp.ne.s32.totalorder %s132, %s135
    %p144 = scmp.eq.s32.totalorder %s17, 1
    %p145 = por %p143, %p144
    %p146 = scmp.ne.s32.totalorder %s135, %s136
    %p147 = scmp.eq.s32.totalorder %s17, 0
    %p148 = por %p146, %p147
    %p149 = scmp.ne.s32.totalorder %s135, %s136
    %p150 = scmp.eq.s32.totalorder %s18, 1
    %p151 = por %p149, %p150
    %p153 = scmp.ne.s32.totalorder %s136, %s152
    %p154 = scmp.eq.s32.totalorder %s18, 0
    %p155 = por %p153, %p154
    %s156 = ssub.s32 %s19, %s31
    %s157 = ssub.s32 %s20, %s27
    %s158 = sor.u32 %s156, %s157
    %p159 = scmp.eq.s32.totalorder %s158, 0
    %s161 = sadd.s32 %s160, 1
    %s162 = scalar_select %p159, %s160, %s161
    %p165 = pneg %p159
    %p166 = scmp.eq.s32.totalorder %s12, 1
    %p167 = por %p165, %p166
    %p168 = scmp.ne.s32.totalorder %s160, %s163
    %p169 = scmp.eq.s32.totalorder %s12, 0
    %p170 = por %p168, %p169
    %p171 = scmp.ne.s32.totalorder %s160, %s163
    %p172 = scmp.eq.s32.totalorder %s17, 1
    %p173 = por %p171, %p172
    %p174 = scmp.ne.s32.totalorder %s163, %s164
    %p175 = scmp.eq.s32.totalorder %s17, 0
    %p176 = por %p174, %p175
    %p177 = scmp.ne.s32.totalorder %s163, %s164
    %p178 = scmp.eq.s32.totalorder %s18, 1
    %p179 = por %p177, %p178
    %p181 = scmp.ne.s32.totalorder %s164, %s180
    %p182 = scmp.eq.s32.totalorder %s18, 0
    %p183 = por %p181, %p182
    %p184 = scmp.le.s32.totalorder 1, %s12
    %p185 = scmp.lt.s32.totalorder %s12, 3
    %p186 = pnand %p184, %p185
    %p187 = pneg %p186
    // Predicated region
    $region9: #{detector_head_forward.4} parent=5 // pred_check
      _
    $region10: #{detector_head_forward.4} parent=5 // pred_check_branch
      %189 = sbr.rel (%p186) target = $region12
    $region11: #{detector_head_forward.4} parent=5 // pred_region
      %s190 = ssub.s32 %s12, 1
      // Predicated region
      $region13: #{detector_head_forward.4} parent=11 // pred_check
        %p191 = pneg %p71
      $region14: #{detector_head_forward.4} parent=11 // pred_check_branch
        %193 = sbr.rel (%p191) target = $region16
      $region15: #{detector_head_forward.4} parent=11 // pred_region
        _
      $region16: #{detector_head_forward.4} parent=11 // pred_fallthru
        _
      // Predicated region
      $region17: #{detector_head_forward.4} parent=11 // pred_check
        %p194 = pneg %p92
      $region18: #{detector_head_forward.4} parent=11 // pred_check_branch
        %196 = sbr.rel (%p194) target = $region20
      $region19: #{detector_head_forward.4} parent=11 // pred_region
        _
      $region20: #{detector_head_forward.4} parent=11 // pred_fallthru
        _
    $region12: #{detector_head_forward.4} parent=5 // pred_fallthru
      _
    %p197 = scmp.lt.s32.totalorder %s12, 2
    // Predicated region
    $region21: #{detector_head_forward.4} parent=5 // pred_check
      %p198 = pneg %p197
    $region22: #{detector_head_forward.4} parent=5 // pred_check_branch
      %200 = sbr.rel (%p198) target = $region24
    $region23: #{detector_head_forward.4} parent=5 // pred_region
      // Predicated region
      $region25: #{detector_head_forward.4} parent=23 // pred_check
        %p201 = pneg %p44
      $region26: #{detector_head_forward.4} parent=23 // pred_check_branch
        %203 = sbr.rel (%p201) target = $region28
      $region27: #{detector_head_forward.4} parent=23 // pred_region
        %p204 = scmp.lt.s32.totalorder %s19, 1
        %s205 = scalar_select %p204, %s19, 1
        %s206 = smul.addr %s205, 20
        %s207 = smul.addr %s206, 8
        %s208 = scalar_lea.vmem %s0, %s207
      $region28: #{detector_head_forward.4} parent=23 // pred_fallthru
        _
    $region24: #{detector_head_forward.4} parent=5 // pred_fallthru
      _
    %p209 = scmp.le.s32.totalorder 1, %s12
    %p210 = scmp.lt.s32.totalorder %s12, 3
    %p211 = pnand %p209, %p210
    %p212 = pneg %p211
    // Predicated region
    $region29: #{detector_head_forward.4} parent=5 // pred_check
      _
    $region30: #{detector_head_forward.4} parent=5 // pred_check_branch
      %214 = sbr.rel (%p211) target = $region32
    $region31: #{detector_head_forward.4} parent=5 // pred_region
      %s215 = ssub.s32 %s12, 1
      %p216 = scmp.lt.s32.totalorder %s21, 1
      %s217 = scalar_select %p216, %s21, 1
      %s218 = smul.addr %s217, 20
      %s219 = smul.addr %s218, 8
      %s220 = scalar_lea.vmem %s0, %s219
      %p221 = pneg %p50
      %p222 = pneg %p47
      %p223 = pneg %p71
      %p224 = pneg %p68
      %p225 = pneg %p92
      %p226 = pneg %p89
      %p227 = pneg %p120
      %p228 = pneg %p117
      %s229 = smul.u32 8, %s22
      %p230 = scmp.lt.s32.totalorder %s21, 1
      %s231 = scalar_select %p230, %s21, 1
      %p232 = scmp.lt.s32.totalorder %s229, 7
      %s233 = scalar_select %p232, %s229, 7
      %s234 = smul.addr %s233, 2
      %s235 = smul.addr %s231, 16
      %s236 = sadd.s32 %s234, %s235
      %s237 = smul.addr %s236, 4
      %s238 = scalar_lea.vmem %s3, %s237
      %p239 = pneg %p148
      %p240 = pneg %p145
      %p241 = scmp.lt.s32.totalorder %s21, 1
      %s242 = scalar_select %p241, %s21, 1
      %p243 = scmp.lt.s32.totalorder %s22, 0
      %s244 = scalar_select %p243, %s22, 0
      %s245 = smul.addr %s244, 2
      %s246 = smul.addr %s242, 2
      %s247 = sadd.s32 %s245, %s246
      %s248 = scalar_lea.vmem %s4, %s247
      %p249 = pneg %p176
      %p250 = pneg %p173
      %p251 = scmp.lt.s32.totalorder %s21, 1
      %s252 = scalar_select %p251, %s21, 1
      %p253 = scmp.lt.s32.totalorder %s22, 0
      %s254 = scalar_select %p253, %s22, 0
      %s255 = smul.addr %s254, 2
      %s256 = smul.addr %s252, 2
      %s257 = sadd.s32 %s255, %s256
      %s258 = scalar_lea.vmem %s5, %s257
      %p259 = scmp.lt.s32.totalorder %s21, 1
      %s260 = scalar_select %p259, %s21, 1
      %s261 = smul.addr %s260, 20
      %s262 = smul.addr %s261, 8
      %s263 = scalar_lea.vmem %s0, %s262
      %s264 = smul.u32 8, %s22
      %p265 = scmp.lt.s32.totalorder %s21, 1
      %s266 = scalar_select %p265, %s21, 1
      %p267 = scmp.lt.s32.totalorder %s264, 7
      %s268 = scalar_select %p267, %s264, 7
      %s269 = smul.addr %s268, 2
      %s270 = smul.addr %s266, 16
      %s271 = sadd.s32 %s269, %s270
      %s272 = smul.addr %s271, 4
      %s273 = scalar_lea.vmem %s3, %s272
      %s274 = smul.u32 8, %s22
      %p275 = scmp.lt.s32.totalorder %s21, 1
      %s276 = scalar_select %p275, %s21, 1
      %p277 = scmp.lt.s32.totalorder %s22, 0
      %s278 = scalar_select %p277, %s22, 0
      %s279 = smul.addr %s278, 2
      %s280 = smul.addr %s276, 2
      %s281 = sadd.s32 %s279, %s280
      %s282 = scalar_lea.vmem %s4, %s281
      %p283 = scmp.lt.s32.totalorder %s21, 1
      %s284 = scalar_select %p283, %s21, 1
      %p285 = scmp.lt.s32.totalorder %s22, 0
      %s286 = scalar_select %p285, %s22, 0
      %s287 = smul.addr %s286, 2
      %s288 = smul.addr %s284, 2
      %s289 = sadd.s32 %s287, %s288
      %s290 = scalar_lea.vmem %s5, %s289
      %s292 = smul.u32 %s22, 8
      %s293 = smul.u32 %s292, 16
      %s294 = scalar_lea.vmem %s263, %s293
      %v295 = vld [vmem:[%s294] sm:$0xff]
      %v296 = vld [vmem:[%s294 + $0x8] sm:$0x3]
      %v297 = vld [vmem:[%s294 + $0x10] sm:$0xff]
      %v298 = vld [vmem:[%s294 + $0x18] sm:$0x3]
      %v299 = vld [vmem:[%s294 + $0x20] sm:$0xff]
      %v300 = vld [vmem:[%s294 + $0x28] sm:$0x3]
      %v301 = vld [vmem:[%s294 + $0x30] sm:$0xff]
      %v302 = vld [vmem:[%s294 + $0x38] sm:$0x3]
      %v303 = vld [vmem:[%s294 + $0x40] sm:$0xff]
      %v304 = vld [vmem:[%s294 + $0x48] sm:$0x3]
      %v305 = vld [vmem:[%s294 + $0x50] sm:$0xff]
      %v306 = vld [vmem:[%s294 + $0x58] sm:$0x3]
      %v307 = vld [vmem:[%s294 + $0x60] sm:$0xff]
      %v308 = vld [vmem:[%s294 + $0x68] sm:$0x3]
      %v309 = vld [vmem:[%s294 + $0x70] sm:$0xff]
      %v310 = vld [vmem:[%s294 + $0x78] sm:$0x3]
      %v311 = vpack.c.bf16 %v297, %v295
      %v312 = vpack.c.bf16 %v301, %v299
      %v313 = vpack.c.bf16 %v305, %v303
      %v314 = vpack.c.bf16 %v309, %v307
      %v315 = vld [vmem:[%s1] sm:$0xff]
      %vm332 = vcmask 1046528
      %v333 = vrot.slane %v295, 1
      %v334 = vrot.slane %v296, 1
      %v335 = vsel %vm332, %v333, %v334
      %v336 = vrot.slane %v297, 1
      %v337 = vrot.slane %v298, 1
      %v338 = vsel %vm332, %v336, %v337
      %v339 = vrot.slane %v299, 1
      %v340 = vrot.slane %v300, 1
      %v341 = vsel %vm332, %v339, %v340
      %v342 = vrot.slane %v301, 1
      %v343 = vrot.slane %v302, 1
      %v344 = vsel %vm332, %v342, %v343
      %v345 = vrot.slane %v303, 1
      %v346 = vrot.slane %v304, 1
      %v347 = vsel %vm332, %v345, %v346
      %v348 = vrot.slane %v305, 1
      %v349 = vrot.slane %v306, 1
      %v350 = vsel %vm332, %v348, %v349
      %v351 = vrot.slane %v307, 1
      %v352 = vrot.slane %v308, 1
      %v353 = vsel %vm332, %v351, %v352
      %v354 = vrot.slane %v309, 1
      %v355 = vrot.slane %v310, 1
      %v356 = vsel %vm332, %v354, %v355
      %v365 = vpack.c.bf16 %v338, %v335
      %v366 = vpack.c.bf16 %v344, %v341
      %v367 = vpack.c.bf16 %v350, %v347
      %v368 = vpack.c.bf16 %v356, %v353
      %s369 = scalar_lea.vmem %s1, 8
      %v370 = vld [vmem:[%s369] sm:$0xff]
      %v372 = vunpack.c.l.b16 %v370
      %v373 = vunpack.c.h.b16 %v370
      %v374 = vpack.c.b16 %v372, %v372
      %v375 = vpack.c.b16 %v373, %v373
      %vm376 = vcmask 64512
      %v378 = vsel %vm376, %v365, 0
      %v381 = vsel %vm376, %v366, 0
      %v384 = vsel %vm376, %v367, 0
      %v387 = vsel %vm376, %v368, 0
      %vm389 = vcmask 1043456
      %v391 = vsel %vm389, %v374, 0
      %v394 = vsel %vm389, %v375, 0
      %396 = vmatpush.bf16.msra.mxu0 0
      %397 = vmatpush.bf16.msra.mxu0 0
      %398 = vmatpush.bf16.msra.mxu0 0
      %399 = vmatpush.bf16.msra.mxu0 0
      %400 = vmatpush.bf16.msra.mxu0 0
      %401 = vmatpush.bf16.msra.mxu0 0
      %402 = vmatpush.bf16.msra.mxu0 0
      %403 = vmatpush.bf16.msra.mxu0 %v391
      %404 = vmatmul.bf16.gmra.mxu0 %v378
      %v405 = vpop.f32.mrf.mxu0
      %v406 = vadd.f32 0.0, %v405
      %v407 = vpop.f32.mrf.mxu0
      %v408 = vadd.f32 0.0, %v407
      %409 = vmatmul.bf16.gmra.mxu0 %v381
      %v410 = vpop.f32.mrf.mxu0
      %v411 = vadd.f32 0.0, %v410
      %v412 = vpop.f32.mrf.mxu0
      %v413 = vadd.f32 0.0, %v412
      %414 = vmatmul.bf16.gmra.mxu0 %v384
      %v415 = vpop.f32.mrf.mxu0
      %v416 = vadd.f32 0.0, %v415
      %v417 = vpop.f32.mrf.mxu0
      %v418 = vadd.f32 0.0, %v417
      %419 = vmatmul.bf16.gmra.mxu0 %v387
      %v420 = vpop.f32.mrf.mxu0
      %v421 = vadd.f32 0.0, %v420
      %v422 = vpop.f32.mrf.mxu0
      %v423 = vadd.f32 0.0, %v422
      %424 = vdwg.mxu0
      %425 = vmatpush.bf16.msra.mxu0 0
      %426 = vmatpush.bf16.msra.mxu0 0
      %427 = vmatpush.bf16.msra.mxu0 0
      %428 = vmatpush.bf16.msra.mxu0 0
      %429 = vmatpush.bf16.msra.mxu0 0
      %430 = vmatpush.bf16.msra.mxu0 0
      %431 = vmatpush.bf16.msra.mxu0 0
      %432 = vmatpush.bf16.msra.mxu0 %v394
      %433 = vmatmul.bf16.gmra.mxu0 %v378
      %v434 = vpop.f32.mrf.mxu0
      %v435 = vadd.f32 0.0, %v434
      %v436 = vpop.f32.mrf.mxu0
      %v437 = vadd.f32 0.0, %v436
      %438 = vmatmul.bf16.gmra.mxu0 %v381
      %v439 = vpop.f32.mrf.mxu0
      %v440 = vadd.f32 0.0, %v439
      %v441 = vpop.f32.mrf.mxu0
      %v442 = vadd.f32 0.0, %v441
      %443 = vmatmul.bf16.gmra.mxu0 %v384
      %v444 = vpop.f32.mrf.mxu0
      %v445 = vadd.f32 0.0, %v444
      %v446 = vpop.f32.mrf.mxu0
      %v447 = vadd.f32 0.0, %v446
      %448 = vmatmul.bf16.gmra.mxu0 %v387
      %v449 = vpop.f32.mrf.mxu0
      %v450 = vadd.f32 0.0, %v449
      %v451 = vpop.f32.mrf.mxu0
      %v452 = vadd.f32 0.0, %v451
      %453 = vdwg.mxu0
      %v455 = vunpack.c.l.b16 %v315
      %v456 = vunpack.c.h.b16 %v315
      %v457 = vpack.c.b16 %v455, %v455
      %v458 = vpack.c.b16 %v456, %v456
      %v460 = vsel %vm376, %v311, 0
      %v463 = vsel %vm376, %v312, 0
      %v466 = vsel %vm376, %v313, 0
      %v469 = vsel %vm376, %v314, 0
      %v472 = vsel %vm389, %v457, 0
      %v475 = vsel %vm389, %v458, 0
      %477 = vmatpush.bf16.msra.mxu0 0
      %478 = vmatpush.bf16.msra.mxu0 0
      %479 = vmatpush.bf16.msra.mxu0 0
      %480 = vmatpush.bf16.msra.mxu0 0
      %481 = vmatpush.bf16.msra.mxu0 0
      %482 = vmatpush.bf16.msra.mxu0 0
      %483 = vmatpush.bf16.msra.mxu0 0
      %484 = vmatpush.bf16.msra.mxu0 %v472
      %485 = vmatmul.bf16.gmra.mxu0 %v460
      %v486 = vpop.f32.mrf.mxu0
      %v487 = vadd.f32 %v406, %v486
      %v488 = vpop.f32.mrf.mxu0
      %v489 = vadd.f32 %v408, %v488
      %490 = vmatmul.bf16.gmra.mxu0 %v463
      %v491 = vpop.f32.mrf.mxu0
      %v492 = vadd.f32 %v411, %v491
      %v493 = vpop.f32.mrf.mxu0
      %v494 = vadd.f32 %v413, %v493
      %495 = vmatmul.bf16.gmra.mxu0 %v466
      %v496 = vpop.f32.mrf.mxu0
      %v497 = vadd.f32 %v416, %v496
      %v498 = vpop.f32.mrf.mxu0
      %v499 = vadd.f32 %v418, %v498
      %500 = vmatmul.bf16.gmra.mxu0 %v469
      %v501 = vpop.f32.mrf.mxu0
      %v502 = vadd.f32 %v421, %v501
      %v503 = vpop.f32.mrf.mxu0
      %v504 = vadd.f32 %v423, %v503
      %505 = vdwg.mxu0
      %506 = vmatpush.bf16.msra.mxu0 0
      %507 = vmatpush.bf16.msra.mxu0 0
      %508 = vmatpush.bf16.msra.mxu0 0
      %509 = vmatpush.bf16.msra.mxu0 0
      %510 = vmatpush.bf16.msra.mxu0 0
      %511 = vmatpush.bf16.msra.mxu0 0
      %512 = vmatpush.bf16.msra.mxu0 0
      %513 = vmatpush.bf16.msra.mxu0 %v475
      %514 = vmatmul.bf16.gmra.mxu0 %v460
      %v515 = vpop.f32.mrf.mxu0
      %v516 = vadd.f32 %v435, %v515
      %v517 = vpop.f32.mrf.mxu0
      %v518 = vadd.f32 %v437, %v517
      %519 = vmatmul.bf16.gmra.mxu0 %v463
      %v520 = vpop.f32.mrf.mxu0
      %v521 = vadd.f32 %v440, %v520
      %v522 = vpop.f32.mrf.mxu0
      %v523 = vadd.f32 %v442, %v522
      %524 = vmatmul.bf16.gmra.mxu0 %v466
      %v525 = vpop.f32.mrf.mxu0
      %v526 = vadd.f32 %v445, %v525
      %v527 = vpop.f32.mrf.mxu0
      %v528 = vadd.f32 %v447, %v527
      %529 = vmatmul.bf16.gmra.mxu0 %v469
      %v530 = vpop.f32.mrf.mxu0
      %v531 = vadd.f32 %v450, %v530
      %v532 = vpop.f32.mrf.mxu0
      %v533 = vadd.f32 %v452, %v532
      %534 = vdwg.mxu0
      %vm535 = vcmask 1045504
      %v536 = vrot.slane %v295, 2
      %v537 = vrot.slane %v296, 2
      %v538 = vsel %vm535, %v536, %v537
      %v539 = vrot.slane %v297, 2
      %v540 = vrot.slane %v298, 2
      %v541 = vsel %vm535, %v539, %v540
      %v542 = vrot.slane %v299, 2
      %v543 = vrot.slane %v300, 2
      %v544 = vsel %vm535, %v542, %v543
      %v545 = vrot.slane %v301, 2
      %v546 = vrot.slane %v302, 2
      %v547 = vsel %vm535, %v545, %v546
      %v548 = vrot.slane %v303, 2
      %v549 = vrot.slane %v304, 2
      %v550 = vsel %vm535, %v548, %v549
      %v551 = vrot.slane %v305, 2
      %v552 = vrot.slane %v306, 2
      %v553 = vsel %vm535, %v551, %v552
      %v554 = vrot.slane %v307, 2
      %v555 = vrot.slane %v308, 2
      %v556 = vsel %vm535, %v554, %v555
      %v557 = vrot.slane %v309, 2
      %v558 = vrot.slane %v310, 2
      %v559 = vsel %vm535, %v557, %v558
      %v568 = vpack.c.bf16 %v541, %v538
      %v569 = vpack.c.bf16 %v547, %v544
      %v570 = vpack.c.bf16 %v553, %v550
      %v571 = vpack.c.bf16 %v559, %v556
      %s572 = scalar_lea.vmem %s1, 16
      %v573 = vld [vmem:[%s572] sm:$0xff]
      %v575 = vunpack.c.l.b16 %v573
      %v576 = vunpack.c.h.b16 %v573
      %v577 = vpack.c.b16 %v575, %v575
      %v578 = vpack.c.b16 %v576, %v576
      %v580 = vsel %vm376, %v568, 0
      %v583 = vsel %vm376, %v569, 0
      %v586 = vsel %vm376, %v570, 0
      %v589 = vsel %vm376, %v571, 0
      %v592 = vsel %vm389, %v577, 0
      %v595 = vsel %vm389, %v578, 0
      %597 = vmatpush.bf16.msra.mxu0 0
      %598 = vmatpush.bf16.msra.mxu0 0
      %599 = vmatpush.bf16.msra.mxu0 0
      %600 = vmatpush.bf16.msra.mxu0 0
      %601 = vmatpush.bf16.msra.mxu0 0
      %602 = vmatpush.bf16.msra.mxu0 0
      %603 = vmatpush.bf16.msra.mxu0 0
      %604 = vmatpush.bf16.msra.mxu0 %v592
      %605 = vmatmul.bf16.gmra.mxu0 %v580
      %v606 = vpop.f32.mrf.mxu0
      %v607 = vadd.f32 0.0, %v606
      %v608 = vpop.f32.mrf.mxu0
      %v609 = vadd.f32 0.0, %v608
      %610 = vmatmul.bf16.gmra.mxu0 %v583
      %v611 = vpop.f32.mrf.mxu0
      %v612 = vadd.f32 0.0, %v611
      %v613 = vpop.f32.mrf.mxu0
      %v614 = vadd.f32 0.0, %v613
      %615 = vmatmul.bf16.gmra.mxu0 %v586
      %v616 = vpop.f32.mrf.mxu0
      %v617 = vadd.f32 0.0, %v616
      %v618 = vpop.f32.mrf.mxu0
      %v619 = vadd.f32 0.0, %v618
      %620 = vmatmul.bf16.gmra.mxu0 %v589
      %v621 = vpop.f32.mrf.mxu0
      %v622 = vadd.f32 0.0, %v621
      %v623 = vpop.f32.mrf.mxu0
      %v624 = vadd.f32 0.0, %v623
      %625 = vdwg.mxu0
      %626 = vmatpush.bf16.msra.mxu0 0
      %627 = vmatpush.bf16.msra.mxu0 0
      %628 = vmatpush.bf16.msra.mxu0 0
      %629 = vmatpush.bf16.msra.mxu0 0
      %630 = vmatpush.bf16.msra.mxu0 0
      %631 = vmatpush.bf16.msra.mxu0 0
      %632 = vmatpush.bf16.msra.mxu0 0
      %633 = vmatpush.bf16.msra.mxu0 %v595
      %634 = vmatmul.bf16.gmra.mxu0 %v580
      %v635 = vpop.f32.mrf.mxu0
      %v636 = vadd.f32 0.0, %v635
      %v637 = vpop.f32.mrf.mxu0
      %v638 = vadd.f32 0.0, %v637
      %639 = vmatmul.bf16.gmra.mxu0 %v583
      %v640 = vpop.f32.mrf.mxu0
      %v641 = vadd.f32 0.0, %v640
      %v642 = vpop.f32.mrf.mxu0
      %v643 = vadd.f32 0.0, %v642
      %644 = vmatmul.bf16.gmra.mxu0 %v586
      %v645 = vpop.f32.mrf.mxu0
      %v646 = vadd.f32 0.0, %v645
      %v647 = vpop.f32.mrf.mxu0
      %v648 = vadd.f32 0.0, %v647
      %649 = vmatmul.bf16.gmra.mxu0 %v589
      %v650 = vpop.f32.mrf.mxu0
      %v651 = vadd.f32 0.0, %v650
      %v652 = vpop.f32.mrf.mxu0
      %v653 = vadd.f32 0.0, %v652
      %654 = vdwg.mxu0
      %v655 = vadd.f32 %v487, %v607
      %v656 = vadd.f32 %v516, %v636
      %v657 = vadd.f32 %v489, %v609
      %v658 = vadd.f32 %v518, %v638
      %v659 = vadd.f32 %v492, %v612
      %v660 = vadd.f32 %v521, %v641
      %v661 = vadd.f32 %v494, %v614
      %v662 = vadd.f32 %v523, %v643
      %v663 = vadd.f32 %v497, %v617
      %v664 = vadd.f32 %v526, %v646
      %v665 = vadd.f32 %v499, %v619
      %v666 = vadd.f32 %v528, %v648
      %v667 = vadd.f32 %v502, %v622
      %v668 = vadd.f32 %v531, %v651
      %v669 = vadd.f32 %v504, %v624
      %v670 = vadd.f32 %v533, %v653
      %s671 = sadd.s32 %s292, 1
      %s672 = smul.u32 %s671, 16
      %s673 = scalar_lea.vmem %s263, %s672
      %v674 = vld [vmem:[%s673] sm:$0xff]
      %v675 = vld [vmem:[%s673 + $0x8] sm:$0x3]
      %v676 = vld [vmem:[%s673 + $0x10] sm:$0xff]
      %v677 = vld [vmem:[%s673 + $0x18] sm:$0x3]
      %v678 = vld [vmem:[%s673 + $0x20] sm:$0xff]
      %v679 = vld [vmem:[%s673 + $0x28] sm:$0x3]
      %v680 = vld [vmem:[%s673 + $0x30] sm:$0xff]
      %v681 = vld [vmem:[%s673 + $0x38] sm:$0x3]
      %v682 = vld [vmem:[%s673 + $0x40] sm:$0xff]
      %v683 = vld [vmem:[%s673 + $0x48] sm:$0x3]
      %v684 = vld [vmem:[%s673 + $0x50] sm:$0xff]
      %v685 = vld [vmem:[%s673 + $0x58] sm:$0x3]
      %v686 = vld [vmem:[%s673 + $0x60] sm:$0xff]
      %v687 = vld [vmem:[%s673 + $0x68] sm:$0x3]
      %v688 = vld [vmem:[%s673 + $0x70] sm:$0xff]
      %v689 = vld [vmem:[%s673 + $0x78] sm:$0x3]
      %v690 = vpack.c.bf16 %v676, %v674
      %v691 = vpack.c.bf16 %v680, %v678
      %v692 = vpack.c.bf16 %v684, %v682
      %v693 = vpack.c.bf16 %v688, %v686
      %s694 = scalar_lea.vmem %s1, 24
      %v695 = vld [vmem:[%s694] sm:$0xff]
      %v697 = vunpack.c.l.b16 %v695
      %v698 = vunpack.c.h.b16 %v695
      %v699 = vpack.c.b16 %v697, %v697
      %v700 = vpack.c.b16 %v698, %v698
      %v702 = vsel %vm376, %v690, 0
      %v705 = vsel %vm376, %v691, 0
      %v708 = vsel %vm376, %v692, 0
      %v711 = vsel %vm376, %v693, 0
      %v714 = vsel %vm389, %v699, 0
      %v717 = vsel %vm389, %v700, 0
      %719 = vmatpush.bf16.msra.mxu0 0
      %720 = vmatpush.bf16.msra.mxu0 0
      %721 = vmatpush.bf16.msra.mxu0 0
      %722 = vmatpush.bf16.msra.mxu0 0
      %723 = vmatpush.bf16.msra.mxu0 0
      %724 = vmatpush.bf16.msra.mxu0 0
      %725 = vmatpush.bf16.msra.mxu0 0
      %726 = vmatpush.bf16.msra.mxu0 %v714
      %727 = vmatmul.bf16.gmra.mxu0 %v702
      %v728 = vpop.f32.mrf.mxu0
      %v729 = vadd.f32 0.0, %v728
      %v730 = vpop.f32.mrf.mxu0
      %v731 = vadd.f32 0.0, %v730
      %732 = vmatmul.bf16.gmra.mxu0 %v705
      %v733 = vpop.f32.mrf.mxu0
      %v734 = vadd.f32 0.0, %v733
      %v735 = vpop.f32.mrf.mxu0
      %v736 = vadd.f32 0.0, %v735
      %737 = vmatmul.bf16.gmra.mxu0 %v708
      %v738 = vpop.f32.mrf.mxu0
      %v739 = vadd.f32 0.0, %v738
      %v740 = vpop.f32.mrf.mxu0
      %v741 = vadd.f32 0.0, %v740
      %742 = vmatmul.bf16.gmra.mxu0 %v711
      %v743 = vpop.f32.mrf.mxu0
      %v744 = vadd.f32 0.0, %v743
      %v745 = vpop.f32.mrf.mxu0
      %v746 = vadd.f32 0.0, %v745
      %747 = vdwg.mxu0
      %748 = vmatpush.bf16.msra.mxu0 0
      %749 = vmatpush.bf16.msra.mxu0 0
      %750 = vmatpush.bf16.msra.mxu0 0
      %751 = vmatpush.bf16.msra.mxu0 0
      %752 = vmatpush.bf16.msra.mxu0 0
      %753 = vmatpush.bf16.msra.mxu0 0
      %754 = vmatpush.bf16.msra.mxu0 0
      %755 = vmatpush.bf16.msra.mxu0 %v717
      %756 = vmatmul.bf16.gmra.mxu0 %v702
      %v757 = vpop.f32.mrf.mxu0
      %v758 = vadd.f32 0.0, %v757
      %v759 = vpop.f32.mrf.mxu0
      %v760 = vadd.f32 0.0, %v759
      %761 = vmatmul.bf16.gmra.mxu0 %v705
      %v762 = vpop.f32.mrf.mxu0
      %v763 = vadd.f32 0.0, %v762
      %v764 = vpop.f32.mrf.mxu0
      %v765 = vadd.f32 0.0, %v764
      %766 = vmatmul.bf16.gmra.mxu0 %v708
      %v767 = vpop.f32.mrf.mxu0
      %v768 = vadd.f32 0.0, %v767
      %v769 = vpop.f32.mrf.mxu0
      %v770 = vadd.f32 0.0, %v769
      %771 = vmatmul.bf16.gmra.mxu0 %v711
      %v772 = vpop.f32.mrf.mxu0
      %v773 = vadd.f32 0.0, %v772
      %v774 = vpop.f32.mrf.mxu0
      %v775 = vadd.f32 0.0, %v774
      %776 = vdwg.mxu0
      %v777 = vadd.f32 %v655, %v729
      %v778 = vadd.f32 %v656, %v758
      %v779 = vadd.f32 %v657, %v731
      %v780 = vadd.f32 %v658, %v760
      %v781 = vadd.f32 %v659, %v734
      %v782 = vadd.f32 %v660, %v763
      %v783 = vadd.f32 %v661, %v736
      %v784 = vadd.f32 %v662, %v765
      %v785 = vadd.f32 %v663, %v739
      %v786 = vadd.f32 %v664, %v768
      %v787 = vadd.f32 %v665, %v741
      %v788 = vadd.f32 %v666, %v770
      %v789 = vadd.f32 %v667, %v744
      %v790 = vadd.f32 %v668, %v773
      %v791 = vadd.f32 %v669, %v746
      %v792 = vadd.f32 %v670, %v775
      %v809 = vrot.slane %v674, 1
      %v810 = vrot.slane %v675, 1
      %v811 = vsel %vm332, %v809, %v810
      %v812 = vrot.slane %v676, 1
      %v813 = vrot.slane %v677, 1
      %v814 = vsel %vm332, %v812, %v813
      %v815 = vrot.slane %v678, 1
      %v816 = vrot.slane %v679, 1
      %v817 = vsel %vm332, %v815, %v816
      %v818 = vrot.slane %v680, 1
      %v819 = vrot.slane %v681, 1
      %v820 = vsel %vm332, %v818, %v819
      %v821 = vrot.slane %v682, 1
      %v822 = vrot.slane %v683, 1
      %v823 = vsel %vm332, %v821, %v822
      %v824 = vrot.slane %v684, 1
      %v825 = vrot.slane %v685, 1
      %v826 = vsel %vm332, %v824, %v825
      %v827 = vrot.slane %v686, 1
      %v828 = vrot.slane %v687, 1
      %v829 = vsel %vm332, %v827, %v828
      %v830 = vrot.slane %v688, 1
      %v831 = vrot.slane %v689, 1
      %v832 = vsel %vm332, %v830, %v831
      %v841 = vpack.c.bf16 %v814, %v811
      %v842 = vpack.c.bf16 %v820, %v817
      %v843 = vpack.c.bf16 %v826, %v823
      %v844 = vpack.c.bf16 %v832, %v829
      %s845 = scalar_lea.vmem %s1, 32
      %v846 = vld [vmem:[%s845] sm:$0xff]
      %v848 = vunpack.c.l.b16 %v846
      %v849 = vunpack.c.h.b16 %v846
      %v850 = vpack.c.b16 %v848, %v848
      %v851 = vpack.c.b16 %v849, %v849
      %v853 = vsel %vm376, %v841, 0
      %v856 = vsel %vm376, %v842, 0
      %v859 = vsel %vm376, %v843, 0
      %v862 = vsel %vm376, %v844, 0
      %v865 = vsel %vm389, %v850, 0
      %v868 = vsel %vm389, %v851, 0
      %870 = vmatpush.bf16.msra.mxu0 0
      %871 = vmatpush.bf16.msra.mxu0 0
      %872 = vmatpush.bf16.msra.mxu0 0
      %873 = vmatpush.bf16.msra.mxu0 0
      %874 = vmatpush.bf16.msra.mxu0 0
      %875 = vmatpush.bf16.msra.mxu0 0
      %876 = vmatpush.bf16.msra.mxu0 0
      %877 = vmatpush.bf16.msra.mxu0 %v865
      %878 = vmatmul.bf16.gmra.mxu0 %v853
      %v879 = vpop.f32.mrf.mxu0
      %v880 = vadd.f32 0.0, %v879
      %v881 = vpop.f32.mrf.mxu0
      %v882 = vadd.f32 0.0, %v881
      %883 = vmatmul.bf16.gmra.mxu0 %v856
      %v884 = vpop.f32.mrf.mxu0
      %v885 = vadd.f32 0.0, %v884
      %v886 = vpop.f32.mrf.mxu0
      %v887 = vadd.f32 0.0, %v886
      %888 = vmatmul.bf16.gmra.mxu0 %v859
      %v889 = vpop.f32.mrf.mxu0
      %v890 = vadd.f32 0.0, %v889
      %v891 = vpop.f32.mrf.mxu0
      %v892 = vadd.f32 0.0, %v891
      %893 = vmatmul.bf16.gmra.mxu0 %v862
      %v894 = vpop.f32.mrf.mxu0
      %v895 = vadd.f32 0.0, %v894
      %v896 = vpop.f32.mrf.mxu0
      %v897 = vadd.f32 0.0, %v896
      %898 = vdwg.mxu0
      %899 = vmatpush.bf16.msra.mxu0 0
      %900 = vmatpush.bf16.msra.mxu0 0
      %901 = vmatpush.bf16.msra.mxu0 0
      %902 = vmatpush.bf16.msra.mxu0 0
      %903 = vmatpush.bf16.msra.mxu0 0
      %904 = vmatpush.bf16.msra.mxu0 0
      %905 = vmatpush.bf16.msra.mxu0 0
      %906 = vmatpush.bf16.msra.mxu0 %v868
      %907 = vmatmul.bf16.gmra.mxu0 %v853
      %v908 = vpop.f32.mrf.mxu0
      %v909 = vadd.f32 0.0, %v908
      %v910 = vpop.f32.mrf.mxu0
      %v911 = vadd.f32 0.0, %v910
      %912 = vmatmul.bf16.gmra.mxu0 %v856
      %v913 = vpop.f32.mrf.mxu0
      %v914 = vadd.f32 0.0, %v913
      %v915 = vpop.f32.mrf.mxu0
      %v916 = vadd.f32 0.0, %v915
      %917 = vmatmul.bf16.gmra.mxu0 %v859
      %v918 = vpop.f32.mrf.mxu0
      %v919 = vadd.f32 0.0, %v918
      %v920 = vpop.f32.mrf.mxu0
      %v921 = vadd.f32 0.0, %v920
      %922 = vmatmul.bf16.gmra.mxu0 %v862
      %v923 = vpop.f32.mrf.mxu0
      %v924 = vadd.f32 0.0, %v923
      %v925 = vpop.f32.mrf.mxu0
      %v926 = vadd.f32 0.0, %v925
      %927 = vdwg.mxu0
      %v928 = vadd.f32 %v777, %v880
      %v929 = vadd.f32 %v778, %v909
      %v930 = vadd.f32 %v779, %v882
      %v931 = vadd.f32 %v780, %v911
      %v932 = vadd.f32 %v781, %v885
      %v933 = vadd.f32 %v782, %v914
      %v934 = vadd.f32 %v783, %v887
      %v935 = vadd.f32 %v784, %v916
      %v936 = vadd.f32 %v785, %v890
      %v937 = vadd.f32 %v786, %v919
      %v938 = vadd.f32 %v787, %v892
      %v939 = vadd.f32 %v788, %v921
      %v940 = vadd.f32 %v789, %v895
      %v941 = vadd.f32 %v790, %v924
      %v942 = vadd.f32 %v791, %v897
      %v943 = vadd.f32 %v792, %v926
      %v944 = vrot.slane %v674, 2
      %v945 = vrot.slane %v675, 2
      %v946 = vsel %vm535, %v944, %v945
      %v947 = vrot.slane %v676, 2
      %v948 = vrot.slane %v677, 2
      %v949 = vsel %vm535, %v947, %v948
      %v950 = vrot.slane %v678, 2
      %v951 = vrot.slane %v679, 2
      %v952 = vsel %vm535, %v950, %v951
      %v953 = vrot.slane %v680, 2
      %v954 = vrot.slane %v681, 2
      %v955 = vsel %vm535, %v953, %v954
      %v956 = vrot.slane %v682, 2
      %v957 = vrot.slane %v683, 2
      %v958 = vsel %vm535, %v956, %v957
      %v959 = vrot.slane %v684, 2
      %v960 = vrot.slane %v685, 2
      %v961 = vsel %vm535, %v959, %v960
      %v962 = vrot.slane %v686, 2
      %v963 = vrot.slane %v687, 2
      %v964 = vsel %vm535, %v962, %v963
      %v965 = vrot.slane %v688, 2
      %v966 = vrot.slane %v689, 2
      %v967 = vsel %vm535, %v965, %v966
      %v976 = vpack.c.bf16 %v949, %v946
      %v977 = vpack.c.bf16 %v955, %v952
      %v978 = vpack.c.bf16 %v961, %v958
      %v979 = vpack.c.bf16 %v967, %v964
      %s980 = scalar_lea.vmem %s1, 40
      %v981 = vld [vmem:[%s980] sm:$0xff]
      %v983 = vunpack.c.l.b16 %v981
      %v984 = vunpack.c.h.b16 %v981
      %v985 = vpack.c.b16 %v983, %v983
      %v986 = vpack.c.b16 %v984, %v984
      %v988 = vsel %vm376, %v976, 0
      %v991 = vsel %vm376, %v977, 0
      %v994 = vsel %vm376, %v978, 0
      %v997 = vsel %vm376, %v979, 0
      %v1000 = vsel %vm389, %v985, 0
      %v1003 = vsel %vm389, %v986, 0
      %1005 = vmatpush.bf16.msra.mxu0 0
      %1006 = vmatpush.bf16.msra.mxu0 0
      %1007 = vmatpush.bf16.msra.mxu0 0
      %1008 = vmatpush.bf16.msra.mxu0 0
      %1009 = vmatpush.bf16.msra.mxu0 0
      %1010 = vmatpush.bf16.msra.mxu0 0
      %1011 = vmatpush.bf16.msra.mxu0 0
      %1012 = vmatpush.bf16.msra.mxu0 %v1000
      %1013 = vmatmul.bf16.gmra.mxu0 %v988
      %v1014 = vpop.f32.mrf.mxu0
      %v1015 = vadd.f32 0.0, %v1014
      %v1016 = vpop.f32.mrf.mxu0
      %v1017 = vadd.f32 0.0, %v1016
      %1018 = vmatmul.bf16.gmra.mxu0 %v991
      %v1019 = vpop.f32.mrf.mxu0
      %v1020 = vadd.f32 0.0, %v1019
      %v1021 = vpop.f32.mrf.mxu0
      %v1022 = vadd.f32 0.0, %v1021
      %1023 = vmatmul.bf16.gmra.mxu0 %v994
      %v1024 = vpop.f32.mrf.mxu0
      %v1025 = vadd.f32 0.0, %v1024
      %v1026 = vpop.f32.mrf.mxu0
      %v1027 = vadd.f32 0.0, %v1026
      %1028 = vmatmul.bf16.gmra.mxu0 %v997
      %v1029 = vpop.f32.mrf.mxu0
      %v1030 = vadd.f32 0.0, %v1029
      %v1031 = vpop.f32.mrf.mxu0
      %v1032 = vadd.f32 0.0, %v1031
      %1033 = vdwg.mxu0
      %1034 = vmatpush.bf16.msra.mxu0 0
      %1035 = vmatpush.bf16.msra.mxu0 0
      %1036 = vmatpush.bf16.msra.mxu0 0
      %1037 = vmatpush.bf16.msra.mxu0 0
      %1038 = vmatpush.bf16.msra.mxu0 0
      %1039 = vmatpush.bf16.msra.mxu0 0
      %1040 = vmatpush.bf16.msra.mxu0 0
      %1041 = vmatpush.bf16.msra.mxu0 %v1003
      %1042 = vmatmul.bf16.gmra.mxu0 %v988
      %v1043 = vpop.f32.mrf.mxu0
      %v1044 = vadd.f32 0.0, %v1043
      %v1045 = vpop.f32.mrf.mxu0
      %v1046 = vadd.f32 0.0, %v1045
      %1047 = vmatmul.bf16.gmra.mxu0 %v991
      %v1048 = vpop.f32.mrf.mxu0
      %v1049 = vadd.f32 0.0, %v1048
      %v1050 = vpop.f32.mrf.mxu0
      %v1051 = vadd.f32 0.0, %v1050
      %1052 = vmatmul.bf16.gmra.mxu0 %v994
      %v1053 = vpop.f32.mrf.mxu0
      %v1054 = vadd.f32 0.0, %v1053
      %v1055 = vpop.f32.mrf.mxu0
      %v1056 = vadd.f32 0.0, %v1055
      %1057 = vmatmul.bf16.gmra.mxu0 %v997
      %v1058 = vpop.f32.mrf.mxu0
      %v1059 = vadd.f32 0.0, %v1058
      %v1060 = vpop.f32.mrf.mxu0
      %v1061 = vadd.f32 0.0, %v1060
      %1062 = vdwg.mxu0
      %v1063 = vadd.f32 %v928, %v1015
      %v1064 = vadd.f32 %v929, %v1044
      %v1065 = vadd.f32 %v930, %v1017
      %v1066 = vadd.f32 %v931, %v1046
      %v1067 = vadd.f32 %v932, %v1020
      %v1068 = vadd.f32 %v933, %v1049
      %v1069 = vadd.f32 %v934, %v1022
      %v1070 = vadd.f32 %v935, %v1051
      %v1071 = vadd.f32 %v936, %v1025
      %v1072 = vadd.f32 %v937, %v1054
      %v1073 = vadd.f32 %v938, %v1027
      %v1074 = vadd.f32 %v939, %v1056
      %v1075 = vadd.f32 %v940, %v1030
      %v1076 = vadd.f32 %v941, %v1059
      %v1077 = vadd.f32 %v942, %v1032
      %v1078 = vadd.f32 %v943, %v1061
      %s1079 = sadd.s32 %s292, 2
      %s1080 = smul.u32 %s1079, 16
      %s1081 = scalar_lea.vmem %s263, %s1080
      %v1082 = vld [vmem:[%s1081] sm:$0xff]
      %v1083 = vld [vmem:[%s1081 + $0x8] sm:$0x3]
      %v1084 = vld [vmem:[%s1081 + $0x10] sm:$0xff]
      %v1085 = vld [vmem:[%s1081 + $0x18] sm:$0x3]
      %v1086 = vld [vmem:[%s1081 + $0x20] sm:$0xff]
      %v1087 = vld [vmem:[%s1081 + $0x28] sm:$0x3]
      %v1088 = vld [vmem:[%s1081 + $0x30] sm:$0xff]
      %v1089 = vld [vmem:[%s1081 + $0x38] sm:$0x3]
      %v1090 = vld [vmem:[%s1081 + $0x40] sm:$0xff]
      %v1091 = vld [vmem:[%s1081 + $0x48] sm:$0x3]
      %v1092 = vld [vmem:[%s1081 + $0x50] sm:$0xff]
      %v1093 = vld [vmem:[%s1081 + $0x58] sm:$0x3]
      %v1094 = vld [vmem:[%s1081 + $0x60] sm:$0xff]
      %v1095 = vld [vmem:[%s1081 + $0x68] sm:$0x3]
      %v1096 = vld [vmem:[%s1081 + $0x70] sm:$0xff]
      %v1097 = vld [vmem:[%s1081 + $0x78] sm:$0x3]
      %v1098 = vpack.c.bf16 %v1084, %v1082
      %v1099 = vpack.c.bf16 %v1088, %v1086
      %v1100 = vpack.c.bf16 %v1092, %v1090
      %v1101 = vpack.c.bf16 %v1096, %v1094
      %s1102 = scalar_lea.vmem %s1, 48
      %v1103 = vld [vmem:[%s1102] sm:$0xff]
      %v1105 = vunpack.c.l.b16 %v1103
      %v1106 = vunpack.c.h.b16 %v1103
      %v1107 = vpack.c.b16 %v1105, %v1105
      %v1108 = vpack.c.b16 %v1106, %v1106
      %v1110 = vsel %vm376, %v1098, 0
      %v1113 = vsel %vm376, %v1099, 0
      %v1116 = vsel %vm376, %v1100, 0
      %v1119 = vsel %vm376, %v1101, 0
      %v1122 = vsel %vm389, %v1107, 0
      %v1125 = vsel %vm389, %v1108, 0
      %1127 = vmatpush.bf16.msra.mxu0 0
      %1128 = vmatpush.bf16.msra.mxu0 0
      %1129 = vmatpush.bf16.msra.mxu0 0
      %1130 = vmatpush.bf16.msra.mxu0 0
      %1131 = vmatpush.bf16.msra.mxu0 0
      %1132 = vmatpush.bf16.msra.mxu0 0
      %1133 = vmatpush.bf16.msra.mxu0 0
      %1134 = vmatpush.bf16.msra.mxu0 %v1122
      %1135 = vmatmul.bf16.gmra.mxu0 %v1110
      %v1136 = vpop.f32.mrf.mxu0
      %v1137 = vadd.f32 0.0, %v1136
      %v1138 = vpop.f32.mrf.mxu0
      %v1139 = vadd.f32 0.0, %v1138
      %1140 = vmatmul.bf16.gmra.mxu0 %v1113
      %v1141 = vpop.f32.mrf.mxu0
      %v1142 = vadd.f32 0.0, %v1141
      %v1143 = vpop.f32.mrf.mxu0
      %v1144 = vadd.f32 0.0, %v1143
      %1145 = vmatmul.bf16.gmra.mxu0 %v1116
      %v1146 = vpop.f32.mrf.mxu0
      %v1147 = vadd.f32 0.0, %v1146
      %v1148 = vpop.f32.mrf.mxu0
      %v1149 = vadd.f32 0.0, %v1148
      %1150 = vmatmul.bf16.gmra.mxu0 %v1119
      %v1151 = vpop.f32.mrf.mxu0
      %v1152 = vadd.f32 0.0, %v1151
      %v1153 = vpop.f32.mrf.mxu0
      %v1154 = vadd.f32 0.0, %v1153
      %1155 = vdwg.mxu0
      %1156 = vmatpush.bf16.msra.mxu0 0
      %1157 = vmatpush.bf16.msra.mxu0 0
      %1158 = vmatpush.bf16.msra.mxu0 0
      %1159 = vmatpush.bf16.msra.mxu0 0
      %1160 = vmatpush.bf16.msra.mxu0 0
      %1161 = vmatpush.bf16.msra.mxu0 0
      %1162 = vmatpush.bf16.msra.mxu0 0
      %1163 = vmatpush.bf16.msra.mxu0 %v1125
      %1164 = vmatmul.bf16.gmra.mxu0 %v1110
      %v1165 = vpop.f32.mrf.mxu0
      %v1166 = vadd.f32 0.0, %v1165
      %v1167 = vpop.f32.mrf.mxu0
      %v1168 = vadd.f32 0.0, %v1167
      %1169 = vmatmul.bf16.gmra.mxu0 %v1113
      %v1170 = vpop.f32.mrf.mxu0
      %v1171 = vadd.f32 0.0, %v1170
      %v1172 = vpop.f32.mrf.mxu0
      %v1173 = vadd.f32 0.0, %v1172
      %1174 = vmatmul.bf16.gmra.mxu0 %v1116
      %v1175 = vpop.f32.mrf.mxu0
      %v1176 = vadd.f32 0.0, %v1175
      %v1177 = vpop.f32.mrf.mxu0
      %v1178 = vadd.f32 0.0, %v1177
      %1179 = vmatmul.bf16.gmra.mxu0 %v1119
      %v1180 = vpop.f32.mrf.mxu0
      %v1181 = vadd.f32 0.0, %v1180
      %v1182 = vpop.f32.mrf.mxu0
      %v1183 = vadd.f32 0.0, %v1182
      %1184 = vdwg.mxu0
      %v1185 = vadd.f32 %v1063, %v1137
      %v1186 = vadd.f32 %v1064, %v1166
      %v1187 = vadd.f32 %v1065, %v1139
      %v1188 = vadd.f32 %v1066, %v1168
      %v1189 = vadd.f32 %v1067, %v1142
      %v1190 = vadd.f32 %v1068, %v1171
      %v1191 = vadd.f32 %v1069, %v1144
      %v1192 = vadd.f32 %v1070, %v1173
      %v1193 = vadd.f32 %v1071, %v1147
      %v1194 = vadd.f32 %v1072, %v1176
      %v1195 = vadd.f32 %v1073, %v1149
      %v1196 = vadd.f32 %v1074, %v1178
      %v1197 = vadd.f32 %v1075, %v1152
      %v1198 = vadd.f32 %v1076, %v1181
      %v1199 = vadd.f32 %v1077, %v1154
      %v1200 = vadd.f32 %v1078, %v1183
      %v1217 = vrot.slane %v1082, 1
      %v1218 = vrot.slane %v1083, 1
      %v1219 = vsel %vm332, %v1217, %v1218
      %v1220 = vrot.slane %v1084, 1
      %v1221 = vrot.slane %v1085, 1
      %v1222 = vsel %vm332, %v1220, %v1221
      %v1223 = vrot.slane %v1086, 1
      %v1224 = vrot.slane %v1087, 1
      %v1225 = vsel %vm332, %v1223, %v1224
      %v1226 = vrot.slane %v1088, 1
      %v1227 = vrot.slane %v1089, 1
      %v1228 = vsel %vm332, %v1226, %v1227
      %v1229 = vrot.slane %v1090, 1
      %v1230 = vrot.slane %v1091, 1
      %v1231 = vsel %vm332, %v1229, %v1230
      %v1232 = vrot.slane %v1092, 1
      %v1233 = vrot.slane %v1093, 1
      %v1234 = vsel %vm332, %v1232, %v1233
      %v1235 = vrot.slane %v1094, 1
      %v1236 = vrot.slane %v1095, 1
      %v1237 = vsel %vm332, %v1235, %v1236
      %v1238 = vrot.slane %v1096, 1
      %v1239 = vrot.slane %v1097, 1
      %v1240 = vsel %vm332, %v1238, %v1239
      %v1249 = vpack.c.bf16 %v1222, %v1219
      %v1250 = vpack.c.bf16 %v1228, %v1225
      %v1251 = vpack.c.bf16 %v1234, %v1231
      %v1252 = vpack.c.bf16 %v1240, %v1237
      %s1253 = scalar_lea.vmem %s1, 56
      %v1254 = vld [vmem:[%s1253] sm:$0xff]
      %v1256 = vunpack.c.l.b16 %v1254
      %v1257 = vunpack.c.h.b16 %v1254
      %v1258 = vpack.c.b16 %v1256, %v1256
      %v1259 = vpack.c.b16 %v1257, %v1257
      %v1261 = vsel %vm376, %v1249, 0
      %v1264 = vsel %vm376, %v1250, 0
      %v1267 = vsel %vm376, %v1251, 0
      %v1270 = vsel %vm376, %v1252, 0
      %v1273 = vsel %vm389, %v1258, 0
      %v1276 = vsel %vm389, %v1259, 0
      %1278 = vmatpush.bf16.msra.mxu0 0
      %1279 = vmatpush.bf16.msra.mxu0 0
      %1280 = vmatpush.bf16.msra.mxu0 0
      %1281 = vmatpush.bf16.msra.mxu0 0
      %1282 = vmatpush.bf16.msra.mxu0 0
      %1283 = vmatpush.bf16.msra.mxu0 0
      %1284 = vmatpush.bf16.msra.mxu0 0
      %1285 = vmatpush.bf16.msra.mxu0 %v1273
      %1286 = vmatmul.bf16.gmra.mxu0 %v1261
      %v1287 = vpop.f32.mrf.mxu0
      %v1288 = vadd.f32 0.0, %v1287
      %v1289 = vpop.f32.mrf.mxu0
      %v1290 = vadd.f32 0.0, %v1289
      %1291 = vmatmul.bf16.gmra.mxu0 %v1264
      %v1292 = vpop.f32.mrf.mxu0
      %v1293 = vadd.f32 0.0, %v1292
      %v1294 = vpop.f32.mrf.mxu0
      %v1295 = vadd.f32 0.0, %v1294
      %1296 = vmatmul.bf16.gmra.mxu0 %v1267
      %v1297 = vpop.f32.mrf.mxu0
      %v1298 = vadd.f32 0.0, %v1297
      %v1299 = vpop.f32.mrf.mxu0
      %v1300 = vadd.f32 0.0, %v1299
      %1301 = vmatmul.bf16.gmra.mxu0 %v1270
      %v1302 = vpop.f32.mrf.mxu0
      %v1303 = vadd.f32 0.0, %v1302
      %v1304 = vpop.f32.mrf.mxu0
      %v1305 = vadd.f32 0.0, %v1304
      %1306 = vdwg.mxu0
      %1307 = vmatpush.bf16.msra.mxu0 0
      %1308 = vmatpush.bf16.msra.mxu0 0
      %1309 = vmatpush.bf16.msra.mxu0 0
      %1310 = vmatpush.bf16.msra.mxu0 0
      %1311 = vmatpush.bf16.msra.mxu0 0
      %1312 = vmatpush.bf16.msra.mxu0 0
      %1313 = vmatpush.bf16.msra.mxu0 0
      %1314 = vmatpush.bf16.msra.mxu0 %v1276
      %1315 = vmatmul.bf16.gmra.mxu0 %v1261
      %v1316 = vpop.f32.mrf.mxu0
      %v1317 = vadd.f32 0.0, %v1316
      %v1318 = vpop.f32.mrf.mxu0
      %v1319 = vadd.f32 0.0, %v1318
      %1320 = vmatmul.bf16.gmra.mxu0 %v1264
      %v1321 = vpop.f32.mrf.mxu0
      %v1322 = vadd.f32 0.0, %v1321
      %v1323 = vpop.f32.mrf.mxu0
      %v1324 = vadd.f32 0.0, %v1323
      %1325 = vmatmul.bf16.gmra.mxu0 %v1267
      %v1326 = vpop.f32.mrf.mxu0
      %v1327 = vadd.f32 0.0, %v1326
      %v1328 = vpop.f32.mrf.mxu0
      %v1329 = vadd.f32 0.0, %v1328
      %1330 = vmatmul.bf16.gmra.mxu0 %v1270
      %v1331 = vpop.f32.mrf.mxu0
      %v1332 = vadd.f32 0.0, %v1331
      %v1333 = vpop.f32.mrf.mxu0
      %v1334 = vadd.f32 0.0, %v1333
      %1335 = vdwg.mxu0
      %v1336 = vadd.f32 %v1185, %v1288
      %v1337 = vadd.f32 %v1186, %v1317
      %v1338 = vadd.f32 %v1187, %v1290
      %v1339 = vadd.f32 %v1188, %v1319
      %v1340 = vadd.f32 %v1189, %v1293
      %v1341 = vadd.f32 %v1190, %v1322
      %v1342 = vadd.f32 %v1191, %v1295
      %v1343 = vadd.f32 %v1192, %v1324
      %v1344 = vadd.f32 %v1193, %v1298
      %v1345 = vadd.f32 %v1194, %v1327
      %v1346 = vadd.f32 %v1195, %v1300
      %v1347 = vadd.f32 %v1196, %v1329
      %v1348 = vadd.f32 %v1197, %v1303
      %v1349 = vadd.f32 %v1198, %v1332
      %v1350 = vadd.f32 %v1199, %v1305
      %v1351 = vadd.f32 %v1200, %v1334
      %v1352 = vrot.slane %v1082, 2
      %v1353 = vrot.slane %v1083, 2
      %v1354 = vsel %vm535, %v1352, %v1353
      %v1355 = vrot.slane %v1084, 2
      %v1356 = vrot.slane %v1085, 2
      %v1357 = vsel %vm535, %v1355, %v1356
      %v1358 = vrot.slane %v1086, 2
      %v1359 = vrot.slane %v1087, 2
      %v1360 = vsel %vm535, %v1358, %v1359
      %v1361 = vrot.slane %v1088, 2
      %v1362 = vrot.slane %v1089, 2
      %v1363 = vsel %vm535, %v1361, %v1362
      %v1364 = vrot.slane %v1090, 2
      %v1365 = vrot.slane %v1091, 2
      %v1366 = vsel %vm535, %v1364, %v1365
      %v1367 = vrot.slane %v1092, 2
      %v1368 = vrot.slane %v1093, 2
      %v1369 = vsel %vm535, %v1367, %v1368
      %v1370 = vrot.slane %v1094, 2
      %v1371 = vrot.slane %v1095, 2
      %v1372 = vsel %vm535, %v1370, %v1371
      %v1373 = vrot.slane %v1096, 2
      %v1374 = vrot.slane %v1097, 2
      %v1375 = vsel %vm535, %v1373, %v1374
      %v1384 = vpack.c.bf16 %v1357, %v1354
      %v1385 = vpack.c.bf16 %v1363, %v1360
      %v1386 = vpack.c.bf16 %v1369, %v1366
      %v1387 = vpack.c.bf16 %v1375, %v1372
      %s1388 = scalar_lea.vmem %s1, 64
      %v1389 = vld [vmem:[%s1388] sm:$0xff]
      %v1391 = vunpack.c.l.b16 %v1389
      %v1392 = vunpack.c.h.b16 %v1389
      %v1393 = vpack.c.b16 %v1391, %v1391
      %v1394 = vpack.c.b16 %v1392, %v1392
      %v1396 = vsel %vm376, %v1384, 0
      %v1399 = vsel %vm376, %v1385, 0
      %v1402 = vsel %vm376, %v1386, 0
      %v1405 = vsel %vm376, %v1387, 0
      %v1408 = vsel %vm389, %v1393, 0
      %v1411 = vsel %vm389, %v1394, 0
      %1413 = vmatpush.bf16.msra.mxu0 0
      %1414 = vmatpush.bf16.msra.mxu0 0
      %1415 = vmatpush.bf16.msra.mxu0 0
      %1416 = vmatpush.bf16.msra.mxu0 0
      %1417 = vmatpush.bf16.msra.mxu0 0
      %1418 = vmatpush.bf16.msra.mxu0 0
      %1419 = vmatpush.bf16.msra.mxu0 0
      %1420 = vmatpush.bf16.msra.mxu0 %v1408
      %1421 = vmatmul.bf16.gmra.mxu0 %v1396
      %v1422 = vpop.f32.mrf.mxu0
      %v1423 = vadd.f32 0.0, %v1422
      %v1424 = vpop.f32.mrf.mxu0
      %v1425 = vadd.f32 0.0, %v1424
      %1426 = vmatmul.bf16.gmra.mxu0 %v1399
      %v1427 = vpop.f32.mrf.mxu0
      %v1428 = vadd.f32 0.0, %v1427
      %v1429 = vpop.f32.mrf.mxu0
      %v1430 = vadd.f32 0.0, %v1429
      %1431 = vmatmul.bf16.gmra.mxu0 %v1402
      %v1432 = vpop.f32.mrf.mxu0
      %v1433 = vadd.f32 0.0, %v1432
      %v1434 = vpop.f32.mrf.mxu0
      %v1435 = vadd.f32 0.0, %v1434
      %1436 = vmatmul.bf16.gmra.mxu0 %v1405
      %v1437 = vpop.f32.mrf.mxu0
      %v1438 = vadd.f32 0.0, %v1437
      %v1439 = vpop.f32.mrf.mxu0
      %v1440 = vadd.f32 0.0, %v1439
      %1441 = vdwg.mxu0
      %1442 = vmatpush.bf16.msra.mxu0 0
      %1443 = vmatpush.bf16.msra.mxu0 0
      %1444 = vmatpush.bf16.msra.mxu0 0
      %1445 = vmatpush.bf16.msra.mxu0 0
      %1446 = vmatpush.bf16.msra.mxu0 0
      %1447 = vmatpush.bf16.msra.mxu0 0
      %1448 = vmatpush.bf16.msra.mxu0 0
      %1449 = vmatpush.bf16.msra.mxu0 %v1411
      %1450 = vmatmul.bf16.gmra.mxu0 %v1396
      %v1451 = vpop.f32.mrf.mxu0
      %v1452 = vadd.f32 0.0, %v1451
      %v1453 = vpop.f32.mrf.mxu0
      %v1454 = vadd.f32 0.0, %v1453
      %1455 = vmatmul.bf16.gmra.mxu0 %v1399
      %v1456 = vpop.f32.mrf.mxu0
      %v1457 = vadd.f32 0.0, %v1456
      %v1458 = vpop.f32.mrf.mxu0
      %v1459 = vadd.f32 0.0, %v1458
      %1460 = vmatmul.bf16.gmra.mxu0 %v1402
      %v1461 = vpop.f32.mrf.mxu0
      %v1462 = vadd.f32 0.0, %v1461
      %v1463 = vpop.f32.mrf.mxu0
      %v1464 = vadd.f32 0.0, %v1463
      %1465 = vmatmul.bf16.gmra.mxu0 %v1405
      %v1466 = vpop.f32.mrf.mxu0
      %v1467 = vadd.f32 0.0, %v1466
      %v1468 = vpop.f32.mrf.mxu0
      %v1469 = vadd.f32 0.0, %v1468
      %1470 = vdwg.mxu0
      %v1471 = vadd.f32 %v1336, %v1423
      %v1472 = vadd.f32 %v1337, %v1452
      %v1473 = vadd.f32 %v1338, %v1425
      %v1474 = vadd.f32 %v1339, %v1454
      %v1475 = vadd.f32 %v1340, %v1428
      %v1476 = vadd.f32 %v1341, %v1457
      %v1477 = vadd.f32 %v1342, %v1430
      %v1478 = vadd.f32 %v1343, %v1459
      %v1479 = vadd.f32 %v1344, %v1433
      %v1480 = vadd.f32 %v1345, %v1462
      %v1481 = vadd.f32 %v1346, %v1435
      %v1482 = vadd.f32 %v1347, %v1464
      %v1483 = vadd.f32 %v1348, %v1438
      %v1484 = vadd.f32 %v1349, %v1467
      %v1485 = vadd.f32 %v1350, %v1440
      %v1486 = vadd.f32 %v1351, %v1469
      %v1487 = vld [vmem:[%s2] sm:$0x3]
      %v1489 = vperm.slane %v1487, 0
      %v1490 = vperm.slane %v1487, 1
      %v1493 = vadd.f32 %v1471, %v1489
      %v1494 = vadd.f32 %v1472, %v1490
      %v1495 = vadd.f32 %v1473, %v1489
      %v1496 = vadd.f32 %v1474, %v1490
      %v1497 = vadd.f32 %v1475, %v1489
      %v1498 = vadd.f32 %v1476, %v1490
      %v1499 = vadd.f32 %v1477, %v1489
      %v1500 = vadd.f32 %v1478, %v1490
      %v1501 = vadd.f32 %v1479, %v1489
      %v1502 = vadd.f32 %v1480, %v1490
      %v1503 = vadd.f32 %v1481, %v1489
      %v1504 = vadd.f32 %v1482, %v1490
      %v1505 = vadd.f32 %v1483, %v1489
      %v1506 = vadd.f32 %v1484, %v1490
      %v1507 = vadd.f32 %v1485, %v1489
      %v1508 = vadd.f32 %v1486, %v1490
      %v1509 = vmax.f32 %v1493, 0.0
      %v1510 = vmax.f32 %v1494, 0.0
      %v1511 = vmax.f32 %v1495, 0.0
      %v1512 = vmax.f32 %v1496, 0.0
      %v1513 = vmax.f32 %v1497, 0.0
      %v1514 = vmax.f32 %v1498, 0.0
      %v1515 = vmax.f32 %v1499, 0.0
      %v1516 = vmax.f32 %v1500, 0.0
      %v1517 = vmax.f32 %v1501, 0.0
      %v1518 = vmax.f32 %v1502, 0.0
      %v1519 = vmax.f32 %v1503, 0.0
      %v1520 = vmax.f32 %v1504, 0.0
      %v1521 = vmax.f32 %v1505, 0.0
      %v1522 = vmax.f32 %v1506, 0.0
      %v1523 = vmax.f32 %v1507, 0.0
      %v1524 = vmax.f32 %v1508, 0.0
      %v1525 = vpack.c.bf16 %v1510, %v1509
      %v1526 = vpack.c.bf16 %v1512, %v1511
      %v1527 = vpack.c.bf16 %v1514, %v1513
      %v1528 = vpack.c.bf16 %v1516, %v1515
      %v1529 = vpack.c.bf16 %v1518, %v1517
      %v1530 = vpack.c.bf16 %v1520, %v1519
      %v1531 = vpack.c.bf16 %v1522, %v1521
      %v1532 = vpack.c.bf16 %v1524, %v1523
      %1533 = vst [vmem:[%s273] sm:$0xff] %v1525
      %1534 = vst [vmem:[%s273 + $0x8] sm:$0xff] %v1526
      %1535 = vst [vmem:[%s273 + $0x10] sm:$0xff] %v1527
      %1536 = vst [vmem:[%s273 + $0x18] sm:$0xff] %v1528
      %1537 = vst [vmem:[%s273 + $0x20] sm:$0xff] %v1529
      %1538 = vst [vmem:[%s273 + $0x28] sm:$0xff] %v1530
      %1539 = vst [vmem:[%s273 + $0x30] sm:$0xff] %v1531
      %1540 = vst [vmem:[%s273 + $0x38] sm:$0xff] %v1532
      %v1541 = vadd.f32 %v1509, %v1511
      %v1542 = vadd.f32 %v1541, %v1513
      %v1543 = vadd.f32 %v1542, %v1515
      %v1544 = vadd.f32 %v1543, %v1517
      %v1545 = vadd.f32 %v1544, %v1519
      %v1546 = vadd.f32 %v1545, %v1521
      %v1547 = vadd.f32 %v1546, %v1523
      %v1548 = vrot.slane %v1547, 4
      %v1549 = vadd.f32 %v1547, %v1548
      %v1550 = vrot.slane %v1549, 2
      %v1551 = vadd.f32 %v1549, %v1550
      %v1552 = vrot.slane %v1551, 1
      %v1553 = vadd.f32 %v1551, %v1552
      %v1554 = vadd.f32 %v1510, %v1512
      %v1555 = vadd.f32 %v1554, %v1514
      %v1556 = vadd.f32 %v1555, %v1516
      %v1557 = vadd.f32 %v1556, %v1518
      %v1558 = vadd.f32 %v1557, %v1520
      %v1559 = vadd.f32 %v1558, %v1522
      %v1560 = vadd.f32 %v1559, %v1524
      %v1561 = vrot.slane %v1560, 4
      %v1562 = vadd.f32 %v1560, %v1561
      %v1563 = vrot.slane %v1562, 2
      %v1564 = vadd.f32 %v1562, %v1563
      %v1565 = vrot.slane %v1564, 1
      %v1566 = vadd.f32 %v1564, %v1565
      %v1569 = vrot.slane %v1566, 7
      %vm1570 = vcmask 1040384
      %v1571 = vsel %vm1570, %v1553, %v1569
      %v1573 = vlaneseq
      %vm1574 = vcmp.ge.s32.totalorder %v1573, 0
      %vm1575 = vcmp.lt.s32.totalorder %v1573, 256
      %vm1576 = vmand %vm1574, %vm1575
      %1577 = vst.msk [vmem:[%s282] sm:$0x3] %vm1576, %v1571
      %v1578 = vmul.f32 %v1509, %v1509
      %v1579 = vmul.f32 %v1510, %v1510
      %v1580 = vmul.f32 %v1511, %v1511
      %v1581 = vmul.f32 %v1512, %v1512
      %v1582 = vmul.f32 %v1513, %v1513
      %v1583 = vmul.f32 %v1514, %v1514
      %v1584 = vmul.f32 %v1515, %v1515
      %v1585 = vmul.f32 %v1516, %v1516
      %v1586 = vmul.f32 %v1517, %v1517
      %v1587 = vmul.f32 %v1518, %v1518
      %v1588 = vmul.f32 %v1519, %v1519
      %v1589 = vmul.f32 %v1520, %v1520
      %v1590 = vmul.f32 %v1521, %v1521
      %v1591 = vmul.f32 %v1522, %v1522
      %v1592 = vmul.f32 %v1523, %v1523
      %v1593 = vmul.f32 %v1524, %v1524
      %v1594 = vadd.f32 %v1578, %v1580
      %v1595 = vadd.f32 %v1594, %v1582
      %v1596 = vadd.f32 %v1595, %v1584
      %v1597 = vadd.f32 %v1596, %v1586
      %v1598 = vadd.f32 %v1597, %v1588
      %v1599 = vadd.f32 %v1598, %v1590
      %v1600 = vadd.f32 %v1599, %v1592
      %v1601 = vrot.slane %v1600, 4
      %v1602 = vadd.f32 %v1600, %v1601
      %v1603 = vrot.slane %v1602, 2
      %v1604 = vadd.f32 %v1602, %v1603
      %v1605 = vrot.slane %v1604, 1
      %v1606 = vadd.f32 %v1604, %v1605
      %v1607 = vadd.f32 %v1579, %v1581
      %v1608 = vadd.f32 %v1607, %v1583
      %v1609 = vadd.f32 %v1608, %v1585
      %v1610 = vadd.f32 %v1609, %v1587
      %v1611 = vadd.f32 %v1610, %v1589
      %v1612 = vadd.f32 %v1611, %v1591
      %v1613 = vadd.f32 %v1612, %v1593
      %v1614 = vrot.slane %v1613, 4
      %v1615 = vadd.f32 %v1613, %v1614
      %v1616 = vrot.slane %v1615, 2
      %v1617 = vadd.f32 %v1615, %v1616
      %v1618 = vrot.slane %v1617, 1
      %v1619 = vadd.f32 %v1617, %v1618
      %v1622 = vrot.slane %v1619, 7
      %v1623 = vsel %vm1570, %v1606, %v1622
      %1625 = vst.msk [vmem:[%s290] sm:$0x3] %vm1576, %v1623
      %s1626 = smul.u32 8, %s22
      %p1627 = scmp.lt.s32.totalorder %s21, 1
      %s1628 = scalar_select %p1627, %s21, 1
      %p1629 = scmp.lt.s32.totalorder %s1626, 7
      %s1630 = scalar_select %p1629, %s1626, 7
      %s1631 = smul.addr %s1630, 2
      %s1632 = smul.addr %s1628, 16
      %s1633 = sadd.s32 %s1631, %s1632
      %s1634 = smul.addr %s1633, 4
      %s1635 = scalar_lea.vmem %s3, %s1634
      %p1636 = scmp.lt.s32.totalorder %s21, 1
      %s1637 = scalar_select %p1636, %s21, 1
      %p1638 = scmp.lt.s32.totalorder %s22, 0
      %s1639 = scalar_select %p1638, %s22, 0
      %s1640 = smul.addr %s1639, 2
      %s1641 = smul.addr %s1637, 2
      %s1642 = sadd.s32 %s1640, %s1641
      %s1643 = scalar_lea.vmem %s4, %s1642
      %p1644 = scmp.lt.s32.totalorder %s21, 1
      %s1645 = scalar_select %p1644, %s21, 1
      %p1646 = scmp.lt.s32.totalorder %s22, 0
      %s1647 = scalar_select %p1646, %s22, 0
      %s1648 = smul.addr %s1647, 2
      %s1649 = smul.addr %s1645, 2
      %s1650 = sadd.s32 %s1648, %s1649
      %s1651 = scalar_lea.vmem %s5, %s1650
      // Predicated region
      $region33: #{detector_head_forward.4} parent=31 // pred_check
        %p1652 = pneg %p117
      $region34: #{detector_head_forward.4} parent=31 // pred_check_branch
        %1654 = sbr.rel (%p1652) target = $region36
      $region35: #{detector_head_forward.4} parent=31 // pred_region
        %s1655 = smul.u32 8, %s22
      $region36: #{detector_head_forward.4} parent=31 // pred_fallthru
        _
      // Predicated region
      $region37: #{detector_head_forward.4} parent=31 // pred_check
        %p1656 = pneg %p145
      $region38: #{detector_head_forward.4} parent=31 // pred_check_branch
        %1658 = sbr.rel (%p1656) target = $region40
      $region39: #{detector_head_forward.4} parent=31 // pred_region
        _
      $region40: #{detector_head_forward.4} parent=31 // pred_fallthru
        _
      // Predicated region
      $region41: #{detector_head_forward.4} parent=31 // pred_check
        %p1659 = pneg %p173
      $region42: #{detector_head_forward.4} parent=31 // pred_check_branch
        %1661 = sbr.rel (%p1659) target = $region44
      $region43: #{detector_head_forward.4} parent=31 // pred_region
        _
      $region44: #{detector_head_forward.4} parent=31 // pred_fallthru
        _
    $region32: #{detector_head_forward.4} parent=5 // pred_fallthru
      _
    %p1662 = scmp.le.s32.totalorder 2, %s12
    // Predicated region
    $region45: #{detector_head_forward.4} parent=5 // pred_check
      %p1663 = pneg %p1662
    $region46: #{detector_head_forward.4} parent=5 // pred_check_branch
      %1665 = sbr.rel (%p1663) target = $region48
    $region47: #{detector_head_forward.4} parent=5 // pred_region
      %s1666 = ssub.s32 %s12, 2
      // Predicated region
      $region49: #{detector_head_forward.4} parent=47 // pred_check
        %p1667 = pneg %p123
      $region50: #{detector_head_forward.4} parent=47 // pred_check_branch
        %1669 = sbr.rel (%p1667) target = $region52
      $region51: #{detector_head_forward.4} parent=47 // pred_region
        %s1670 = smul.u32 8, %s24
        %p1671 = scmp.lt.s32.totalorder %s23, 1
        %s1672 = scalar_select %p1671, %s23, 1
        %p1673 = scmp.lt.s32.totalorder %s1670, 7
        %s1674 = scalar_select %p1673, %s1670, 7
        %s1675 = smul.addr %s1674, 2
        %s1676 = smul.addr %s1672, 16
        %s1677 = sadd.s32 %s1675, %s1676
        %s1678 = smul.addr %s1677, 4
        %s1679 = scalar_lea.vmem %s3, %s1678
      $region52: #{detector_head_forward.4} parent=47 // pred_fallthru
        _
      // Predicated region
      $region53: #{detector_head_forward.4} parent=47 // pred_check
        %p1680 = pneg %p151
      $region54: #{detector_head_forward.4} parent=47 // pred_check_branch
        %1682 = sbr.rel (%p1680) target = $region56
      $region55: #{detector_head_forward.4} parent=47 // pred_region
        %p1683 = scmp.lt.s32.totalorder %s23, 1
        %s1684 = scalar_select %p1683, %s23, 1
        %p1685 = scmp.lt.s32.totalorder %s24, 0
        %s1686 = scalar_select %p1685, %s24, 0
        %s1687 = smul.addr %s1686, 2
        %s1688 = smul.addr %s1684, 2
        %s1689 = sadd.s32 %s1687, %s1688
        %s1690 = scalar_lea.vmem %s4, %s1689
      $region56: #{detector_head_forward.4} parent=47 // pred_fallthru
        _
      // Predicated region
      $region57: #{detector_head_forward.4} parent=47 // pred_check
        %p1691 = pneg %p179
      $region58: #{detector_head_forward.4} parent=47 // pred_check_branch
        %1693 = sbr.rel (%p1691) target = $region60
      $region59: #{detector_head_forward.4} parent=47 // pred_region
        %p1694 = scmp.lt.s32.totalorder %s23, 1
        %s1695 = scalar_select %p1694, %s23, 1
        %p1696 = scmp.lt.s32.totalorder %s24, 0
        %s1697 = scalar_select %p1696, %s24, 0
        %s1698 = smul.addr %s1697, 2
        %s1699 = smul.addr %s1695, 2
        %s1700 = sadd.s32 %s1698, %s1699
        %s1701 = scalar_lea.vmem %s5, %s1700
      $region60: #{detector_head_forward.4} parent=47 // pred_fallthru
        _
    $region48: #{detector_head_forward.4} parent=5 // pred_fallthru
      _
  $region6: #{detector_head_forward.4} parent=0 // loop_footer
    %s16 = sadd.s32 1, %s12
  $region7: #{detector_head_forward.4} parent=0 // loop_footer_branch
    %11 = sbr.rel target = $region3
  $region8: #{detector_head_forward.4} parent=0 // loop_exit
    _

// kernel: detector_head_forward.7
$region0: #{detector_head_forward.7}
  #allocation0 [shape = 'u32[]', space=smem, size = 0x4, offset = 0x4, fixed_abs, tag = 'smem constant byte address 0x4 - core index']
  #allocation1 [shape = 'u32[72,128]{1,0:T(1,128)}', space=vmem, size = 0x9000, scoped, tag = 'internal scratch']
  %s0 = inlined_call_operand.vmem [shape: f32[2,64,64], index: 0, kind: input, shape index: {}]
  %s1 = inlined_call_operand.hbm [shape: f32[2,64,64], index: 1, kind: output, shape index: {}]
  %s2 = sld [smem:[#allocation0]]
  $region37: #{detector_head_forward.7} parent=0
    _
  %s4 = ssub.s32 1, %s2
  %s5 = scalar_select 0, %s4, %s2
  $region1: #{detector_head_forward.7} parent=0
    #allocation2 [shape = 'u8[65536]{0}', space=vmem, size = 0x10000, scoped, tag = 'output window, operand 0']
    #allocation3 [shape = 's32[2]{0}', space=sflag, size = 0x8, scoped, tag = 'scoped memory for detector_head_forward.7']
    %6 = vsyncpa [#allocation3], 0
    %s7 = scalar_lea.sflag [#allocation3], 1
    %8 = vsyncpa %s7, 0
    loop: start=0, step=1, limit=4
    $region2: #{detector_head_forward.7} parent=1 // loop_pre_header
      _
    $region3: #{detector_head_forward.7} parent=1 // loop_header
      %s10 = sphi 0, %s14
      %p11 = scmp.ge.s32.totalorder %s10, 4
      %s20 = sphi 0, %s22
      %s23 = sphi 0, %s20
      %s24 = sphi 0, %s23
      %s40 = sphi 0, %s24
      %s46 = sphi 0, %s48
      %s49 = sphi 0, %s46
      %s50 = sphi 0, %s49
      %s66 = sphi 0, %s50
    $region4: #{detector_head_forward.7} parent=1 // loop_header_branch
      %13 = sbr.rel (%p11) target = $region8
    $region5: #{detector_head_forward.7} parent=1 // loop_body
      %s15 = ssub.s32 %s10, 1
      %s16 = ssub.s32 %s10, 2
      %s17 = sadd.s32 %s10, 1
      %s18 = ssub.s32 %s10, %s17
      %p19 = scmp.eq.s32.totalorder %s18, 0
      %s21 = sadd.s32 %s20, 1
      %s22 = scalar_select %p19, %s20, %s21
      %p25 = pneg %p19
      %p26 = scmp.eq.s32.totalorder %s10, 1
      %p27 = por %p25, %p26
      %p28 = scmp.ne.s32.totalorder %s20, %s23
      %p29 = scmp.eq.s32.totalorder %s10, 0
      %p30 = por %p28, %p29
      %p31 = scmp.ne.s32.totalorder %s20, %s23
      %p32 = scmp.eq.s32.totalorder %s15, 1
      %p33 = por %p31, %p32
      %p34 = scmp.ne.s32.totalorder %s23, %s24
      %p35 = scmp.eq.s32.totalorder %s15, 0
      %p36 = por %p34, %p35
      %p37 = scmp.ne.s32.totalorder %s23, %s24
      %p38 = scmp.eq.s32.totalorder %s16, 1
      %p39 = por %p37, %p38
      %p41 = scmp.ne.s32.totalorder %s24, %s40
      %p42 = scmp.eq.s32.totalorder %s16, 0
      %p43 = por %p41, %p42
      %s44 = ssub.s32 %s10, %s17
      %p45 = scmp.eq.s32.totalorder %s44, 0
      %s47 = sadd.s32 %s46, 1
      %s48 = scalar_select %p45, %s46, %s47
      %p51 = pneg %p45
      %p52 = scmp.eq.s32.totalorder %s10, 1
      %p53 = por %p51, %p52
      %p54 = scmp.ne.s32.totalorder %s46, %s49
      %p55 = scmp.eq.s32.totalorder %s10, 0
      %p56 = por %p54, %p55
      %p57 = scmp.ne.s32.totalorder %s46, %s49
      %p58 = scmp.eq.s32.totalorder %s15, 1
      %p59 = por %p57, %p58
      %p60 = scmp.ne.s32.totalorder %s49, %s50
      %p61 = scmp.eq.s32.totalorder %s15, 0
      %p62 = por %p60, %p61
      %p63 = scmp.ne.s32.totalorder %s49, %s50
      %p64 = scmp.eq.s32.totalorder %s16, 1
      %p65 = por %p63, %p64
      %p67 = scmp.ne.s32.totalorder %s50, %s66
      %p68 = scmp.eq.s32.totalorder %s16, 0
      %p69 = por %p67, %p68
      %p70 = scmp.le.s32.totalorder 1, %s10
      %p71 = scmp.lt.s32.totalorder %s10, 3
      %p72 = pnand %p70, %p71
      %p73 = pneg %p72
      // Predicated region
      $region9: #{detector_head_forward.7} parent=5 // pred_check
        _
      $region10: #{detector_head_forward.7} parent=5 // pred_check_branch
        %75 = sbr.rel (%p72) target = $region12
      $region11: #{detector_head_forward.7} parent=5 // pred_region
        %s76 = ssub.s32 %s10, 1
      $region12: #{detector_head_forward.7} parent=5 // pred_fallthru
        _
      %p77 = scmp.lt.s32.totalorder %s10, 2
      // Predicated region
      $region13: #{detector_head_forward.7} parent=5 // pred_check
        %p78 = pneg %p77
      $region14: #{detector_head_forward.7} parent=5 // pred_check_branch
        %80 = sbr.rel (%p78) target = $region16
      $region15: #{detector_head_forward.7} parent=5 // pred_region
        // Predicated region
        $region17: #{detector_head_forward.7} parent=15 // pred_check
          %p81 = pneg %p30
        $region18: #{detector_head_forward.7} parent=15 // pred_check_branch
          %83 = sbr.rel (%p81) target = $region20
        $region19: #{detector_head_forward.7} parent=15 // pred_region
          %p84 = scmp.lt.s32.totalorder %s10, 1
          %s85 = scalar_select %p84, %s10, 1
          %s86 = smul.addr %s85, 8
          %s87 = smul.addr %s86, 8
          %s88 = scalar_lea.vmem %s0, %s87
        $region20: #{detector_head_forward.7} parent=15 // pred_fallthru
          _
      $region16: #{detector_head_forward.7} parent=5 // pred_fallthru
        _
      %p89 = scmp.le.s32.totalorder 1, %s10
      %p90 = scmp.lt.s32.totalorder %s10, 3
      %p91 = pnand %p89, %p90
      %p92 = pneg %p91
      // Predicated region
      $region21: #{detector_head_forward.7} parent=5 // pred_check
        _
      $region22: #{detector_head_forward.7} parent=5 // pred_check_branch
        %94 = sbr.rel (%p91) target = $region24
      $region23: #{detector_head_forward.7} parent=5 // pred_region
        %s95 = ssub.s32 %s10, 1
        %p96 = scmp.lt.s32.totalorder %s15, 1
        %s97 = scalar_select %p96, %s15, 1
        %s98 = smul.addr %s97, 8
        %s99 = smul.addr %s98, 8
        %s100 = scalar_lea.vmem %s0, %s99
        %p101 = pneg %p36
        %p102 = pneg %p33
        %p103 = pneg %p62
        %p104 = pneg %p59
        %s105 = sand.u32 %s49, 1
        %s106 = scalar_lea.sflag [#allocation3], %s105
        %s107 = sand.u32 %s49, 1
        %s108 = smul.addr %s107, 64
        %s109 = scalar_lea.vmem [#allocation2], %s108
        %p110 = scmp.lt.s32.totalorder %s15, 1
        %s111 = scalar_select %p110, %s15, 1
        %s112 = smul.addr %s111, 8
        %s113 = smul.addr %s112, 8
        %s114 = scalar_lea.vmem %s0, %s113
        %v115 = vld [vmem:[%s114] sm:$0xff]
        %v116 = vld [vmem:[%s114 + $0x8] sm:$0xff]
        %v117 = vld [vmem:[%s114 + $0x10] sm:$0xff]
        %v118 = vld [vmem:[%s114 + $0x18] sm:$0xff]
        %v119 = vld [vmem:[%s114 + $0x20] sm:$0xff]
        %v120 = vld [vmem:[%s114 + $0x28] sm:$0xff]
        %v121 = vld [vmem:[%s114 + $0x30] sm:$0xff]
        %v122 = vld [vmem:[%s114 + $0x38] sm:$0xff]
        %v123 = vlaneseq
        %v124 = vshrl.u32 %v123, 7
        %v125 = vadd.s32 %v124, 8
        %v126 = vadd.s32 %v124, 16
        %v127 = vadd.s32 %v124, 24
        %v128 = vadd.s32 %v124, 32
        %v129 = vadd.s32 %v124, 40
        %v130 = vadd.s32 %v124, 48
        %v131 = vadd.s32 %v124, 56
        %v132 = vlaneseq
        %v133 = vand.u32 %v132, 127
        %v134 = vadd.s32 %v124, 1
        %v135 = vadd.s32 %v125, 1
        %v136 = vadd.s32 %v126, 1
        %v137 = vadd.s32 %v127, 1
        %v138 = vadd.s32 %v128, 1
        %v139 = vadd.s32 %v129, 1
        %v140 = vadd.s32 %v130, 1
        %v141 = vadd.s32 %v131, 1
        %vm142 = vcmp.ge.s32.totalorder %v134, 0
        %vm143 = vcmp.ge.s32.totalorder %v135, 0
        %vm144 = vcmp.ge.s32.totalorder %v136, 0
        %vm145 = vcmp.ge.s32.totalorder %v137, 0
        %vm146 = vcmp.ge.s32.totalorder %v138, 0
        %vm147 = vcmp.ge.s32.totalorder %v139, 0
        %vm148 = vcmp.ge.s32.totalorder %v140, 0
        %vm149 = vcmp.ge.s32.totalorder %v141, 0
        %vm150 = vcmp.lt.s32.totalorder %v134, 64
        %vm151 = vcmp.lt.s32.totalorder %v135, 64
        %vm152 = vcmp.lt.s32.totalorder %v136, 64
        %vm153 = vcmp.lt.s32.totalorder %v137, 64
        %vm154 = vcmp.lt.s32.totalorder %v138, 64
        %vm155 = vcmp.lt.s32.totalorder %v139, 64
        %vm156 = vcmp.lt.s32.totalorder %v140, 64
        %vm157 = vcmp.lt.s32.totalorder %v141, 64
        %vm158 = vmand %vm142, %vm150
        %vm159 = vmand %vm143, %vm151
        %vm160 = vmand %vm144, %vm152
        %vm161 = vmand %vm145, %vm153
        %vm162 = vmand %vm146, %vm154
        %vm163 = vmand %vm147, %vm155
        %vm164 = vmand %vm148, %vm156
        %vm165 = vmand %vm149, %vm157
        %v166 = vadd.s32 %v124, 2
        %v167 = vadd.s32 %v125, 2
        %v168 = vadd.s32 %v126, 2
        %v169 = vadd.s32 %v127, 2
        %v170 = vadd.s32 %v128, 2
        %v171 = vadd.s32 %v129, 2
        %v172 = vadd.s32 %v130, 2
        %v173 = vadd.s32 %v131, 2
        %vm174 = vcmp.ge.s32.totalorder %v166, 0
        %vm175 = vcmp.ge.s32.totalorder %v167, 0
        %vm176 = vcmp.ge.s32.totalorder %v168, 0
        %vm177 = vcmp.ge.s32.totalorder %v169, 0
        %vm178 = vcmp.ge.s32.totalorder %v170, 0
        %vm179 = vcmp.ge.s32.totalorder %v171, 0
        %vm180 = vcmp.ge.s32.totalorder %v172, 0
        %vm181 = vcmp.ge.s32.totalorder %v173, 0
        %vm182 = vcmp.lt.s32.totalorder %v166, 64
        %vm183 = vcmp.lt.s32.totalorder %v167, 64
        %vm184 = vcmp.lt.s32.totalorder %v168, 64
        %vm185 = vcmp.lt.s32.totalorder %v169, 64
        %vm186 = vcmp.lt.s32.totalorder %v170, 64
        %vm187 = vcmp.lt.s32.totalorder %v171, 64
        %vm188 = vcmp.lt.s32.totalorder %v172, 64
        %vm189 = vcmp.lt.s32.totalorder %v173, 64
        %vm190 = vmand %vm174, %vm182
        %vm191 = vmand %vm175, %vm183
        %vm192 = vmand %vm176, %vm184
        %vm193 = vmand %vm177, %vm185
        %vm194 = vmand %vm178, %vm186
        %vm195 = vmand %vm179, %vm187
        %vm196 = vmand %vm180, %vm188
        %vm197 = vmand %vm181, %vm189
        %v198 = vadd.s32 %v124, 4
        %v199 = vadd.s32 %v125, 4
        %v200 = vadd.s32 %v126, 4
        %v201 = vadd.s32 %v127, 4
        %v202 = vadd.s32 %v128, 4
        %v203 = vadd.s32 %v129, 4
        %v204 = vadd.s32 %v130, 4
        %v205 = vadd.s32 %v131, 4
        %vm206 = vcmp.ge.s32.totalorder %v198, 0
        %vm207 = vcmp.ge.s32.totalorder %v199, 0
        %vm208 = vcmp.ge.s32.totalorder %v200, 0
        %vm209 = vcmp.ge.s32.totalorder %v201, 0
        %vm210 = vcmp.ge.s32.totalorder %v202, 0
        %vm211 = vcmp.ge.s32.totalorder %v203, 0
        %vm212 = vcmp.ge.s32.totalorder %v204, 0
        %vm213 = vcmp.ge.s32.totalorder %v205, 0
        %vm214 = vcmp.lt.s32.totalorder %v198, 64
        %vm215 = vcmp.lt.s32.totalorder %v199, 64
        %vm216 = vcmp.lt.s32.totalorder %v200, 64
        %vm217 = vcmp.lt.s32.totalorder %v201, 64
        %vm218 = vcmp.lt.s32.totalorder %v202, 64
        %vm219 = vcmp.lt.s32.totalorder %v203, 64
        %vm220 = vcmp.lt.s32.totalorder %v204, 64
        %vm221 = vcmp.lt.s32.totalorder %v205, 64
        %vm222 = vmand %vm206, %vm214
        %vm223 = vmand %vm207, %vm215
        %vm224 = vmand %vm208, %vm216
        %vm225 = vmand %vm209, %vm217
        %vm226 = vmand %vm210, %vm218
        %vm227 = vmand %vm211, %vm219
        %vm228 = vmand %vm212, %vm220
        %vm229 = vmand %vm213, %vm221
        %v230 = vadd.s32 %v124, 4294967295
        %v231 = vadd.s32 %v125, 4294967295
        %v232 = vadd.s32 %v126, 4294967295
        %v233 = vadd.s32 %v127, 4294967295
        %v234 = vadd.s32 %v128, 4294967295
        %v235 = vadd.s32 %v129, 4294967295
        %v236 = vadd.s32 %v130, 4294967295
        %v237 = vadd.s32 %v131, 4294967295
        %vm238 = vcmp.ge.s32.totalorder %v230, 0
        %vm239 = vcmp.ge.s32.totalorder %v231, 0
        %vm240 = vcmp.ge.s32.totalorder %v232, 0
        %vm241 = vcmp.ge.s32.totalorder %v233, 0
        %vm242 = vcmp.ge.s32.totalorder %v234, 0
        %vm243 = vcmp.ge.s32.totalorder %v235, 0
        %vm244 = vcmp.ge.s32.totalorder %v236, 0
        %vm245 = vcmp.ge.s32.totalorder %v237, 0
        %vm246 = vcmp.lt.s32.totalorder %v230, 64
        %vm247 = vcmp.lt.s32.totalorder %v231, 64
        %vm248 = vcmp.lt.s32.totalorder %v232, 64
        %vm249 = vcmp.lt.s32.totalorder %v233, 64
        %vm250 = vcmp.lt.s32.totalorder %v234, 64
        %vm251 = vcmp.lt.s32.totalorder %v235, 64
        %vm252 = vcmp.lt.s32.totalorder %v236, 64
        %vm253 = vcmp.lt.s32.totalorder %v237, 64
        %vm254 = vmand %vm238, %vm246
        %vm255 = vmand %vm239, %vm247
        %vm256 = vmand %vm240, %vm248
        %vm257 = vmand %vm241, %vm249
        %vm258 = vmand %vm242, %vm250
        %vm259 = vmand %vm243, %vm251
        %vm260 = vmand %vm244, %vm252
        %vm261 = vmand %vm245, %vm253
        %v262 = vadd.s32 %v124, 4294967294
        %v263 = vadd.s32 %v125, 4294967294
        %v264 = vadd.s32 %v126, 4294967294
        %v265 = vadd.s32 %v127, 4294967294
        %v266 = vadd.s32 %v128, 4294967294
        %v267 = vadd.s32 %v129, 4294967294
        %v268 = vadd.s32 %v130, 4294967294
        %v269 = vadd.s32 %v131, 4294967294
        %vm270 = vcmp.ge.s32.totalorder %v262, 0
        %vm271 = vcmp.ge.s32.totalorder %v263, 0
        %vm272 = vcmp.ge.s32.totalorder %v264, 0
        %vm273 = vcmp.ge.s32.totalorder %v265, 0
        %vm274 = vcmp.ge.s32.totalorder %v266, 0
        %vm275 = vcmp.ge.s32.totalorder %v267, 0
        %vm276 = vcmp.ge.s32.totalorder %v268, 0
        %vm277 = vcmp.ge.s32.totalorder %v269, 0
        %vm278 = vcmp.lt.s32.totalorder %v262, 64
        %vm279 = vcmp.lt.s32.totalorder %v263, 64
        %vm280 = vcmp.lt.s32.totalorder %v264, 64
        %vm281 = vcmp.lt.s32.totalorder %v265, 64
        %vm282 = vcmp.lt.s32.totalorder %v266, 64
        %vm283 = vcmp.lt.s32.totalorder %v267, 64
        %vm284 = vcmp.lt.s32.totalorder %v268, 64
        %vm285 = vcmp.lt.s32.totalorder %v269, 64
        %vm286 = vmand %vm270, %vm278
        %vm287 = vmand %vm271, %vm279
        %vm288 = vmand %vm272, %vm280
        %vm289 = vmand %vm273, %vm281
        %vm290 = vmand %vm274, %vm282
        %vm291 = vmand %vm275, %vm283
        %vm292 = vmand %vm276, %vm284
        %vm293 = vmand %vm277, %vm285
        %v294 = vadd.s32 %v124, 4294967292
        %v295 = vadd.s32 %v125, 4294967292
        %v296 = vadd.s32 %v126, 4294967292
        %v297 = vadd.s32 %v127, 4294967292
        %v298 = vadd.s32 %v128, 4294967292
        %v299 = vadd.s32 %v129, 4294967292
        %v300 = vadd.s32 %v130, 4294967292
        %v301 = vadd.s32 %v131, 4294967292
        %vm302 = vcmp.ge.s32.totalorder %v294, 0
        %vm303 = vcmp.ge.s32.totalorder %v295, 0
        %vm304 = vcmp.ge.s32.totalorder %v296, 0
        %vm305 = vcmp.ge.s32.totalorder %v297, 0
        %vm306 = vcmp.ge.s32.totalorder %v298, 0
        %vm307 = vcmp.ge.s32.totalorder %v299, 0
        %vm308 = vcmp.ge.s32.totalorder %v300, 0
        %vm309 = vcmp.ge.s32.totalorder %v301, 0
        %vm310 = vcmp.lt.s32.totalorder %v294, 64
        %vm311 = vcmp.lt.s32.totalorder %v295, 64
        %vm312 = vcmp.lt.s32.totalorder %v296, 64
        %vm313 = vcmp.lt.s32.totalorder %v297, 64
        %vm314 = vcmp.lt.s32.totalorder %v298, 64
        %vm315 = vcmp.lt.s32.totalorder %v299, 64
        %vm316 = vcmp.lt.s32.totalorder %v300, 64
        %vm317 = vcmp.lt.s32.totalorder %v301, 64
        %vm318 = vmand %vm302, %vm310
        %vm319 = vmand %vm303, %vm311
        %vm320 = vmand %vm304, %vm312
        %vm321 = vmand %vm305, %vm313
        %vm322 = vmand %vm306, %vm314
        %vm323 = vmand %vm307, %vm315
        %vm324 = vmand %vm308, %vm316
        %vm325 = vmand %vm309, %vm317
        %v326 = vadd.s32 %v133, 1
        %vm327 = vcmp.ge.s32.totalorder %v326, 0
        %vm328 = vcmp.lt.s32.totalorder %v326, 64
        %vm329 = vmand %vm327, %vm328
        %v330 = vadd.s32 %v133, 2
        %vm331 = vcmp.ge.s32.totalorder %v330, 0
        %vm332 = vcmp.lt.s32.totalorder %v330, 64
        %vm333 = vmand %vm331, %vm332
        %v334 = vadd.s32 %v133, 4
        %vm335 = vcmp.ge.s32.totalorder %v334, 0
        %vm336 = vcmp.lt.s32.totalorder %v334, 64
        %vm337 = vmand %vm335, %vm336
        %v338 = vadd.s32 %v133, 4294967295
        %vm339 = vcmp.ge.s32.totalorder %v338, 0
        %vm340 = vcmp.lt.s32.totalorder %v338, 64
        %vm341 = vmand %vm339, %vm340
        %v342 = vadd.s32 %v133, 4294967294
        %vm343 = vcmp.ge.s32.totalorder %v342, 0
        %vm344 = vcmp.lt.s32.totalorder %v342, 64
        %vm345 = vmand %vm343, %vm344
        %v346 = vadd.s32 %v133, 4294967292
        %vm347 = vcmp.ge.s32.totalorder %v346, 0
        %vm348 = vcmp.lt.s32.totalorder %v346, 64
        %vm349 = vmand %vm347, %vm348
        %vm350 = vcmask 1048064
        %351 = vrot.lane.b32.xlu0 %v115, 64
        %v352 = vpop.permute.xlu0 %351
        %v353 = vsel %vm350, %v352, %v115
        %354 = vrot.lane.b32.xlu0 %v116, 64
        %v355 = vpop.permute.xlu0 %354
        %v356 = vsel %vm350, %v355, %v116
        %357 = vrot.lane.b32.xlu0 %v117, 64
        %v358 = vpop.permute.xlu0 %357
        %v359 = vsel %vm350, %v358, %v117
        %360 = vrot.lane.b32.xlu0 %v118, 64
        %v361 = vpop.permute.xlu0 %360
        %v362 = vsel %vm350, %v361, %v118
        %363 = vrot.lane.b32.xlu0 %v119, 64
        %v364 = vpop.permute.xlu0 %363
        %v365 = vsel %vm350, %v364, %v119
        %366 = vrot.lane.b32.xlu0 %v120, 64
        %v367 = vpop.permute.xlu0 %366
        %v368 = vsel %vm350, %v367, %v120
        %369 = vrot.lane.b32.xlu0 %v121, 64
        %v370 = vpop.permute.xlu0 %369
        %v371 = vsel %vm350, %v370, %v121
        %372 = vrot.lane.b32.xlu0 %v122, 64
        %v373 = vpop.permute.xlu0 %372
        %v374 = vsel %vm350, %v373, %v122
        %375 = vrot.lane.b32.xlu0 %v353, 64
        %v376 = vpop.permute.xlu0 %375
        %377 = vrot.lane.b32.xlu0 %v356, 64
        %v378 = vpop.permute.xlu0 %377
        %379 = vrot.lane.b32.xlu0 %v359, 64
        %v380 = vpop.permute.xlu0 %379
        %381 = vrot.lane.b32.xlu0 %v362, 64
        %v382 = vpop.permute.xlu0 %381
        %383 = vrot.lane.b32.xlu0 %v365, 64
        %v384 = vpop.permute.xlu0 %383
        %385 = vrot.lane.b32.xlu0 %v368, 64
        %v386 = vpop.permute.xlu0 %385
        %387 = vrot.lane.b32.xlu0 %v371, 64
        %v388 = vpop.permute.xlu0 %387
        %389 = vrot.lane.b32.xlu0 %v374, 64
        %v390 = vpop.permute.xlu0 %389
        %v391 = vsel %vm350, %v376, %v115
        %v392 = vsel %vm350, %v378, %v116
        %v393 = vsel %vm350, %v380, %v117
        %v394 = vsel %vm350, %v382, %v118
        %v395 = vsel %vm350, %v384, %v119
        %v396 = vsel %vm350, %v386, %v120
        %v397 = vsel %vm350, %v388, %v121
        %v398 = vsel %vm350, %v390, %v122
        %407 = vrot.lane.b32.xlu0 %v391, 127
        %v408 = vpop.permute.xlu0 %407
        %409 = vrot.lane.b32.xlu0 %v392, 127
        %v410 = vpop.permute.xlu0 %409
        %411 = vrot.lane.b32.xlu0 %v393, 127
        %v412 = vpop.permute.xlu0 %411
        %413 = vrot.lane.b32.xlu0 %v394, 127
        %v414 = vpop.permute.xlu0 %413
        %415 = vrot.lane.b32.xlu0 %v395, 127
        %v416 = vpop.permute.xlu0 %415
        %417 = vrot.lane.b32.xlu0 %v396, 127
        %v418 = vpop.permute.xlu0 %417
        %419 = vrot.lane.b32.xlu0 %v397, 127
        %v420 = vpop.permute.xlu0 %419
        %421 = vrot.lane.b32.xlu0 %v398, 127
        %v422 = vpop.permute.xlu0 %421
        %v431 = vsel %vm329, %v408, -inf
        %v432 = vsel %vm329, %v410, -inf
        %v433 = vsel %vm329, %v412, -inf
        %v434 = vsel %vm329, %v414, -inf
        %v435 = vsel %vm329, %v416, -inf
        %v436 = vsel %vm329, %v418, -inf
        %v437 = vsel %vm329, %v420, -inf
        %v438 = vsel %vm329, %v422, -inf
        %v439 = vmax.f32 %v115, %v431
        %v440 = vmax.f32 %v116, %v432
        %v441 = vmax.f32 %v117, %v433
        %v442 = vmax.f32 %v118, %v434
        %v443 = vmax.f32 %v119, %v435
        %v444 = vmax.f32 %v120, %v436
        %v445 = vmax.f32 %v121, %v437
        %v446 = vmax.f32 %v122, %v438
        %447 = vrot.lane.b32.xlu0 %v439, 64
        %v448 = vpop.permute.xlu0 %447
        %v449 = vsel %vm350, %v448, %v439
        %450 = vrot.lane.b32.xlu0 %v440, 64
        %v451 = vpop.permute.xlu0 %450
        %v452 = vsel %vm350, %v451, %v440
        %453 = vrot.lane.b32.xlu0 %v441, 64
        %v454 = vpop.permute.xlu0 %453
        %v455 = vsel %vm350, %v454, %v441
        %456 = vrot.lane.b32.xlu0 %v442, 64
        %v457 = vpop.permute.xlu0 %456
        %v458 = vsel %vm350, %v457, %v442
        %459 = vrot.lane.b32.xlu0 %v443, 64
        %v460 = vpop.permute.xlu0 %459
        %v461 = vsel %vm350, %v460, %v443
        %462 = vrot.lane.b32.xlu0 %v444, 64
        %v463 = vpop.permute.xlu0 %462
        %v464 = vsel %vm350, %v463, %v444
        %465 = vrot.lane.b32.xlu0 %v445, 64
        %v466 = vpop.permute.xlu0 %465
        %v467 = vsel %vm350, %v466, %v445
        %468 = vrot.lane.b32.xlu0 %v446, 64
        %v469 = vpop.permute.xlu0 %468
        %v470 = vsel %vm350, %v469, %v446
        %471 = vrot.lane.b32.xlu0 %v449, 64
        %v472 = vpop.permute.xlu0 %471
        %473 = vrot.lane.b32.xlu0 %v452, 64
        %v474 = vpop.permute.xlu0 %473
        %475 = vrot.lane.b32.xlu0 %v455, 64
        %v476 = vpop.permute.xlu0 %475
        %477 = vrot.lane.b32.xlu0 %v458, 64
        %v478 = vpop.permute.xlu0 %477
        %479 = vrot.lane.b32.xlu0 %v461, 64
        %v480 = vpop.permute.xlu0 %479
        %481 = vrot.lane.b32.xlu0 %v464, 64
        %v482 = vpop.permute.xlu0 %481
        %483 = vrot.lane.b32.xlu0 %v467, 64
        %v484 = vpop.permute.xlu0 %483
        %485 = vrot.lane.b32.xlu0 %v470, 64
        %v486 = vpop.permute.xlu0 %485
        %v487 = vsel %vm350, %v472, %v439
        %v488 = vsel %vm350, %v474, %v440
        %v489 = vsel %vm350, %v476, %v441
        %v490 = vsel %vm350, %v478, %v442
        %v491 = vsel %vm350, %v480, %v443
        %v492 = vsel %vm350, %v482, %v444
        %v493 = vsel %vm350, %v484, %v445
        %v494 = vsel %vm350, %v486, %v446
        %503 = vrot.lane.b32.xlu0 %v487, 126
        %v504 = vpop.permute.xlu0 %503
        %505 = vrot.lane.b32.xlu0 %v488, 126
        %v506 = vpop.permute.xlu0 %505
        %507 = vrot.lane.b32.xlu0 %v489, 126
        %v508 = vpop.permute.xlu0 %507
        %509 = vrot.lane.b32.xlu0 %v490, 126
        %v510 = vpop.permute.xlu0 %509
        %511 = vrot.lane.b32.xlu0 %v491, 126
        %v512 = vpop.permute.xlu0 %511
        %513 = vrot.lane.b32.xlu0 %v492, 126
        %v514 = vpop.permute.xlu0 %513
        %515 = vrot.lane.b32.xlu0 %v493, 126
        %v516 = vpop.permute.xlu0 %515
        %517 = vrot.lane.b32.xlu0 %v494, 126
        %v518 = vpop.permute.xlu0 %517
        %v527 = vsel %vm333, %v504, -inf
        %v528 = vsel %vm333, %v506, -inf
        %v529 = vsel %vm333, %v508, -inf
        %v530 = vsel %vm333, %v510, -inf
        %v531 = vsel %vm333, %v512, -inf
        %v532 = vsel %vm333, %v514, -inf
        %v533 = vsel %vm333, %v516, -inf
        %v534 = vsel %vm333, %v518, -inf
        %v535 = vmax.f32 %v439, %v527
        %v536 = vmax.f32 %v440, %v528
        %v537 = vmax.f32 %v441, %v529
        %v538 = vmax.f32 %v442, %v530
        %v539 = vmax.f32 %v443, %v531
        %v540 = vmax.f32 %v444, %v532
        %v541 = vmax.f32 %v445, %v533
        %v542 = vmax.f32 %v446, %v534
        %543 = vrot.lane.b32.xlu0 %v391, 124
        %v544 = vpop.permute.xlu0 %543
        %545 = vrot.lane.b32.xlu0 %v392, 124
        %v546 = vpop.permute.xlu0 %545
        %547 = vrot.lane.b32.xlu0 %v393, 124
        %v548 = vpop.permute.xlu0 %547
        %549 = vrot.lane.b32.xlu0 %v394, 124
        %v550 = vpop.permute.xlu0 %549
        %551 = vrot.lane.b32.xlu0 %v395, 124
        %v552 = vpop.permute.xlu0 %551
        %553 = vrot.lane.b32.xlu0 %v396, 124
        %v554 = vpop.permute.xlu0 %553
        %555 = vrot.lane.b32.xlu0 %v397, 124
        %v556 = vpop.permute.xlu0 %555
        %557 = vrot.lane.b32.xlu0 %v398, 124
        %v558 = vpop.permute.xlu0 %557
        %v567 = vsel %vm337, %v544, -inf
        %v568 = vsel %vm337, %v546, -inf
        %v569 = vsel %vm337, %v548, -inf
        %v570 = vsel %vm337, %v550, -inf
        %v571 = vsel %vm337, %v552, -inf
        %v572 = vsel %vm337, %v554, -inf
        %v573 = vsel %vm337, %v556, -inf
        %v574 = vsel %vm337, %v558, -inf
        %v575 = vmax.f32 %v535, %v567
        %v576 = vmax.f32 %v536, %v568
        %v577 = vmax.f32 %v537, %v569
        %v578 = vmax.f32 %v538, %v570
        %v579 = vmax.f32 %v539, %v571
        %v580 = vmax.f32 %v540, %v572
        %v581 = vmax.f32 %v541, %v573
        %v582 = vmax.f32 %v542, %v574
        %583 = vrot.lane.b32.xlu0 %v391, 65
        %v584 = vpop.permute.xlu0 %583
        %585 = vrot.lane.b32.xlu0 %v392, 65
        %v586 = vpop.permute.xlu0 %585
        %587 = vrot.lane.b32.xlu0 %v393, 65
        %v588 = vpop.permute.xlu0 %587
        %589 = vrot.lane.b32.xlu0 %v394, 65
        %v590 = vpop.permute.xlu0 %589
        %591 = vrot.lane.b32.xlu0 %v395, 65
        %v592 = vpop.permute.xlu0 %591
        %593 = vrot.lane.b32.xlu0 %v396, 65
        %v594 = vpop.permute.xlu0 %593
        %595 = vrot.lane.b32.xlu0 %v397, 65
        %v596 = vpop.permute.xlu0 %595
        %597 = vrot.lane.b32.xlu0 %v398, 65
        %v598 = vpop.permute.xlu0 %597
        %v607 = vsel %vm341, %v584, -inf
        %v608 = vsel %vm341, %v586, -inf
        %v609 = vsel %vm341, %v588, -inf
        %v610 = vsel %vm341, %v590, -inf
        %v611 = vsel %vm341, %v592, -inf
        %v612 = vsel %vm341, %v594, -inf
        %v613 = vsel %vm341, %v596, -inf
        %v614 = vsel %vm341, %v598, -inf
        %v615 = vmax.f32 %v115, %v607
        %v616 = vmax.f32 %v116, %v608
        %v617 = vmax.f32 %v117, %v609
        %v618 = vmax.f32 %v118, %v610
        %v619 = vmax.f32 %v119, %v611
        %v620 = vmax.f32 %v120, %v612
        %v621 = vmax.f32 %v121, %v613
        %v622 = vmax.f32 %v122, %v614
        %623 = vrot.lane.b32.xlu0 %v615, 64
        %v624 = vpop.permute.xlu0 %623
        %v625 = vsel %vm350, %v624, %v615
        %626 = vrot.lane.b32.xlu0 %v616, 64
        %v627 = vpop.permute.xlu0 %626
        %v628 = vsel %vm350, %v627, %v616
        %629 = vrot.lane.b32.xlu0 %v617, 64
        %v630 = vpop.permute.xlu0 %629
        %v631 = vsel %vm350, %v630, %v617
        %632 = vrot.lane.b32.xlu0 %v618, 64
        %v633 = vpop.permute.xlu0 %632
        %v634 = vsel %vm350, %v633, %v618
        %635 = vrot.lane.b32.xlu0 %v619, 64
        %v636 = vpop.permute.xlu0 %635
        %v637 = vsel %vm350, %v636, %v619
        %638 = vrot.lane.b32.xlu0 %v620, 64
        %v639 = vpop.permute.xlu0 %638
        %v640 = vsel %vm350, %v639, %v620
        %641 = vrot.lane.b32.xlu0 %v621, 64
        %v642 = vpop.permute.xlu0 %641
        %v643 = vsel %vm350, %v642, %v621
        %644 = vrot.lane.b32.xlu0 %v622, 64
        %v645 = vpop.permute.xlu0 %644
        %v646 = vsel %vm350, %v645, %v622
        %647 = vrot.lane.b32.xlu0 %v625, 64
        %v648 = vpop.permute.xlu0 %647
        %649 = vrot.lane.b32.xlu0 %v628, 64
        %v650 = vpop.permute.xlu0 %649
        %651 = vrot.lane.b32.xlu0 %v631, 64
        %v652 = vpop.permute.xlu0 %651
        %653 = vrot.lane.b32.xlu0 %v634, 64
        %v654 = vpop.permute.xlu0 %653
        %655 = vrot.lane.b32.xlu0 %v637, 64
        %v656 = vpop.permute.xlu0 %655
        %657 = vrot.lane.b32.xlu0 %v640, 64
        %v658 = vpop.permute.xlu0 %657
        %659 = vrot.lane.b32.xlu0 %v643, 64
        %v660 = vpop.permute.xlu0 %659
        %661 = vrot.lane.b32.xlu0 %v646, 64
        %v662 = vpop.permute.xlu0 %661
        %v663 = vsel %vm350, %v648, %v615
        %v664 = vsel %vm350, %v650, %v616
        %v665 = vsel %vm350, %v652, %v617
        %v666 = vsel %vm350, %v654, %v618
        %v667 = vsel %vm350, %v656, %v619
        %v668 = vsel %vm350, %v658, %v620
        %v669 = vsel %vm350, %v660, %v621
        %v670 = vsel %vm350, %v662, %v622
        %679 = vrot.lane.b32.xlu0 %v663, 66
        %v680 = vpop.permute.xlu0 %679
        %681 = vrot.lane.b32.xlu0 %v664, 66
        %v682 = vpop.permute.xlu0 %681
        %683 = vrot.lane.b32.xlu0 %v665, 66
        %v684 = vpop.permute.xlu0 %683
        %685 = vrot.lane.b32.xlu0 %v666, 66
        %v686 = vpop.permute.xlu0 %685
        %687 = vrot.lane.b32.xlu0 %v667, 66
        %v688 = vpop.permute.xlu0 %687
        %689 = vrot.lane.b32.xlu0 %v668, 66
        %v690 = vpop.permute.xlu0 %689
        %691 = vrot.lane.b32.xlu0 %v669, 66
        %v692 = vpop.permute.xlu0 %691
        %693 = vrot.lane.b32.xlu0 %v670, 66
        %v694 = vpop.permute.xlu0 %693
        %v703 = vsel %vm345, %v680, -inf
        %v704 = vsel %vm345, %v682, -inf
        %v705 = vsel %vm345, %v684, -inf
        %v706 = vsel %vm345, %v686, -inf
        %v707 = vsel %vm345, %v688, -inf
        %v708 = vsel %vm345, %v690, -inf
        %v709 = vsel %vm345, %v692, -inf
        %v710 = vsel %vm345, %v694, -inf
        %v711 = vmax.f32 %v615, %v703
        %v712 = vmax.f32 %v616, %v704
        %v713 = vmax.f32 %v617, %v705
        %v714 = vmax.f32 %v618, %v706
        %v715 = vmax.f32 %v619, %v707
        %v716 = vmax.f32 %v620, %v708
        %v717 = vmax.f32 %v621, %v709
        %v718 = vmax.f32 %v622, %v710
        %719 = vrot.lane.b32.xlu0 %v391, 68
        %v720 = vpop.permute.xlu0 %719
        %721 = vrot.lane.b32.xlu0 %v392, 68
        %v722 = vpop.permute.xlu0 %721
        %723 = vrot.lane.b32.xlu0 %v393, 68
        %v724 = vpop.permute.xlu0 %723
        %725 = vrot.lane.b32.xlu0 %v394, 68
        %v726 = vpop.permute.xlu0 %725
        %727 = vrot.lane.b32.xlu0 %v395, 68
        %v728 = vpop.permute.xlu0 %727
        %729 = vrot.lane.b32.xlu0 %v396, 68
        %v730 = vpop.permute.xlu0 %729
        %731 = vrot.lane.b32.xlu0 %v397, 68
        %v732 = vpop.permute.xlu0 %731
        %733 = vrot.lane.b32.xlu0 %v398, 68
        %v734 = vpop.permute.xlu0 %733
        %v743 = vsel %vm349, %v720, -inf
        %v744 = vsel %vm349, %v722, -inf
        %v745 = vsel %vm349, %v724, -inf
        %v746 = vsel %vm349, %v726, -inf
        %v747 = vsel %vm349, %v728, -inf
        %v748 = vsel %vm349, %v730, -inf
        %v749 = vsel %vm349, %v732, -inf
        %v750 = vsel %vm349, %v734, -inf
        %v751 = vmax.f32 %v711, %v743
        %v752 = vmax.f32 %v712, %v744
        %v753 = vmax.f32 %v713, %v745
        %v754 = vmax.f32 %v714, %v746
        %v755 = vmax.f32 %v715, %v747
        %v756 = vmax.f32 %v716, %v748
        %v757 = vmax.f32 %v717, %v749
        %v758 = vmax.f32 %v718, %v750
        %v759 = vmax.f32 %v575, %v751
        %v760 = vmax.f32 %v576, %v752
        %v761 = vmax.f32 %v577, %v753
        %v762 = vmax.f32 %v578, %v754
        %v763 = vmax.f32 %v579, %v755
        %v764 = vmax.f32 %v580, %v756
        %v765 = vmax.f32 %v581, %v757
        %v766 = vmax.f32 %v582, %v758
        %v767 = vrot.slane %v759, 1
        %v768 = vrot.slane %v760, 1
        %v769 = vrot.slane %v761, 1
        %v770 = vrot.slane %v762, 1
        %v771 = vrot.slane %v763, 1
        %v772 = vrot.slane %v764, 1
        %v773 = vrot.slane %v765, 1
        %v774 = vrot.slane %v766, 1
        %vm775 = vcmp.lt.s32.totalorder %v124, 7
        %v776 = vsel %vm775, %v773, %v774
        %v777 = vsel %vm775, %v772, %v773
        %v778 = vsel %vm775, %v771, %v772
        %v779 = vsel %vm775, %v770, %v771
        %v780 = vsel %vm775, %v769, %v770
        %v781 = vsel %vm775, %v768, %v769
        %v782 = vsel %vm775, %v767, %v768
        %v783 = vsel %vm775, %v774, %v767
        %v784 = vsel %vm158, %v782, -inf
        %v785 = vsel %vm159, %v781, -inf
        %v786 = vsel %vm160, %v780, -inf
        %v787 = vsel %vm161, %v779, -inf
        %v788 = vsel %vm162, %v778, -inf
        %v789 = vsel %vm163, %v777, -inf
        %v790 = vsel %vm164, %v776, -inf
        %v791 = vsel %vm165, %v783, -inf
        %v792 = vmax.f32 %v759, %v784
        %v793 = vmax.f32 %v760, %v785
        %v794 = vmax.f32 %v761, %v786
        %v795 = vmax.f32 %v762, %v787
        %v796 = vmax.f32 %v763, %v788
        %v797 = vmax.f32 %v764, %v789
        %v798 = vmax.f32 %v765, %v790
        %v799 = vmax.f32 %v766, %v791
        %v800 = vrot.slane %v792, 2
        %v801 = vrot.slane %v793, 2
        %v802 = vrot.slane %v794, 2
        %v803 = vrot.slane %v795, 2
        %v804 = vrot.slane %v796, 2
        %v805 = vrot.slane %v797, 2
        %v806 = vrot.slane %v798, 2
        %v807 = vrot.slane %v799, 2
        %vm808 = vcmp.lt.s32.totalorder %v124, 6
        %v809 = vsel %vm808, %v806, %v807
        %v810 = vsel %vm808, %v805, %v806
        %v811 = vsel %vm808, %v804, %v805
        %v812 = vsel %vm808, %v803, %v804
        %v813 = vsel %vm808, %v802, %v803
        %v814 = vsel %vm808, %v801, %v802
        %v815 = vsel %vm808, %v800, %v801
        %v816 = vsel %vm808, %v807, %v800
        %v817 = vsel %vm190, %v815, -inf
        %v818 = vsel %vm191, %v814, -inf
        %v819 = vsel %vm192, %v813, -inf
        %v820 = vsel %vm193, %v812, -inf
        %v821 = vsel %vm194, %v811, -inf
        %v822 = vsel %vm195, %v810, -inf
        %v823 = vsel %vm196, %v809, -inf
        %v824 = vsel %vm197, %v816, -inf
        %v825 = vmax.f32 %v792, %v817
        %v826 = vmax.f32 %v793, %v818
        %v827 = vmax.f32 %v794, %v819
        %v828 = vmax.f32 %v795, %v820
        %v829 = vmax.f32 %v796, %v821
        %v830 = vmax.f32 %v797, %v822
        %v831 = vmax.f32 %v798, %v823
        %v832 = vmax.f32 %v799, %v824
        %v833 = vrot.slane %v759, 4
        %v834 = vrot.slane %v760, 4
        %v835 = vrot.slane %v761, 4
        %v836 = vrot.slane %v762, 4
        %v837 = vrot.slane %v763, 4
        %v838 = vrot.slane %v764, 4
        %v839 = vrot.slane %v765, 4
        %v840 = vrot.slane %v766, 4
        %vm841 = vcmp.lt.s32.totalorder %v124, 4
        %v842 = vsel %vm841, %v839, %v840
        %v843 = vsel %vm841, %v838, %v839
        %v844 = vsel %vm841, %v837, %v838
        %v845 = vsel %vm841, %v836, %v837
        %v846 = vsel %vm841, %v835, %v836
        %v847 = vsel %vm841, %v834, %v835
        %v848 = vsel %vm841, %v833, %v834
        %v849 = vsel %vm841, %v840, %v833
        %v850 = vsel %vm222, %v848, -inf
        %v851 = vsel %vm223, %v847, -inf
        %v852 = vsel %vm224, %v846, -inf
        %v853 = vsel %vm225, %v845, -inf
        %v854 = vsel %vm226, %v844, -inf
        %v855 = vsel %vm227, %v843, -inf
        %v856 = vsel %vm228, %v842, -inf
        %v857 = vsel %vm229, %v849, -inf
        %v858 = vmax.f32 %v825, %v850
        %v859 = vmax.f32 %v826, %v851
        %v860 = vmax.f32 %v827, %v852
        %v861 = vmax.f32 %v828, %v853
        %v862 = vmax.f32 %v829, %v854
        %v863 = vmax.f32 %v830, %v855
        %v864 = vmax.f32 %v831, %v856
        %v865 = vmax.f32 %v832, %v857
        %v866 = vrot.slane %v759, 7
        %v867 = vrot.slane %v760, 7
        %v868 = vrot.slane %v761, 7
        %v869 = vrot.slane %v762, 7
        %v870 = vrot.slane %v763, 7
        %v871 = vrot.slane %v764, 7
        %v872 = vrot.slane %v765, 7
        %v873 = vrot.slane %v766, 7
        %vm874 = vcmp.lt.s32.totalorder %v124, 1
        %v875 = vsel %vm874, %v872, %v873
        %v876 = vsel %vm874, %v871, %v872
        %v877 = vsel %vm874, %v870, %v871
        %v878 = vsel %vm874, %v869, %v870
        %v879 = vsel %vm874, %v868, %v869
        %v880 = vsel %vm874, %v867, %v868
        %v881 = vsel %vm874, %v866, %v867
        %v882 = vsel %vm874, %v873, %v866
        %v883 = vsel %vm254, %v882, -inf
        %v884 = vsel %vm255, %v881, -inf
        %v885 = vsel %vm256, %v880, -inf
        %v886 = vsel %vm257, %v879, -inf
        %v887 = vsel %vm258, %v878, -inf
        %v888 = vsel %vm259, %v877, -inf
        %v889 = vsel %vm260, %v876, -inf
        %v890 = vsel %vm261, %v875, -inf
        %v891 = vmax.f32 %v759, %v883
        %v892 = vmax.f32 %v760, %v884
        %v893 = vmax.f32 %v761, %v885
        %v894 = vmax.f32 %v762, %v886
        %v895 = vmax.f32 %v763, %v887
        %v896 = vmax.f32 %v764, %v888
        %v897 = vmax.f32 %v765, %v889
        %v898 = vmax.f32 %v766, %v890
        %v899 = vrot.slane %v891, 6
        %v900 = vrot.slane %v892, 6
        %v901 = vrot.slane %v893, 6
        %v902 = vrot.slane %v894, 6
        %v903 = vrot.slane %v895, 6
        %v904 = vrot.slane %v896, 6
        %v905 = vrot.slane %v897, 6
        %v906 = vrot.slane %v898, 6
        %vm907 = vcmp.lt.s32.totalorder %v124, 2
        %v908 = vsel %vm907, %v905, %v906
        %v909 = vsel %vm907, %v904, %v905
        %v910 = vsel %vm907, %v903, %v904
        %v911 = vsel %vm907, %v902, %v903
        %v912 = vsel %vm907, %v901, %v902
        %v913 = vsel %vm907, %v900, %v901
        %v914 = vsel %vm907, %v899, %v900
        %v915 = vsel %vm907, %v906, %v899
        %v916 = vsel %vm286, %v915, -inf
        %v917 = vsel %vm287, %v914, -inf
        %v918 = vsel %vm288, %v913, -inf
        %v919 = vsel %vm289, %v912, -inf
        %v920 = vsel %vm290, %v911, -inf
        %v921 = vsel %vm291, %v910, -inf
        %v922 = vsel %vm292, %v909, -inf
        %v923 = vsel %vm293, %v908, -inf
        %v924 = vmax.f32 %v891, %v916
        %v925 = vmax.f32 %v892, %v917
        %v926 = vmax.f32 %v893, %v918
        %v927 = vmax.f32 %v894, %v919
        %v928 = vmax.f32 %v895, %v920
        %v929 = vmax.f32 %v896, %v921
        %v930 = vmax.f32 %v897, %v922
        %v931 = vmax.f32 %v898, %v923
        %v932 = vsel %vm318, %v849, -inf
        %v933 = vsel %vm319, %v848, -inf
        %v934 = vsel %vm320, %v847, -inf
        %v935 = vsel %vm321, %v846, -inf
        %v936 = vsel %vm322, %v845, -inf
        %v937 = vsel %vm323, %v844, -inf
        %v938 = vsel %vm324, %v843, -inf
        %v939 = vsel %vm325, %v842, -inf
        %v940 = vmax.f32 %v924, %v932
        %v941 = vmax.f32 %v925, %v933
        %v942 = vmax.f32 %v926, %v934
        %v943 = vmax.f32 %v927, %v935
        %v944 = vmax.f32 %v928, %v936
        %v945 = vmax.f32 %v929, %v937
        %v946 = vmax.f32 %v930, %v938
        %v947 = vmax.f32 %v931, %v939
        %v948 = vmax.f32 %v858, %v940
        %v949 = vmax.f32 %v859, %v941
        %v950 = vmax.f32 %v860, %v942
        %v951 = vmax.f32 %v861, %v943
        %v952 = vmax.f32 %v862, %v944
        %v953 = vmax.f32 %v863, %v945
        %v954 = vmax.f32 %v864, %v946
        %v955 = vmax.f32 %v865, %v947
        %vm956 = vcmp.eq.f32.partialorder %v115, %v948
        %vm957 = vcmp.eq.f32.partialorder %v116, %v949
        %vm958 = vcmp.eq.f32.partialorder %v117, %v950
        %vm959 = vcmp.eq.f32.partialorder %v118, %v951
        %vm960 = vcmp.eq.f32.partialorder %v119, %v952
        %vm961 = vcmp.eq.f32.partialorder %v120, %v953
        %vm962 = vcmp.eq.f32.partialorder %v121, %v954
        %vm963 = vcmp.eq.f32.partialorder %v122, %v955
        %v964 = vsel %vm956, 1, 0
        %v965 = vsel %vm957, 1, 0
        %v966 = vsel %vm958, 1, 0
        %v967 = vsel %vm959, 1, 0
        %v968 = vsel %vm960, 1, 0
        %v969 = vsel %vm961, 1, 0
        %v970 = vsel %vm962, 1, 0
        %v971 = vsel %vm963, 1, 0
        %v972 = vcvt.s32.f32 %v964
        %v973 = vcvt.s32.f32 %v965
        %v974 = vcvt.s32.f32 %v966
        %v975 = vcvt.s32.f32 %v967
        %v976 = vcvt.s32.f32 %v968
        %v977 = vcvt.s32.f32 %v969
        %v978 = vcvt.s32.f32 %v970
        %v979 = vcvt.s32.f32 %v971
        %980 = vrot.lane.b32.xlu0 %v972, 64
        %v981 = vpop.permute.xlu0 %980
        %v982 = vsel %vm350, %v981, %v972
        %983 = vrot.lane.b32.xlu0 %v973, 64
        %v984 = vpop.permute.xlu0 %983
        %v985 = vsel %vm350, %v984, %v973
        %986 = vrot.lane.b32.xlu0 %v974, 64
        %v987 = vpop.permute.xlu0 %986
        %v988 = vsel %vm350, %v987, %v974
        %989 = vrot.lane.b32.xlu0 %v975, 64
        %v990 = vpop.permute.xlu0 %989
        %v991 = vsel %vm350, %v990, %v975
        %992 = vrot.lane.b32.xlu0 %v976, 64
        %v993 = vpop.permute.xlu0 %992
        %v994 = vsel %vm350, %v993, %v976
        %995 = vrot.lane.b32.xlu0 %v977, 64
        %v996 = vpop.permute.xlu0 %995
        %v997 = vsel %vm350, %v996, %v977
        %998 = vrot.lane.b32.xlu0 %v978, 64
        %v999 = vpop.permute.xlu0 %998
        %v1000 = vsel %vm350, %v999, %v978
        %1001 = vrot.lane.b32.xlu0 %v979, 64
        %v1002 = vpop.permute.xlu0 %1001
        %v1003 = vsel %vm350, %v1002, %v979
        %1004 = vrot.lane.b32.xlu0 %v982, 64
        %v1005 = vpop.permute.xlu0 %1004
        %1006 = vrot.lane.b32.xlu0 %v985, 64
        %v1007 = vpop.permute.xlu0 %1006
        %1008 = vrot.lane.b32.xlu0 %v988, 64
        %v1009 = vpop.permute.xlu0 %1008
        %1010 = vrot.lane.b32.xlu0 %v991, 64
        %v1011 = vpop.permute.xlu0 %1010
        %1012 = vrot.lane.b32.xlu0 %v994, 64
        %v1013 = vpop.permute.xlu0 %1012
        %1014 = vrot.lane.b32.xlu0 %v997, 64
        %v1015 = vpop.permute.xlu0 %1014
        %1016 = vrot.lane.b32.xlu0 %v1000, 64
        %v1017 = vpop.permute.xlu0 %1016
        %1018 = vrot.lane.b32.xlu0 %v1003, 64
        %v1019 = vpop.permute.xlu0 %1018
        %v1020 = vsel %vm350, %v1005, %v972
        %v1021 = vsel %vm350, %v1007, %v973
        %v1022 = vsel %vm350, %v1009, %v974
        %v1023 = vsel %vm350, %v1011, %v975
        %v1024 = vsel %vm350, %v1013, %v976
        %v1025 = vsel %vm350, %v1015, %v977
        %v1026 = vsel %vm350, %v1017, %v978
        %v1027 = vsel %vm350, %v1019, %v979
        %1036 = vrot.lane.b32.xlu0 %v1020, 127
        %v1037 = vpop.permute.xlu0 %1036
        %1038 = vrot.lane.b32.xlu0 %v1021, 127
        %v1039 = vpop.permute.xlu0 %1038
        %1040 = vrot.lane.b32.xlu0 %v1022, 127
        %v1041 = vpop.permute.xlu0 %1040
        %1042 = vrot.lane.b32.xlu0 %v1023, 127
        %v1043 = vpop.permute.xlu0 %1042
        %1044 = vrot.lane.b32.xlu0 %v1024, 127
        %v1045 = vpop.permute.xlu0 %1044
        %1046 = vrot.lane.b32.xlu0 %v1025, 127
        %v1047 = vpop.permute.xlu0 %1046
        %1048 = vrot.lane.b32.xlu0 %v1026, 127
        %v1049 = vpop.permute.xlu0 %1048
        %1050 = vrot.lane.b32.xlu0 %v1027, 127
        %v1051 = vpop.permute.xlu0 %1050
        %v1060 = vsel %vm329, %v1037, -inf
        %v1061 = vsel %vm329, %v1039, -inf
        %v1062 = vsel %vm329, %v1041, -inf
        %v1063 = vsel %vm329, %v1043, -inf
        %v1064 = vsel %vm329, %v1045, -inf
        %v1065 = vsel %vm329, %v1047, -inf
        %v1066 = vsel %vm329, %v1049, -inf
        %v1067 = vsel %vm329, %v1051, -inf
        %v1068 = vmax.f32 %v972, %v1060
        %v1069 = vmax.f32 %v973, %v1061
        %v1070 = vmax.f32 %v974, %v1062
        %v1071 = vmax.f32 %v975, %v1063
        %v1072 = vmax.f32 %v976, %v1064
        %v1073 = vmax.f32 %v977, %v1065
        %v1074 = vmax.f32 %v978, %v1066
        %v1075 = vmax.f32 %v979, %v1067
        %1076 = vrot.lane.b32.xlu0 %v1068, 64
        %v1077 = vpop.permute.xlu0 %1076
        %v1078 = vsel %vm350, %v1077, %v1068
        %1079 = vrot.lane.b32.xlu0 %v1069, 64
        %v1080 = vpop.permute.xlu0 %1079
        %v1081 = vsel %vm350, %v1080, %v1069
        %1082 = vrot.lane.b32.xlu0 %v1070, 64
        %v1083 = vpop.permute.xlu0 %1082
        %v1084 = vsel %vm350, %v1083, %v1070
        %1085 = vrot.lane.b32.xlu0 %v1071, 64
        %v1086 = vpop.permute.xlu0 %1085
        %v1087 = vsel %vm350, %v1086, %v1071
        %1088 = vrot.lane.b32.xlu0 %v1072, 64
        %v1089 = vpop.permute.xlu0 %1088
        %v1090 = vsel %vm350, %v1089, %v1072
        %1091 = vrot.lane.b32.xlu0 %v1073, 64
        %v1092 = vpop.permute.xlu0 %1091
        %v1093 = vsel %vm350, %v1092, %v1073
        %1094 = vrot.lane.b32.xlu0 %v1074, 64
        %v1095 = vpop.permute.xlu0 %1094
        %v1096 = vsel %vm350, %v1095, %v1074
        %1097 = vrot.lane.b32.xlu0 %v1075, 64
        %v1098 = vpop.permute.xlu0 %1097
        %v1099 = vsel %vm350, %v1098, %v1075
        %1100 = vrot.lane.b32.xlu0 %v1078, 64
        %v1101 = vpop.permute.xlu0 %1100
        %1102 = vrot.lane.b32.xlu0 %v1081, 64
        %v1103 = vpop.permute.xlu0 %1102
        %1104 = vrot.lane.b32.xlu0 %v1084, 64
        %v1105 = vpop.permute.xlu0 %1104
        %1106 = vrot.lane.b32.xlu0 %v1087, 64
        %v1107 = vpop.permute.xlu0 %1106
        %1108 = vrot.lane.b32.xlu0 %v1090, 64
        %v1109 = vpop.permute.xlu0 %1108
        %1110 = vrot.lane.b32.xlu0 %v1093, 64
        %v1111 = vpop.permute.xlu0 %1110
        %1112 = vrot.lane.b32.xlu0 %v1096, 64
        %v1113 = vpop.permute.xlu0 %1112
        %1114 = vrot.lane.b32.xlu0 %v1099, 64
        %v1115 = vpop.permute.xlu0 %1114
        %v1116 = vsel %vm350, %v1101, %v1068
        %v1117 = vsel %vm350, %v1103, %v1069
        %v1118 = vsel %vm350, %v1105, %v1070
        %v1119 = vsel %vm350, %v1107, %v1071
        %v1120 = vsel %vm350, %v1109, %v1072
        %v1121 = vsel %vm350, %v1111, %v1073
        %v1122 = vsel %vm350, %v1113, %v1074
        %v1123 = vsel %vm350, %v1115, %v1075
        %1132 = vrot.lane.b32.xlu0 %v1116, 126
        %v1133 = vpop.permute.xlu0 %1132
        %1134 = vrot.lane.b32.xlu0 %v1117, 126
        %v1135 = vpop.permute.xlu0 %1134
        %1136 = vrot.lane.b32.xlu0 %v1118, 126
        %v1137 = vpop.permute.xlu0 %1136
        %1138 = vrot.lane.b32.xlu0 %v1119, 126
        %v1139 = vpop.permute.xlu0 %1138
        %1140 = vrot.lane.b32.xlu0 %v1120, 126
        %v1141 = vpop.permute.xlu0 %1140
        %1142 = vrot.lane.b32.xlu0 %v1121, 126
        %v1143 = vpop.permute.xlu0 %1142
        %1144 = vrot.lane.b32.xlu0 %v1122, 126
        %v1145 = vpop.permute.xlu0 %1144
        %1146 = vrot.lane.b32.xlu0 %v1123, 126
        %v1147 = vpop.permute.xlu0 %1146
        %v1156 = vsel %vm333, %v1133, -inf
        %v1157 = vsel %vm333, %v1135, -inf
        %v1158 = vsel %vm333, %v1137, -inf
        %v1159 = vsel %vm333, %v1139, -inf
        %v1160 = vsel %vm333, %v1141, -inf
        %v1161 = vsel %vm333, %v1143, -inf
        %v1162 = vsel %vm333, %v1145, -inf
        %v1163 = vsel %vm333, %v1147, -inf
        %v1164 = vmax.f32 %v1068, %v1156
        %v1165 = vmax.f32 %v1069, %v1157
        %v1166 = vmax.f32 %v1070, %v1158
        %v1167 = vmax.f32 %v1071, %v1159
        %v1168 = vmax.f32 %v1072, %v1160
        %v1169 = vmax.f32 %v1073, %v1161
        %v1170 = vmax.f32 %v1074, %v1162
        %v1171 = vmax.f32 %v1075, %v1163
        %1172 = vrot.lane.b32.xlu0 %v1020, 124
        %v1173 = vpop.permute.xlu0 %1172
        %1174 = vrot.lane.b32.xlu0 %v1021, 124
        %v1175 = vpop.permute.xlu0 %1174
        %1176 = vrot.lane.b32.xlu0 %v1022, 124
        %v1177 = vpop.permute.xlu0 %1176
        %1178 = vrot.lane.b32.xlu0 %v1023, 124
        %v1179 = vpop.permute.xlu0 %1178
        %1180 = vrot.lane.b32.xlu0 %v1024, 124
        %v1181 = vpop.permute.xlu0 %1180
        %1182 = vrot.lane.b32.xlu0 %v1025, 124
        %v1183 = vpop.permute.xlu0 %1182
        %1184 = vrot.lane.b32.xlu0 %v1026, 124
        %v1185 = vpop.permute.xlu0 %1184
        %1186 = vrot.lane.b32.xlu0 %v1027, 124
        %v1187 = vpop.permute.xlu0 %1186
        %v1196 = vsel %vm337, %v1173, -inf
        %v1197 = vsel %vm337, %v1175, -inf
        %v1198 = vsel %vm337, %v1177, -inf
        %v1199 = vsel %vm337, %v1179, -inf
        %v1200 = vsel %vm337, %v1181, -inf
        %v1201 = vsel %vm337, %v1183, -inf
        %v1202 = vsel %vm337, %v1185, -inf
        %v1203 = vsel %vm337, %v1187, -inf
        %v1204 = vmax.f32 %v1164, %v1196
        %v1205 = vmax.f32 %v1165, %v1197
        %v1206 = vmax.f32 %v1166, %v1198
        %v1207 = vmax.f32 %v1167, %v1199
        %v1208 = vmax.f32 %v1168, %v1200
        %v1209 = vmax.f32 %v1169, %v1201
        %v1210 = vmax.f32 %v1170, %v1202
        %v1211 = vmax.f32 %v1171, %v1203
        %1212 = vrot.lane.b32.xlu0 %v1020, 65
        %v1213 = vpop.permute.xlu0 %1212
        %1214 = vrot.lane.b32.xlu0 %v1021, 65
        %v1215 = vpop.permute.xlu0 %1214
        %1216 = vrot.lane.b32.xlu0 %v1022, 65
        %v1217 = vpop.permute.xlu0 %1216
        %1218 = vrot.lane.b32.xlu0 %v1023, 65
        %v1219 = vpop.permute.xlu0 %1218
        %1220 = vrot.lane.b32.xlu0 %v1024, 65
        %v1221 = vpop.permute.xlu0 %1220
        %1222 = vrot.lane.b32.xlu0 %v1025, 65
        %v1223 = vpop.permute.xlu0 %1222
        %1224 = vrot.lane.b32.xlu0 %v1026, 65
        %v1225 = vpop.permute.xlu0 %1224
        %1226 = vrot.lane.b32.xlu0 %v1027, 65
        %v1227 = vpop.permute.xlu0 %1226
        %v1236 = vsel %vm341, %v1213, -inf
        %v1237 = vsel %vm341, %v1215, -inf
        %v1238 = vsel %vm341, %v1217, -inf
        %v1239 = vsel %vm341, %v1219, -inf
        %v1240 = vsel %vm341, %v1221, -inf
        %v1241 = vsel %vm341, %v1223, -inf
        %v1242 = vsel %vm341, %v1225, -inf
        %v1243 = vsel %vm341, %v1227, -inf
        %v1244 = vmax.f32 %v972, %v1236
        %v1245 = vmax.f32 %v973, %v1237
        %v1246 = vmax.f32 %v974, %v1238
        %v1247 = vmax.f32 %v975, %v1239
        %v1248 = vmax.f32 %v976, %v1240
        %v1249 = vmax.f32 %v977, %v1241
        %v1250 = vmax.f32 %v978, %v1242
        %v1251 = vmax.f32 %v979, %v1243
        %1252 = vrot.lane.b32.xlu0 %v1244, 64
        %v1253 = vpop.permute.xlu0 %1252
        %v1254 = vsel %vm350, %v1253, %v1244
        %1255 = vrot.lane.b32.xlu0 %v1245, 64
        %v1256 = vpop.permute.xlu0 %1255
        %v1257 = vsel %vm350, %v1256, %v1245
        %1258 = vrot.lane.b32.xlu0 %v1246, 64
        %v1259 = vpop.permute.xlu0 %1258
        %v1260 = vsel %vm350, %v1259, %v1246
        %1261 = vrot.lane.b32.xlu0 %v1247, 64
        %v1262 = vpop.permute.xlu0 %1261
        %v1263 = vsel %vm350, %v1262, %v1247
        %1264 = vrot.lane.b32.xlu0 %v1248, 64
        %v1265 = vpop.permute.xlu0 %1264
        %v1266 = vsel %vm350, %v1265, %v1248
        %1267 = vrot.lane.b32.xlu0 %v1249, 64
        %v1268 = vpop.permute.xlu0 %1267
        %v1269 = vsel %vm350, %v1268, %v1249
        %1270 = vrot.lane.b32.xlu0 %v1250, 64
        %v1271 = vpop.permute.xlu0 %1270
        %v1272 = vsel %vm350, %v1271, %v1250
        %1273 = vrot.lane.b32.xlu0 %v1251, 64
        %v1274 = vpop.permute.xlu0 %1273
        %v1275 = vsel %vm350, %v1274, %v1251
        %1276 = vrot.lane.b32.xlu0 %v1254, 64
        %v1277 = vpop.permute.xlu0 %1276
        %1278 = vrot.lane.b32.xlu0 %v1257, 64
        %v1279 = vpop.permute.xlu0 %1278
        %1280 = vrot.lane.b32.xlu0 %v1260, 64
        %v1281 = vpop.permute.xlu0 %1280
        %1282 = vrot.lane.b32.xlu0 %v1263, 64
        %v1283 = vpop.permute.xlu0 %1282
        %1284 = vrot.lane.b32.xlu0 %v1266, 64
        %v1285 = vpop.permute.xlu0 %1284
        %1286 = vrot.lane.b32.xlu0 %v1269, 64
        %v1287 = vpop.permute.xlu0 %1286
        %1288 = vrot.lane.b32.xlu0 %v1272, 64
        %v1289 = vpop.permute.xlu0 %1288
        %1290 = vrot.lane.b32.xlu0 %v1275, 64
        %v1291 = vpop.permute.xlu0 %1290
        %v1292 = vsel %vm350, %v1277, %v1244
        %v1293 = vsel %vm350, %v1279, %v1245
        %v1294 = vsel %vm350, %v1281, %v1246
        %v1295 = vsel %vm350, %v1283, %v1247
        %v1296 = vsel %vm350, %v1285, %v1248
        %v1297 = vsel %vm350, %v1287, %v1249
        %v1298 = vsel %vm350, %v1289, %v1250
        %v1299 = vsel %vm350, %v1291, %v1251
        %1308 = vrot.lane.b32.xlu0 %v1292, 66
        %v1309 = vpop.permute.xlu0 %1308
        %1310 = vrot.lane.b32.xlu0 %v1293, 66
        %v1311 = vpop.permute.xlu0 %1310
        %1312 = vrot.lane.b32.xlu0 %v1294, 66
        %v1313 = vpop.permute.xlu0 %1312
        %1314 = vrot.lane.b32.xlu0 %v1295, 66
        %v1315 = vpop.permute.xlu0 %1314
        %1316 = vrot.lane.b32.xlu0 %v1296, 66
        %v1317 = vpop.permute.xlu0 %1316
        %1318 = vrot.lane.b32.xlu0 %v1297, 66
        %v1319 = vpop.permute.xlu0 %1318
        %1320 = vrot.lane.b32.xlu0 %v1298, 66
        %v1321 = vpop.permute.xlu0 %1320
        %1322 = vrot.lane.b32.xlu0 %v1299, 66
        %v1323 = vpop.permute.xlu0 %1322
        %v1332 = vsel %vm345, %v1309, -inf
        %v1333 = vsel %vm345, %v1311, -inf
        %v1334 = vsel %vm345, %v1313, -inf
        %v1335 = vsel %vm345, %v1315, -inf
        %v1336 = vsel %vm345, %v1317, -inf
        %v1337 = vsel %vm345, %v1319, -inf
        %v1338 = vsel %vm345, %v1321, -inf
        %v1339 = vsel %vm345, %v1323, -inf
        %v1340 = vmax.f32 %v1244, %v1332
        %v1341 = vmax.f32 %v1245, %v1333
        %v1342 = vmax.f32 %v1246, %v1334
        %v1343 = vmax.f32 %v1247, %v1335
        %v1344 = vmax.f32 %v1248, %v1336
        %v1345 = vmax.f32 %v1249, %v1337
        %v1346 = vmax.f32 %v1250, %v1338
        %v1347 = vmax.f32 %v1251, %v1339
        %1348 = vrot.lane.b32.xlu0 %v1020, 68
        %v1349 = vpop.permute.xlu0 %1348
        %1350 = vrot.lane.b32.xlu0 %v1021, 68
        %v1351 = vpop.permute.xlu0 %1350
        %1352 = vrot.lane.b32.xlu0 %v1022, 68
        %v1353 = vpop.permute.xlu0 %1352
        %1354 = vrot.lane.b32.xlu0 %v1023, 68
        %v1355 = vpop.permute.xlu0 %1354
        %1356 = vrot.lane.b32.xlu0 %v1024, 68
        %v1357 = vpop.permute.xlu0 %1356
        %1358 = vrot.lane.b32.xlu0 %v1025, 68
        %v1359 = vpop.permute.xlu0 %1358
        %1360 = vrot.lane.b32.xlu0 %v1026, 68
        %v1361 = vpop.permute.xlu0 %1360
        %1362 = vrot.lane.b32.xlu0 %v1027, 68
        %v1363 = vpop.permute.xlu0 %1362
        %v1372 = vsel %vm349, %v1349, -inf
        %v1373 = vsel %vm349, %v1351, -inf
        %v1374 = vsel %vm349, %v1353, -inf
        %v1375 = vsel %vm349, %v1355, -inf
        %v1376 = vsel %vm349, %v1357, -inf
        %v1377 = vsel %vm349, %v1359, -inf
        %v1378 = vsel %vm349, %v1361, -inf
        %v1379 = vsel %vm349, %v1363, -inf
        %v1380 = vmax.f32 %v1340, %v1372
        %v1381 = vmax.f32 %v1341, %v1373
        %v1382 = vmax.f32 %v1342, %v1374
        %v1383 = vmax.f32 %v1343, %v1375
        %v1384 = vmax.f32 %v1344, %v1376
        %v1385 = vmax.f32 %v1345, %v1377
        %v1386 = vmax.f32 %v1346, %v1378
        %v1387 = vmax.f32 %v1347, %v1379
        %v1388 = vmax.f32 %v1204, %v1380
        %v1389 = vmax.f32 %v1205, %v1381
        %v1390 = vmax.f32 %v1206, %v1382
        %v1391 = vmax.f32 %v1207, %v1383
        %v1392 = vmax.f32 %v1208, %v1384
        %v1393 = vmax.f32 %v1209, %v1385
        %v1394 = vmax.f32 %v1210, %v1386
        %v1395 = vmax.f32 %v1211, %v1387
        %v1396 = vrot.slane %v1388, 1
        %v1397 = vrot.slane %v1389, 1
        %v1398 = vrot.slane %v1390, 1
        %v1399 = vrot.slane %v1391, 1
        %v1400 = vrot.slane %v1392, 1
        %v1401 = vrot.slane %v1393, 1
        %v1402 = vrot.slane %v1394, 1
        %v1403 = vrot.slane %v1395, 1
        %v1404 = vsel %vm775, %v1402, %v1403
        %v1405 = vsel %vm775, %v1401, %v1402
        %v1406 = vsel %vm775, %v1400, %v1401
        %v1407 = vsel %vm775, %v1399, %v1400
        %v1408 = vsel %vm775, %v1398, %v1399
        %v1409 = vsel %vm775, %v1397, %v1398
        %v1410 = vsel %vm775, %v1396, %v1397
        %v1411 = vsel %vm775, %v1403, %v1396
        %v1412 = vsel %vm158, %v1410, -inf
        %v1413 = vsel %vm159, %v1409, -inf
        %v1414 = vsel %vm160, %v1408, -inf
        %v1415 = vsel %vm161, %v1407, -inf
        %v1416 = vsel %vm162, %v1406, -inf
        %v1417 = vsel %vm163, %v1405, -inf
        %v1418 = vsel %vm164, %v1404, -inf
        %v1419 = vsel %vm165, %v1411, -inf
        %v1420 = vmax.f32 %v1388, %v1412
        %v1421 = vmax.f32 %v1389, %v1413
        %v1422 = vmax.f32 %v1390, %v1414
        %v1423 = vmax.f32 %v1391, %v1415
        %v1424 = vmax.f32 %v1392, %v1416
        %v1425 = vmax.f32 %v1393, %v1417
        %v1426 = vmax.f32 %v1394, %v1418
        %v1427 = vmax.f32 %v1395, %v1419
        %v1428 = vrot.slane %v1420, 2
        %v1429 = vrot.slane %v1421, 2
        %v1430 = vrot.slane %v1422, 2
        %v1431 = vrot.slane %v1423, 2
        %v1432 = vrot.slane %v1424, 2
        %v1433 = vrot.slane %v1425, 2
        %v1434 = vrot.slane %v1426, 2
        %v1435 = vrot.slane %v1427, 2
        %v1436 = vsel %vm808, %v1434, %v1435
        %v1437 = vsel %vm808, %v1433, %v1434
        %v1438 = vsel %vm808, %v1432, %v1433
        %v1439 = vsel %vm808, %v1431, %v1432
        %v1440 = vsel %vm808, %v1430, %v1431
        %v1441 = vsel %vm808, %v1429, %v1430
        %v1442 = vsel %vm808, %v1428, %v1429
        %v1443 = vsel %vm808, %v1435, %v1428
        %v1444 = vsel %vm190, %v1442, -inf
        %v1445 = vsel %vm191, %v1441, -inf
        %v1446 = vsel %vm192, %v1440, -inf
        %v1447 = vsel %vm193, %v1439, -inf
        %v1448 = vsel %vm194, %v1438, -inf
        %v1449 = vsel %vm195, %v1437, -inf
        %v1450 = vsel %vm196, %v1436, -inf
        %v1451 = vsel %vm197, %v1443, -inf
        %v1452 = vmax.f32 %v1420, %v1444
        %v1453 = vmax.f32 %v1421, %v1445
        %v1454 = vmax.f32 %v1422, %v1446
        %v1455 = vmax.f32 %v1423, %v1447
        %v1456 = vmax.f32 %v1424, %v1448
        %v1457 = vmax.f32 %v1425, %v1449
        %v1458 = vmax.f32 %v1426, %v1450
        %v1459 = vmax.f32 %v1427, %v1451
        %v1460 = vrot.slane %v1388, 4
        %v1461 = vrot.slane %v1389, 4
        %v1462 = vrot.slane %v1390, 4
        %v1463 = vrot.slane %v1391, 4
        %v1464 = vrot.slane %v1392, 4
        %v1465 = vrot.slane %v1393, 4
        %v1466 = vrot.slane %v1394, 4
        %v1467 = vrot.slane %v1395, 4
        %v1468 = vsel %vm841, %v1466, %v1467
        %v1469 = vsel %vm841, %v1465, %v1466
        %v1470 = vsel %vm841, %v1464, %v1465
        %v1471 = vsel %vm841, %v1463, %v1464
        %v1472 = vsel %vm841, %v1462, %v1463
        %v1473 = vsel %vm841, %v1461, %v1462
        %v1474 = vsel %vm841, %v1460, %v1461
        %v1475 = vsel %vm841, %v1467, %v1460
        %v1476 = vsel %vm222, %v1474, -inf
        %v1477 = vsel %vm223, %v1473, -inf
        %v1478 = vsel %vm224, %v1472, -inf
        %v1479 = vsel %vm225, %v1471, -inf
        %v1480 = vsel %vm226, %v1470, -inf
        %v1481 = vsel %vm227, %v1469, -inf
        %v1482 = vsel %vm228, %v1468, -inf
        %v1483 = vsel %vm229, %v1475, -inf
        %v1484 = vmax.f32 %v1452, %v1476
        %v1485 = vmax.f32 %v1453, %v1477
        %v1486 = vmax.f32 %v1454, %v1478
        %v1487 = vmax.f32 %v1455, %v1479
        %v1488 = vmax.f32 %v1456, %v1480
        %v1489 = vmax.f32 %v1457, %v1481
        %v1490 = vmax.f32 %v1458, %v1482
        %v1491 = vmax.f32 %v1459, %v1483
        %v1492 = vrot.slane %v1388, 7
        %v1493 = vrot.slane %v1389, 7
        %v1494 = vrot.slane %v1390, 7
        %v1495 = vrot.slane %v1391, 7
        %v1496 = vrot.slane %v1392, 7
        %v1497 = vrot.slane %v1393, 7
        %v1498 = vrot.slane %v1394, 7
        %v1499 = vrot.slane %v1395, 7
        %v1500 = vsel %vm874, %v1498, %v1499
        %v1501 = vsel %vm874, %v1497, %v1498
        %v1502 = vsel %vm874, %v1496, %v1497
        %v1503 = vsel %vm874, %v1495, %v1496
        %v1504 = vsel %vm874, %v1494, %v1495
        %v1505 = vsel %vm874, %v1493, %v1494
        %v1506 = vsel %vm874, %v1492, %v1493
        %v1507 = vsel %vm874, %v1499, %v1492
        %v1508 = vsel %vm254, %v1507, -inf
        %v1509 = vsel %vm255, %v1506, -inf
        %v1510 = vsel %vm256, %v1505, -inf
        %v1511 = vsel %vm257, %v1504, -inf
        %v1512 = vsel %vm258, %v1503, -inf
        %v1513 = vsel %vm259, %v1502, -inf
        %v1514 = vsel %vm260, %v1501, -inf
        %v1515 = vsel %vm261, %v1500, -inf
        %v1516 = vmax.f32 %v1388, %v1508
        %v1517 = vmax.f32 %v1389, %v1509
        %v1518 = vmax.f32 %v1390, %v1510
        %v1519 = vmax.f32 %v1391, %v1511
        %v1520 = vmax.f32 %v1392, %v1512
        %v1521 = vmax.f32 %v1393, %v1513
        %v1522 = vmax.f32 %v1394, %v1514
        %v1523 = vmax.f32 %v1395, %v1515
        %v1524 = vrot.slane %v1516, 6
        %v1525 = vrot.slane %v1517, 6
        %v1526 = vrot.slane %v1518, 6
        %v1527 = vrot.slane %v1519, 6
        %v1528 = vrot.slane %v1520, 6
        %v1529 = vrot.slane %v1521, 6
        %v1530 = vrot.slane %v1522, 6
        %v1531 = vrot.slane %v1523, 6
        %v1532 = vsel %vm907, %v1530, %v1531
        %v1533 = vsel %vm907, %v1529, %v1530
        %v1534 = vsel %vm907, %v1528, %v1529
        %v1535 = vsel %vm907, %v1527, %v1528
        %v1536 = vsel %vm907, %v1526, %v1527
        %v1537 = vsel %vm907, %v1525, %v1526
        %v1538 = vsel %vm907, %v1524, %v1525
        %v1539 = vsel %vm907, %v1531, %v1524
        %v1540 = vsel %vm286, %v1539, -inf
        %v1541 = vsel %vm287, %v1538, -inf
        %v1542 = vsel %vm288, %v1537, -inf
        %v1543 = vsel %vm289, %v1536, -inf
        %v1544 = vsel %vm290, %v1535, -inf
        %v1545 = vsel %vm291, %v1534, -inf
        %v1546 = vsel %vm292, %v1533, -inf
        %v1547 = vsel %vm293, %v1532, -inf
        %v1548 = vmax.f32 %v1516, %v1540
        %v1549 = vmax.f32 %v1517, %v1541
        %v1550 = vmax.f32 %v1518, %v1542
        %v1551 = vmax.f32 %v1519, %v1543
        %v1552 = vmax.f32 %v1520, %v1544
        %v1553 = vmax.f32 %v1521, %v1545
        %v1554 = vmax.f32 %v1522, %v1546
        %v1555 = vmax.f32 %v1523, %v1547
        %v1556 = vsel %vm318, %v1475, -inf
        %v1557 = vsel %vm319, %v1474, -inf
        %v1558 = vsel %vm320, %v1473, -inf
        %v1559 = vsel %vm321, %v1472, -inf
        %v1560 = vsel %vm322, %v1471, -inf
        %v1561 = vsel %vm323, %v1470, -inf
        %v1562 = vsel %vm324, %v1469, -inf
        %v1563 = vsel %vm325, %v1468, -inf
        %v1564 = vmax.f32 %v1548, %v1556
        %v1565 = vmax.f32 %v1549, %v1557
        %v1566 = vmax.f32 %v1550, %v1558
        %v1567 = vmax.f32 %v1551, %v1559
        %v1568 = vmax.f32 %v1552, %v1560
        %v1569 = vmax.f32 %v1553, %v1561
        %v1570 = vmax.f32 %v1554, %v1562
        %v1571 = vmax.f32 %v1555, %v1563
        %v1572 = vmax.f32 %v1484, %v1564
        %v1573 = vmax.f32 %v1485, %v1565
        %v1574 = vmax.f32 %v1486, %v1566
        %v1575 = vmax.f32 %v1487, %v1567
        %v1576 = vmax.f32 %v1488, %v1568
        %v1577 = vmax.f32 %v1489, %v1569
        %v1578 = vmax.f32 %v1490, %v1570
        %v1579 = vmax.f32 %v1491, %v1571
        %vm1580 = vcmp.gt.f32.partialorder %v1572, 0.0
        %vm1581 = vcmp.gt.f32.partialorder %v1573, 0.0
        %vm1582 = vcmp.gt.f32.partialorder %v1574, 0.0
        %vm1583 = vcmp.gt.f32.partialorder %v1575, 0.0
        %vm1584 = vcmp.gt.f32.partialorder %v1576, 0.0
        %vm1585 = vcmp.gt.f32.partialorder %v1577, 0.0
        %vm1586 = vcmp.gt.f32.partialorder %v1578, 0.0
        %vm1587 = vcmp.gt.f32.partialorder %v1579, 0.0
        %v1588 = vsel %vm1580, 0.0, %v115
        %v1589 = vsel %vm1581, 0.0, %v116
        %v1590 = vsel %vm1582, 0.0, %v117
        %v1591 = vsel %vm1583, 0.0, %v118
        %v1592 = vsel %vm1584, 0.0, %v119
        %v1593 = vsel %vm1585, 0.0, %v120
        %v1594 = vsel %vm1586, 0.0, %v121
        %v1595 = vsel %vm1587, 0.0, %v122
        %1596 = vrot.lane.b32.xlu0 %v1588, 64
        %v1597 = vpop.permute.xlu0 %1596
        %v1598 = vsel %vm350, %v1597, %v1588
        %1599 = vrot.lane.b32.xlu0 %v1589, 64
        %v1600 = vpop.permute.xlu0 %1599
        %v1601 = vsel %vm350, %v1600, %v1589
        %1602 = vrot.lane.b32.xlu0 %v1590, 64
        %v1603 = vpop.permute.xlu0 %1602
        %v1604 = vsel %vm350, %v1603, %v1590
        %1605 = vrot.lane.b32.xlu0 %v1591, 64
        %v1606 = vpop.permute.xlu0 %1605
        %v1607 = vsel %vm350, %v1606, %v1591
        %1608 = vrot.lane.b32.xlu0 %v1592, 64
        %v1609 = vpop.permute.xlu0 %1608
        %v1610 = vsel %vm350, %v1609, %v1592
        %1611 = vrot.lane.b32.xlu0 %v1593, 64
        %v1612 = vpop.permute.xlu0 %1611
        %v1613 = vsel %vm350, %v1612, %v1593
        %1614 = vrot.lane.b32.xlu0 %v1594, 64
        %v1615 = vpop.permute.xlu0 %1614
        %v1616 = vsel %vm350, %v1615, %v1594
        %1617 = vrot.lane.b32.xlu0 %v1595, 64
        %v1618 = vpop.permute.xlu0 %1617
        %v1619 = vsel %vm350, %v1618, %v1595
        %1620 = vrot.lane.b32.xlu0 %v1598, 64
        %v1621 = vpop.permute.xlu0 %1620
        %1622 = vrot.lane.b32.xlu0 %v1601, 64
        %v1623 = vpop.permute.xlu0 %1622
        %1624 = vrot.lane.b32.xlu0 %v1604, 64
        %v1625 = vpop.permute.xlu0 %1624
        %1626 = vrot.lane.b32.xlu0 %v1607, 64
        %v1627 = vpop.permute.xlu0 %1626
        %1628 = vrot.lane.b32.xlu0 %v1610, 64
        %v1629 = vpop.permute.xlu0 %1628
        %1630 = vrot.lane.b32.xlu0 %v1613, 64
        %v1631 = vpop.permute.xlu0 %1630
        %1632 = vrot.lane.b32.xlu0 %v1616, 64
        %v1633 = vpop.permute.xlu0 %1632
        %1634 = vrot.lane.b32.xlu0 %v1619, 64
        %v1635 = vpop.permute.xlu0 %1634
        %v1636 = vsel %vm350, %v1621, %v1588
        %v1637 = vsel %vm350, %v1623, %v1589
        %v1638 = vsel %vm350, %v1625, %v1590
        %v1639 = vsel %vm350, %v1627, %v1591
        %v1640 = vsel %vm350, %v1629, %v1592
        %v1641 = vsel %vm350, %v1631, %v1593
        %v1642 = vsel %vm350, %v1633, %v1594
        %v1643 = vsel %vm350, %v1635, %v1595
        %1652 = vrot.lane.b32.xlu0 %v1636, 127
        %v1653 = vpop.permute.xlu0 %1652
        %1654 = vrot.lane.b32.xlu0 %v1637, 127
        %v1655 = vpop.permute.xlu0 %1654
        %1656 = vrot.lane.b32.xlu0 %v1638, 127
        %v1657 = vpop.permute.xlu0 %1656
        %1658 = vrot.lane.b32.xlu0 %v1639, 127
        %v1659 = vpop.permute.xlu0 %1658
        %1660 = vrot.lane.b32.xlu0 %v1640, 127
        %v1661 = vpop.permute.xlu0 %1660
        %1662 = vrot.lane.b32.xlu0 %v1641, 127
        %v1663 = vpop.permute.xlu0 %1662
        %1664 = vrot.lane.b32.xlu0 %v1642, 127
        %v1665 = vpop.permute.xlu0 %1664
        %1666 = vrot.lane.b32.xlu0 %v1643, 127
        %v1667 = vpop.permute.xlu0 %1666
        %v1676 = vsel %vm329, %v1653, -inf
        %v1677 = vsel %vm329, %v1655, -inf
        %v1678 = vsel %vm329, %v1657, -inf
        %v1679 = vsel %vm329, %v1659, -inf
        %v1680 = vsel %vm329, %v1661, -inf
        %v1681 = vsel %vm329, %v1663, -inf
        %v1682 = vsel %vm329, %v1665, -inf
        %v1683 = vsel %vm329, %v1667, -inf
        %v1684 = vmax.f32 %v1588, %v1676
        %v1685 = vmax.f32 %v1589, %v1677
        %v1686 = vmax.f32 %v1590, %v1678
        %v1687 = vmax.f32 %v1591, %v1679
        %v1688 = vmax.f32 %v1592, %v1680
        %v1689 = vmax.f32 %v1593, %v1681
        %v1690 = vmax.f32 %v1594, %v1682
        %v1691 = vmax.f32 %v1595, %v1683
        %1692 = vrot.lane.b32.xlu0 %v1684, 64
        %v1693 = vpop.permute.xlu0 %1692
        %v1694 = vsel %vm350, %v1693, %v1684
        %1695 = vrot.lane.b32.xlu0 %v1685, 64
        %v1696 = vpop.permute.xlu0 %1695
        %v1697 = vsel %vm350, %v1696, %v1685
        %1698 = vrot.lane.b32.xlu0 %v1686, 64
        %v1699 = vpop.permute.xlu0 %1698
        %v1700 = vsel %vm350, %v1699, %v1686
        %1701 = vrot.lane.b32.xlu0 %v1687, 64
        %v1702 = vpop.permute.xlu0 %1701
        %v1703 = vsel %vm350, %v1702, %v1687
        %1704 = vrot.lane.b32.xlu0 %v1688, 64
        %v1705 = vpop.permute.xlu0 %1704
        %v1706 = vsel %vm350, %v1705, %v1688
        %1707 = vrot.lane.b32.xlu0 %v1689, 64
        %v1708 = vpop.permute.xlu0 %1707
        %v1709 = vsel %vm350, %v1708, %v1689
        %1710 = vrot.lane.b32.xlu0 %v1690, 64
        %v1711 = vpop.permute.xlu0 %1710
        %v1712 = vsel %vm350, %v1711, %v1690
        %1713 = vrot.lane.b32.xlu0 %v1691, 64
        %v1714 = vpop.permute.xlu0 %1713
        %v1715 = vsel %vm350, %v1714, %v1691
        %1716 = vrot.lane.b32.xlu0 %v1694, 64
        %v1717 = vpop.permute.xlu0 %1716
        %1718 = vrot.lane.b32.xlu0 %v1697, 64
        %v1719 = vpop.permute.xlu0 %1718
        %1720 = vrot.lane.b32.xlu0 %v1700, 64
        %v1721 = vpop.permute.xlu0 %1720
        %1722 = vrot.lane.b32.xlu0 %v1703, 64
        %v1723 = vpop.permute.xlu0 %1722
        %1724 = vrot.lane.b32.xlu0 %v1706, 64
        %v1725 = vpop.permute.xlu0 %1724
        %1726 = vrot.lane.b32.xlu0 %v1709, 64
        %v1727 = vpop.permute.xlu0 %1726
        %1728 = vrot.lane.b32.xlu0 %v1712, 64
        %v1729 = vpop.permute.xlu0 %1728
        %1730 = vrot.lane.b32.xlu0 %v1715, 64
        %v1731 = vpop.permute.xlu0 %1730
        %v1732 = vsel %vm350, %v1717, %v1684
        %v1733 = vsel %vm350, %v1719, %v1685
        %v1734 = vsel %vm350, %v1721, %v1686
        %v1735 = vsel %vm350, %v1723, %v1687
        %v1736 = vsel %vm350, %v1725, %v1688
        %v1737 = vsel %vm350, %v1727, %v1689
        %v1738 = vsel %vm350, %v1729, %v1690
        %v1739 = vsel %vm350, %v1731, %v1691
        %1748 = vrot.lane.b32.xlu0 %v1732, 126
        %v1749 = vpop.permute.xlu0 %1748
        %1750 = vrot.lane.b32.xlu0 %v1733, 126
        %v1751 = vpop.permute.xlu0 %1750
        %1752 = vrot.lane.b32.xlu0 %v1734, 126
        %v1753 = vpop.permute.xlu0 %1752
        %1754 = vrot.lane.b32.xlu0 %v1735, 126
        %v1755 = vpop.permute.xlu0 %1754
        %1756 = vrot.lane.b32.xlu0 %v1736, 126
        %v1757 = vpop.permute.xlu0 %1756
        %1758 = vrot.lane.b32.xlu0 %v1737, 126
        %v1759 = vpop.permute.xlu0 %1758
        %1760 = vrot.lane.b32.xlu0 %v1738, 126
        %v1761 = vpop.permute.xlu0 %1760
        %1762 = vrot.lane.b32.xlu0 %v1739, 126
        %v1763 = vpop.permute.xlu0 %1762
        %v1772 = vsel %vm333, %v1749, -inf
        %v1773 = vsel %vm333, %v1751, -inf
        %v1774 = vsel %vm333, %v1753, -inf
        %v1775 = vsel %vm333, %v1755, -inf
        %v1776 = vsel %vm333, %v1757, -inf
        %v1777 = vsel %vm333, %v1759, -inf
        %v1778 = vsel %vm333, %v1761, -inf
        %v1779 = vsel %vm333, %v1763, -inf
        %v1780 = vmax.f32 %v1684, %v1772
        %v1781 = vmax.f32 %v1685, %v1773
        %v1782 = vmax.f32 %v1686, %v1774
        %v1783 = vmax.f32 %v1687, %v1775
        %v1784 = vmax.f32 %v1688, %v1776
        %v1785 = vmax.f32 %v1689, %v1777
        %v1786 = vmax.f32 %v1690, %v1778
        %v1787 = vmax.f32 %v1691, %v1779
        %1788 = vrot.lane.b32.xlu0 %v1636, 124
        %v1789 = vpop.permute.xlu0 %1788
        %1790 = vrot.lane.b32.xlu0 %v1637, 124
        %v1791 = vpop.permute.xlu0 %1790
        %1792 = vrot.lane.b32.xlu0 %v1638, 124
        %v1793 = vpop.permute.xlu0 %1792
        %1794 = vrot.lane.b32.xlu0 %v1639, 124
        %v1795 = vpop.permute.xlu0 %1794
        %1796 = vrot.lane.b32.xlu0 %v1640, 124
        %v1797 = vpop.permute.xlu0 %1796
        %1798 = vrot.lane.b32.xlu0 %v1641, 124
        %v1799 = vpop.permute.xlu0 %1798
        %1800 = vrot.lane.b32.xlu0 %v1642, 124
        %v1801 = vpop.permute.xlu0 %1800
        %1802 = vrot.lane.b32.xlu0 %v1643, 124
        %v1803 = vpop.permute.xlu0 %1802
        %v1812 = vsel %vm337, %v1789, -inf
        %v1813 = vsel %vm337, %v1791, -inf
        %v1814 = vsel %vm337, %v1793, -inf
        %v1815 = vsel %vm337, %v1795, -inf
        %v1816 = vsel %vm337, %v1797, -inf
        %v1817 = vsel %vm337, %v1799, -inf
        %v1818 = vsel %vm337, %v1801, -inf
        %v1819 = vsel %vm337, %v1803, -inf
        %v1820 = vmax.f32 %v1780, %v1812
        %v1821 = vmax.f32 %v1781, %v1813
        %v1822 = vmax.f32 %v1782, %v1814
        %v1823 = vmax.f32 %v1783, %v1815
        %v1824 = vmax.f32 %v1784, %v1816
        %v1825 = vmax.f32 %v1785, %v1817
        %v1826 = vmax.f32 %v1786, %v1818
        %v1827 = vmax.f32 %v1787, %v1819
        %1828 = vrot.lane.b32.xlu0 %v1636, 65
        %v1829 = vpop.permute.xlu0 %1828
        %1830 = vrot.lane.b32.xlu0 %v1637, 65
        %v1831 = vpop.permute.xlu0 %1830
        %1832 = vrot.lane.b32.xlu0 %v1638, 65
        %v1833 = vpop.permute.xlu0 %1832
        %1834 = vrot.lane.b32.xlu0 %v1639, 65
        %v1835 = vpop.permute.xlu0 %1834
        %1836 = vrot.lane.b32.xlu0 %v1640, 65
        %v1837 = vpop.permute.xlu0 %1836
        %1838 = vrot.lane.b32.xlu0 %v1641, 65
        %v1839 = vpop.permute.xlu0 %1838
        %1840 = vrot.lane.b32.xlu0 %v1642, 65
        %v1841 = vpop.permute.xlu0 %1840
        %1842 = vrot.lane.b32.xlu0 %v1643, 65
        %v1843 = vpop.permute.xlu0 %1842
        %v1852 = vsel %vm341, %v1829, -inf
        %v1853 = vsel %vm341, %v1831, -inf
        %v1854 = vsel %vm341, %v1833, -inf
        %v1855 = vsel %vm341, %v1835, -inf
        %v1856 = vsel %vm341, %v1837, -inf
        %v1857 = vsel %vm341, %v1839, -inf
        %v1858 = vsel %vm341, %v1841, -inf
        %v1859 = vsel %vm341, %v1843, -inf
        %v1860 = vmax.f32 %v1588, %v1852
        %v1861 = vmax.f32 %v1589, %v1853
        %v1862 = vmax.f32 %v1590, %v1854
        %v1863 = vmax.f32 %v1591, %v1855
        %v1864 = vmax.f32 %v1592, %v1856
        %v1865 = vmax.f32 %v1593, %v1857
        %v1866 = vmax.f32 %v1594, %v1858
        %v1867 = vmax.f32 %v1595, %v1859
        %1868 = vrot.lane.b32.xlu0 %v1860, 64
        %v1869 = vpop.permute.xlu0 %1868
        %v1870 = vsel %vm350, %v1869, %v1860
        %1871 = vrot.lane.b32.xlu0 %v1861, 64
        %v1872 = vpop.permute.xlu0 %1871
        %v1873 = vsel %vm350, %v1872, %v1861
        %1874 = vrot.lane.b32.xlu0 %v1862, 64
        %v1875 = vpop.permute.xlu0 %1874
        %v1876 = vsel %vm350, %v1875, %v1862
        %1877 = vrot.lane.b32.xlu0 %v1863, 64
        %v1878 = vpop.permute.xlu0 %1877
        %v1879 = vsel %vm350, %v1878, %v1863
        %1880 = vrot.lane.b32.xlu0 %v1864, 64
        %v1881 = vpop.permute.xlu0 %1880
        %v1882 = vsel %vm350, %v1881, %v1864
        %1883 = vrot.lane.b32.xlu0 %v1865, 64
        %v1884 = vpop.permute.xlu0 %1883
        %v1885 = vsel %vm350, %v1884, %v1865
        %1886 = vrot.lane.b32.xlu0 %v1866, 64
        %v1887 = vpop.permute.xlu0 %1886
        %v1888 = vsel %vm350, %v1887, %v1866
        %1889 = vrot.lane.b32.xlu0 %v1867, 64
        %v1890 = vpop.permute.xlu0 %1889
        %v1891 = vsel %vm350, %v1890, %v1867
        %1892 = vrot.lane.b32.xlu0 %v1870, 64
        %v1893 = vpop.permute.xlu0 %1892
        %1894 = vrot.lane.b32.xlu0 %v1873, 64
        %v1895 = vpop.permute.xlu0 %1894
        %1896 = vrot.lane.b32.xlu0 %v1876, 64
        %v1897 = vpop.permute.xlu0 %1896
        %1898 = vrot.lane.b32.xlu0 %v1879, 64
        %v1899 = vpop.permute.xlu0 %1898
        %1900 = vrot.lane.b32.xlu0 %v1882, 64
        %v1901 = vpop.permute.xlu0 %1900
        %1902 = vrot.lane.b32.xlu0 %v1885, 64
        %v1903 = vpop.permute.xlu0 %1902
        %1904 = vrot.lane.b32.xlu0 %v1888, 64
        %v1905 = vpop.permute.xlu0 %1904
        %1906 = vrot.lane.b32.xlu0 %v1891, 64
        %v1907 = vpop.permute.xlu0 %1906
        %v1908 = vsel %vm350, %v1893, %v1860
        %v1909 = vsel %vm350, %v1895, %v1861
        %v1910 = vsel %vm350, %v1897, %v1862
        %v1911 = vsel %vm350, %v1899, %v1863
        %v1912 = vsel %vm350, %v1901, %v1864
        %v1913 = vsel %vm350, %v1903, %v1865
        %v1914 = vsel %vm350, %v1905, %v1866
        %v1915 = vsel %vm350, %v1907, %v1867
        %1924 = vrot.lane.b32.xlu0 %v1908, 66
        %v1925 = vpop.permute.xlu0 %1924
        %1926 = vrot.lane.b32.xlu0 %v1909, 66
        %v1927 = vpop.permute.xlu0 %1926
        %1928 = vrot.lane.b32.xlu0 %v1910, 66
        %v1929 = vpop.permute.xlu0 %1928
        %1930 = vrot.lane.b32.xlu0 %v1911, 66
        %v1931 = vpop.permute.xlu0 %1930
        %1932 = vrot.lane.b32.xlu0 %v1912, 66
        %v1933 = vpop.permute.xlu0 %1932
        %1934 = vrot.lane.b32.xlu0 %v1913, 66
        %v1935 = vpop.permute.xlu0 %1934
        %1936 = vrot.lane.b32.xlu0 %v1914, 66
        %v1937 = vpop.permute.xlu0 %1936
        %1938 = vrot.lane.b32.xlu0 %v1915, 66
        %v1939 = vpop.permute.xlu0 %1938
        %v1948 = vsel %vm345, %v1925, -inf
        %v1949 = vsel %vm345, %v1927, -inf
        %v1950 = vsel %vm345, %v1929, -inf
        %v1951 = vsel %vm345, %v1931, -inf
        %v1952 = vsel %vm345, %v1933, -inf
        %v1953 = vsel %vm345, %v1935, -inf
        %v1954 = vsel %vm345, %v1937, -inf
        %v1955 = vsel %vm345, %v1939, -inf
        %v1956 = vmax.f32 %v1860, %v1948
        %v1957 = vmax.f32 %v1861, %v1949
        %v1958 = vmax.f32 %v1862, %v1950
        %v1959 = vmax.f32 %v1863, %v1951
        %v1960 = vmax.f32 %v1864, %v1952
        %v1961 = vmax.f32 %v1865, %v1953
        %v1962 = vmax.f32 %v1866, %v1954
        %v1963 = vmax.f32 %v1867, %v1955
        %1964 = vrot.lane.b32.xlu0 %v1636, 68
        %v1965 = vpop.permute.xlu0 %1964
        %1966 = vrot.lane.b32.xlu0 %v1637, 68
        %v1967 = vpop.permute.xlu0 %1966
        %1968 = vrot.lane.b32.xlu0 %v1638, 68
        %v1969 = vpop.permute.xlu0 %1968
        %1970 = vrot.lane.b32.xlu0 %v1639, 68
        %v1971 = vpop.permute.xlu0 %1970
        %1972 = vrot.lane.b32.xlu0 %v1640, 68
        %v1973 = vpop.permute.xlu0 %1972
        %1974 = vrot.lane.b32.xlu0 %v1641, 68
        %v1975 = vpop.permute.xlu0 %1974
        %1976 = vrot.lane.b32.xlu0 %v1642, 68
        %v1977 = vpop.permute.xlu0 %1976
        %1978 = vrot.lane.b32.xlu0 %v1643, 68
        %v1979 = vpop.permute.xlu0 %1978
        %v1988 = vsel %vm349, %v1965, -inf
        %v1989 = vsel %vm349, %v1967, -inf
        %v1990 = vsel %vm349, %v1969, -inf
        %v1991 = vsel %vm349, %v1971, -inf
        %v1992 = vsel %vm349, %v1973, -inf
        %v1993 = vsel %vm349, %v1975, -inf
        %v1994 = vsel %vm349, %v1977, -inf
        %v1995 = vsel %vm349, %v1979, -inf
        %v1996 = vmax.f32 %v1956, %v1988
        %v1997 = vmax.f32 %v1957, %v1989
        %v1998 = vmax.f32 %v1958, %v1990
        %v1999 = vmax.f32 %v1959, %v1991
        %v2000 = vmax.f32 %v1960, %v1992
        %v2001 = vmax.f32 %v1961, %v1993
        %v2002 = vmax.f32 %v1962, %v1994
        %v2003 = vmax.f32 %v1963, %v1995
        %v2004 = vmax.f32 %v1820, %v1996
        %v2005 = vmax.f32 %v1821, %v1997
        %v2006 = vmax.f32 %v1822, %v1998
        %v2007 = vmax.f32 %v1823, %v1999
        %v2008 = vmax.f32 %v1824, %v2000
        %v2009 = vmax.f32 %v1825, %v2001
        %v2010 = vmax.f32 %v1826, %v2002
        %v2011 = vmax.f32 %v1827, %v2003
        %v2012 = vrot.slane %v2004, 1
        %v2013 = vrot.slane %v2005, 1
        %v2014 = vrot.slane %v2006, 1
        %v2015 = vrot.slane %v2007, 1
        %v2016 = vrot.slane %v2008, 1
        %v2017 = vrot.slane %v2009, 1
        %v2018 = vrot.slane %v2010, 1
        %v2019 = vrot.slane %v2011, 1
        %v2020 = vsel %vm775, %v2018, %v2019
        %v2021 = vsel %vm775, %v2017, %v2018
        %v2022 = vsel %vm775, %v2016, %v2017
        %v2023 = vsel %vm775, %v2015, %v2016
        %v2024 = vsel %vm775, %v2014, %v2015
        %v2025 = vsel %vm775, %v2013, %v2014
        %v2026 = vsel %vm775, %v2012, %v2013
        %v2027 = vsel %vm775, %v2019, %v2012
        %v2028 = vsel %vm158, %v2026, -inf
        %v2029 = vsel %vm159, %v2025, -inf
        %v2030 = vsel %vm160, %v2024, -inf
        %v2031 = vsel %vm161, %v2023, -inf
        %v2032 = vsel %vm162, %v2022, -inf
        %v2033 = vsel %vm163, %v2021, -inf
        %v2034 = vsel %vm164, %v2020, -inf
        %v2035 = vsel %vm165, %v2027, -inf
        %v2036 = vmax.f32 %v2004, %v2028
        %v2037 = vmax.f32 %v2005, %v2029
        %v2038 = vmax.f32 %v2006, %v2030
        %v2039 = vmax.f32 %v2007, %v2031
        %v2040 = vmax.f32 %v2008, %v2032
        %v2041 = vmax.f32 %v2009, %v2033
        %v2042 = vmax.f32 %v2010, %v2034
        %v2043 = vmax.f32 %v2011, %v2035
        %v2044 = vrot.slane %v2036, 2
        %v2045 = vrot.slane %v2037, 2
        %v2046 = vrot.slane %v2038, 2
        %v2047 = vrot.slane %v2039, 2
        %v2048 = vrot.slane %v2040, 2
        %v2049 = vrot.slane %v2041, 2
        %v2050 = vrot.slane %v2042, 2
        %v2051 = vrot.slane %v2043, 2
        %v2052 = vsel %vm808, %v2050, %v2051
        %v2053 = vsel %vm808, %v2049, %v2050
        %v2054 = vsel %vm808, %v2048, %v2049
        %v2055 = vsel %vm808, %v2047, %v2048
        %v2056 = vsel %vm808, %v2046, %v2047
        %v2057 = vsel %vm808, %v2045, %v2046
        %v2058 = vsel %vm808, %v2044, %v2045
        %v2059 = vsel %vm808, %v2051, %v2044
        %v2060 = vsel %vm190, %v2058, -inf
        %v2061 = vsel %vm191, %v2057, -inf
        %v2062 = vsel %vm192, %v2056, -inf
        %v2063 = vsel %vm193, %v2055, -inf
        %v2064 = vsel %vm194, %v2054, -inf
        %v2065 = vsel %vm195, %v2053, -inf
        %v2066 = vsel %vm196, %v2052, -inf
        %v2067 = vsel %vm197, %v2059, -inf
        %v2068 = vmax.f32 %v2036, %v2060
        %v2069 = vmax.f32 %v2037, %v2061
        %v2070 = vmax.f32 %v2038, %v2062
        %v2071 = vmax.f32 %v2039, %v2063
        %v2072 = vmax.f32 %v2040, %v2064
        %v2073 = vmax.f32 %v2041, %v2065
        %v2074 = vmax.f32 %v2042, %v2066
        %v2075 = vmax.f32 %v2043, %v2067
        %v2076 = vrot.slane %v2004, 4
        %v2077 = vrot.slane %v2005, 4
        %v2078 = vrot.slane %v2006, 4
        %v2079 = vrot.slane %v2007, 4
        %v2080 = vrot.slane %v2008, 4
        %v2081 = vrot.slane %v2009, 4
        %v2082 = vrot.slane %v2010, 4
        %v2083 = vrot.slane %v2011, 4
        %v2084 = vsel %vm841, %v2082, %v2083
        %v2085 = vsel %vm841, %v2081, %v2082
        %v2086 = vsel %vm841, %v2080, %v2081
        %v2087 = vsel %vm841, %v2079, %v2080
        %v2088 = vsel %vm841, %v2078, %v2079
        %v2089 = vsel %vm841, %v2077, %v2078
        %v2090 = vsel %vm841, %v2076, %v2077
        %v2091 = vsel %vm841, %v2083, %v2076
        %v2092 = vsel %vm222, %v2090, -inf
        %v2093 = vsel %vm223, %v2089, -inf
        %v2094 = vsel %vm224, %v2088, -inf
        %v2095 = vsel %vm225, %v2087, -inf
        %v2096 = vsel %vm226, %v2086, -inf
        %v2097 = vsel %vm227, %v2085, -inf
        %v2098 = vsel %vm228, %v2084, -inf
        %v2099 = vsel %vm229, %v2091, -inf
        %v2100 = vmax.f32 %v2068, %v2092
        %v2101 = vmax.f32 %v2069, %v2093
        %v2102 = vmax.f32 %v2070, %v2094
        %v2103 = vmax.f32 %v2071, %v2095
        %v2104 = vmax.f32 %v2072, %v2096
        %v2105 = vmax.f32 %v2073, %v2097
        %v2106 = vmax.f32 %v2074, %v2098
        %v2107 = vmax.f32 %v2075, %v2099
        %v2108 = vrot.slane %v2004, 7
        %v2109 = vrot.slane %v2005, 7
        %v2110 = vrot.slane %v2006, 7
        %v2111 = vrot.slane %v2007, 7
        %v2112 = vrot.slane %v2008, 7
        %v2113 = vrot.slane %v2009, 7
        %v2114 = vrot.slane %v2010, 7
        %v2115 = vrot.slane %v2011, 7
        %v2116 = vsel %vm874, %v2114, %v2115
        %v2117 = vsel %vm874, %v2113, %v2114
        %v2118 = vsel %vm874, %v2112, %v2113
        %v2119 = vsel %vm874, %v2111, %v2112
        %v2120 = vsel %vm874, %v2110, %v2111
        %v2121 = vsel %vm874, %v2109, %v2110
        %v2122 = vsel %vm874, %v2108, %v2109
        %v2123 = vsel %vm874, %v2115, %v2108
        %v2124 = vsel %vm254, %v2123, -inf
        %v2125 = vsel %vm255, %v2122, -inf
        %v2126 = vsel %vm256, %v2121, -inf
        %v2127 = vsel %vm257, %v2120, -inf
        %v2128 = vsel %vm258, %v2119, -inf
        %v2129 = vsel %vm259, %v2118, -inf
        %v2130 = vsel %vm260, %v2117, -inf
        %v2131 = vsel %vm261, %v2116, -inf
        %v2132 = vmax.f32 %v2004, %v2124
        %v2133 = vmax.f32 %v2005, %v2125
        %v2134 = vmax.f32 %v2006, %v2126
        %v2135 = vmax.f32 %v2007, %v2127
        %v2136 = vmax.f32 %v2008, %v2128
        %v2137 = vmax.f32 %v2009, %v2129
        %v2138 = vmax.f32 %v2010, %v2130
        %v2139 = vmax.f32 %v2011, %v2131
        %v2140 = vrot.slane %v2132, 6
        %v2141 = vrot.slane %v2133, 6
        %v2142 = vrot.slane %v2134, 6
        %v2143 = vrot.slane %v2135, 6
        %v2144 = vrot.slane %v2136, 6
        %v2145 = vrot.slane %v2137, 6
        %v2146 = vrot.slane %v2138, 6
        %v2147 = vrot.slane %v2139, 6
        %v2148 = vsel %vm907, %v2146, %v2147
        %v2149 = vsel %vm907, %v2145, %v2146
        %v2150 = vsel %vm907, %v2144, %v2145
        %v2151 = vsel %vm907, %v2143, %v2144
        %v2152 = vsel %vm907, %v2142, %v2143
        %v2153 = vsel %vm907, %v2141, %v2142
        %v2154 = vsel %vm907, %v2140, %v2141
        %v2155 = vsel %vm907, %v2147, %v2140
        %v2156 = vsel %vm286, %v2155, -inf
        %v2157 = vsel %vm287, %v2154, -inf
        %v2158 = vsel %vm288, %v2153, -inf
        %v2159 = vsel %vm289, %v2152, -inf
        %v2160 = vsel %vm290, %v2151, -inf
        %v2161 = vsel %vm291, %v2150, -inf
        %v2162 = vsel %vm292, %v2149, -inf
        %v2163 = vsel %vm293, %v2148, -inf
        %v2164 = vmax.f32 %v2132, %v2156
        %v2165 = vmax.f32 %v2133, %v2157
        %v2166 = vmax.f32 %v2134, %v2158
        %v2167 = vmax.f32 %v2135, %v2159
        %v2168 = vmax.f32 %v2136, %v2160
        %v2169 = vmax.f32 %v2137, %v2161
        %v2170 = vmax.f32 %v2138, %v2162
        %v2171 = vmax.f32 %v2139, %v2163
        %v2172 = vsel %vm318, %v2091, -inf
        %v2173 = vsel %vm319, %v2090, -inf
        %v2174 = vsel %vm320, %v2089, -inf
        %v2175 = vsel %vm321, %v2088, -inf
        %v2176 = vsel %vm322, %v2087, -inf
        %v2177 = vsel %vm323, %v2086, -inf
        %v2178 = vsel %vm324, %v2085, -inf
        %v2179 = vsel %vm325, %v2084, -inf
        %v2180 = vmax.f32 %v2164, %v2172
        %v2181 = vmax.f32 %v2165, %v2173
        %v2182 = vmax.f32 %v2166, %v2174
        %v2183 = vmax.f32 %v2167, %v2175
        %v2184 = vmax.f32 %v2168, %v2176
        %v2185 = vmax.f32 %v2169, %v2177
        %v2186 = vmax.f32 %v2170, %v2178
        %v2187 = vmax.f32 %v2171, %v2179
        %v2188 = vmax.f32 %v2100, %v2180
        %v2189 = vmax.f32 %v2101, %v2181
        %v2190 = vmax.f32 %v2102, %v2182
        %v2191 = vmax.f32 %v2103, %v2183
        %v2192 = vmax.f32 %v2104, %v2184
        %v2193 = vmax.f32 %v2105, %v2185
        %v2194 = vmax.f32 %v2106, %v2186
        %v2195 = vmax.f32 %v2107, %v2187
        %vm2196 = vcmp.eq.f32.partialorder %v1588, %v2188
        %vm2197 = vcmp.eq.f32.partialorder %v1589, %v2189
        %vm2198 = vcmp.eq.f32.partialorder %v1590, %v2190
        %vm2199 = vcmp.eq.f32.partialorder %v1591, %v2191
        %vm2200 = vcmp.eq.f32.partialorder %v1592, %v2192
        %vm2201 = vcmp.eq.f32.partialorder %v1593, %v2193
        %vm2202 = vcmp.eq.f32.partialorder %v1594, %v2194
        %vm2203 = vcmp.eq.f32.partialorder %v1595, %v2195
        %vm2204 = vmxor %vm1580, 1
        %vm2205 = vmxor %vm1581, 1
        %vm2206 = vmxor %vm1582, 1
        %vm2207 = vmxor %vm1583, 1
        %vm2208 = vmxor %vm1584, 1
        %vm2209 = vmxor %vm1585, 1
        %vm2210 = vmxor %vm1586, 1
        %vm2211 = vmxor %vm1587, 1
        %vm2212 = vmand %vm2196, %vm2204
        %vm2213 = vmand %vm2197, %vm2205
        %vm2214 = vmand %vm2198, %vm2206
        %vm2215 = vmand %vm2199, %vm2207
        %vm2216 = vmand %vm2200, %vm2208
        %vm2217 = vmand %vm2201, %vm2209
        %vm2218 = vmand %vm2202, %vm2210
        %vm2219 = vmand %vm2203, %vm2211
        %vm2220 = vmor %vm956, %vm2212
        %vm2221 = vmor %vm957, %vm2213
        %vm2222 = vmor %vm958, %vm2214
        %vm2223 = vmor %vm959, %vm2215
        %vm2224 = vmor %vm960, %vm2216
        %vm2225 = vmor %vm961, %vm2217
        %vm2226 = vmor %vm962, %vm2218
        %vm2227 = vmor %vm963, %vm2219
        %v2228 = vsel %vm2220, 1, 0
        %v2229 = vsel %vm2221, 1, 0
        %v2230 = vsel %vm2222, 1, 0
        %v2231 = vsel %vm2223, 1, 0
        %v2232 = vsel %vm2224, 1, 0
        %v2233 = vsel %vm2225, 1, 0
        %v2234 = vsel %vm2226, 1, 0
        %v2235 = vsel %vm2227, 1, 0
        %v2236 = vcvt.s32.f32 %v2228
        %v2237 = vcvt.s32.f32 %v2229
        %v2238 = vcvt.s32.f32 %v2230
        %v2239 = vcvt.s32.f32 %v2231
        %v2240 = vcvt.s32.f32 %v2232
        %v2241 = vcvt.s32.f32 %v2233
        %v2242 = vcvt.s32.f32 %v2234
        %v2243 = vcvt.s32.f32 %v2235
        %2244 = vrot.lane.b32.xlu0 %v2236, 64
        %v2245 = vpop.permute.xlu0 %2244
        %v2246 = vsel %vm350, %v2245, %v2236
        %2247 = vrot.lane.b32.xlu0 %v2237, 64
        %v2248 = vpop.permute.xlu0 %2247
        %v2249 = vsel %vm350, %v2248, %v2237
        %2250 = vrot.lane.b32.xlu0 %v2238, 64
        %v2251 = vpop.permute.xlu0 %2250
        %v2252 = vsel %vm350, %v2251, %v2238
        %2253 = vrot.lane.b32.xlu0 %v2239, 64
        %v2254 = vpop.permute.xlu0 %2253
        %v2255 = vsel %vm350, %v2254, %v2239
        %2256 = vrot.lane.b32.xlu0 %v2240, 64
        %v2257 = vpop.permute.xlu0 %2256
        %v2258 = vsel %vm350, %v2257, %v2240
        %2259 = vrot.lane.b32.xlu0 %v2241, 64
        %v2260 = vpop.permute.xlu0 %2259
        %v2261 = vsel %vm350, %v2260, %v2241
        %2262 = vrot.lane.b32.xlu0 %v2242, 64
        %v2263 = vpop.permute.xlu0 %2262
        %v2264 = vsel %vm350, %v2263, %v2242
        %2265 = vrot.lane.b32.xlu0 %v2243, 64
        %v2266 = vpop.permute.xlu0 %2265
        %v2267 = vsel %vm350, %v2266, %v2243
        %2268 = vrot.lane.b32.xlu0 %v2246, 64
        %v2269 = vpop.permute.xlu0 %2268
        %2270 = vrot.lane.b32.xlu0 %v2249, 64
        %v2271 = vpop.permute.xlu0 %2270
        %2272 = vrot.lane.b32.xlu0 %v2252, 64
        %v2273 = vpop.permute.xlu0 %2272
        %2274 = vrot.lane.b32.xlu0 %v2255, 64
        %v2275 = vpop.permute.xlu0 %2274
        %2276 = vrot.lane.b32.xlu0 %v2258, 64
        %v2277 = vpop.permute.xlu0 %2276
        %2278 = vrot.lane.b32.xlu0 %v2261, 64
        %v2279 = vpop.permute.xlu0 %2278
        %2280 = vrot.lane.b32.xlu0 %v2264, 64
        %v2281 = vpop.permute.xlu0 %2280
        %2282 = vrot.lane.b32.xlu0 %v2267, 64
        %v2283 = vpop.permute.xlu0 %2282
        %v2284 = vsel %vm350, %v2269, %v2236
        %v2285 = vsel %vm350, %v2271, %v2237
        %v2286 = vsel %vm350, %v2273, %v2238
        %v2287 = vsel %vm350, %v2275, %v2239
        %v2288 = vsel %vm350, %v2277, %v2240
        %v2289 = vsel %vm350, %v2279, %v2241
        %v2290 = vsel %vm350, %v2281, %v2242
        %v2291 = vsel %vm350, %v2283, %v2243
        %2300 = vrot.lane.b32.xlu0 %v2284, 127
        %v2301 = vpop.permute.xlu0 %2300
        %2302 = vrot.lane.b32.xlu0 %v2285, 127
        %v2303 = vpop.permute.xlu0 %2302
        %2304 = vrot.lane.b32.xlu0 %v2286, 127
        %v2305 = vpop.permute.xlu0 %2304
        %2306 = vrot.lane.b32.xlu0 %v2287, 127
        %v2307 = vpop.permute.xlu0 %2306
        %2308 = vrot.lane.b32.xlu0 %v2288, 127
        %v2309 = vpop.permute.xlu0 %2308
        %2310 = vrot.lane.b32.xlu0 %v2289, 127
        %v2311 = vpop.permute.xlu0 %2310
        %2312 = vrot.lane.b32.xlu0 %v2290, 127
        %v2313 = vpop.permute.xlu0 %2312
        %2314 = vrot.lane.b32.xlu0 %v2291, 127
        %v2315 = vpop.permute.xlu0 %2314
        %v2324 = vsel %vm329, %v2301, -inf
        %v2325 = vsel %vm329, %v2303, -inf
        %v2326 = vsel %vm329, %v2305, -inf
        %v2327 = vsel %vm329, %v2307, -inf
        %v2328 = vsel %vm329, %v2309, -inf
        %v2329 = vsel %vm329, %v2311, -inf
        %v2330 = vsel %vm329, %v2313, -inf
        %v2331 = vsel %vm329, %v2315, -inf
        %v2332 = vmax.f32 %v2236, %v2324
        %v2333 = vmax.f32 %v2237, %v2325
        %v2334 = vmax.f32 %v2238, %v2326
        %v2335 = vmax.f32 %v2239, %v2327
        %v2336 = vmax.f32 %v2240, %v2328
        %v2337 = vmax.f32 %v2241, %v2329
        %v2338 = vmax.f32 %v2242, %v2330
        %v2339 = vmax.f32 %v2243, %v2331
        %2340 = vrot.lane.b32.xlu0 %v2332, 64
        %v2341 = vpop.permute.xlu0 %2340
        %v2342 = vsel %vm350, %v2341, %v2332
        %2343 = vrot.lane.b32.xlu0 %v2333, 64
        %v2344 = vpop.permute.xlu0 %2343
        %v2345 = vsel %vm350, %v2344, %v2333
        %2346 = vrot.lane.b32.xlu0 %v2334, 64
        %v2347 = vpop.permute.xlu0 %2346
        %v2348 = vsel %vm350, %v2347, %v2334
        %2349 = vrot.lane.b32.xlu0 %v2335, 64
        %v2350 = vpop.permute.xlu0 %2349
        %v2351 = vsel %vm350, %v2350, %v2335
        %2352 = vrot.lane.b32.xlu0 %v2336, 64
        %v2353 = vpop.permute.xlu0 %2352
        %v2354 = vsel %vm350, %v2353, %v2336
        %2355 = vrot.lane.b32.xlu0 %v2337, 64
        %v2356 = vpop.permute.xlu0 %2355
        %v2357 = vsel %vm350, %v2356, %v2337
        %2358 = vrot.lane.b32.xlu0 %v2338, 64
        %v2359 = vpop.permute.xlu0 %2358
        %v2360 = vsel %vm350, %v2359, %v2338
        %2361 = vrot.lane.b32.xlu0 %v2339, 64
        %v2362 = vpop.permute.xlu0 %2361
        %v2363 = vsel %vm350, %v2362, %v2339
        %2364 = vrot.lane.b32.xlu0 %v2342, 64
        %v2365 = vpop.permute.xlu0 %2364
        %2366 = vrot.lane.b32.xlu0 %v2345, 64
        %v2367 = vpop.permute.xlu0 %2366
        %2368 = vrot.lane.b32.xlu0 %v2348, 64
        %v2369 = vpop.permute.xlu0 %2368
        %2370 = vrot.lane.b32.xlu0 %v2351, 64
        %v2371 = vpop.permute.xlu0 %2370
        %2372 = vrot.lane.b32.xlu0 %v2354, 64
        %v2373 = vpop.permute.xlu0 %2372
        %2374 = vrot.lane.b32.xlu0 %v2357, 64
        %v2375 = vpop.permute.xlu0 %2374
        %2376 = vrot.lane.b32.xlu0 %v2360, 64
        %v2377 = vpop.permute.xlu0 %2376
        %2378 = vrot.lane.b32.xlu0 %v2363, 64
        %v2379 = vpop.permute.xlu0 %2378
        %v2380 = vsel %vm350, %v2365, %v2332
        %v2381 = vsel %vm350, %v2367, %v2333
        %v2382 = vsel %vm350, %v2369, %v2334
        %v2383 = vsel %vm350, %v2371, %v2335
        %v2384 = vsel %vm350, %v2373, %v2336
        %v2385 = vsel %vm350, %v2375, %v2337
        %v2386 = vsel %vm350, %v2377, %v2338
        %v2387 = vsel %vm350, %v2379, %v2339
        %2396 = vrot.lane.b32.xlu0 %v2380, 126
        %v2397 = vpop.permute.xlu0 %2396
        %2398 = vrot.lane.b32.xlu0 %v2381, 126
        %v2399 = vpop.permute.xlu0 %2398
        %2400 = vrot.lane.b32.xlu0 %v2382, 126
        %v2401 = vpop.permute.xlu0 %2400
        %2402 = vrot.lane.b32.xlu0 %v2383, 126
        %v2403 = vpop.permute.xlu0 %2402
        %2404 = vrot.lane.b32.xlu0 %v2384, 126
        %v2405 = vpop.permute.xlu0 %2404
        %2406 = vrot.lane.b32.xlu0 %v2385, 126
        %v2407 = vpop.permute.xlu0 %2406
        %2408 = vrot.lane.b32.xlu0 %v2386, 126
        %v2409 = vpop.permute.xlu0 %2408
        %2410 = vrot.lane.b32.xlu0 %v2387, 126
        %v2411 = vpop.permute.xlu0 %2410
        %v2420 = vsel %vm333, %v2397, -inf
        %v2421 = vsel %vm333, %v2399, -inf
        %v2422 = vsel %vm333, %v2401, -inf
        %v2423 = vsel %vm333, %v2403, -inf
        %v2424 = vsel %vm333, %v2405, -inf
        %v2425 = vsel %vm333, %v2407, -inf
        %v2426 = vsel %vm333, %v2409, -inf
        %v2427 = vsel %vm333, %v2411, -inf
        %v2428 = vmax.f32 %v2332, %v2420
        %v2429 = vmax.f32 %v2333, %v2421
        %v2430 = vmax.f32 %v2334, %v2422
        %v2431 = vmax.f32 %v2335, %v2423
        %v2432 = vmax.f32 %v2336, %v2424
        %v2433 = vmax.f32 %v2337, %v2425
        %v2434 = vmax.f32 %v2338, %v2426
        %v2435 = vmax.f32 %v2339, %v2427
        %2436 = vrot.lane.b32.xlu0 %v2284, 124
        %v2437 = vpop.permute.xlu0 %2436
        %2438 = vrot.lane.b32.xlu0 %v2285, 124
        %v2439 = vpop.permute.xlu0 %2438
        %2440 = vrot.lane.b32.xlu0 %v2286, 124
        %v2441 = vpop.permute.xlu0 %2440
        %2442 = vrot.lane.b32.xlu0 %v2287, 124
        %v2443 = vpop.permute.xlu0 %2442
        %2444 = vrot.lane.b32.xlu0 %v2288, 124
        %v2445 = vpop.permute.xlu0 %2444
        %2446 = vrot.lane.b32.xlu0 %v2289, 124
        %v2447 = vpop.permute.xlu0 %2446
        %2448 = vrot.lane.b32.xlu0 %v2290, 124
        %v2449 = vpop.permute.xlu0 %2448
        %2450 = vrot.lane.b32.xlu0 %v2291, 124
        %v2451 = vpop.permute.xlu0 %2450
        %v2460 = vsel %vm337, %v2437, -inf
        %v2461 = vsel %vm337, %v2439, -inf
        %v2462 = vsel %vm337, %v2441, -inf
        %v2463 = vsel %vm337, %v2443, -inf
        %v2464 = vsel %vm337, %v2445, -inf
        %v2465 = vsel %vm337, %v2447, -inf
        %v2466 = vsel %vm337, %v2449, -inf
        %v2467 = vsel %vm337, %v2451, -inf
        %v2468 = vmax.f32 %v2428, %v2460
        %v2469 = vmax.f32 %v2429, %v2461
        %v2470 = vmax.f32 %v2430, %v2462
        %v2471 = vmax.f32 %v2431, %v2463
        %v2472 = vmax.f32 %v2432, %v2464
        %v2473 = vmax.f32 %v2433, %v2465
        %v2474 = vmax.f32 %v2434, %v2466
        %v2475 = vmax.f32 %v2435, %v2467
        %2476 = vrot.lane.b32.xlu0 %v2284, 65
        %v2477 = vpop.permute.xlu0 %2476
        %2478 = vrot.lane.b32.xlu0 %v2285, 65
        %v2479 = vpop.permute.xlu0 %2478
        %2480 = vrot.lane.b32.xlu0 %v2286, 65
        %v2481 = vpop.permute.xlu0 %2480
        %2482 = vrot.lane.b32.xlu0 %v2287, 65
        %v2483 = vpop.permute.xlu0 %2482
        %2484 = vrot.lane.b32.xlu0 %v2288, 65
        %v2485 = vpop.permute.xlu0 %2484
        %2486 = vrot.lane.b32.xlu0 %v2289, 65
        %v2487 = vpop.permute.xlu0 %2486
        %2488 = vrot.lane.b32.xlu0 %v2290, 65
        %v2489 = vpop.permute.xlu0 %2488
        %2490 = vrot.lane.b32.xlu0 %v2291, 65
        %v2491 = vpop.permute.xlu0 %2490
        %v2500 = vsel %vm341, %v2477, -inf
        %v2501 = vsel %vm341, %v2479, -inf
        %v2502 = vsel %vm341, %v2481, -inf
        %v2503 = vsel %vm341, %v2483, -inf
        %v2504 = vsel %vm341, %v2485, -inf
        %v2505 = vsel %vm341, %v2487, -inf
        %v2506 = vsel %vm341, %v2489, -inf
        %v2507 = vsel %vm341, %v2491, -inf
        %v2508 = vmax.f32 %v2236, %v2500
        %v2509 = vmax.f32 %v2237, %v2501
        %v2510 = vmax.f32 %v2238, %v2502
        %v2511 = vmax.f32 %v2239, %v2503
        %v2512 = vmax.f32 %v2240, %v2504
        %v2513 = vmax.f32 %v2241, %v2505
        %v2514 = vmax.f32 %v2242, %v2506
        %v2515 = vmax.f32 %v2243, %v2507
        %2516 = vrot.lane.b32.xlu0 %v2508, 64
        %v2517 = vpop.permute.xlu0 %2516
        %v2518 = vsel %vm350, %v2517, %v2508
        %2519 = vrot.lane.b32.xlu0 %v2509, 64
        %v2520 = vpop.permute.xlu0 %2519
        %v2521 = vsel %vm350, %v2520, %v2509
        %2522 = vrot.lane.b32.xlu0 %v2510, 64
        %v2523 = vpop.permute.xlu0 %2522
        %v2524 = vsel %vm350, %v2523, %v2510
        %2525 = vrot.lane.b32.xlu0 %v2511, 64
        %v2526 = vpop.permute.xlu0 %2525
        %v2527 = vsel %vm350, %v2526, %v2511
        %2528 = vrot.lane.b32.xlu0 %v2512, 64
        %v2529 = vpop.permute.xlu0 %2528
        %v2530 = vsel %vm350, %v2529, %v2512
        %2531 = vrot.lane.b32.xlu0 %v2513, 64
        %v2532 = vpop.permute.xlu0 %2531
        %v2533 = vsel %vm350, %v2532, %v2513
        %2534 = vrot.lane.b32.xlu0 %v2514, 64
        %v2535 = vpop.permute.xlu0 %2534
        %v2536 = vsel %vm350, %v2535, %v2514
        %2537 = vrot.lane.b32.xlu0 %v2515, 64
        %v2538 = vpop.permute.xlu0 %2537
        %v2539 = vsel %vm350, %v2538, %v2515
        %2540 = vrot.lane.b32.xlu0 %v2518, 64
        %v2541 = vpop.permute.xlu0 %2540
        %2542 = vrot.lane.b32.xlu0 %v2521, 64
        %v2543 = vpop.permute.xlu0 %2542
        %2544 = vrot.lane.b32.xlu0 %v2524, 64
        %v2545 = vpop.permute.xlu0 %2544
        %2546 = vrot.lane.b32.xlu0 %v2527, 64
        %v2547 = vpop.permute.xlu0 %2546
        %2548 = vrot.lane.b32.xlu0 %v2530, 64
        %v2549 = vpop.permute.xlu0 %2548
        %2550 = vrot.lane.b32.xlu0 %v2533, 64
        %v2551 = vpop.permute.xlu0 %2550
        %2552 = vrot.lane.b32.xlu0 %v2536, 64
        %v2553 = vpop.permute.xlu0 %2552
        %2554 = vrot.lane.b32.xlu0 %v2539, 64
        %v2555 = vpop.permute.xlu0 %2554
        %v2556 = vsel %vm350, %v2541, %v2508
        %v2557 = vsel %vm350, %v2543, %v2509
        %v2558 = vsel %vm350, %v2545, %v2510
        %v2559 = vsel %vm350, %v2547, %v2511
        %v2560 = vsel %vm350, %v2549, %v2512
        %v2561 = vsel %vm350, %v2551, %v2513
        %v2562 = vsel %vm350, %v2553, %v2514
        %v2563 = vsel %vm350, %v2555, %v2515
        %2572 = vrot.lane.b32.xlu0 %v2556, 66
        %v2573 = vpop.permute.xlu0 %2572
        %2574 = vrot.lane.b32.xlu0 %v2557, 66
        %v2575 = vpop.permute.xlu0 %2574
        %2576 = vrot.lane.b32.xlu0 %v2558, 66
        %v2577 = vpop.permute.xlu0 %2576
        %2578 = vrot.lane.b32.xlu0 %v2559, 66
        %v2579 = vpop.permute.xlu0 %2578
        %2580 = vrot.lane.b32.xlu0 %v2560, 66
        %v2581 = vpop.permute.xlu0 %2580
        %2582 = vrot.lane.b32.xlu0 %v2561, 66
        %v2583 = vpop.permute.xlu0 %2582
        %2584 = vrot.lane.b32.xlu0 %v2562, 66
        %v2585 = vpop.permute.xlu0 %2584
        %2586 = vrot.lane.b32.xlu0 %v2563, 66
        %v2587 = vpop.permute.xlu0 %2586
        %v2596 = vsel %vm345, %v2573, -inf
        %v2597 = vsel %vm345, %v2575, -inf
        %v2598 = vsel %vm345, %v2577, -inf
        %v2599 = vsel %vm345, %v2579, -inf
        %v2600 = vsel %vm345, %v2581, -inf
        %v2601 = vsel %vm345, %v2583, -inf
        %v2602 = vsel %vm345, %v2585, -inf
        %v2603 = vsel %vm345, %v2587, -inf
        %v2604 = vmax.f32 %v2508, %v2596
        %v2605 = vmax.f32 %v2509, %v2597
        %v2606 = vmax.f32 %v2510, %v2598
        %v2607 = vmax.f32 %v2511, %v2599
        %v2608 = vmax.f32 %v2512, %v2600
        %v2609 = vmax.f32 %v2513, %v2601
        %v2610 = vmax.f32 %v2514, %v2602
        %v2611 = vmax.f32 %v2515, %v2603
        %2612 = vrot.lane.b32.xlu0 %v2284, 68
        %v2613 = vpop.permute.xlu0 %2612
        %2614 = vrot.lane.b32.xlu0 %v2285, 68
        %v2615 = vpop.permute.xlu0 %2614
        %2616 = vrot.lane.b32.xlu0 %v2286, 68
        %v2617 = vpop.permute.xlu0 %2616
        %2618 = vrot.lane.b32.xlu0 %v2287, 68
        %v2619 = vpop.permute.xlu0 %2618
        %2620 = vrot.lane.b32.xlu0 %v2288, 68
        %v2621 = vpop.permute.xlu0 %2620
        %2622 = vrot.lane.b32.xlu0 %v2289, 68
        %v2623 = vpop.permute.xlu0 %2622
        %2624 = vrot.lane.b32.xlu0 %v2290, 68
        %v2625 = vpop.permute.xlu0 %2624
        %2626 = vrot.lane.b32.xlu0 %v2291, 68
        %v2627 = vpop.permute.xlu0 %2626
        %v2636 = vsel %vm349, %v2613, -inf
        %v2637 = vsel %vm349, %v2615, -inf
        %v2638 = vsel %vm349, %v2617, -inf
        %v2639 = vsel %vm349, %v2619, -inf
        %v2640 = vsel %vm349, %v2621, -inf
        %v2641 = vsel %vm349, %v2623, -inf
        %v2642 = vsel %vm349, %v2625, -inf
        %v2643 = vsel %vm349, %v2627, -inf
        %v2644 = vmax.f32 %v2604, %v2636
        %v2645 = vmax.f32 %v2605, %v2637
        %v2646 = vmax.f32 %v2606, %v2638
        %v2647 = vmax.f32 %v2607, %v2639
        %v2648 = vmax.f32 %v2608, %v2640
        %v2649 = vmax.f32 %v2609, %v2641
        %v2650 = vmax.f32 %v2610, %v2642
        %v2651 = vmax.f32 %v2611, %v2643
        %v2652 = vmax.f32 %v2468, %v2644
        %v2653 = vmax.f32 %v2469, %v2645
        %v2654 = vmax.f32 %v2470, %v2646
        %v2655 = vmax.f32 %v2471, %v2647
        %v2656 = vmax.f32 %v2472, %v2648
        %v2657 = vmax.f32 %v2473, %v2649
        %v2658 = vmax.f32 %v2474, %v2650
        %v2659 = vmax.f32 %v2475, %v2651
        %v2660 = vrot.slane %v2652, 1
        %v2661 = vrot.slane %v2653, 1
        %v2662 = vrot.slane %v2654, 1
        %v2663 = vrot.slane %v2655, 1
        %v2664 = vrot.slane %v2656, 1
        %v2665 = vrot.slane %v2657, 1
        %v2666 = vrot.slane %v2658, 1
        %v2667 = vrot.slane %v2659, 1
        %v2668 = vsel %vm775, %v2666, %v2667
        %v2669 = vsel %vm775, %v2665, %v2666
        %v2670 = vsel %vm775, %v2664, %v2665
        %v2671 = vsel %vm775, %v2663, %v2664
        %v2672 = vsel %vm775, %v2662, %v2663
        %v2673 = vsel %vm775, %v2661, %v2662
        %v2674 = vsel %vm775, %v2660, %v2661
        %v2675 = vsel %vm775, %v2667, %v2660
        %v2676 = vsel %vm158, %v2674, -inf
        %v2677 = vsel %vm159, %v2673, -inf
        %v2678 = vsel %vm160, %v2672, -inf
        %v2679 = vsel %vm161, %v2671, -inf
        %v2680 = vsel %vm162, %v2670, -inf
        %v2681 = vsel %vm163, %v2669, -inf
        %v2682 = vsel %vm164, %v2668, -inf
        %v2683 = vsel %vm165, %v2675, -inf
        %v2684 = vmax.f32 %v2652, %v2676
        %v2685 = vmax.f32 %v2653, %v2677
        %v2686 = vmax.f32 %v2654, %v2678
        %v2687 = vmax.f32 %v2655, %v2679
        %v2688 = vmax.f32 %v2656, %v2680
        %v2689 = vmax.f32 %v2657, %v2681
        %v2690 = vmax.f32 %v2658, %v2682
        %v2691 = vmax.f32 %v2659, %v2683
        %v2692 = vrot.slane %v2684, 2
        %v2693 = vrot.slane %v2685, 2
        %v2694 = vrot.slane %v2686, 2
        %v2695 = vrot.slane %v2687, 2
        %v2696 = vrot.slane %v2688, 2
        %v2697 = vrot.slane %v2689, 2
        %v2698 = vrot.slane %v2690, 2
        %v2699 = vrot.slane %v2691, 2
        %v2700 = vsel %vm808, %v2698, %v2699
        %v2701 = vsel %vm808, %v2697, %v2698
        %v2702 = vsel %vm808, %v2696, %v2697
        %v2703 = vsel %vm808, %v2695, %v2696
        %v2704 = vsel %vm808, %v2694, %v2695
        %v2705 = vsel %vm808, %v2693, %v2694
        %v2706 = vsel %vm808, %v2692, %v2693
        %v2707 = vsel %vm808, %v2699, %v2692
        %v2708 = vsel %vm190, %v2706, -inf
        %v2709 = vsel %vm191, %v2705, -inf
        %v2710 = vsel %vm192, %v2704, -inf
        %v2711 = vsel %vm193, %v2703, -inf
        %v2712 = vsel %vm194, %v2702, -inf
        %v2713 = vsel %vm195, %v2701, -inf
        %v2714 = vsel %vm196, %v2700, -inf
        %v2715 = vsel %vm197, %v2707, -inf
        %v2716 = vmax.f32 %v2684, %v2708
        %v2717 = vmax.f32 %v2685, %v2709
        %v2718 = vmax.f32 %v2686, %v2710
        %v2719 = vmax.f32 %v2687, %v2711
        %v2720 = vmax.f32 %v2688, %v2712
        %v2721 = vmax.f32 %v2689, %v2713
        %v2722 = vmax.f32 %v2690, %v2714
        %v2723 = vmax.f32 %v2691, %v2715
        %v2724 = vrot.slane %v2652, 4
        %v2725 = vrot.slane %v2653, 4
        %v2726 = vrot.slane %v2654, 4
        %v2727 = vrot.slane %v2655, 4
        %v2728 = vrot.slane %v2656, 4
        %v2729 = vrot.slane %v2657, 4
        %v2730 = vrot.slane %v2658, 4
        %v2731 = vrot.slane %v2659, 4
        %v2732 = vsel %vm841, %v2730, %v2731
        %v2733 = vsel %vm841, %v2729, %v2730
        %v2734 = vsel %vm841, %v2728, %v2729
        %v2735 = vsel %vm841, %v2727, %v2728
        %v2736 = vsel %vm841, %v2726, %v2727
        %v2737 = vsel %vm841, %v2725, %v2726
        %v2738 = vsel %vm841, %v2724, %v2725
        %v2739 = vsel %vm841, %v2731, %v2724
        %v2740 = vsel %vm222, %v2738, -inf
        %v2741 = vsel %vm223, %v2737, -inf
        %v2742 = vsel %vm224, %v2736, -inf
        %v2743 = vsel %vm225, %v2735, -inf
        %v2744 = vsel %vm226, %v2734, -inf
        %v2745 = vsel %vm227, %v2733, -inf
        %v2746 = vsel %vm228, %v2732, -inf
        %v2747 = vsel %vm229, %v2739, -inf
        %v2748 = vmax.f32 %v2716, %v2740
        %v2749 = vmax.f32 %v2717, %v2741
        %v2750 = vmax.f32 %v2718, %v2742
        %v2751 = vmax.f32 %v2719, %v2743
        %v2752 = vmax.f32 %v2720, %v2744
        %v2753 = vmax.f32 %v2721, %v2745
        %v2754 = vmax.f32 %v2722, %v2746
        %v2755 = vmax.f32 %v2723, %v2747
        %v2756 = vrot.slane %v2652, 7
        %v2757 = vrot.slane %v2653, 7
        %v2758 = vrot.slane %v2654, 7
        %v2759 = vrot.slane %v2655, 7
        %v2760 = vrot.slane %v2656, 7
        %v2761 = vrot.slane %v2657, 7
        %v2762 = vrot.slane %v2658, 7
        %v2763 = vrot.slane %v2659, 7
        %v2764 = vsel %vm874, %v2762, %v2763
        %v2765 = vsel %vm874, %v2761, %v2762
        %v2766 = vsel %vm874, %v2760, %v2761
        %v2767 = vsel %vm874, %v2759, %v2760
        %v2768 = vsel %vm874, %v2758, %v2759
        %v2769 = vsel %vm874, %v2757, %v2758
        %v2770 = vsel %vm874, %v2756, %v2757
        %v2771 = vsel %vm874, %v2763, %v2756
        %v2772 = vsel %vm254, %v2771, -inf
        %v2773 = vsel %vm255, %v2770, -inf
        %v2774 = vsel %vm256, %v2769, -inf
        %v2775 = vsel %vm257, %v2768, -inf
        %v2776 = vsel %vm258, %v2767, -inf
        %v2777 = vsel %vm259, %v2766, -inf
        %v2778 = vsel %vm260, %v2765, -inf
        %v2779 = vsel %vm261, %v2764, -inf
        %v2780 = vmax.f32 %v2652, %v2772
        %v2781 = vmax.f32 %v2653, %v2773
        %v2782 = vmax.f32 %v2654, %v2774
        %v2783 = vmax.f32 %v2655, %v2775
        %v2784 = vmax.f32 %v2656, %v2776
        %v2785 = vmax.f32 %v2657, %v2777
        %v2786 = vmax.f32 %v2658, %v2778
        %v2787 = vmax.f32 %v2659, %v2779
        %v2788 = vrot.slane %v2780, 6
        %v2789 = vrot.slane %v2781, 6
        %v2790 = vrot.slane %v2782, 6
        %v2791 = vrot.slane %v2783, 6
        %v2792 = vrot.slane %v2784, 6
        %v2793 = vrot.slane %v2785, 6
        %v2794 = vrot.slane %v2786, 6
        %v2795 = vrot.slane %v2787, 6
        %v2796 = vsel %vm907, %v2794, %v2795
        %v2797 = vsel %vm907, %v2793, %v2794
        %v2798 = vsel %vm907, %v2792, %v2793
        %v2799 = vsel %vm907, %v2791, %v2792
        %v2800 = vsel %vm907, %v2790, %v2791
        %v2801 = vsel %vm907, %v2789, %v2790
        %v2802 = vsel %vm907, %v2788, %v2789
        %v2803 = vsel %vm907, %v2795, %v2788
        %v2804 = vsel %vm286, %v2803, -inf
        %v2805 = vsel %vm287, %v2802, -inf
        %v2806 = vsel %vm288, %v2801, -inf
        %v2807 = vsel %vm289, %v2800, -inf
        %v2808 = vsel %vm290, %v2799, -inf
        %v2809 = vsel %vm291, %v2798, -inf
        %v2810 = vsel %vm292, %v2797, -inf
        %v2811 = vsel %vm293, %v2796, -inf
        %v2812 = vmax.f32 %v2780, %v2804
        %v2813 = vmax.f32 %v2781, %v2805
        %v2814 = vmax.f32 %v2782, %v2806
        %v2815 = vmax.f32 %v2783, %v2807
        %v2816 = vmax.f32 %v2784, %v2808
        %v2817 = vmax.f32 %v2785, %v2809
        %v2818 = vmax.f32 %v2786, %v2810
        %v2819 = vmax.f32 %v2787, %v2811
        %v2820 = vsel %vm318, %v2739, -inf
        %v2821 = vsel %vm319, %v2738, -inf
        %v2822 = vsel %vm320, %v2737, -inf
        %v2823 = vsel %vm321, %v2736, -inf
        %v2824 = vsel %vm322, %v2735, -inf
        %v2825 = vsel %vm323, %v2734, -inf
        %v2826 = vsel %vm324, %v2733, -inf
        %v2827 = vsel %vm325, %v2732, -inf
        %v2828 = vmax.f32 %v2812, %v2820
        %v2829 = vmax.f32 %v2813, %v2821
        %v2830 = vmax.f32 %v2814, %v2822
        %v2831 = vmax.f32 %v2815, %v2823
        %v2832 = vmax.f32 %v2816, %v2824
        %v2833 = vmax.f32 %v2817, %v2825
        %v2834 = vmax.f32 %v2818, %v2826
        %v2835 = vmax.f32 %v2819, %v2827
        %v2836 = vmax.f32 %v2748, %v2828
        %v2837 = vmax.f32 %v2749, %v2829
        %v2838 = vmax.f32 %v2750, %v2830
        %v2839 = vmax.f32 %v2751, %v2831
        %v2840 = vmax.f32 %v2752, %v2832
        %v2841 = vmax.f32 %v2753, %v2833
        %v2842 = vmax.f32 %v2754, %v2834
        %v2843 = vmax.f32 %v2755, %v2835
        %vm2844 = vcmp.gt.f32.partialorder %v2836, 0.0
        %vm2845 = vcmp.gt.f32.partialorder %v2837, 0.0
        %vm2846 = vcmp.gt.f32.partialorder %v2838, 0.0
        %vm2847 = vcmp.gt.f32.partialorder %v2839, 0.0
        %vm2848 = vcmp.gt.f32.partialorder %v2840, 0.0
        %vm2849 = vcmp.gt.f32.partialorder %v2841, 0.0
        %vm2850 = vcmp.gt.f32.partialorder %v2842, 0.0
        %vm2851 = vcmp.gt.f32.partialorder %v2843, 0.0
        %v2852 = vsel %vm2844, 0.0, %v115
        %v2853 = vsel %vm2845, 0.0, %v116
        %v2854 = vsel %vm2846, 0.0, %v117
        %v2855 = vsel %vm2847, 0.0, %v118
        %v2856 = vsel %vm2848, 0.0, %v119
        %v2857 = vsel %vm2849, 0.0, %v120
        %v2858 = vsel %vm2850, 0.0, %v121
        %v2859 = vsel %vm2851, 0.0, %v122
        %2860 = vrot.lane.b32.xlu0 %v2852, 64
        %v2861 = vpop.permute.xlu0 %2860
        %v2862 = vsel %vm350, %v2861, %v2852
        %2863 = vrot.lane.b32.xlu0 %v2853, 64
        %v2864 = vpop.permute.xlu0 %2863
        %v2865 = vsel %vm350, %v2864, %v2853
        %2866 = vrot.lane.b32.xlu0 %v2854, 64
        %v2867 = vpop.permute.xlu0 %2866
        %v2868 = vsel %vm350, %v2867, %v2854
        %2869 = vrot.lane.b32.xlu0 %v2855, 64
        %v2870 = vpop.permute.xlu0 %2869
        %v2871 = vsel %vm350, %v2870, %v2855
        %2872 = vrot.lane.b32.xlu0 %v2856, 64
        %v2873 = vpop.permute.xlu0 %2872
        %v2874 = vsel %vm350, %v2873, %v2856
        %2875 = vrot.lane.b32.xlu0 %v2857, 64
        %v2876 = vpop.permute.xlu0 %2875
        %v2877 = vsel %vm350, %v2876, %v2857
        %2878 = vrot.lane.b32.xlu0 %v2858, 64
        %v2879 = vpop.permute.xlu0 %2878
        %v2880 = vsel %vm350, %v2879, %v2858
        %2881 = vrot.lane.b32.xlu0 %v2859, 64
        %v2882 = vpop.permute.xlu0 %2881
        %v2883 = vsel %vm350, %v2882, %v2859
        %2884 = vrot.lane.b32.xlu0 %v2862, 64
        %v2885 = vpop.permute.xlu0 %2884
        %2886 = vrot.lane.b32.xlu0 %v2865, 64
        %v2887 = vpop.permute.xlu0 %2886
        %2888 = vrot.lane.b32.xlu0 %v2868, 64
        %v2889 = vpop.permute.xlu0 %2888
        %2890 = vrot.lane.b32.xlu0 %v2871, 64
        %v2891 = vpop.permute.xlu0 %2890
        %2892 = vrot.lane.b32.xlu0 %v2874, 64
        %v2893 = vpop.permute.xlu0 %2892
        %2894 = vrot.lane.b32.xlu0 %v2877, 64
        %v2895 = vpop.permute.xlu0 %2894
        %2896 = vrot.lane.b32.xlu0 %v2880, 64
        %v2897 = vpop.permute.xlu0 %2896
        %2898 = vrot.lane.b32.xlu0 %v2883, 64
        %v2899 = vpop.permute.xlu0 %2898
        %v2900 = vsel %vm350, %v2885, %v2852
        %v2901 = vsel %vm350, %v2887, %v2853
        %v2902 = vsel %vm350, %v2889, %v2854
        %v2903 = vsel %vm350, %v2891, %v2855
        %v2904 = vsel %vm350, %v2893, %v2856
        %v2905 = vsel %vm350, %v2895, %v2857
        %v2906 = vsel %vm350, %v2897, %v2858
        %v2907 = vsel %vm350, %v2899, %v2859
        %2916 = vrot.lane.b32.xlu0 %v2900, 127
        %v2917 = vpop.permute.xlu0 %2916
        %2918 = vrot.lane.b32.xlu0 %v2901, 127
        %v2919 = vpop.permute.xlu0 %2918
        %2920 = vrot.lane.b32.xlu0 %v2902, 127
        %v2921 = vpop.permute.xlu0 %2920
        %2922 = vrot.lane.b32.xlu0 %v2903, 127
        %v2923 = vpop.permute.xlu0 %2922
        %2924 = vrot.lane.b32.xlu0 %v2904, 127
        %v2925 = vpop.permute.xlu0 %2924
        %2926 = vrot.lane.b32.xlu0 %v2905, 127
        %v2927 = vpop.permute.xlu0 %2926
        %2928 = vrot.lane.b32.xlu0 %v2906, 127
        %v2929 = vpop.permute.xlu0 %2928
        %2930 = vrot.lane.b32.xlu0 %v2907, 127
        %v2931 = vpop.permute.xlu0 %2930
        %v2940 = vsel %vm329, %v2917, -inf
        %v2941 = vsel %vm329, %v2919, -inf
        %v2942 = vsel %vm329, %v2921, -inf
        %v2943 = vsel %vm329, %v2923, -inf
        %v2944 = vsel %vm329, %v2925, -inf
        %v2945 = vsel %vm329, %v2927, -inf
        %v2946 = vsel %vm329, %v2929, -inf
        %v2947 = vsel %vm329, %v2931, -inf
        %v2948 = vmax.f32 %v2852, %v2940
        %v2949 = vmax.f32 %v2853, %v2941
        %v2950 = vmax.f32 %v2854, %v2942
        %v2951 = vmax.f32 %v2855, %v2943
        %v2952 = vmax.f32 %v2856, %v2944
        %v2953 = vmax.f32 %v2857, %v2945
        %v2954 = vmax.f32 %v2858, %v2946
        %v2955 = vmax.f32 %v2859, %v2947
        %2956 = vrot.lane.b32.xlu0 %v2948, 64
        %v2957 = vpop.permute.xlu0 %2956
        %v2958 = vsel %vm350, %v2957, %v2948
        %2959 = vrot.lane.b32.xlu0 %v2949, 64
        %v2960 = vpop.permute.xlu0 %2959
        %v2961 = vsel %vm350, %v2960, %v2949
        %2962 = vrot.lane.b32.xlu0 %v2950, 64
        %v2963 = vpop.permute.xlu0 %2962
        %v2964 = vsel %vm350, %v2963, %v2950
        %2965 = vrot.lane.b32.xlu0 %v2951, 64
        %v2966 = vpop.permute.xlu0 %2965
        %v2967 = vsel %vm350, %v2966, %v2951
        %2968 = vrot.lane.b32.xlu0 %v2952, 64
        %v2969 = vpop.permute.xlu0 %2968
        %v2970 = vsel %vm350, %v2969, %v2952
        %2971 = vrot.lane.b32.xlu0 %v2953, 64
        %v2972 = vpop.permute.xlu0 %2971
        %v2973 = vsel %vm350, %v2972, %v2953
        %2974 = vrot.lane.b32.xlu0 %v2954, 64
        %v2975 = vpop.permute.xlu0 %2974
        %v2976 = vsel %vm350, %v2975, %v2954
        %2977 = vrot.lane.b32.xlu0 %v2955, 64
        %v2978 = vpop.permute.xlu0 %2977
        %v2979 = vsel %vm350, %v2978, %v2955
        %2980 = vrot.lane.b32.xlu0 %v2958, 64
        %v2981 = vpop.permute.xlu0 %2980
        %2982 = vrot.lane.b32.xlu0 %v2961, 64
        %v2983 = vpop.permute.xlu0 %2982
        %2984 = vrot.lane.b32.xlu0 %v2964, 64
        %v2985 = vpop.permute.xlu0 %2984
        %2986 = vrot.lane.b32.xlu0 %v2967, 64
        %v2987 = vpop.permute.xlu0 %2986
        %2988 = vrot.lane.b32.xlu0 %v2970, 64
        %v2989 = vpop.permute.xlu0 %2988
        %2990 = vrot.lane.b32.xlu0 %v2973, 64
        %v2991 = vpop.permute.xlu0 %2990
        %2992 = vrot.lane.b32.xlu0 %v2976, 64
        %v2993 = vpop.permute.xlu0 %2992
        %2994 = vrot.lane.b32.xlu0 %v2979, 64
        %v2995 = vpop.permute.xlu0 %2994
        %v2996 = vsel %vm350, %v2981, %v2948
        %v2997 = vsel %vm350, %v2983, %v2949
        %v2998 = vsel %vm350, %v2985, %v2950
        %v2999 = vsel %vm350, %v2987, %v2951
        %v3000 = vsel %vm350, %v2989, %v2952
        %v3001 = vsel %vm350, %v2991, %v2953
        %v3002 = vsel %vm350, %v2993, %v2954
        %v3003 = vsel %vm350, %v2995, %v2955
        %3012 = vrot.lane.b32.xlu0 %v2996, 126
        %v3013 = vpop.permute.xlu0 %3012
        %3014 = vrot.lane.b32.xlu0 %v2997, 126
        %v3015 = vpop.permute.xlu0 %3014
        %3016 = vrot.lane.b32.xlu0 %v2998, 126
        %v3017 = vpop.permute.xlu0 %3016
        %3018 = vrot.lane.b32.xlu0 %v2999, 126
        %v3019 = vpop.permute.xlu0 %3018
        %3020 = vrot.lane.b32.xlu0 %v3000, 126
        %v3021 = vpop.permute.xlu0 %3020
        %3022 = vrot.lane.b32.xlu0 %v3001, 126
        %v3023 = vpop.permute.xlu0 %3022
        %3024 = vrot.lane.b32.xlu0 %v3002, 126
        %v3025 = vpop.permute.xlu0 %3024
        %3026 = vrot.lane.b32.xlu0 %v3003, 126
        %v3027 = vpop.permute.xlu0 %3026
        %v3036 = vsel %vm333, %v3013, -inf
        %v3037 = vsel %vm333, %v3015, -inf
        %v3038 = vsel %vm333, %v3017, -inf
        %v3039 = vsel %vm333, %v3019, -inf
        %v3040 = vsel %vm333, %v3021, -inf
        %v3041 = vsel %vm333, %v3023, -inf
        %v3042 = vsel %vm333, %v3025, -inf
        %v3043 = vsel %vm333, %v3027, -inf
        %v3044 = vmax.f32 %v2948, %v3036
        %v3045 = vmax.f32 %v2949, %v3037
        %v3046 = vmax.f32 %v2950, %v3038
        %v3047 = vmax.f32 %v2951, %v3039
        %v3048 = vmax.f32 %v2952, %v3040
        %v3049 = vmax.f32 %v2953, %v3041
        %v3050 = vmax.f32 %v2954, %v3042
        %v3051 = vmax.f32 %v2955, %v3043
        %3052 = vrot.lane.b32.xlu0 %v2900, 124
        %v3053 = vpop.permute.xlu0 %3052
        %3054 = vrot.lane.b32.xlu0 %v2901, 124
        %v3055 = vpop.permute.xlu0 %3054
        %3056 = vrot.lane.b32.xlu0 %v2902, 124
        %v3057 = vpop.permute.xlu0 %3056
        %3058 = vrot.lane.b32.xlu0 %v2903, 124
        %v3059 = vpop.permute.xlu0 %3058
        %3060 = vrot.lane.b32.xlu0 %v2904, 124
        %v3061 = vpop.permute.xlu0 %3060
        %3062 = vrot.lane.b32.xlu0 %v2905, 124
        %v3063 = vpop.permute.xlu0 %3062
        %3064 = vrot.lane.b32.xlu0 %v2906, 124
        %v3065 = vpop.permute.xlu0 %3064
        %3066 = vrot.lane.b32.xlu0 %v2907, 124
        %v3067 = vpop.permute.xlu0 %3066
        %v3076 = vsel %vm337, %v3053, -inf
        %v3077 = vsel %vm337, %v3055, -inf
        %v3078 = vsel %vm337, %v3057, -inf
        %v3079 = vsel %vm337, %v3059, -inf
        %v3080 = vsel %vm337, %v3061, -inf
        %v3081 = vsel %vm337, %v3063, -inf
        %v3082 = vsel %vm337, %v3065, -inf
        %v3083 = vsel %vm337, %v3067, -inf
        %v3084 = vmax.f32 %v3044, %v3076
        %v3085 = vmax.f32 %v3045, %v3077
        %v3086 = vmax.f32 %v3046, %v3078
        %v3087 = vmax.f32 %v3047, %v3079
        %v3088 = vmax.f32 %v3048, %v3080
        %v3089 = vmax.f32 %v3049, %v3081
        %v3090 = vmax.f32 %v3050, %v3082
        %v3091 = vmax.f32 %v3051, %v3083
        %3092 = vrot.lane.b32.xlu0 %v2900, 65
        %v3093 = vpop.permute.xlu0 %3092
        %3094 = vrot.lane.b32.xlu0 %v2901, 65
        %v3095 = vpop.permute.xlu0 %3094
        %3096 = vrot.lane.b32.xlu0 %v2902, 65
        %v3097 = vpop.permute.xlu0 %3096
        %3098 = vrot.lane.b32.xlu0 %v2903, 65
        %v3099 = vpop.permute.xlu0 %3098
        %3100 = vrot.lane.b32.xlu0 %v2904, 65
        %v3101 = vpop.permute.xlu0 %3100
        %3102 = vrot.lane.b32.xlu0 %v2905, 65
        %v3103 = vpop.permute.xlu0 %3102
        %3104 = vrot.lane.b32.xlu0 %v2906, 65
        %v3105 = vpop.permute.xlu0 %3104
        %3106 = vrot.lane.b32.xlu0 %v2907, 65
        %v3107 = vpop.permute.xlu0 %3106
        %v3116 = vsel %vm341, %v3093, -inf
        %v3117 = vsel %vm341, %v3095, -inf
        %v3118 = vsel %vm341, %v3097, -inf
        %v3119 = vsel %vm341, %v3099, -inf
        %v3120 = vsel %vm341, %v3101, -inf
        %v3121 = vsel %vm341, %v3103, -inf
        %v3122 = vsel %vm341, %v3105, -inf
        %v3123 = vsel %vm341, %v3107, -inf
        %v3124 = vmax.f32 %v2852, %v3116
        %v3125 = vmax.f32 %v2853, %v3117
        %v3126 = vmax.f32 %v2854, %v3118
        %v3127 = vmax.f32 %v2855, %v3119
        %v3128 = vmax.f32 %v2856, %v3120
        %v3129 = vmax.f32 %v2857, %v3121
        %v3130 = vmax.f32 %v2858, %v3122
        %v3131 = vmax.f32 %v2859, %v3123
        %3132 = vrot.lane.b32.xlu0 %v3124, 64
        %v3133 = vpop.permute.xlu0 %3132
        %v3134 = vsel %vm350, %v3133, %v3124
        %3135 = vrot.lane.b32.xlu0 %v3125, 64
        %v3136 = vpop.permute.xlu0 %3135
        %v3137 = vsel %vm350, %v3136, %v3125
        %3138 = vrot.lane.b32.xlu0 %v3126, 64
        %v3139 = vpop.permute.xlu0 %3138
        %v3140 = vsel %vm350, %v3139, %v3126
        %3141 = vrot.lane.b32.xlu0 %v3127, 64
        %v3142 = vpop.permute.xlu0 %3141
        %v3143 = vsel %vm350, %v3142, %v3127
        %3144 = vrot.lane.b32.xlu0 %v3128, 64
        %v3145 = vpop.permute.xlu0 %3144
        %v3146 = vsel %vm350, %v3145, %v3128
        %3147 = vrot.lane.b32.xlu0 %v3129, 64
        %v3148 = vpop.permute.xlu0 %3147
        %v3149 = vsel %vm350, %v3148, %v3129
        %3150 = vrot.lane.b32.xlu0 %v3130, 64
        %v3151 = vpop.permute.xlu0 %3150
        %v3152 = vsel %vm350, %v3151, %v3130
        %3153 = vrot.lane.b32.xlu0 %v3131, 64
        %v3154 = vpop.permute.xlu0 %3153
        %v3155 = vsel %vm350, %v3154, %v3131
        %3156 = vrot.lane.b32.xlu0 %v3134, 64
        %v3157 = vpop.permute.xlu0 %3156
        %3158 = vrot.lane.b32.xlu0 %v3137, 64
        %v3159 = vpop.permute.xlu0 %3158
        %3160 = vrot.lane.b32.xlu0 %v3140, 64
        %v3161 = vpop.permute.xlu0 %3160
        %3162 = vrot.lane.b32.xlu0 %v3143, 64
        %v3163 = vpop.permute.xlu0 %3162
        %3164 = vrot.lane.b32.xlu0 %v3146, 64
        %v3165 = vpop.permute.xlu0 %3164
        %3166 = vrot.lane.b32.xlu0 %v3149, 64
        %v3167 = vpop.permute.xlu0 %3166
        %3168 = vrot.lane.b32.xlu0 %v3152, 64
        %v3169 = vpop.permute.xlu0 %3168
        %3170 = vrot.lane.b32.xlu0 %v3155, 64
        %v3171 = vpop.permute.xlu0 %3170
        %v3172 = vsel %vm350, %v3157, %v3124
        %v3173 = vsel %vm350, %v3159, %v3125
        %v3174 = vsel %vm350, %v3161, %v3126
        %v3175 = vsel %vm350, %v3163, %v3127
        %v3176 = vsel %vm350, %v3165, %v3128
        %v3177 = vsel %vm350, %v3167, %v3129
        %v3178 = vsel %vm350, %v3169, %v3130
        %v3179 = vsel %vm350, %v3171, %v3131
        %3188 = vrot.lane.b32.xlu0 %v3172, 66
        %v3189 = vpop.permute.xlu0 %3188
        %3190 = vrot.lane.b32.xlu0 %v3173, 66
        %v3191 = vpop.permute.xlu0 %3190
        %3192 = vrot.lane.b32.xlu0 %v3174, 66
        %v3193 = vpop.permute.xlu0 %3192
        %3194 = vrot.lane.b32.xlu0 %v3175, 66
        %v3195 = vpop.permute.xlu0 %3194
        %3196 = vrot.lane.b32.xlu0 %v3176, 66
        %v3197 = vpop.permute.xlu0 %3196
        %3198 = vrot.lane.b32.xlu0 %v3177, 66
        %v3199 = vpop.permute.xlu0 %3198
        %3200 = vrot.lane.b32.xlu0 %v3178, 66
        %v3201 = vpop.permute.xlu0 %3200
        %3202 = vrot.lane.b32.xlu0 %v3179, 66
        %v3203 = vpop.permute.xlu0 %3202
        %v3212 = vsel %vm345, %v3189, -inf
        %v3213 = vsel %vm345, %v3191, -inf
        %v3214 = vsel %vm345, %v3193, -inf
        %v3215 = vsel %vm345, %v3195, -inf
        %v3216 = vsel %vm345, %v3197, -inf
        %v3217 = vsel %vm345, %v3199, -inf
        %v3218 = vsel %vm345, %v3201, -inf
        %v3219 = vsel %vm345, %v3203, -inf
        %v3220 = vmax.f32 %v3124, %v3212
        %v3221 = vmax.f32 %v3125, %v3213
        %v3222 = vmax.f32 %v3126, %v3214
        %v3223 = vmax.f32 %v3127, %v3215
        %v3224 = vmax.f32 %v3128, %v3216
        %v3225 = vmax.f32 %v3129, %v3217
        %v3226 = vmax.f32 %v3130, %v3218
        %v3227 = vmax.f32 %v3131, %v3219
        %3228 = vrot.lane.b32.xlu0 %v2900, 68
        %v3229 = vpop.permute.xlu0 %3228
        %3230 = vrot.lane.b32.xlu0 %v2901, 68
        %v3231 = vpop.permute.xlu0 %3230
        %3232 = vrot.lane.b32.xlu0 %v2902, 68
        %v3233 = vpop.permute.xlu0 %3232
        %3234 = vrot.lane.b32.xlu0 %v2903, 68
        %v3235 = vpop.permute.xlu0 %3234
        %3236 = vrot.lane.b32.xlu0 %v2904, 68
        %v3237 = vpop.permute.xlu0 %3236
        %3238 = vrot.lane.b32.xlu0 %v2905, 68
        %v3239 = vpop.permute.xlu0 %3238
        %3240 = vrot.lane.b32.xlu0 %v2906, 68
        %v3241 = vpop.permute.xlu0 %3240
        %3242 = vrot.lane.b32.xlu0 %v2907, 68
        %v3243 = vpop.permute.xlu0 %3242
        %v3252 = vsel %vm349, %v3229, -inf
        %v3253 = vsel %vm349, %v3231, -inf
        %v3254 = vsel %vm349, %v3233, -inf
        %v3255 = vsel %vm349, %v3235, -inf
        %v3256 = vsel %vm349, %v3237, -inf
        %v3257 = vsel %vm349, %v3239, -inf
        %v3258 = vsel %vm349, %v3241, -inf
        %v3259 = vsel %vm349, %v3243, -inf
        %v3260 = vmax.f32 %v3220, %v3252
        %v3261 = vmax.f32 %v3221, %v3253
        %v3262 = vmax.f32 %v3222, %v3254
        %v3263 = vmax.f32 %v3223, %v3255
        %v3264 = vmax.f32 %v3224, %v3256
        %v3265 = vmax.f32 %v3225, %v3257
        %v3266 = vmax.f32 %v3226, %v3258
        %v3267 = vmax.f32 %v3227, %v3259
        %v3268 = vmax.f32 %v3084, %v3260
        %v3269 = vmax.f32 %v3085, %v3261
        %v3270 = vmax.f32 %v3086, %v3262
        %v3271 = vmax.f32 %v3087, %v3263
        %v3272 = vmax.f32 %v3088, %v3264
        %v3273 = vmax.f32 %v3089, %v3265
        %v3274 = vmax.f32 %v3090, %v3266
        %v3275 = vmax.f32 %v3091, %v3267
        %v3276 = vrot.slane %v3268, 1
        %v3277 = vrot.slane %v3269, 1
        %v3278 = vrot.slane %v3270, 1
        %v3279 = vrot.slane %v3271, 1
        %v3280 = vrot.slane %v3272, 1
        %v3281 = vrot.slane %v3273, 1
        %v3282 = vrot.slane %v3274, 1
        %v3283 = vrot.slane %v3275, 1
        %v3284 = vsel %vm775, %v3282, %v3283
        %v3285 = vsel %vm775, %v3281, %v3282
        %v3286 = vsel %vm775, %v3280, %v3281
        %v3287 = vsel %vm775, %v3279, %v3280
        %v3288 = vsel %vm775, %v3278, %v3279
        %v3289 = vsel %vm775, %v3277, %v3278
        %v3290 = vsel %vm775, %v3276, %v3277
        %v3291 = vsel %vm775, %v3283, %v3276
        %v3292 = vsel %vm158, %v3290, -inf
        %v3293 = vsel %vm159, %v3289, -inf
        %v3294 = vsel %vm160, %v3288, -inf
        %v3295 = vsel %vm161, %v3287, -inf
        %v3296 = vsel %vm162, %v3286, -inf
        %v3297 = vsel %vm163, %v3285, -inf
        %v3298 = vsel %vm164, %v3284, -inf
        %v3299 = vsel %vm165, %v3291, -inf
        %v3300 = vmax.f32 %v3268, %v3292
        %v3301 = vmax.f32 %v3269, %v3293
        %v3302 = vmax.f32 %v3270, %v3294
        %v3303 = vmax.f32 %v3271, %v3295
        %v3304 = vmax.f32 %v3272, %v3296
        %v3305 = vmax.f32 %v3273, %v3297
        %v3306 = vmax.f32 %v3274, %v3298
        %v3307 = vmax.f32 %v3275, %v3299
        %v3308 = vrot.slane %v3300, 2
        %v3309 = vrot.slane %v3301, 2
        %v3310 = vrot.slane %v3302, 2
        %v3311 = vrot.slane %v3303, 2
        %v3312 = vrot.slane %v3304, 2
        %v3313 = vrot.slane %v3305, 2
        %v3314 = vrot.slane %v3306, 2
        %v3315 = vrot.slane %v3307, 2
        %v3316 = vsel %vm808, %v3314, %v3315
        %v3317 = vsel %vm808, %v3313, %v3314
        %v3318 = vsel %vm808, %v3312, %v3313
        %v3319 = vsel %vm808, %v3311, %v3312
        %v3320 = vsel %vm808, %v3310, %v3311
        %v3321 = vsel %vm808, %v3309, %v3310
        %v3322 = vsel %vm808, %v3308, %v3309
        %v3323 = vsel %vm808, %v3315, %v3308
        %v3324 = vsel %vm190, %v3322, -inf
        %v3325 = vsel %vm191, %v3321, -inf
        %v3326 = vsel %vm192, %v3320, -inf
        %v3327 = vsel %vm193, %v3319, -inf
        %v3328 = vsel %vm194, %v3318, -inf
        %v3329 = vsel %vm195, %v3317, -inf
        %v3330 = vsel %vm196, %v3316, -inf
        %v3331 = vsel %vm197, %v3323, -inf
        %v3332 = vmax.f32 %v3300, %v3324
        %v3333 = vmax.f32 %v3301, %v3325
        %v3334 = vmax.f32 %v3302, %v3326
        %v3335 = vmax.f32 %v3303, %v3327
        %v3336 = vmax.f32 %v3304, %v3328
        %v3337 = vmax.f32 %v3305, %v3329
        %v3338 = vmax.f32 %v3306, %v3330
        %v3339 = vmax.f32 %v3307, %v3331
        %v3340 = vrot.slane %v3268, 4
        %v3341 = vrot.slane %v3269, 4
        %v3342 = vrot.slane %v3270, 4
        %v3343 = vrot.slane %v3271, 4
        %v3344 = vrot.slane %v3272, 4
        %v3345 = vrot.slane %v3273, 4
        %v3346 = vrot.slane %v3274, 4
        %v3347 = vrot.slane %v3275, 4
        %v3348 = vsel %vm841, %v3346, %v3347
        %v3349 = vsel %vm841, %v3345, %v3346
        %v3350 = vsel %vm841, %v3344, %v3345
        %v3351 = vsel %vm841, %v3343, %v3344
        %v3352 = vsel %vm841, %v3342, %v3343
        %v3353 = vsel %vm841, %v3341, %v3342
        %v3354 = vsel %vm841, %v3340, %v3341
        %v3355 = vsel %vm841, %v3347, %v3340
        %v3356 = vsel %vm222, %v3354, -inf
        %v3357 = vsel %vm223, %v3353, -inf
        %v3358 = vsel %vm224, %v3352, -inf
        %v3359 = vsel %vm225, %v3351, -inf
        %v3360 = vsel %vm226, %v3350, -inf
        %v3361 = vsel %vm227, %v3349, -inf
        %v3362 = vsel %vm228, %v3348, -inf
        %v3363 = vsel %vm229, %v3355, -inf
        %v3364 = vmax.f32 %v3332, %v3356
        %v3365 = vmax.f32 %v3333, %v3357
        %v3366 = vmax.f32 %v3334, %v3358
        %v3367 = vmax.f32 %v3335, %v3359
        %v3368 = vmax.f32 %v3336, %v3360
        %v3369 = vmax.f32 %v3337, %v3361
        %v3370 = vmax.f32 %v3338, %v3362
        %v3371 = vmax.f32 %v3339, %v3363
        %v3372 = vrot.slane %v3268, 7
        %v3373 = vrot.slane %v3269, 7
        %v3374 = vrot.slane %v3270, 7
        %v3375 = vrot.slane %v3271, 7
        %v3376 = vrot.slane %v3272, 7
        %v3377 = vrot.slane %v3273, 7
        %v3378 = vrot.slane %v3274, 7
        %v3379 = vrot.slane %v3275, 7
        %v3380 = vsel %vm874, %v3378, %v3379
        %v3381 = vsel %vm874, %v3377, %v3378
        %v3382 = vsel %vm874, %v3376, %v3377
        %v3383 = vsel %vm874, %v3375, %v3376
        %v3384 = vsel %vm874, %v3374, %v3375
        %v3385 = vsel %vm874, %v3373, %v3374
        %v3386 = vsel %vm874, %v3372, %v3373
        %v3387 = vsel %vm874, %v3379, %v3372
        %v3388 = vsel %vm254, %v3387, -inf
        %v3389 = vsel %vm255, %v3386, -inf
        %v3390 = vsel %vm256, %v3385, -inf
        %v3391 = vsel %vm257, %v3384, -inf
        %v3392 = vsel %vm258, %v3383, -inf
        %v3393 = vsel %vm259, %v3382, -inf
        %v3394 = vsel %vm260, %v3381, -inf
        %v3395 = vsel %vm261, %v3380, -inf
        %v3396 = vmax.f32 %v3268, %v3388
        %v3397 = vmax.f32 %v3269, %v3389
        %v3398 = vmax.f32 %v3270, %v3390
        %v3399 = vmax.f32 %v3271, %v3391
        %v3400 = vmax.f32 %v3272, %v3392
        %v3401 = vmax.f32 %v3273, %v3393
        %v3402 = vmax.f32 %v3274, %v3394
        %v3403 = vmax.f32 %v3275, %v3395
        %v3404 = vrot.slane %v3396, 6
        %v3405 = vrot.slane %v3397, 6
        %v3406 = vrot.slane %v3398, 6
        %v3407 = vrot.slane %v3399, 6
        %v3408 = vrot.slane %v3400, 6
        %v3409 = vrot.slane %v3401, 6
        %v3410 = vrot.slane %v3402, 6
        %v3411 = vrot.slane %v3403, 6
        %v3412 = vsel %vm907, %v3410, %v3411
        %v3413 = vsel %vm907, %v3409, %v3410
        %v3414 = vsel %vm907, %v3408, %v3409
        %v3415 = vsel %vm907, %v3407, %v3408
        %v3416 = vsel %vm907, %v3406, %v3407
        %v3417 = vsel %vm907, %v3405, %v3406
        %v3418 = vsel %vm907, %v3404, %v3405
        %v3419 = vsel %vm907, %v3411, %v3404
        %v3420 = vsel %vm286, %v3419, -inf
        %v3421 = vsel %vm287, %v3418, -inf
        %v3422 = vsel %vm288, %v3417, -inf
        %v3423 = vsel %vm289, %v3416, -inf
        %v3424 = vsel %vm290, %v3415, -inf
        %v3425 = vsel %vm291, %v3414, -inf
        %v3426 = vsel %vm292, %v3413, -inf
        %v3427 = vsel %vm293, %v3412, -inf
        %v3428 = vmax.f32 %v3396, %v3420
        %v3429 = vmax.f32 %v3397, %v3421
        %v3430 = vmax.f32 %v3398, %v3422
        %v3431 = vmax.f32 %v3399, %v3423
        %v3432 = vmax.f32 %v3400, %v3424
        %v3433 = vmax.f32 %v3401, %v3425
        %v3434 = vmax.f32 %v3402, %v3426
        %v3435 = vmax.f32 %v3403, %v3427
        %v3436 = vsel %vm318, %v3355, -inf
        %v3437 = vsel %vm319, %v3354, -inf
        %v3438 = vsel %vm320, %v3353, -inf
        %v3439 = vsel %vm321, %v3352, -inf
        %v3440 = vsel %vm322, %v3351, -inf
        %v3441 = vsel %vm323, %v3350, -inf
        %v3442 = vsel %vm324, %v3349, -inf
        %v3443 = vsel %vm325, %v3348, -inf
        %v3444 = vmax.f32 %v3428, %v3436
        %v3445 = vmax.f32 %v3429, %v3437
        %v3446 = vmax.f32 %v3430, %v3438
        %v3447 = vmax.f32 %v3431, %v3439
        %v3448 = vmax.f32 %v3432, %v3440
        %v3449 = vmax.f32 %v3433, %v3441
        %v3450 = vmax.f32 %v3434, %v3442
        %v3451 = vmax.f32 %v3435, %v3443
        %v3452 = vmax.f32 %v3364, %v3444
        %v3453 = vmax.f32 %v3365, %v3445
        %v3454 = vmax.f32 %v3366, %v3446
        %v3455 = vmax.f32 %v3367, %v3447
        %v3456 = vmax.f32 %v3368, %v3448
        %v3457 = vmax.f32 %v3369, %v3449
        %v3458 = vmax.f32 %v3370, %v3450
        %v3459 = vmax.f32 %v3371, %v3451
        %vm3460 = vcmp.eq.f32.partialorder %v2852, %v3452
        %vm3461 = vcmp.eq.f32.partialorder %v2853, %v3453
        %vm3462 = vcmp.eq.f32.partialorder %v2854, %v3454
        %vm3463 = vcmp.eq.f32.partialorder %v2855, %v3455
        %vm3464 = vcmp.eq.f32.partialorder %v2856, %v3456
        %vm3465 = vcmp.eq.f32.partialorder %v2857, %v3457
        %vm3466 = vcmp.eq.f32.partialorder %v2858, %v3458
        %vm3467 = vcmp.eq.f32.partialorder %v2859, %v3459
        %vm3468 = vmxor %vm2844, 1
        %vm3469 = vmxor %vm2845, 1
        %vm3470 = vmxor %vm2846, 1
        %vm3471 = vmxor %vm2847, 1
        %vm3472 = vmxor %vm2848, 1
        %vm3473 = vmxor %vm2849, 1
        %vm3474 = vmxor %vm2850, 1
        %vm3475 = vmxor %vm2851, 1
        %vm3476 = vmand %vm3460, %vm3468
        %vm3477 = vmand %vm3461, %vm3469
        %vm3478 = vmand %vm3462, %vm3470
        %vm3479 = vmand %vm3463, %vm3471
        %vm3480 = vmand %vm3464, %vm3472
        %vm3481 = vmand %vm3465, %vm3473
        %vm3482 = vmand %vm3466, %vm3474
        %vm3483 = vmand %vm3467, %vm3475
        %vm3484 = vmor %vm2220, %vm3476
        %vm3485 = vmor %vm2221, %vm3477
        %vm3486 = vmor %vm2222, %vm3478
        %vm3487 = vmor %vm2223, %vm3479
        %vm3488 = vmor %vm2224, %vm3480
        %vm3489 = vmor %vm2225, %vm3481
        %vm3490 = vmor %vm2226, %vm3482
        %vm3491 = vmor %vm2227, %vm3483
        %v3492 = vsel %vm3484, %v115, 0.0
        %v3493 = vsel %vm3485, %v116, 0.0
        %v3494 = vsel %vm3486, %v117, 0.0
        %v3495 = vsel %vm3487, %v118, 0.0
        %v3496 = vsel %vm3488, %v119, 0.0
        %v3497 = vsel %vm3489, %v120, 0.0
        %v3498 = vsel %vm3490, %v121, 0.0
        %v3499 = vsel %vm3491, %v122, 0.0
        %vm3500 = vcmask 523264
        %3501 = vst.msk [vmem:[%s109] sm:$0xff] %vm3500, %v3492
        %3502 = vst.msk [vmem:[%s109 + $0x8] sm:$0xff] %vm3500, %v3493
        %3503 = vst.msk [vmem:[%s109 + $0x10] sm:$0xff] %vm3500, %v3494
        %3504 = vst.msk [vmem:[%s109 + $0x18] sm:$0xff] %vm3500, %v3495
        %3505 = vst.msk [vmem:[%s109 + $0x20] sm:$0xff] %vm3500, %v3496
        %3506 = vst.msk [vmem:[%s109 + $0x28] sm:$0xff] %vm3500, %v3497
        %3507 = vst.msk [vmem:[%s109 + $0x30] sm:$0xff] %vm3500, %v3498
        %3508 = vst.msk [vmem:[%s109 + $0x38] sm:$0xff] %vm3500, %v3499
        %s3509 = sand.u32 %s49, 1
        %s3510 = scalar_lea.sflag [#allocation3], %s3509
        %s3511 = sand.u32 %s49, 1
        %s3512 = smul.addr %s3511, 64
        %s3513 = scalar_lea.vmem [#allocation2], %s3512
        // Predicated region
        $region25: #{detector_head_forward.7} parent=23 // pred_check
          %p3514 = pneg %p59
        $region26: #{detector_head_forward.7} parent=23 // pred_check_branch
          %3516 = sbr.rel (%p3514) target = $region28
        $region27: #{detector_head_forward.7} parent=23 // pred_region
          %3518 = vsyncadd %s3510, 0
          %s3519 = smul.addr %s15, 8
          %s3520 = smul.addr %s3519, 8
          %s3521 = scalar_lea.hbm %s1, %s3520
          %s3522 = sshll.u32 %s3513, 4
          %s3523 = int_to_ptr.vmem [resolvable:$true] %s3522
          %s3524 = sshll.u32 %s3521, 4
          %s3525 = int_to_ptr.hbm [resolvable:$true] %s3524
          %3530 = dma.vmem_to_hbm [thread:$0]  %s3523, 1024, %s3525, %s3510, 128, 128, 8
        $region28: #{detector_head_forward.7} parent=23 // pred_fallthru
          _
      $region24: #{detector_head_forward.7} parent=5 // pred_fallthru
        _
      %p3531 = scmp.le.s32.totalorder 2, %s10
      // Predicated region
      $region29: #{detector_head_forward.7} parent=5 // pred_check
        %p3532 = pneg %p3531
      $region30: #{detector_head_forward.7} parent=5 // pred_check_branch
        %3534 = sbr.rel (%p3532) target = $region32
      $region31: #{detector_head_forward.7} parent=5 // pred_region
        %s3535 = ssub.s32 %s10, 2
        // Predicated region
        $region33: #{detector_head_forward.7} parent=31 // pred_check
          %p3536 = pneg %p65
        $region34: #{detector_head_forward.7} parent=31 // pred_check_branch
          %3538 = sbr.rel (%p3536) target = $region36
        $region35: #{detector_head_forward.7} parent=31 // pred_region
          %s3539 = sand.u32 %s50, 1
          %s3540 = scalar_lea.sflag [#allocation3], %s3539
          %s3541 = sand.u32 %s50, 1
          %s3542 = smul.addr %s3541, 64
          %s3543 = scalar_lea.vmem [#allocation2], %s3542
          %3545 = dma.done %s3540, 1024
        $region36: #{detector_head_forward.7} parent=31 // pred_fallthru
          _
      $region32: #{detector_head_forward.7} parent=5 // pred_fallthru
        _
    $region6: #{detector_head_forward.7} parent=1 // loop_footer
      %s14 = sadd.s32 1, %s10
    $region7: #{detector_head_forward.7} parent=1 // loop_footer_branch
      %9 = sbr.rel target = $region3
    $region8: #{detector_head_forward.7} parent=1 // loop_exit
      _
    %3546 = vsyncpa [#allocation3], 1
    %s3547 = scalar_lea.sflag [#allocation3], 1
    %3548 = vsyncpa %s3547, 1

</llo_original>
